<compile_context>
chip_gen: v7x
topology: tpu7x:2x2x1
jax: 0.10.0
libtpu: 0.0.40
codegen_flags: <defaults>
</compile_context>

<pallas_src>
import jax
import jax.numpy as jnp
from jax import lax
from jax.experimental import pallas as pl
from jax.experimental.pallas import tpu as pltpu

NUM_GROUPS = 32
GN_EPS = 1e-5
MASK_NEG = -1e30   # finite "-inf" for padded KV columns (avoids inf-inf NaNs in the max)


# ------------------------------------------------------------------ kernel A: GN stats
def gn_stats_kernel(x_ref, pool_ref, scat_ref, gamma_ref, beta_ref,
                    scale_ref, shift_ref, sum_sc, ssq_sc):
    hi = pl.program_id(1)

    @pl.when(hi == 0)
    def _():
        sum_sc[...] = jnp.zeros_like(sum_sc)
        ssq_sc[...] = jnp.zeros_like(ssq_sc)

    x = x_ref[0]                                          # (TH, C) f32; padded rows are 0
    sum_sc[...] += jnp.sum(x, axis=0, keepdims=True)
    ssq_sc[...] += jnp.sum(x * x, axis=0, keepdims=True)

    @pl.when(hi == pl.num_programs(1) - 1)
    def _():
        # Group mean / E[x^2] via tiny (C,G) pool + (G,C) broadcast-back matmuls (runs once
        # per batch element, so the M=1 matmul cost is negligible).  pool already divides
        # by the true (unpadded) HW * group_size.
        mean = jnp.dot(jnp.dot(sum_sc[...], pool_ref[...],
                               preferred_element_type=jnp.float32),
                       scat_ref[...], preferred_element_type=jnp.float32)    # (1, C)
        msq = jnp.dot(jnp.dot(ssq_sc[...], pool_ref[...],
                              preferred_element_type=jnp.float32),
                      scat_ref[...], preferred_element_type=jnp.float32)     # (1, C)
        var = jnp.maximum(msq - mean * mean, 0.0)
        scale = gamma_ref[...] * lax.rsqrt(var + GN_EPS)
        shift = beta_ref[...] - mean * scale
        scale_ref[0] = scale
        shift_ref[0] = shift


# ------------------------------------------------------------ kernel B: normalize + QKV
def gn_apply_qkv_kernel(x_ref, scale_ref, shift_ref, wqkv_ref, bqkv_ref, qkv_ref):
    x = x_ref[0]                                          # (TH, C) f32
    h = x * scale_ref[0] + shift_ref[0]                   # GroupNorm affine, f32
    qkv = jnp.dot(h.astype(jnp.bfloat16), wqkv_ref[...],
                  preferred_element_type=jnp.float32) + bqkv_ref[...]
    qkv_ref[0] = qkv.astype(jnp.bfloat16)                 # lane-dense (TH, 3C) store


# ----------------------------------------------------- kernel C: flash attention + out
def flash_attn_kernel(q_ref, k_ref, v_ref, bias_ref, x_ref, wo_ref, bo_ref, o_ref,
                      m_sc, l_sc):
    ki = pl.program_id(2)

    @pl.when(ki == 0)
    def _():
        m_sc[...] = jnp.full_like(m_sc, -jnp.inf)
        l_sc[...] = jnp.zeros_like(l_sc)
        o_ref[...] = jnp.zeros_like(o_ref)                # unnormalized acc lives in o_ref

    q = q_ref[0]                                          # (TQ, C) bf16, pre-scaled 1/sqrt(C)
    k = k_ref[0]                                          # (TK, C) bf16
    # NT dot_general (contract inner dims) -> native transposed-RHS MXU matmul in Mosaic;
    # no per-KV-step k transpose on the XLU.
    s = lax.dot_general(q, k, (((1,), (1,)), ((), ())),
                        preferred_element_type=jnp.float32)       # (TQ, TK) f32
    s = s + bias_ref[...]                                 # mask padded KV columns

    m_prev = m_sc[...]
    m_new = jnp.maximum(m_prev, jnp.max(s, axis=-1, keepdims=True))
    corr = jnp.exp(m_prev - m_new)
    p = jnp.exp(s - m_new)
    l_sc[...] = corr * l_sc[...] + jnp.sum(p, axis=-1, keepdims=True)
    o_ref[0] = corr * o_ref[0] + jnp.dot(p.astype(jnp.bfloat16), v_ref[0],
                                         preferred_element_type=jnp.float32)
    m_sc[...] = m_new

    @pl.when(ki == pl.num_programs(2) - 1)
    def _():
        b = o_ref[0] * pl.reciprocal(l_sc[...], approx=True)      # (TQ, C) f32
        out = jnp.dot(b.astype(jnp.bfloat16), wo_ref[...],
                      preferred_element_type=jnp.float32) + bo_ref[...]
        o_ref[0] = out + x_ref[0]                                 # residual add in f32


# ------------------------------------------------------------------ tiling / HW helpers
def _round_up(a, m):
    return (a + m - 1) // m * m


def _hw_info():
    """(physical VMEM bytes, preferred MXU tile) for the local TPU generation."""
    kind = ""
    try:
        kind = jax.devices()[0].device_kind.lower()
    except Exception:
        pass
    try:
        vmem_cap = int(pltpu.get_tpu_info().vmem_capacity_bytes)
    except Exception:
        vmem_cap = (64 << 20) if "7" in kind else (128 << 20)
    # v2-v5 TensorCores have 128x128 MXUs; v6e / v7x have 256x256 MXUs.
    mxu_tile = 128 if any(v in kind for v in ("v2", "v3", "v4", "v5")) else 256
    return vmem_cap, mxu_tile


def _pick_attn_tile(hw, mxu_tile):
    """Attention tile (TQ=TK): prefer the MXU-native size unless it increases padding."""
    best_tile, best_pad = None, None
    for t in sorted({mxu_tile, 128}, reverse=True):
        pad = _round_up(hw, t)
        if best_pad is None or pad < best_pad:
            best_tile, best_pad = t, pad
    return best_tile, best_pad


def _row_tile(total_rows, bytes_per_row, vmem_budget, cap_rows=2048):
    """Largest multiple of 128 that divides total_rows and fits the VMEM row budget."""
    unit = 128
    max_rows = min(cap_rows, max(unit, vmem_budget // max(1, bytes_per_row)))
    best, t = unit, unit
    while t <= min(total_rows, max_rows):
        if total_rows % t == 0:
            best = t
        t += unit
    return best


def _vmem_limit(pipelined_bytes, resident_bytes, vmem_cap):
    """2x (double buffer) the pipelined blocks + resident weights/scratch, 2x headroom,
    clamped to ~75% of physical VMEM (~96 MiB on v5e/v6e, ~48 MiB on v7x)."""
    need = 2 * pipelined_bytes + resident_bytes
    return int(min(max(2 * need, 32 << 20), (3 * vmem_cap) // 4))


# ------------------------------------------------------------------ wrapper
def self_attention_block(x_nchw, params):
    """x_nchw: (B, C, H, W) float32. Returns (B, C, H, W) float32."""
    B, C, H, W = x_nchw.shape
    HW = H * W
    G = NUM_GROUPS
    assert C % G == 0, "GroupNorm(32, ch) requires ch % 32 == 0"
    # q/k/v column blocks of width C are carved out of the fused (HW, 3C) array, so C must
    # be a lane multiple.  TODO(synk): pad channels to a multiple of 128 for other widths.
    assert C % 128 == 0, "kernel tiling requires ch % 128 == 0"
    gs = C // G

    vmem_cap, mxu_tile = _hw_info()

    # ---- tiling / padding ----
    TQ, HW_pad = _pick_attn_tile(HW, mxu_tile)     # 256 on v6e/v7x, 128 on v5e-class
    TK = TQ
    n_q, n_kv = HW_pad // TQ, HW_pad // TK
    TH_stats = _row_tile(HW_pad, 2 * C * 4, vmem_cap // 4)
    TH_apply = _row_tile(HW_pad, 2 * (C * 4 + 3 * C * 2), vmem_cap // 4)
    n_hs, n_ha = HW_pad // TH_stats, HW_pad // TH_apply

    # ---- layout / parameter prep ----
    x_tok = jnp.transpose(x_nchw, (0, 2, 3, 1)).reshape(B, HW, C)
    if HW_pad != HW:
        x_tok = jnp.pad(x_tok, ((0, 0), (0, HW_pad - HW), (0, 0)))   # zero-padded tokens

    # GroupNorm pooling matrices: (C, G) group-average (divides by TRUE HW*gs) and (G, C).
    grp = jnp.arange(C) // gs
    pool = (grp[:, None] == jnp.arange(G)[None, :]).astype(jnp.float32) / float(HW * gs)
    scat = (jnp.arange(G)[:, None] == grp[None, :]).astype(jnp.float32)
    gamma = params["gamma"].reshape(1, C).astype(jnp.float32)
    beta = params["beta"].reshape(1, C).astype(jnp.float32)

    # conv weights (C_out, C_in, 1, 1) -> (C_in, C_out); fuse q/k/v; fold 1/sqrt(C) into q.
    scale = 1.0 / float(C) ** 0.5
    wq = params["wq"].reshape(C, C).T * scale
    wk = params["wk"].reshape(C, C).T
    wv = params["wv"].reshape(C, C).T
    wqkv = jnp.concatenate([wq, wk, wv], axis=1).astype(jnp.bfloat16)        # (C, 3C)
    bqkv = jnp.concatenate(
        [params["bq"].reshape(1, C) * scale,
         params["bk"].reshape(1, C),
         params["bv"].reshape(1, C)], axis=1).astype(jnp.float32)            # (1, 3C)
    wo = params["wo"].reshape(C, C).T.astype(jnp.bfloat16)
    bo = params["bo"].reshape(1, C).astype(jnp.float32)

    # Additive bias masking padded KV columns (0 for valid, -1e30 for padded).
    kv_bias = jnp.where(jnp.arange(HW_pad) < HW, 0.0, MASK_NEG)
    kv_bias = kv_bias.astype(jnp.float32).reshape(1, HW_pad)

    # ---- kernel A: GroupNorm statistics (HW-tiled, stats carried in VMEM scratch) ----
    # NOTE: parallel extent here is only B; on v7x one TC may idle for this tiny kernel.
    kA_pipe = TH_stats * C * 4 + 2 * C * 4
    kA_res = (C * G + G * C + 4 * C) * 4
    gn_scale, gn_shift = pl.pallas_call(
        gn_stats_kernel,
        out_shape=(jax.ShapeDtypeStruct((B, 1, C), jnp.float32),
                   jax.ShapeDtypeStruct((B, 1, C), jnp.float32)),
        grid=(B, n_hs),
        in_specs=[
            pl.BlockSpec((1, TH_stats, C), lambda b, h: (b, h, 0)),   # x row tile
            pl.BlockSpec((C, G), lambda b, h: (0, 0)),                # pool
            pl.BlockSpec((G, C), lambda b, h: (0, 0)),                # scat
            pl.BlockSpec((1, C), lambda b, h: (0, 0)),                # gamma
            pl.BlockSpec((1, C), lambda b, h: (0, 0)),                # beta
        ],
        out_specs=[pl.BlockSpec((1, 1, C), lambda b, h: (b, 0, 0)),
                   pl.BlockSpec((1, 1, C), lambda b, h: (b, 0, 0))],
        scratch_shapes=[pltpu.VMEM((1, C), jnp.float32),
                        pltpu.VMEM((1, C), jnp.float32)],
        compiler_params=pltpu.CompilerParams(
            dimension_semantics=("parallel", "arbitrary"),
            vmem_limit_bytes=_vmem_limit(kA_pipe, kA_res, vmem_cap)),
    )(x_tok, pool, scat, gamma, beta)

    # ---- kernel B: normalize + fused QKV projection (fully parallel over B x HW tiles) ----
    kB_pipe = TH_apply * C * 4 + TH_apply * 3 * C * 2 + 2 * C * 4
    kB_res = C * 3 * C * 2 + 3 * C * 4
    qkv = pl.pallas_call(
        gn_apply_qkv_kernel,
        out_shape=jax.ShapeDtypeStruct((B, HW_pad, 3 * C), jnp.bfloat16),
        grid=(B, n_ha),
        in_specs=[
            pl.BlockSpec((1, TH_apply, C), lambda b, h: (b, h, 0)),   # x row tile
            pl.BlockSpec((1, 1, C), lambda b, h: (b, 0, 0)),          # scale
            pl.BlockSpec((1, 1, C), lambda b, h: (b, 0, 0)),          # shift
            pl.BlockSpec((C, 3 * C), lambda b, h: (0, 0)),            # wqkv
            pl.BlockSpec((1, 3 * C), lambda b, h: (0, 0)),            # bqkv
        ],
        out_specs=pl.BlockSpec((1, TH_apply, 3 * C), lambda b, h: (b, h, 0)),
        compiler_params=pltpu.CompilerParams(
            dimension_semantics=("parallel", "parallel"),
            vmem_limit_bytes=_vmem_limit(kB_pipe, kB_res, vmem_cap)),
    )(x_tok, gn_scale, gn_shift, wqkv, bqkv)

    # ---- kernel C: flash attention + output projection + residual ----
    # NOTE: k/v BlockSpecs could take pipeline_mode=pl.Buffered(3) if profiling on v5e
    # shows the per-step K/V DMA exposed; on v6e/v7x it is comfortably hidden.
    kC_pipe = (TQ * C * 2 + 2 * TK * C * 2 + TK * 4 + TQ * C * 4 + TQ * C * 4)
    kC_res = C * C * 2 + C * 4 + 2 * TQ * TK * 4 + 2 * TQ * 128 * 4
    out_tok = pl.pallas_call(
        flash_attn_kernel,
        out_shape=jax.ShapeDtypeStruct((B, HW_pad, C), jnp.float32),
        grid=(B, n_q, n_kv),
        in_specs=[
            # q/k/v are three column-block views of the fused (HW_pad, 3C) qkv array.
            pl.BlockSpec((1, TQ, C), lambda b, qi, ki: (b, qi, 0)),   # q  cols [0, C)
            pl.BlockSpec((1, TK, C), lambda b, qi, ki: (b, ki, 1)),   # k  cols [C, 2C)
            pl.BlockSpec((1, TK, C), lambda b, qi, ki: (b, ki, 2)),   # v  cols [2C, 3C)
            pl.BlockSpec((1, TK), lambda b, qi, ki: (0, ki)),         # padded-KV mask bias
            pl.BlockSpec((1, TQ, C), lambda b, qi, ki: (b, qi, 0)),   # x residual tile
            pl.BlockSpec((C, C), lambda b, qi, ki: (0, 0)),           # wo
            pl.BlockSpec((1, C), lambda b, qi, ki: (0, 0)),           # bo
        ],
        out_specs=pl.BlockSpec((1, TQ, C), lambda b, qi, ki: (b, qi, 0)),
        scratch_shapes=[
            pltpu.VMEM((TQ, 1), jnp.float32),   # running max
            pltpu.VMEM((TQ, 1), jnp.float32),   # running denom
        ],
        compiler_params=pltpu.CompilerParams(
            dimension_semantics=("parallel", "parallel", "arbitrary"),
            vmem_limit_bytes=_vmem_limit(kC_pipe, kC_res, vmem_cap)),
    )(qkv, qkv, qkv, kv_bias, x_tok, wo, bo)

    # drop padded tokens, (B, HW, C) -> NCHW
    out_tok = out_tok[:, :HW, :]
    return jnp.transpose(out_tok.reshape(B, H, W, C), (0, 3, 1, 2))


# ------------------------------------------------------------------ reference / params
def ref_forward(x, params):
    B, C, H, W = x.shape
    G = NUM_GROUPS
    xg = x.reshape(B, G, C // G, H, W)
    mean = xg.mean(axis=(2, 3, 4), keepdims=True)
    var = xg.var(axis=(2, 3, 4), keepdims=True)
    h = (xg - mean) * lax.rsqrt(var + GN_EPS)
    h = h.reshape(B, C, H, W) * params["gamma"].reshape(1, C, 1, 1) \
        + params["beta"].reshape(1, C, 1, 1)

    def conv1x1(t, w, b):
        return jnp.einsum("bchw,oc->bohw", t, w.reshape(C, C)) + b.reshape(1, C, 1, 1)

    q = conv1x1(h, params["wq"], params["bq"])
    k = conv1x1(h, params["wk"], params["bk"])
    v = conv1x1(h, params["wv"], params["bv"])
    qf = q.transpose(0, 2, 3, 1).reshape(B, H * W, C)
    kf = k.reshape(B, C, H * W)
    alpha = jax.nn.softmax(jnp.einsum("bqc,bck->bqk", qf, kf) / (C ** 0.5), axis=-1)
    vf = v.transpose(0, 2, 3, 1).reshape(B, H * W, C)
    bimg = jnp.einsum("bqk,bkc->bqc", alpha, vf).reshape(B, H, W, C).transpose(0, 3, 1, 2)
    return conv1x1(bimg, params["wo"], params["bo"]) + x


def init_params(key, ch):
    ks = jax.random.split(key, 8)
    scale = 0.02
    return {
        "gamma": jnp.ones((ch,), jnp.float32),
        "beta": jnp.zeros((ch,), jnp.float32),
        "wq": scale * jax.random.normal(ks[0], (ch, ch, 1, 1), jnp.float32),
        "bq": scale * jax.random.normal(ks[1], (ch,), jnp.float32),
        "wk": scale * jax.random.normal(ks[2], (ch, ch, 1, 1), jnp.float32),
        "bk": scale * jax.random.normal(ks[3], (ch,), jnp.float32),
        "wv": scale * jax.random.normal(ks[4], (ch, ch, 1, 1), jnp.float32),
        "bv": scale * jax.random.normal(ks[5], (ch,), jnp.float32),
        "wo": scale * jax.random.normal(ks[6], (ch, ch, 1, 1), jnp.float32),
        "bo": scale * jax.random.normal(ks[7], (ch,), jnp.float32),
    }


if __name__ == "__main__":
    key = jax.random.PRNGKey(0)
    k_x, k_p, k_x2 = jax.random.split(key, 3)

    # C multiple of 32 (GroupNorm) and of 128 (lane-dense q/k/v column blocks); HW=256.
    B, C, H, W = 2, 128, 16, 16
    x = jax.random.normal(k_x, (B, C, H, W), jnp.float32)
    params = init_params(k_p, C)

    fwd = jax.jit(self_attention_block)
    out = fwd(x, params)
    jax.block_until_ready(out)
    assert out.shape == (B, C, H, W)
    err = float(jnp.max(jnp.abs(out - ref_forward(x, params))))
    assert err < 5e-2, f"max abs err {err}"

    # Odd spatial size exercises the HW-padding / masked-KV path (144 tokens -> 256).
    x2 = jax.random.normal(k_x2, (1, C, 12, 12), jnp.float32)
    out2 = fwd(x2, params)
    jax.block_until_ready(out2)
    err2 = float(jnp.max(jnp.abs(out2 - ref_forward(x2, params))))
    assert err2 < 5e-2, f"max abs err (padded) {err2}"

    print("KERNEL_OK")
</pallas_src>

<mosaic_0001>
module attributes {stable_mosaic.version = 11 : i64} {
  func.func @gn_stats_kernel(%arg0: i32, %arg1: i32, %arg2: memref<1x256x128xf32, #tpu.memory_space<vmem>>, %arg3: memref<128x32xf32, #tpu.memory_space<vmem>>, %arg4: memref<32x128xf32, #tpu.memory_space<vmem>>, %arg5: memref<1x128xf32, #tpu.memory_space<vmem>>, %arg6: memref<1x128xf32, #tpu.memory_space<vmem>>, %arg7: memref<1x1x128xf32, #tpu.memory_space<vmem>>, %arg8: memref<1x1x128xf32, #tpu.memory_space<vmem>>, %arg9: memref<1x128xf32, #tpu.memory_space<vmem>>, %arg10: memref<1x128xf32, #tpu.memory_space<vmem>>) attributes {dimension_semantics = [#tpu.dimension_semantics<parallel>, #tpu.dimension_semantics<arbitrary>], iteration_bounds = array<i64: 2, 1>, scalar_prefetch = 0 : i64, scratch_operands = 2 : i64, tpu.core_type = #tpu.core_type<tc>, window_params = [{transform_indices = @transform_0, window_bounds = array<i64: 1, 256, 128>}, {pipeline_mode = #tpu.pipeline_mode<synchronous>, transform_indices = @transform_1, window_bounds = array<i64: 128, 32>}, {pipeline_mode = #tpu.pipeline_mode<synchronous>, transform_indices = @transform_2, window_bounds = array<i64: 32, 128>}, {pipeline_mode = #tpu.pipeline_mode<synchronous>, transform_indices = @transform_3, window_bounds = array<i64: 1, 128>}, {pipeline_mode = #tpu.pipeline_mode<synchronous>, transform_indices = @transform_4, window_bounds = array<i64: 1, 128>}, {transform_indices = @transform_5, window_bounds = array<i64: 1, 1, 128>}, {transform_indices = @transform_6, window_bounds = array<i64: 1, 1, 128>}]} {
    %c0_i32 = arith.constant 0 : i32
    %0 = arith.cmpi eq, %arg1, %c0_i32 : i32
    %1 = arith.extui %0 : i1 to i32
    %c0_i32_0 = arith.constant 0 : i32
    %2 = arith.cmpi ne, %1, %c0_i32_0 : i32
    scf.if %2 {
      %cst_14 = arith.constant 0.000000e+00 : f32
      %19 = vector.broadcast %cst_14 : f32 to vector<1x128xf32>
      %c0_15 = arith.constant 0 : index
      %c0_16 = arith.constant 0 : index
      %20 = vector.load %arg9[%c0_15, %c0_16] : memref<1x128xf32, #tpu.memory_space<vmem>>, vector<1x128xf32>
      tpu.vector_store %arg9[%c0_15, %c0_16], %19 {strides = array<i32>} : memref<1x128xf32, #tpu.memory_space<vmem>>, vector<1x128xf32>,
      %cst_17 = arith.constant 0.000000e+00 : f32
      %21 = vector.broadcast %cst_17 : f32 to vector<1x128xf32>
      %c0_18 = arith.constant 0 : index
      %c0_19 = arith.constant 0 : index
      %22 = vector.load %arg10[%c0_18, %c0_19] : memref<1x128xf32, #tpu.memory_space<vmem>>, vector<1x128xf32>
      tpu.vector_store %arg10[%c0_18, %c0_19], %21 {strides = array<i32>} : memref<1x128xf32, #tpu.memory_space<vmem>>, vector<1x128xf32>,
    } else {
    }
    %c0 = arith.constant 0 : index
    %c0_1 = arith.constant 0 : index
    %c0_2 = arith.constant 0 : index
    %3 = vector.load %arg2[%c0, %c0_1, %c0_2] : memref<1x256x128xf32, #tpu.memory_space<vmem>>, vector<1x256x128xf32>
    %4 = vector.shape_cast %3 : vector<1x256x128xf32> to vector<256x128xf32>
    %c0_3 = arith.constant 0 : index
    %c0_4 = arith.constant 0 : index
    %5 = vector.load %arg9[%c0_3, %c0_4] : memref<1x128xf32, #tpu.memory_space<vmem>>, vector<1x128xf32>
    %cst = arith.constant dense<0.000000e+00> : vector<128xf32>
    %6 = vector.multi_reduction <add>, %4, %cst [0] : vector<256x128xf32> to vector<128xf32>
    %7 = vector.shape_cast %6 : vector<128xf32> to vector<1x128xf32>
    %8 = arith.addf %5, %7 : vector<1x128xf32>
    %c0_5 = arith.constant 0 : index
    %c0_6 = arith.constant 0 : index
    %9 = vector.load %arg9[%c0_5, %c0_6] : memref<1x128xf32, #tpu.memory_space<vmem>>, vector<1x128xf32>
    tpu.vector_store %arg9[%c0_5, %c0_6], %8 {strides = array<i32>} : memref<1x128xf32, #tpu.memory_space<vmem>>, vector<1x128xf32>,
    %c0_7 = arith.constant 0 : index
    %c0_8 = arith.constant 0 : index
    %10 = vector.load %arg10[%c0_7, %c0_8] : memref<1x128xf32, #tpu.memory_space<vmem>>, vector<1x128xf32>
    %11 = arith.mulf %4, %4 : vector<256x128xf32>
    %cst_9 = arith.constant dense<0.000000e+00> : vector<128xf32>
    %12 = vector.multi_reduction <add>, %11, %cst_9 [0] : vector<256x128xf32> to vector<128xf32>
    %13 = vector.shape_cast %12 : vector<128xf32> to vector<1x128xf32>
    %14 = arith.addf %10, %13 : vector<1x128xf32>
    %c0_10 = arith.constant 0 : index
    %c0_11 = arith.constant 0 : index
    %15 = vector.load %arg10[%c0_10, %c0_11] : memref<1x128xf32, #tpu.memory_space<vmem>>, vector<1x128xf32>
    tpu.vector_store %arg10[%c0_10, %c0_11], %14 {strides = array<i32>} : memref<1x128xf32, #tpu.memory_space<vmem>>, vector<1x128xf32>,
    %c0_i32_12 = arith.constant 0 : i32
    %16 = arith.cmpi eq, %arg1, %c0_i32_12 : i32
    %17 = arith.extui %16 : i1 to i32
    %c0_i32_13 = arith.constant 0 : i32
    %18 = arith.cmpi ne, %17, %c0_i32_13 : i32
    scf.if %18 {
      %c0_14 = arith.constant 0 : index
      %c0_15 = arith.constant 0 : index
      %19 = vector.load %arg9[%c0_14, %c0_15] : memref<1x128xf32, #tpu.memory_space<vmem>>, vector<1x128xf32>
      %c0_16 = arith.constant 0 : index
      %c0_17 = arith.constant 0 : index
      %20 = vector.load %arg3[%c0_16, %c0_17] : memref<128x32xf32, #tpu.memory_space<vmem>>, vector<128x32xf32>
      %cst_18 = arith.constant dense<0.000000e+00> : vector<1x32xf32>
      %21 = tpu.matmul %19, %20, %cst_18 {dimension_numbers = #tpu.dot_dimension_numbers<[1], [0], [0], [1], [0, 0, 1, 1], [], []>} : vector<1x128xf32>, vector<128x32xf32>, vector<1x32xf32> -> vector<1x32xf32>
      %c0_19 = arith.constant 0 : index
      %c0_20 = arith.constant 0 : index
      %22 = vector.load %arg4[%c0_19, %c0_20] : memref<32x128xf32, #tpu.memory_space<vmem>>, vector<32x128xf32>
      %cst_21 = arith.constant dense<0.000000e+00> : vector<1x128xf32>
      %23 = tpu.matmul %21, %22, %cst_21 {dimension_numbers = #tpu.dot_dimension_numbers<[1], [0], [0], [1], [0, 0, 1, 1], [], []>} : vector<1x32xf32>, vector<32x128xf32>, vector<1x128xf32> -> vector<1x128xf32>
      %c0_22 = arith.constant 0 : index
      %c0_23 = arith.constant 0 : index
      %24 = vector.load %arg10[%c0_22, %c0_23] : memref<1x128xf32, #tpu.memory_space<vmem>>, vector<1x128xf32>
      %c0_24 = arith.constant 0 : index
      %c0_25 = arith.constant 0 : index
      %25 = vector.load %arg3[%c0_24, %c0_25] : memref<128x32xf32, #tpu.memory_space<vmem>>, vector<128x32xf32>
      %cst_26 = arith.constant dense<0.000000e+00> : vector<1x32xf32>
      %26 = tpu.matmul %24, %25, %cst_26 {dimension_numbers = #tpu.dot_dimension_numbers<[1], [0], [0], [1], [0, 0, 1, 1], [], []>} : vector<1x128xf32>, vector<128x32xf32>, vector<1x32xf32> -> vector<1x32xf32>
      %c0_27 = arith.constant 0 : index
      %c0_28 = arith.constant 0 : index
      %27 = vector.load %arg4[%c0_27, %c0_28] : memref<32x128xf32, #tpu.memory_space<vmem>>, vector<32x128xf32>
      %cst_29 = arith.constant dense<0.000000e+00> : vector<1x128xf32>
      %28 = tpu.matmul %26, %27, %cst_29 {dimension_numbers = #tpu.dot_dimension_numbers<[1], [0], [0], [1], [0, 0, 1, 1], [], []>} : vector<1x32xf32>, vector<32x128xf32>, vector<1x128xf32> -> vector<1x128xf32>
      %29 = arith.mulf %23, %23 : vector<1x128xf32>
      %30 = arith.subf %28, %29 : vector<1x128xf32>
      %cst_30 = arith.constant 0.000000e+00 : f32
      %31 = vector.broadcast %cst_30 : f32 to vector<1x128xf32>
      %32 = arith.maximumf %30, %31 : vector<1x128xf32>
      %c0_31 = arith.constant 0 : index
      %c0_32 = arith.constant 0 : index
      %33 = vector.load %arg5[%c0_31, %c0_32] : memref<1x128xf32, #tpu.memory_space<vmem>>, vector<1x128xf32>
      %cst_33 = arith.constant 9.99999974E-6 : f32
      %34 = vector.broadcast %cst_33 : f32 to vector<1x128xf32>
      %35 = arith.addf %32, %34 : vector<1x128xf32>
      %36 = math.rsqrt %35 : vector<1x128xf32>
      %37 = arith.mulf %33, %36 : vector<1x128xf32>
      %c0_34 = arith.constant 0 : index
      %c0_35 = arith.constant 0 : index
      %38 = vector.load %arg6[%c0_34, %c0_35] : memref<1x128xf32, #tpu.memory_space<vmem>>, vector<1x128xf32>
      %39 = arith.mulf %23, %37 : vector<1x128xf32>
      %40 = arith.subf %38, %39 : vector<1x128xf32>
      %c0_36 = arith.constant 0 : index
      %c0_37 = arith.constant 0 : index
      %c0_38 = arith.constant 0 : index
      %41 = vector.load %arg7[%c0_36, %c0_37, %c0_38] : memref<1x1x128xf32, #tpu.memory_space<vmem>>, vector<1x1x128xf32>
      %42 = vector.shape_cast %41 : vector<1x1x128xf32> to vector<1x128xf32>
      %43 = vector.shape_cast %37 : vector<1x128xf32> to vector<1x1x128xf32>
      tpu.vector_store %arg7[%c0_36, %c0_37, %c0_38], %43 {strides = array<i32>} : memref<1x1x128xf32, #tpu.memory_space<vmem>>, vector<1x1x128xf32>,
      %c0_39 = arith.constant 0 : index
      %c0_40 = arith.constant 0 : index
      %c0_41 = arith.constant 0 : index
      %44 = vector.load %arg8[%c0_39, %c0_40, %c0_41] : memref<1x1x128xf32, #tpu.memory_space<vmem>>, vector<1x1x128xf32>
      %45 = vector.shape_cast %44 : vector<1x1x128xf32> to vector<1x128xf32>
      %46 = vector.shape_cast %40 : vector<1x128xf32> to vector<1x1x128xf32>
      tpu.vector_store %arg8[%c0_39, %c0_40, %c0_41], %46 {strides = array<i32>} : memref<1x1x128xf32, #tpu.memory_space<vmem>>, vector<1x1x128xf32>,
    } else {
    }
    return
  }
  func.func @transform_0(%arg0: i32, %arg1: i32) -> (i32, i32, i32) {
    %c0_i32 = arith.constant 0 : i32
    %c0_i32_0 = arith.constant 0 : i32
    return %arg0, %arg1, %c0_i32 : i32, i32, i32
  }
  func.func @transform_1(%arg0: i32, %arg1: i32) -> (i32, i32) {
    %c0_i32 = arith.constant 0 : i32
    %c0_i32_0 = arith.constant 0 : i32
    %c0_i32_1 = arith.constant 0 : i32
    return %c0_i32, %c0_i32_0 : i32, i32
  }
  func.func @transform_2(%arg0: i32, %arg1: i32) -> (i32, i32) {
    %c0_i32 = arith.constant 0 : i32
    %c0_i32_0 = arith.constant 0 : i32
    %c0_i32_1 = arith.constant 0 : i32
    return %c0_i32, %c0_i32_0 : i32, i32
  }
  func.func @transform_3(%arg0: i32, %arg1: i32) -> (i32, i32) {
    %c0_i32 = arith.constant 0 : i32
    %c0_i32_0 = arith.constant 0 : i32
    %c0_i32_1 = arith.constant 0 : i32
    return %c0_i32, %c0_i32_0 : i32, i32
  }
  func.func @transform_4(%arg0: i32, %arg1: i32) -> (i32, i32) {
    %c0_i32 = arith.constant 0 : i32
    %c0_i32_0 = arith.constant 0 : i32
    %c0_i32_1 = arith.constant 0 : i32
    return %c0_i32, %c0_i32_0 : i32, i32
  }
  func.func @transform_5(%arg0: i32, %arg1: i32) -> (i32, i32, i32) {
    %c0_i32 = arith.constant 0 : i32
    %c0_i32_0 = arith.constant 0 : i32
    %c0_i32_1 = arith.constant 0 : i32
    return %arg0, %c0_i32, %c0_i32_0 : i32, i32, i32
  }
  func.func @transform_6(%arg0: i32, %arg1: i32) -> (i32, i32, i32) {
    %c0_i32 = arith.constant 0 : i32
    %c0_i32_0 = arith.constant 0 : i32
    %c0_i32_1 = arith.constant 0 : i32
    return %arg0, %c0_i32, %c0_i32_0 : i32, i32, i32
  }
}

module attributes {stable_mosaic.version = 11 : i64} {
  func.func @gn_apply_qkv_kernel(%arg0: i32, %arg1: i32, %arg2: memref<1x256x128xf32, #tpu.memory_space<vmem>>, %arg3: memref<1x1x128xf32, #tpu.memory_space<vmem>>, %arg4: memref<1x1x128xf32, #tpu.memory_space<vmem>>, %arg5: memref<128x384xbf16, #tpu.memory_space<vmem>>, %arg6: memref<1x384xf32, #tpu.memory_space<vmem>>, %arg7: memref<1x256x384xbf16, #tpu.memory_space<vmem>>) attributes {dimension_semantics = [#tpu.dimension_semantics<parallel>, #tpu.dimension_semantics<parallel>], iteration_bounds = array<i64: 2, 1>, scalar_prefetch = 0 : i64, scratch_operands = 0 : i64, tpu.core_type = #tpu.core_type<tc>, window_params = [{transform_indices = @transform_0, window_bounds = array<i64: 1, 256, 128>}, {transform_indices = @transform_1, window_bounds = array<i64: 1, 1, 128>}, {transform_indices = @transform_2, window_bounds = array<i64: 1, 1, 128>}, {pipeline_mode = #tpu.pipeline_mode<synchronous>, transform_indices = @transform_3, window_bounds = array<i64: 128, 384>}, {pipeline_mode = #tpu.pipeline_mode<synchronous>, transform_indices = @transform_4, window_bounds = array<i64: 1, 384>}, {transform_indices = @transform_5, window_bounds = array<i64: 1, 256, 384>}]} {
    %c0 = arith.constant 0 : index
    %c0_0 = arith.constant 0 : index
    %c0_1 = arith.constant 0 : index
    %0 = vector.load %arg2[%c0, %c0_0, %c0_1] : memref<1x256x128xf32, #tpu.memory_space<vmem>>, vector<1x256x128xf32>
    %1 = vector.shape_cast %0 : vector<1x256x128xf32> to vector<256x128xf32>
    %c0_2 = arith.constant 0 : index
    %c0_3 = arith.constant 0 : index
    %c0_4 = arith.constant 0 : index
    %2 = vector.load %arg3[%c0_2, %c0_3, %c0_4] : memref<1x1x128xf32, #tpu.memory_space<vmem>>, vector<1x1x128xf32>
    %3 = vector.shape_cast %2 : vector<1x1x128xf32> to vector<1x128xf32>
    %4 = vector.broadcast %3 : vector<1x128xf32> to vector<256x128xf32>
    %5 = arith.mulf %1, %4 : vector<256x128xf32>
    %c0_5 = arith.constant 0 : index
    %c0_6 = arith.constant 0 : index
    %c0_7 = arith.constant 0 : index
    %6 = vector.load %arg4[%c0_5, %c0_6, %c0_7] : memref<1x1x128xf32, #tpu.memory_space<vmem>>, vector<1x1x128xf32>
    %7 = vector.shape_cast %6 : vector<1x1x128xf32> to vector<1x128xf32>
    %8 = vector.broadcast %7 : vector<1x128xf32> to vector<256x128xf32>
    %9 = arith.addf %5, %8 : vector<256x128xf32>
    %10 = arith.truncf %9 : vector<256x128xf32> to vector<256x128xbf16>
    %c0_8 = arith.constant 0 : index
    %c0_9 = arith.constant 0 : index
    %11 = vector.load %arg5[%c0_8, %c0_9] : memref<128x384xbf16, #tpu.memory_space<vmem>>, vector<128x384xbf16>
    %cst = arith.constant dense<0.000000e+00> : vector<256x384xf32>
    %12 = tpu.matmul %10, %11, %cst {dimension_numbers = #tpu.dot_dimension_numbers<[1], [0], [0], [1], [0, 0, 1, 1], [], []>} : vector<256x128xbf16>, vector<128x384xbf16>, vector<256x384xf32> -> vector<256x384xf32>
    %c0_10 = arith.constant 0 : index
    %c0_11 = arith.constant 0 : index
    %13 = vector.load %arg6[%c0_10, %c0_11] : memref<1x384xf32, #tpu.memory_space<vmem>>, vector<1x384xf32>
    %14 = vector.broadcast %13 : vector<1x384xf32> to vector<256x384xf32>
    %15 = arith.addf %12, %14 : vector<256x384xf32>
    %16 = arith.truncf %15 : vector<256x384xf32> to vector<256x384xbf16>
    %c0_12 = arith.constant 0 : index
    %c0_13 = arith.constant 0 : index
    %c0_14 = arith.constant 0 : index
    %17 = vector.load %arg7[%c0_12, %c0_13, %c0_14] : memref<1x256x384xbf16, #tpu.memory_space<vmem>>, vector<1x256x384xbf16>
    %18 = vector.shape_cast %17 : vector<1x256x384xbf16> to vector<256x384xbf16>
    %19 = vector.shape_cast %16 : vector<256x384xbf16> to vector<1x256x384xbf16>
    tpu.vector_store %arg7[%c0_12, %c0_13, %c0_14], %19 {strides = array<i32>} : memref<1x256x384xbf16, #tpu.memory_space<vmem>>, vector<1x256x384xbf16>,
    return
  }
  func.func @transform_0(%arg0: i32, %arg1: i32) -> (i32, i32, i32) {
    %c0_i32 = arith.constant 0 : i32
    %c0_i32_0 = arith.constant 0 : i32
    return %arg0, %arg1, %c0_i32 : i32, i32, i32
  }
  func.func @transform_1(%arg0: i32, %arg1: i32) -> (i32, i32, i32) {
    %c0_i32 = arith.constant 0 : i32
    %c0_i32_0 = arith.constant 0 : i32
    %c0_i32_1 = arith.constant 0 : i32
    return %arg0, %c0_i32, %c0_i32_0 : i32, i32, i32
  }
  func.func @transform_2(%arg0: i32, %arg1: i32) -> (i32, i32, i32) {
    %c0_i32 = arith.constant 0 : i32
    %c0_i32_0 = arith.constant 0 : i32
    %c0_i32_1 = arith.constant 0 : i32
    return %arg0, %c0_i32, %c0_i32_0 : i32, i32, i32
  }
  func.func @transform_3(%arg0: i32, %arg1: i32) -> (i32, i32) {
    %c0_i32 = arith.constant 0 : i32
    %c0_i32_0 = arith.constant 0 : i32
    %c0_i32_1 = arith.constant 0 : i32
    return %c0_i32, %c0_i32_0 : i32, i32
  }
  func.func @transform_4(%arg0: i32, %arg1: i32) -> (i32, i32) {
    %c0_i32 = arith.constant 0 : i32
    %c0_i32_0 = arith.constant 0 : i32
    %c0_i32_1 = arith.constant 0 : i32
    return %c0_i32, %c0_i32_0 : i32, i32
  }
  func.func @transform_5(%arg0: i32, %arg1: i32) -> (i32, i32, i32) {
    %c0_i32 = arith.constant 0 : i32
    %c0_i32_0 = arith.constant 0 : i32
    return %arg0, %arg1, %c0_i32 : i32, i32, i32
  }
}

module attributes {stable_mosaic.version = 11 : i64} {
  func.func @flash_attn_kernel(%arg0: i32, %arg1: i32, %arg2: i32, %arg3: memref<1x256x128xbf16, #tpu.memory_space<vmem>>, %arg4: memref<1x256x128xbf16, #tpu.memory_space<vmem>>, %arg5: memref<1x256x128xbf16, #tpu.memory_space<vmem>>, %arg6: memref<1x256xf32, #tpu.memory_space<vmem>>, %arg7: memref<1x256x128xf32, #tpu.memory_space<vmem>>, %arg8: memref<128x128xbf16, #tpu.memory_space<vmem>>, %arg9: memref<1x128xf32, #tpu.memory_space<vmem>>, %arg10: memref<1x256x128xf32, #tpu.memory_space<vmem>>, %arg11: memref<256x1xf32, #tpu.memory_space<vmem>>, %arg12: memref<256x1xf32, #tpu.memory_space<vmem>>) attributes {dimension_semantics = [#tpu.dimension_semantics<parallel>, #tpu.dimension_semantics<parallel>, #tpu.dimension_semantics<arbitrary>], iteration_bounds = array<i64: 2, 1, 1>, scalar_prefetch = 0 : i64, scratch_operands = 2 : i64, tpu.core_type = #tpu.core_type<tc>, window_params = [{transform_indices = @transform_0, window_bounds = array<i64: 1, 256, 128>}, {transform_indices = @transform_1, window_bounds = array<i64: 1, 256, 128>}, {transform_indices = @transform_2, window_bounds = array<i64: 1, 256, 128>}, {transform_indices = @transform_3, window_bounds = array<i64: 1, 256>}, {transform_indices = @transform_4, window_bounds = array<i64: 1, 256, 128>}, {pipeline_mode = #tpu.pipeline_mode<synchronous>, transform_indices = @transform_5, window_bounds = array<i64: 128, 128>}, {pipeline_mode = #tpu.pipeline_mode<synchronous>, transform_indices = @transform_6, window_bounds = array<i64: 1, 128>}, {transform_indices = @transform_7, window_bounds = array<i64: 1, 256, 128>}]} {
    %c0_i32 = arith.constant 0 : i32
    %0 = arith.cmpi eq, %arg2, %c0_i32 : i32
    %1 = arith.extui %0 : i1 to i32
    %c0_i32_0 = arith.constant 0 : i32
    %2 = arith.cmpi ne, %1, %c0_i32_0 : i32
    scf.if %2 {
      %cst_30 = arith.constant 0xFF800000 : f32
      %42 = vector.broadcast %cst_30 : f32 to vector<256x1xf32>
      %c0_31 = arith.constant 0 : index
      %c0_32 = arith.constant 0 : index
      %43 = vector.load %arg11[%c0_31, %c0_32] : memref<256x1xf32, #tpu.memory_space<vmem>>, vector<256x1xf32>
      tpu.vector_store %arg11[%c0_31, %c0_32], %42 {strides = array<i32>} : memref<256x1xf32, #tpu.memory_space<vmem>>, vector<256x1xf32>,
      %cst_33 = arith.constant 0.000000e+00 : f32
      %44 = vector.broadcast %cst_33 : f32 to vector<256x1xf32>
      %c0_34 = arith.constant 0 : index
      %c0_35 = arith.constant 0 : index
      %45 = vector.load %arg12[%c0_34, %c0_35] : memref<256x1xf32, #tpu.memory_space<vmem>>, vector<256x1xf32>
      tpu.vector_store %arg12[%c0_34, %c0_35], %44 {strides = array<i32>} : memref<256x1xf32, #tpu.memory_space<vmem>>, vector<256x1xf32>,
      %cst_36 = arith.constant 0.000000e+00 : f32
      %46 = vector.broadcast %cst_36 : f32 to vector<1x256x128xf32>
      %c0_37 = arith.constant 0 : index
      %c0_38 = arith.constant 0 : index
      %c0_39 = arith.constant 0 : index
      %47 = vector.load %arg10[%c0_37, %c0_38, %c0_39] : memref<1x256x128xf32, #tpu.memory_space<vmem>>, vector<1x256x128xf32>
      tpu.vector_store %arg10[%c0_37, %c0_38, %c0_39], %46 {strides = array<i32>} : memref<1x256x128xf32, #tpu.memory_space<vmem>>, vector<1x256x128xf32>,
    } else {
    }
    %c0 = arith.constant 0 : index
    %c0_1 = arith.constant 0 : index
    %c0_2 = arith.constant 0 : index
    %3 = vector.load %arg3[%c0, %c0_1, %c0_2] : memref<1x256x128xbf16, #tpu.memory_space<vmem>>, vector<1x256x128xbf16>
    %4 = vector.shape_cast %3 : vector<1x256x128xbf16> to vector<256x128xbf16>
    %c0_3 = arith.constant 0 : index
    %c0_4 = arith.constant 0 : index
    %c0_5 = arith.constant 0 : index
    %5 = vector.load %arg4[%c0_3, %c0_4, %c0_5] : memref<1x256x128xbf16, #tpu.memory_space<vmem>>, vector<1x256x128xbf16>
    %6 = vector.shape_cast %5 : vector<1x256x128xbf16> to vector<256x128xbf16>
    %cst = arith.constant dense<0.000000e+00> : vector<256x256xf32>
    %7 = tpu.matmul %4, %6, %cst {dimension_numbers = #tpu.dot_dimension_numbers<[1], [1], [0], [0], [0, 0, 1, 0], [], []>} : vector<256x128xbf16>, vector<256x128xbf16>, vector<256x256xf32> -> vector<256x256xf32>
    %c0_6 = arith.constant 0 : index
    %c0_7 = arith.constant 0 : index
    %8 = vector.load %arg6[%c0_6, %c0_7] : memref<1x256xf32, #tpu.memory_space<vmem>>, vector<1x256xf32>
    %9 = vector.broadcast %8 : vector<1x256xf32> to vector<256x256xf32>
    %10 = arith.addf %7, %9 : vector<256x256xf32>
    %c0_8 = arith.constant 0 : index
    %c0_9 = arith.constant 0 : index
    %11 = vector.load %arg11[%c0_8, %c0_9] : memref<256x1xf32, #tpu.memory_space<vmem>>, vector<256x1xf32>
    %cst_10 = arith.constant dense<0xFF800000> : vector<256xf32>
    %12 = vector.multi_reduction <maximumf>, %10, %cst_10 [1] : vector<256x256xf32> to vector<256xf32>
    %13 = vector.shape_cast %12 : vector<256xf32> to vector<256x1xf32>
    %14 = arith.maximumf %11, %13 : vector<256x1xf32>
    %15 = arith.subf %11, %14 : vector<256x1xf32>
    %16 = math.exp %15 : vector<256x1xf32>
    %17 = vector.broadcast %14 : vector<256x1xf32> to vector<256x256xf32>
    %18 = arith.subf %10, %17 : vector<256x256xf32>
    %19 = math.exp %18 : vector<256x256xf32>
    %c0_11 = arith.constant 0 : index
    %c0_12 = arith.constant 0 : index
    %20 = vector.load %arg12[%c0_11, %c0_12] : memref<256x1xf32, #tpu.memory_space<vmem>>, vector<256x1xf32>
    %21 = arith.mulf %16, %20 : vector<256x1xf32>
    %cst_13 = arith.constant dense<0.000000e+00> : vector<256xf32>
    %22 = vector.multi_reduction <add>, %19, %cst_13 [1] : vector<256x256xf32> to vector<256xf32>
    %23 = vector.shape_cast %22 : vector<256xf32> to vector<256x1xf32>
    %24 = arith.addf %21, %23 : vector<256x1xf32>
    %c0_14 = arith.constant 0 : index
    %c0_15 = arith.constant 0 : index
    %25 = vector.load %arg12[%c0_14, %c0_15] : memref<256x1xf32, #tpu.memory_space<vmem>>, vector<256x1xf32>
    tpu.vector_store %arg12[%c0_14, %c0_15], %24 {strides = array<i32>} : memref<256x1xf32, #tpu.memory_space<vmem>>, vector<256x1xf32>,
    %c0_16 = arith.constant 0 : index
    %c0_17 = arith.constant 0 : index
    %c0_18 = arith.constant 0 : index
    %26 = vector.load %arg10[%c0_16, %c0_17, %c0_18] : memref<1x256x128xf32, #tpu.memory_space<vmem>>, vector<1x256x128xf32>
    %27 = vector.shape_cast %26 : vector<1x256x128xf32> to vector<256x128xf32>
    %28 = vector.broadcast %16 : vector<256x1xf32> to vector<256x128xf32>
    %29 = arith.mulf %28, %27 : vector<256x128xf32>
    %30 = arith.truncf %19 : vector<256x256xf32> to vector<256x256xbf16>
    %c0_19 = arith.constant 0 : index
    %c0_20 = arith.constant 0 : index
    %c0_21 = arith.constant 0 : index
    %31 = vector.load %arg5[%c0_19, %c0_20, %c0_21] : memref<1x256x128xbf16, #tpu.memory_space<vmem>>, vector<1x256x128xbf16>
    %32 = vector.shape_cast %31 : vector<1x256x128xbf16> to vector<256x128xbf16>
    %cst_22 = arith.constant dense<0.000000e+00> : vector<256x128xf32>
    %33 = tpu.matmul %30, %32, %cst_22 {dimension_numbers = #tpu.dot_dimension_numbers<[1], [0], [0], [1], [0, 0, 1, 1], [], []>} : vector<256x256xbf16>, vector<256x128xbf16>, vector<256x128xf32> -> vector<256x128xf32>
    %34 = arith.addf %29, %33 : vector<256x128xf32>
    %c0_23 = arith.constant 0 : index
    %c0_24 = arith.constant 0 : index
    %c0_25 = arith.constant 0 : index
    %35 = vector.load %arg10[%c0_23, %c0_24, %c0_25] : memref<1x256x128xf32, #tpu.memory_space<vmem>>, vector<1x256x128xf32>
    %36 = vector.shape_cast %35 : vector<1x256x128xf32> to vector<256x128xf32>
    %37 = vector.shape_cast %34 : vector<256x128xf32> to vector<1x256x128xf32>
    tpu.vector_store %arg10[%c0_23, %c0_24, %c0_25], %37 {strides = array<i32>} : memref<1x256x128xf32, #tpu.memory_space<vmem>>, vector<1x256x128xf32>,
    %c0_26 = arith.constant 0 : index
    %c0_27 = arith.constant 0 : index
    %38 = vector.load %arg11[%c0_26, %c0_27] : memref<256x1xf32, #tpu.memory_space<vmem>>, vector<256x1xf32>
    tpu.vector_store %arg11[%c0_26, %c0_27], %14 {strides = array<i32>} : memref<256x1xf32, #tpu.memory_space<vmem>>, vector<256x1xf32>,
    %c0_i32_28 = arith.constant 0 : i32
    %39 = arith.cmpi eq, %arg2, %c0_i32_28 : i32
    %40 = arith.extui %39 : i1 to i32
    %c0_i32_29 = arith.constant 0 : i32
    %41 = arith.cmpi ne, %40, %c0_i32_29 : i32
    scf.if %41 {
      %c0_30 = arith.constant 0 : index
      %c0_31 = arith.constant 0 : index
      %c0_32 = arith.constant 0 : index
      %42 = vector.load %arg10[%c0_30, %c0_31, %c0_32] : memref<1x256x128xf32, #tpu.memory_space<vmem>>, vector<1x256x128xf32>
      %43 = vector.shape_cast %42 : vector<1x256x128xf32> to vector<256x128xf32>
      %c0_33 = arith.constant 0 : index
      %c0_34 = arith.constant 0 : index
      %44 = vector.load %arg12[%c0_33, %c0_34] : memref<256x1xf32, #tpu.memory_space<vmem>>, vector<256x1xf32>
      %45 = tpu.reciprocal %44 {approx = true} : vector<256x1xf32> -> vector<256x1xf32>
      %46 = vector.broadcast %45 : vector<256x1xf32> to vector<256x128xf32>
      %47 = arith.mulf %43, %46 : vector<256x128xf32>
      %48 = arith.truncf %47 : vector<256x128xf32> to vector<256x128xbf16>
      %c0_35 = arith.constant 0 : index
      %c0_36 = arith.constant 0 : index
      %49 = vector.load %arg8[%c0_35, %c0_36] : memref<128x128xbf16, #tpu.memory_space<vmem>>, vector<128x128xbf16>
      %cst_37 = arith.constant dense<0.000000e+00> : vector<256x128xf32>
      %50 = tpu.matmul %48, %49, %cst_37 {dimension_numbers = #tpu.dot_dimension_numbers<[1], [0], [0], [1], [0, 0, 1, 1], [], []>} : vector<256x128xbf16>, vector<128x128xbf16>, vector<256x128xf32> -> vector<256x128xf32>
      %c0_38 = arith.constant 0 : index
      %c0_39 = arith.constant 0 : index
      %51 = vector.load %arg9[%c0_38, %c0_39] : memref<1x128xf32, #tpu.memory_space<vmem>>, vector<1x128xf32>
      %52 = vector.broadcast %51 : vector<1x128xf32> to vector<256x128xf32>
      %53 = arith.addf %50, %52 : vector<256x128xf32>
      %c0_40 = arith.constant 0 : index
      %c0_41 = arith.constant 0 : index
      %c0_42 = arith.constant 0 : index
      %54 = vector.load %arg7[%c0_40, %c0_41, %c0_42] : memref<1x256x128xf32, #tpu.memory_space<vmem>>, vector<1x256x128xf32>
      %55 = vector.shape_cast %54 : vector<1x256x128xf32> to vector<256x128xf32>
      %56 = arith.addf %53, %55 : vector<256x128xf32>
      %c0_43 = arith.constant 0 : index
      %c0_44 = arith.constant 0 : index
      %c0_45 = arith.constant 0 : index
      %57 = vector.load %arg10[%c0_43, %c0_44, %c0_45] : memref<1x256x128xf32, #tpu.memory_space<vmem>>, vector<1x256x128xf32>
      %58 = vector.shape_cast %57 : vector<1x256x128xf32> to vector<256x128xf32>
      %59 = vector.shape_cast %56 : vector<256x128xf32> to vector<1x256x128xf32>
      tpu.vector_store %arg10[%c0_43, %c0_44, %c0_45], %59 {strides = array<i32>} : memref<1x256x128xf32, #tpu.memory_space<vmem>>, vector<1x256x128xf32>,
    } else {
    }
    return
  }
  func.func @transform_0(%arg0: i32, %arg1: i32, %arg2: i32) -> (i32, i32, i32) {
    %c0_i32 = arith.constant 0 : i32
    %c0_i32_0 = arith.constant 0 : i32
    return %arg0, %arg1, %c0_i32 : i32, i32, i32
  }
  func.func @transform_1(%arg0: i32, %arg1: i32, %arg2: i32) -> (i32, i32, i32) {
    %c1_i32 = arith.constant 1 : i32
    %c0_i32 = arith.constant 0 : i32
    return %arg0, %arg2, %c1_i32 : i32, i32, i32
  }
  func.func @transform_2(%arg0: i32, %arg1: i32, %arg2: i32) -> (i32, i32, i32) {
    %c2_i32 = arith.constant 2 : i32
    %c0_i32 = arith.constant 0 : i32
    return %arg0, %arg2, %c2_i32 : i32, i32, i32
  }
  func.func @transform_3(%arg0: i32, %arg1: i32, %arg2: i32) -> (i32, i32) {
    %c0_i32 = arith.constant 0 : i32
    %c0_i32_0 = arith.constant 0 : i32
    return %c0_i32, %arg2 : i32, i32
  }
  func.func @transform_4(%arg0: i32, %arg1: i32, %arg2: i32) -> (i32, i32, i32) {
    %c0_i32 = arith.constant 0 : i32
    %c0_i32_0 = arith.constant 0 : i32
    return %arg0, %arg1, %c0_i32 : i32, i32, i32
  }
  func.func @transform_5(%arg0: i32, %arg1: i32, %arg2: i32) -> (i32, i32) {
    %c0_i32 = arith.constant 0 : i32
    %c0_i32_0 = arith.constant 0 : i32
    %c0_i32_1 = arith.constant 0 : i32
    return %c0_i32, %c0_i32_0 : i32, i32
  }
  func.func @transform_6(%arg0: i32, %arg1: i32, %arg2: i32) -> (i32, i32) {
    %c0_i32 = arith.constant 0 : i32
    %c0_i32_0 = arith.constant 0 : i32
    %c0_i32_1 = arith.constant 0 : i32
    return %c0_i32, %c0_i32_0 : i32, i32
  }
  func.func @transform_7(%arg0: i32, %arg1: i32, %arg2: i32) -> (i32, i32, i32) {
    %c0_i32 = arith.constant 0 : i32
    %c0_i32_0 = arith.constant 0 : i32
    return %arg0, %arg1, %c0_i32 : i32, i32, i32
  }
}

</mosaic_0001>

<llo_original>
// kernel: self_attention_block.3
$region0: #{self_attention_block.3}
  #allocation0 [shape = 'u32[]', space=smem, size = 0x4, offset = 0x4, fixed_abs, tag = 'smem constant byte address 0x4 - core index']
  #allocation1 [shape = 'u32[144,128]{1,0:T(1,128)}', space=vmem, size = 0x12000, scoped, tag = 'internal scratch']
  #allocation2 [shape = 'f32[1,128]{1,0:T(1,128)}', space=vmem, size = 0x200, scoped, tag = 'scratch operand']
  #allocation3 [shape = 'f32[1,128]{1,0:T(1,128)}', space=vmem, size = 0x200, scoped, tag = 'scratch operand']
  %s0 = inlined_call_operand.vmem [shape: f32[2,256,128], index: 0, kind: input, shape index: {}]
  %s1 = inlined_call_operand.vmem [shape: f32[128,32], index: 1, kind: input, shape index: {}]
  %s2 = inlined_call_operand.vmem [shape: f32[32,128], index: 2, kind: input, shape index: {}]
  %s3 = inlined_call_operand.vmem [shape: f32[1,128], index: 3, kind: input, shape index: {}]
  %s4 = inlined_call_operand.vmem [shape: f32[1,128], index: 4, kind: input, shape index: {}]
  %s5 = inlined_call_operand.vmem [shape: f32[2,1,128], index: 5, kind: output, shape index: {0}]
  %s6 = inlined_call_operand.vmem [shape: f32[2,1,128], index: 6, kind: output, shape index: {1}]
  %7 = xla_tuple %s5, %s6
  %s8 = sld [smem:[#allocation0]]
  $region69: #{self_attention_block.3} parent=0
    _
  %s10 = ssub.s32 1, %s8
  %s11 = scalar_select 0, %s10, %s8
  loop: start=0, step=1, limit=4
  $region2: #{self_attention_block.3} parent=0 // loop_pre_header
    _
  $region3: #{self_attention_block.3} parent=0 // loop_header
    %s13 = sphi 0, %s17
    %p14 = scmp.ge.s32.totalorder %s13, 4
    %s20 = sphi 0, %s32
    %s21 = sphi 0, %s28
    %s22 = sphi 0, %s20
    %s23 = sphi 0, %s21
    %s24 = sphi 0, %s22
    %s25 = sphi 0, %s23
    %s37 = sphi 0, %s39
    %s40 = sphi 0, %s37
    %s41 = sphi 0, %s40
    %s57 = sphi 0, %s41
    %s61 = sphi 0, %s61
    %s63 = sphi 0, %s61
    %s64 = sphi 0, %s63
    %s78 = sphi 0, %s64
    %s82 = sphi 0, %s82
    %s84 = sphi 0, %s82
    %s85 = sphi 0, %s84
    %s99 = sphi 0, %s85
    %s103 = sphi 0, %s103
    %s105 = sphi 0, %s103
    %s106 = sphi 0, %s105
    %s120 = sphi 0, %s106
    %s124 = sphi 0, %s124
    %s126 = sphi 0, %s124
    %s127 = sphi 0, %s126
    %s141 = sphi 0, %s127
    %s147 = sphi 0, %s149
    %s150 = sphi 0, %s147
    %s151 = sphi 0, %s150
    %s167 = sphi 0, %s151
    %s173 = sphi 0, %s175
    %s176 = sphi 0, %s173
    %s177 = sphi 0, %s176
    %s193 = sphi 0, %s177
  $region4: #{self_attention_block.3} parent=0 // loop_header_branch
    %16 = sbr.rel (%p14) target = $region8
  $region5: #{self_attention_block.3} parent=0 // loop_body
    %s18 = ssub.s32 %s13, 1
    %s19 = ssub.s32 %s13, 2
    %s26 = sadd.s32 1, %s21
    %p27 = scmp.ge.s32.totalorder %s26, 1
    %s28 = scalar_select %p27, 0, %s26
    %s29 = sadd.s32 1, %s20
    %s30 = scalar_select %p27, %s29, %s20
    %p31 = scmp.ge.s32.totalorder %s30, 2
    %s32 = scalar_select %p31, 0, %s30
    %s33 = ssub.s32 %s20, %s32
    %s34 = ssub.s32 %s21, %s28
    %s35 = sor.u32 %s33, %s34
    %p36 = scmp.eq.s32.totalorder %s35, 0
    %s38 = sadd.s32 %s37, 1
    %s39 = scalar_select %p36, %s37, %s38
    %p42 = pneg %p36
    %p43 = scmp.eq.s32.totalorder %s13, 1
    %p44 = por %p42, %p43
    %p45 = scmp.ne.s32.totalorder %s37, %s40
    %p46 = scmp.eq.s32.totalorder %s13, 0
    %p47 = por %p45, %p46
    %p48 = scmp.ne.s32.totalorder %s37, %s40
    %p49 = scmp.eq.s32.totalorder %s18, 1
    %p50 = por %p48, %p49
    %p51 = scmp.ne.s32.totalorder %s40, %s41
    %p52 = scmp.eq.s32.totalorder %s18, 0
    %p53 = por %p51, %p52
    %p54 = scmp.ne.s32.totalorder %s40, %s41
    %p55 = scmp.eq.s32.totalorder %s19, 1
    %p56 = por %p54, %p55
    %p58 = scmp.ne.s32.totalorder %s41, %s57
    %p59 = scmp.eq.s32.totalorder %s19, 0
    %p60 = por %p58, %p59
    %s62 = sadd.s32 %s61, 1
    %p65 = scmp.eq.s32.totalorder %s13, 1
    %p66 = scmp.ne.s32.totalorder %s61, %s63
    %p67 = scmp.eq.s32.totalorder %s13, 0
    %p68 = por %p66, %p67
    %p69 = scmp.ne.s32.totalorder %s61, %s63
    %p70 = scmp.eq.s32.totalorder %s18, 1
    %p71 = por %p69, %p70
    %p72 = scmp.ne.s32.totalorder %s63, %s64
    %p73 = scmp.eq.s32.totalorder %s18, 0
    %p74 = por %p72, %p73
    %p75 = scmp.ne.s32.totalorder %s63, %s64
    %p76 = scmp.eq.s32.totalorder %s19, 1
    %p77 = por %p75, %p76
    %p79 = scmp.ne.s32.totalorder %s64, %s78
    %p80 = scmp.eq.s32.totalorder %s19, 0
    %p81 = por %p79, %p80
    %s83 = sadd.s32 %s82, 1
    %p86 = scmp.eq.s32.totalorder %s13, 1
    %p87 = scmp.ne.s32.totalorder %s82, %s84
    %p88 = scmp.eq.s32.totalorder %s13, 0
    %p89 = por %p87, %p88
    %p90 = scmp.ne.s32.totalorder %s82, %s84
    %p91 = scmp.eq.s32.totalorder %s18, 1
    %p92 = por %p90, %p91
    %p93 = scmp.ne.s32.totalorder %s84, %s85
    %p94 = scmp.eq.s32.totalorder %s18, 0
    %p95 = por %p93, %p94
    %p96 = scmp.ne.s32.totalorder %s84, %s85
    %p97 = scmp.eq.s32.totalorder %s19, 1
    %p98 = por %p96, %p97
    %p100 = scmp.ne.s32.totalorder %s85, %s99
    %p101 = scmp.eq.s32.totalorder %s19, 0
    %p102 = por %p100, %p101
    %s104 = sadd.s32 %s103, 1
    %p107 = scmp.eq.s32.totalorder %s13, 1
    %p108 = scmp.ne.s32.totalorder %s103, %s105
    %p109 = scmp.eq.s32.totalorder %s13, 0
    %p110 = por %p108, %p109
    %p111 = scmp.ne.s32.totalorder %s103, %s105
    %p112 = scmp.eq.s32.totalorder %s18, 1
    %p113 = por %p111, %p112
    %p114 = scmp.ne.s32.totalorder %s105, %s106
    %p115 = scmp.eq.s32.totalorder %s18, 0
    %p116 = por %p114, %p115
    %p117 = scmp.ne.s32.totalorder %s105, %s106
    %p118 = scmp.eq.s32.totalorder %s19, 1
    %p119 = por %p117, %p118
    %p121 = scmp.ne.s32.totalorder %s106, %s120
    %p122 = scmp.eq.s32.totalorder %s19, 0
    %p123 = por %p121, %p122
    %s125 = sadd.s32 %s124, 1
    %p128 = scmp.eq.s32.totalorder %s13, 1
    %p129 = scmp.ne.s32.totalorder %s124, %s126
    %p130 = scmp.eq.s32.totalorder %s13, 0
    %p131 = por %p129, %p130
    %p132 = scmp.ne.s32.totalorder %s124, %s126
    %p133 = scmp.eq.s32.totalorder %s18, 1
    %p134 = por %p132, %p133
    %p135 = scmp.ne.s32.totalorder %s126, %s127
    %p136 = scmp.eq.s32.totalorder %s18, 0
    %p137 = por %p135, %p136
    %p138 = scmp.ne.s32.totalorder %s126, %s127
    %p139 = scmp.eq.s32.totalorder %s19, 1
    %p140 = por %p138, %p139
    %p142 = scmp.ne.s32.totalorder %s127, %s141
    %p143 = scmp.eq.s32.totalorder %s19, 0
    %p144 = por %p142, %p143
    %s145 = ssub.s32 %s20, %s32
    %p146 = scmp.eq.s32.totalorder %s145, 0
    %s148 = sadd.s32 %s147, 1
    %s149 = scalar_select %p146, %s147, %s148
    %p152 = pneg %p146
    %p153 = scmp.eq.s32.totalorder %s13, 1
    %p154 = por %p152, %p153
    %p155 = scmp.ne.s32.totalorder %s147, %s150
    %p156 = scmp.eq.s32.totalorder %s13, 0
    %p157 = por %p155, %p156
    %p158 = scmp.ne.s32.totalorder %s147, %s150
    %p159 = scmp.eq.s32.totalorder %s18, 1
    %p160 = por %p158, %p159
    %p161 = scmp.ne.s32.totalorder %s150, %s151
    %p162 = scmp.eq.s32.totalorder %s18, 0
    %p163 = por %p161, %p162
    %p164 = scmp.ne.s32.totalorder %s150, %s151
    %p165 = scmp.eq.s32.totalorder %s19, 1
    %p166 = por %p164, %p165
    %p168 = scmp.ne.s32.totalorder %s151, %s167
    %p169 = scmp.eq.s32.totalorder %s19, 0
    %p170 = por %p168, %p169
    %s171 = ssub.s32 %s20, %s32
    %p172 = scmp.eq.s32.totalorder %s171, 0
    %s174 = sadd.s32 %s173, 1
    %s175 = scalar_select %p172, %s173, %s174
    %p178 = pneg %p172
    %p179 = scmp.eq.s32.totalorder %s13, 1
    %p180 = por %p178, %p179
    %p181 = scmp.ne.s32.totalorder %s173, %s176
    %p182 = scmp.eq.s32.totalorder %s13, 0
    %p183 = por %p181, %p182
    %p184 = scmp.ne.s32.totalorder %s173, %s176
    %p185 = scmp.eq.s32.totalorder %s18, 1
    %p186 = por %p184, %p185
    %p187 = scmp.ne.s32.totalorder %s176, %s177
    %p188 = scmp.eq.s32.totalorder %s18, 0
    %p189 = por %p187, %p188
    %p190 = scmp.ne.s32.totalorder %s176, %s177
    %p191 = scmp.eq.s32.totalorder %s19, 1
    %p192 = por %p190, %p191
    %p194 = scmp.ne.s32.totalorder %s177, %s193
    %p195 = scmp.eq.s32.totalorder %s19, 0
    %p196 = por %p194, %p195
    %p197 = scmp.le.s32.totalorder 1, %s13
    %p198 = scmp.lt.s32.totalorder %s13, 3
    %p199 = pnand %p197, %p198
    %p200 = pneg %p199
    // Predicated region
    $region9: #{self_attention_block.3} parent=5 // pred_check
      _
    $region10: #{self_attention_block.3} parent=5 // pred_check_branch
      %202 = sbr.rel (%p199) target = $region12
    $region11: #{self_attention_block.3} parent=5 // pred_region
      %s203 = ssub.s32 %s13, 1
      // Predicated region
      $region13: #{self_attention_block.3} parent=11 // pred_check
        %p204 = pneg %p74
      $region14: #{self_attention_block.3} parent=11 // pred_check_branch
        %206 = sbr.rel (%p204) target = $region16
      $region15: #{self_attention_block.3} parent=11 // pred_region
        _
      $region16: #{self_attention_block.3} parent=11 // pred_fallthru
        _
      // Predicated region
      $region17: #{self_attention_block.3} parent=11 // pred_check
        %p207 = pneg %p95
      $region18: #{self_attention_block.3} parent=11 // pred_check_branch
        %209 = sbr.rel (%p207) target = $region20
      $region19: #{self_attention_block.3} parent=11 // pred_region
        _
      $region20: #{self_attention_block.3} parent=11 // pred_fallthru
        _
      // Predicated region
      $region21: #{self_attention_block.3} parent=11 // pred_check
        %p210 = pneg %p116
      $region22: #{self_attention_block.3} parent=11 // pred_check_branch
        %212 = sbr.rel (%p210) target = $region24
      $region23: #{self_attention_block.3} parent=11 // pred_region
        _
      $region24: #{self_attention_block.3} parent=11 // pred_fallthru
        _
      // Predicated region
      $region25: #{self_attention_block.3} parent=11 // pred_check
        %p213 = pneg %p137
      $region26: #{self_attention_block.3} parent=11 // pred_check_branch
        %215 = sbr.rel (%p213) target = $region28
      $region27: #{self_attention_block.3} parent=11 // pred_region
        _
      $region28: #{self_attention_block.3} parent=11 // pred_fallthru
        _
    $region12: #{self_attention_block.3} parent=5 // pred_fallthru
      _
    %p216 = scmp.lt.s32.totalorder %s13, 2
    // Predicated region
    $region29: #{self_attention_block.3} parent=5 // pred_check
      %p217 = pneg %p216
    $region30: #{self_attention_block.3} parent=5 // pred_check_branch
      %219 = sbr.rel (%p217) target = $region32
    $region31: #{self_attention_block.3} parent=5 // pred_region
      // Predicated region
      $region33: #{self_attention_block.3} parent=31 // pred_check
        %p220 = pneg %p47
      $region34: #{self_attention_block.3} parent=31 // pred_check_branch
        %222 = sbr.rel (%p220) target = $region36
      $region35: #{self_attention_block.3} parent=31 // pred_region
        %s223 = smul.u32 32, %s21
        %p224 = scmp.lt.s32.totalorder %s20, 1
        %s225 = scalar_select %p224, %s20, 1
        %p226 = scmp.lt.s32.totalorder %s223, 31
        %s227 = scalar_select %p226, %s223, 31
        %s228 = smul.addr %s225, 32
        %s229 = sadd.s32 %s227, %s228
        %s230 = smul.addr %s229, 8
        %s231 = scalar_lea.vmem %s0, %s230
        %s232 = smul.u32 32, %s21
      $region36: #{self_attention_block.3} parent=31 // pred_fallthru
        _
    $region32: #{self_attention_block.3} parent=5 // pred_fallthru
      _
    %p233 = scmp.le.s32.totalorder 1, %s13
    %p234 = scmp.lt.s32.totalorder %s13, 3
    %p235 = pnand %p233, %p234
    %p236 = pneg %p235
    // Predicated region
    $region37: #{self_attention_block.3} parent=5 // pred_check
      _
    $region38: #{self_attention_block.3} parent=5 // pred_check_branch
      %238 = sbr.rel (%p235) target = $region40
    $region39: #{self_attention_block.3} parent=5 // pred_region
      %s239 = ssub.s32 %s13, 1
      %s240 = smul.u32 32, %s23
      %p241 = scmp.lt.s32.totalorder %s22, 1
      %s242 = scalar_select %p241, %s22, 1
      %p243 = scmp.lt.s32.totalorder %s240, 31
      %s244 = scalar_select %p243, %s240, 31
      %s245 = smul.addr %s242, 32
      %s246 = sadd.s32 %s244, %s245
      %s247 = smul.addr %s246, 8
      %s248 = scalar_lea.vmem %s0, %s247
      %p249 = pneg %p53
      %p250 = pneg %p50
      %p251 = pneg %p74
      %p252 = pneg %p71
      %p253 = pneg %p95
      %p254 = pneg %p92
      %p255 = pneg %p116
      %p256 = pneg %p113
      %p257 = pneg %p137
      %p258 = pneg %p134
      %p259 = pneg %p163
      %p260 = pneg %p160
      %p261 = scmp.lt.s32.totalorder %s22, 1
      %s262 = scalar_select %p261, %s22, 1
      %s263 = scalar_lea.vmem %s5, %s262
      %p264 = pneg %p189
      %p265 = pneg %p186
      %p266 = scmp.lt.s32.totalorder %s22, 1
      %s267 = scalar_select %p266, %s22, 1
      %s268 = scalar_lea.vmem %s6, %s267
      %s269 = smul.u32 32, %s23
      %p270 = scmp.lt.s32.totalorder %s22, 1
      %s271 = scalar_select %p270, %s22, 1
      %p272 = scmp.lt.s32.totalorder %s269, 31
      %s273 = scalar_select %p272, %s269, 31
      %s274 = smul.addr %s271, 32
      %s275 = sadd.s32 %s273, %s274
      %s276 = smul.addr %s275, 8
      %s277 = scalar_lea.vmem %s0, %s276
      %s278 = smul.u32 32, %s23
      %p279 = scmp.lt.s32.totalorder %s22, 1
      %s280 = scalar_select %p279, %s22, 1
      %s281 = scalar_lea.vmem %s5, %s280
      %p282 = scmp.lt.s32.totalorder %s22, 1
      %s283 = scalar_select %p282, %s22, 1
      %s284 = scalar_lea.vmem %s6, %s283
      %p285 = scmp.eq.s32.totalorder %s23, 0
      // Predicated region
      $region41: #{self_attention_block.3} parent=39 // pred_check
        %p286 = pneg %p285
      $region42: #{self_attention_block.3} parent=39 // pred_check_branch
        %288 = sbr.rel (%p286) target = $region44
      $region43: #{self_attention_block.3} parent=39 // pred_region
        %289 = vst [vmem:[#allocation2] sm:$0x1] 0.0
        %290 = vst [vmem:[#allocation3] sm:$0x1] 0.0
      $region44: #{self_attention_block.3} parent=39 // pred_fallthru
        _
      %v291 = vld [vmem:[%s277] sm:$0xff]
      %v292 = vld [vmem:[%s277 + $0x8] sm:$0xff]
      %v293 = vld [vmem:[%s277 + $0x10] sm:$0xff]
      %v294 = vld [vmem:[%s277 + $0x18] sm:$0xff]
      %v295 = vld [vmem:[%s277 + $0x20] sm:$0xff]
      %v296 = vld [vmem:[%s277 + $0x28] sm:$0xff]
      %v297 = vld [vmem:[%s277 + $0x30] sm:$0xff]
      %v298 = vld [vmem:[%s277 + $0x38] sm:$0xff]
      %v299 = vld [vmem:[%s277 + $0x40] sm:$0xff]
      %v300 = vld [vmem:[%s277 + $0x48] sm:$0xff]
      %v301 = vld [vmem:[%s277 + $0x50] sm:$0xff]
      %v302 = vld [vmem:[%s277 + $0x58] sm:$0xff]
      %v303 = vld [vmem:[%s277 + $0x60] sm:$0xff]
      %v304 = vld [vmem:[%s277 + $0x68] sm:$0xff]
      %v305 = vld [vmem:[%s277 + $0x70] sm:$0xff]
      %v306 = vld [vmem:[%s277 + $0x78] sm:$0xff]
      %v307 = vld [vmem:[%s277 + $0x80] sm:$0xff]
      %v308 = vld [vmem:[%s277 + $0x88] sm:$0xff]
      %v309 = vld [vmem:[%s277 + $0x90] sm:$0xff]
      %v310 = vld [vmem:[%s277 + $0x98] sm:$0xff]
      %v311 = vld [vmem:[%s277 + $0xa0] sm:$0xff]
      %v312 = vld [vmem:[%s277 + $0xa8] sm:$0xff]
      %v313 = vld [vmem:[%s277 + $0xb0] sm:$0xff]
      %v314 = vld [vmem:[%s277 + $0xb8] sm:$0xff]
      %v315 = vld [vmem:[%s277 + $0xc0] sm:$0xff]
      %v316 = vld [vmem:[%s277 + $0xc8] sm:$0xff]
      %v317 = vld [vmem:[%s277 + $0xd0] sm:$0xff]
      %v318 = vld [vmem:[%s277 + $0xd8] sm:$0xff]
      %v319 = vld [vmem:[%s277 + $0xe0] sm:$0xff]
      %v320 = vld [vmem:[%s277 + $0xe8] sm:$0xff]
      %v321 = vld [vmem:[%s277 + $0xf0] sm:$0xff]
      %v322 = vld [vmem:[%s277 + $0xf8] sm:$0xff]
      %v323 = vld [vmem:[#allocation2] sm:$0x1]
      %v324 = vadd.f32 %v291, %v292
      %v325 = vadd.f32 %v324, %v293
      %v326 = vadd.f32 %v325, %v294
      %v327 = vadd.f32 %v326, %v295
      %v328 = vadd.f32 %v327, %v296
      %v329 = vadd.f32 %v328, %v297
      %v330 = vadd.f32 %v329, %v298
      %v331 = vadd.f32 %v330, %v299
      %v332 = vadd.f32 %v331, %v300
      %v333 = vadd.f32 %v332, %v301
      %v334 = vadd.f32 %v333, %v302
      %v335 = vadd.f32 %v334, %v303
      %v336 = vadd.f32 %v335, %v304
      %v337 = vadd.f32 %v336, %v305
      %v338 = vadd.f32 %v337, %v306
      %v339 = vadd.f32 %v338, %v307
      %v340 = vadd.f32 %v339, %v308
      %v341 = vadd.f32 %v340, %v309
      %v342 = vadd.f32 %v341, %v310
      %v343 = vadd.f32 %v342, %v311
      %v344 = vadd.f32 %v343, %v312
      %v345 = vadd.f32 %v344, %v313
      %v346 = vadd.f32 %v345, %v314
      %v347 = vadd.f32 %v346, %v315
      %v348 = vadd.f32 %v347, %v316
      %v349 = vadd.f32 %v348, %v317
      %v350 = vadd.f32 %v349, %v318
      %v351 = vadd.f32 %v350, %v319
      %v352 = vadd.f32 %v351, %v320
      %v353 = vadd.f32 %v352, %v321
      %v354 = vadd.f32 %v353, %v322
      %v355 = vrot.slane %v354, 4
      %v356 = vadd.f32 %v354, %v355
      %v357 = vrot.slane %v356, 2
      %v358 = vadd.f32 %v356, %v357
      %v359 = vrot.slane %v358, 1
      %v360 = vadd.f32 %v358, %v359
      %v361 = vadd.f32 %v323, %v360
      %362 = vst [vmem:[#allocation2] sm:$0x1] %v361
      %v363 = vld [vmem:[#allocation3] sm:$0x1]
      %v364 = vmul.f32 %v291, %v291
      %v365 = vmul.f32 %v292, %v292
      %v366 = vmul.f32 %v293, %v293
      %v367 = vmul.f32 %v294, %v294
      %v368 = vmul.f32 %v295, %v295
      %v369 = vmul.f32 %v296, %v296
      %v370 = vmul.f32 %v297, %v297
      %v371 = vmul.f32 %v298, %v298
      %v372 = vmul.f32 %v299, %v299
      %v373 = vmul.f32 %v300, %v300
      %v374 = vmul.f32 %v301, %v301
      %v375 = vmul.f32 %v302, %v302
      %v376 = vmul.f32 %v303, %v303
      %v377 = vmul.f32 %v304, %v304
      %v378 = vmul.f32 %v305, %v305
      %v379 = vmul.f32 %v306, %v306
      %v380 = vmul.f32 %v307, %v307
      %v381 = vmul.f32 %v308, %v308
      %v382 = vmul.f32 %v309, %v309
      %v383 = vmul.f32 %v310, %v310
      %v384 = vmul.f32 %v311, %v311
      %v385 = vmul.f32 %v312, %v312
      %v386 = vmul.f32 %v313, %v313
      %v387 = vmul.f32 %v314, %v314
      %v388 = vmul.f32 %v315, %v315
      %v389 = vmul.f32 %v316, %v316
      %v390 = vmul.f32 %v317, %v317
      %v391 = vmul.f32 %v318, %v318
      %v392 = vmul.f32 %v319, %v319
      %v393 = vmul.f32 %v320, %v320
      %v394 = vmul.f32 %v321, %v321
      %v395 = vmul.f32 %v322, %v322
      %v396 = vadd.f32 %v364, %v365
      %v397 = vadd.f32 %v396, %v366
      %v398 = vadd.f32 %v397, %v367
      %v399 = vadd.f32 %v398, %v368
      %v400 = vadd.f32 %v399, %v369
      %v401 = vadd.f32 %v400, %v370
      %v402 = vadd.f32 %v401, %v371
      %v403 = vadd.f32 %v402, %v372
      %v404 = vadd.f32 %v403, %v373
      %v405 = vadd.f32 %v404, %v374
      %v406 = vadd.f32 %v405, %v375
      %v407 = vadd.f32 %v406, %v376
      %v408 = vadd.f32 %v407, %v377
      %v409 = vadd.f32 %v408, %v378
      %v410 = vadd.f32 %v409, %v379
      %v411 = vadd.f32 %v410, %v380
      %v412 = vadd.f32 %v411, %v381
      %v413 = vadd.f32 %v412, %v382
      %v414 = vadd.f32 %v413, %v383
      %v415 = vadd.f32 %v414, %v384
      %v416 = vadd.f32 %v415, %v385
      %v417 = vadd.f32 %v416, %v386
      %v418 = vadd.f32 %v417, %v387
      %v419 = vadd.f32 %v418, %v388
      %v420 = vadd.f32 %v419, %v389
      %v421 = vadd.f32 %v420, %v390
      %v422 = vadd.f32 %v421, %v391
      %v423 = vadd.f32 %v422, %v392
      %v424 = vadd.f32 %v423, %v393
      %v425 = vadd.f32 %v424, %v394
      %v426 = vadd.f32 %v425, %v395
      %v427 = vrot.slane %v426, 4
      %v428 = vadd.f32 %v426, %v427
      %v429 = vrot.slane %v428, 2
      %v430 = vadd.f32 %v428, %v429
      %v431 = vrot.slane %v430, 1
      %v432 = vadd.f32 %v430, %v431
      %v433 = vadd.f32 %v363, %v432
      %434 = vst [vmem:[#allocation3] sm:$0x1] %v433
      // Predicated region
      $region45: #{self_attention_block.3} parent=39 // pred_check
        %p435 = pneg %p285
      $region46: #{self_attention_block.3} parent=39 // pred_check_branch
        %437 = sbr.rel (%p435) target = $region48
      $region47: #{self_attention_block.3} parent=39 // pred_region
        %v438 = vld [vmem:[#allocation2] sm:$0x1]
        %v439 = vld [vmem:[%s1] sm:$0xff]
        %v440 = vld [vmem:[%s1 + $0x8] sm:$0xff]
        %v441 = vld [vmem:[%s1 + $0x10] sm:$0xff]
        %v442 = vld [vmem:[%s1 + $0x18] sm:$0xff]
        %v443 = vld [vmem:[%s1 + $0x20] sm:$0xff]
        %v444 = vld [vmem:[%s1 + $0x28] sm:$0xff]
        %v445 = vld [vmem:[%s1 + $0x30] sm:$0xff]
        %v446 = vld [vmem:[%s1 + $0x38] sm:$0xff]
        %v447 = vld [vmem:[%s1 + $0x40] sm:$0xff]
        %v448 = vld [vmem:[%s1 + $0x48] sm:$0xff]
        %v449 = vld [vmem:[%s1 + $0x50] sm:$0xff]
        %v450 = vld [vmem:[%s1 + $0x58] sm:$0xff]
        %v451 = vld [vmem:[%s1 + $0x60] sm:$0xff]
        %v452 = vld [vmem:[%s1 + $0x68] sm:$0xff]
        %v453 = vld [vmem:[%s1 + $0x70] sm:$0xff]
        %v454 = vld [vmem:[%s1 + $0x78] sm:$0xff]
        %455 = vmatprep.subr.mxu0 0.0
        %456 = vmatpush1.msra.mxu0 %v439
        %457 = vmatprep.subr.mxu0 0.0
        %458 = vmatpush1.msra.mxu0 %v440
        %459 = vmatprep.subr.mxu0 0.0
        %460 = vmatpush1.msra.mxu0 %v441
        %461 = vmatprep.subr.mxu0 0.0
        %462 = vmatpush1.msra.mxu0 %v442
        %463 = vmatprep.subr.mxu0 0.0
        %464 = vmatpush1.msra.mxu0 %v443
        %465 = vmatprep.subr.mxu0 0.0
        %466 = vmatpush1.msra.mxu0 %v444
        %467 = vmatprep.subr.mxu0 0.0
        %468 = vmatpush1.msra.mxu0 %v445
        %469 = vmatprep.subr.mxu0 0.0
        %470 = vmatpush1.msra.mxu0 %v446
        %471 = vmatprep.subr.mxu0 0.0
        %472 = vmatpush1.msra.mxu0 %v447
        %473 = vmatprep.subr.mxu0 0.0
        %474 = vmatpush1.msra.mxu0 %v448
        %475 = vmatprep.subr.mxu0 0.0
        %476 = vmatpush1.msra.mxu0 %v449
        %477 = vmatprep.subr.mxu0 0.0
        %478 = vmatpush1.msra.mxu0 %v450
        %479 = vmatprep.subr.mxu0 0.0
        %480 = vmatpush1.msra.mxu0 %v451
        %481 = vmatprep.subr.mxu0 0.0
        %482 = vmatpush1.msra.mxu0 %v452
        %483 = vmatprep.subr.mxu0 0.0
        %484 = vmatpush1.msra.mxu0 %v453
        %485 = vmatprep.subr.mxu0 0.0
        %486 = vmatpush1.msra.mxu0 %v454
        %487 = vmatprep.subr.mxu0 0.0
        %488 = vmatpush1.msra.mxu0 0.0
        %489 = vmatprep.subr.mxu0 0.0
        %490 = vmatpush1.msra.mxu0 0.0
        %491 = vmatprep.subr.mxu0 0.0
        %492 = vmatpush1.msra.mxu0 0.0
        %493 = vmatprep.subr.mxu0 0.0
        %494 = vmatpush1.msra.mxu0 0.0
        %495 = vmatprep.subr.mxu0 0.0
        %496 = vmatpush1.msra.mxu0 0.0
        %497 = vmatprep.subr.mxu0 0.0
        %498 = vmatpush1.msra.mxu0 0.0
        %499 = vmatprep.subr.mxu0 0.0
        %500 = vmatpush1.msra.mxu0 0.0
        %501 = vmatprep.subr.mxu0 0.0
        %502 = vmatpush1.msra.mxu0 0.0
        %503 = vmatprep.subr.mxu0 0.0
        %504 = vmatpush1.msra.mxu0 0.0
        %505 = vmatprep.subr.mxu0 0.0
        %506 = vmatpush1.msra.mxu0 0.0
        %507 = vmatprep.subr.mxu0 0.0
        %508 = vmatpush1.msra.mxu0 0.0
        %509 = vmatprep.subr.mxu0 0.0
        %510 = vmatpush1.msra.mxu0 0.0
        %511 = vmatprep.subr.mxu0 0.0
        %512 = vmatpush1.msra.mxu0 0.0
        %513 = vmatprep.subr.mxu0 0.0
        %514 = vmatpush1.msra.mxu0 0.0
        %515 = vmatprep.subr.mxu0 0.0
        %516 = vmatpush1.msra.mxu0 0.0
        %517 = vmatprep.subr.mxu0 0.0
        %518 = vmatpush1.msra.mxu0 0.0
        %519 = vmatprep.mubr.f32.mxu0 0.0
        %520 = vmatmul.mubr.f32.gmra.mrb[0].mxu0 %v438
        %v521 = vpop.f32.mrb[0].mxu0
        %v522 = vadd.f32 0.0, %v521
        %v523 = vpop.f32.mrb[0].mxu0
        %524 = vdwg.mxu0
        %v525 = vld [vmem:[%s2] sm:$0xff]
        %v526 = vld [vmem:[%s2 + $0x8] sm:$0xff]
        %v527 = vld [vmem:[%s2 + $0x10] sm:$0xff]
        %v528 = vld [vmem:[%s2 + $0x18] sm:$0xff]
        %vm529 = vcmask 261120
        %v531 = vsel %vm529, %v522, 0
        %533 = vmatprep.subr.mxu0 0.0
        %534 = vmatpush1.msra.mxu0 %v525
        %535 = vmatprep.subr.mxu0 0.0
        %536 = vmatpush1.msra.mxu0 %v526
        %537 = vmatprep.subr.mxu0 0.0
        %538 = vmatpush1.msra.mxu0 %v527
        %539 = vmatprep.subr.mxu0 0.0
        %540 = vmatpush1.msra.mxu0 %v528
        %541 = vmatprep.subr.mxu0 0.0
        %542 = vmatpush1.msra.mxu0 0.0
        %543 = vmatprep.subr.mxu0 0.0
        %544 = vmatpush1.msra.mxu0 0.0
        %545 = vmatprep.subr.mxu0 0.0
        %546 = vmatpush1.msra.mxu0 0.0
        %547 = vmatprep.subr.mxu0 0.0
        %548 = vmatpush1.msra.mxu0 0.0
        %549 = vmatprep.subr.mxu0 0.0
        %550 = vmatpush1.msra.mxu0 0.0
        %551 = vmatprep.subr.mxu0 0.0
        %552 = vmatpush1.msra.mxu0 0.0
        %553 = vmatprep.subr.mxu0 0.0
        %554 = vmatpush1.msra.mxu0 0.0
        %555 = vmatprep.subr.mxu0 0.0
        %556 = vmatpush1.msra.mxu0 0.0
        %557 = vmatprep.subr.mxu0 0.0
        %558 = vmatpush1.msra.mxu0 0.0
        %559 = vmatprep.subr.mxu0 0.0
        %560 = vmatpush1.msra.mxu0 0.0
        %561 = vmatprep.subr.mxu0 0.0
        %562 = vmatpush1.msra.mxu0 0.0
        %563 = vmatprep.subr.mxu0 0.0
        %564 = vmatpush1.msra.mxu0 0.0
        %565 = vmatprep.subr.mxu0 0.0
        %566 = vmatpush1.msra.mxu0 0.0
        %567 = vmatprep.subr.mxu0 0.0
        %568 = vmatpush1.msra.mxu0 0.0
        %569 = vmatprep.subr.mxu0 0.0
        %570 = vmatpush1.msra.mxu0 0.0
        %571 = vmatprep.subr.mxu0 0.0
        %572 = vmatpush1.msra.mxu0 0.0
        %573 = vmatprep.subr.mxu0 0.0
        %574 = vmatpush1.msra.mxu0 0.0
        %575 = vmatprep.subr.mxu0 0.0
        %576 = vmatpush1.msra.mxu0 0.0
        %577 = vmatprep.subr.mxu0 0.0
        %578 = vmatpush1.msra.mxu0 0.0
        %579 = vmatprep.subr.mxu0 0.0
        %580 = vmatpush1.msra.mxu0 0.0
        %581 = vmatprep.subr.mxu0 0.0
        %582 = vmatpush1.msra.mxu0 0.0
        %583 = vmatprep.subr.mxu0 0.0
        %584 = vmatpush1.msra.mxu0 0.0
        %585 = vmatprep.subr.mxu0 0.0
        %586 = vmatpush1.msra.mxu0 0.0
        %587 = vmatprep.subr.mxu0 0.0
        %588 = vmatpush1.msra.mxu0 0.0
        %589 = vmatprep.subr.mxu0 0.0
        %590 = vmatpush1.msra.mxu0 0.0
        %591 = vmatprep.subr.mxu0 0.0
        %592 = vmatpush1.msra.mxu0 0.0
        %593 = vmatprep.subr.mxu0 0.0
        %594 = vmatpush1.msra.mxu0 0.0
        %595 = vmatprep.subr.mxu0 0.0
        %596 = vmatpush1.msra.mxu0 0.0
        %597 = vmatprep.mubr.f32.mxu0 0.0
        %598 = vmatmul.mubr.f32.gmra.mrb[0].mxu0 %v531
        %v599 = vpop.f32.mrb[0].mxu0
        %v600 = vadd.f32 0.0, %v599
        %v601 = vpop.f32.mrb[0].mxu0
        %602 = vdwg.mxu0
        %v603 = vld [vmem:[#allocation3] sm:$0x1]
        %604 = vmatprep.subr.mxu0 0.0
        %605 = vmatpush1.msra.mxu0 %v439
        %606 = vmatprep.subr.mxu0 0.0
        %607 = vmatpush1.msra.mxu0 %v440
        %608 = vmatprep.subr.mxu0 0.0
        %609 = vmatpush1.msra.mxu0 %v441
        %610 = vmatprep.subr.mxu0 0.0
        %611 = vmatpush1.msra.mxu0 %v442
        %612 = vmatprep.subr.mxu0 0.0
        %613 = vmatpush1.msra.mxu0 %v443
        %614 = vmatprep.subr.mxu0 0.0
        %615 = vmatpush1.msra.mxu0 %v444
        %616 = vmatprep.subr.mxu0 0.0
        %617 = vmatpush1.msra.mxu0 %v445
        %618 = vmatprep.subr.mxu0 0.0
        %619 = vmatpush1.msra.mxu0 %v446
        %620 = vmatprep.subr.mxu0 0.0
        %621 = vmatpush1.msra.mxu0 %v447
        %622 = vmatprep.subr.mxu0 0.0
        %623 = vmatpush1.msra.mxu0 %v448
        %624 = vmatprep.subr.mxu0 0.0
        %625 = vmatpush1.msra.mxu0 %v449
        %626 = vmatprep.subr.mxu0 0.0
        %627 = vmatpush1.msra.mxu0 %v450
        %628 = vmatprep.subr.mxu0 0.0
        %629 = vmatpush1.msra.mxu0 %v451
        %630 = vmatprep.subr.mxu0 0.0
        %631 = vmatpush1.msra.mxu0 %v452
        %632 = vmatprep.subr.mxu0 0.0
        %633 = vmatpush1.msra.mxu0 %v453
        %634 = vmatprep.subr.mxu0 0.0
        %635 = vmatpush1.msra.mxu0 %v454
        %636 = vmatprep.subr.mxu0 0.0
        %637 = vmatpush1.msra.mxu0 0.0
        %638 = vmatprep.subr.mxu0 0.0
        %639 = vmatpush1.msra.mxu0 0.0
        %640 = vmatprep.subr.mxu0 0.0
        %641 = vmatpush1.msra.mxu0 0.0
        %642 = vmatprep.subr.mxu0 0.0
        %643 = vmatpush1.msra.mxu0 0.0
        %644 = vmatprep.subr.mxu0 0.0
        %645 = vmatpush1.msra.mxu0 0.0
        %646 = vmatprep.subr.mxu0 0.0
        %647 = vmatpush1.msra.mxu0 0.0
        %648 = vmatprep.subr.mxu0 0.0
        %649 = vmatpush1.msra.mxu0 0.0
        %650 = vmatprep.subr.mxu0 0.0
        %651 = vmatpush1.msra.mxu0 0.0
        %652 = vmatprep.subr.mxu0 0.0
        %653 = vmatpush1.msra.mxu0 0.0
        %654 = vmatprep.subr.mxu0 0.0
        %655 = vmatpush1.msra.mxu0 0.0
        %656 = vmatprep.subr.mxu0 0.0
        %657 = vmatpush1.msra.mxu0 0.0
        %658 = vmatprep.subr.mxu0 0.0
        %659 = vmatpush1.msra.mxu0 0.0
        %660 = vmatprep.subr.mxu0 0.0
        %661 = vmatpush1.msra.mxu0 0.0
        %662 = vmatprep.subr.mxu0 0.0
        %663 = vmatpush1.msra.mxu0 0.0
        %664 = vmatprep.subr.mxu0 0.0
        %665 = vmatpush1.msra.mxu0 0.0
        %666 = vmatprep.subr.mxu0 0.0
        %667 = vmatpush1.msra.mxu0 0.0
        %668 = vmatprep.mubr.f32.mxu0 0.0
        %669 = vmatmul.mubr.f32.gmra.mrb[0].mxu0 %v603
        %v670 = vpop.f32.mrb[0].mxu0
        %v671 = vadd.f32 0.0, %v670
        %v672 = vpop.f32.mrb[0].mxu0
        %673 = vdwg.mxu0
        %v675 = vsel %vm529, %v671, 0
        %677 = vmatprep.subr.mxu0 0.0
        %678 = vmatpush1.msra.mxu0 %v525
        %679 = vmatprep.subr.mxu0 0.0
        %680 = vmatpush1.msra.mxu0 %v526
        %681 = vmatprep.subr.mxu0 0.0
        %682 = vmatpush1.msra.mxu0 %v527
        %683 = vmatprep.subr.mxu0 0.0
        %684 = vmatpush1.msra.mxu0 %v528
        %685 = vmatprep.subr.mxu0 0.0
        %686 = vmatpush1.msra.mxu0 0.0
        %687 = vmatprep.subr.mxu0 0.0
        %688 = vmatpush1.msra.mxu0 0.0
        %689 = vmatprep.subr.mxu0 0.0
        %690 = vmatpush1.msra.mxu0 0.0
        %691 = vmatprep.subr.mxu0 0.0
        %692 = vmatpush1.msra.mxu0 0.0
        %693 = vmatprep.subr.mxu0 0.0
        %694 = vmatpush1.msra.mxu0 0.0
        %695 = vmatprep.subr.mxu0 0.0
        %696 = vmatpush1.msra.mxu0 0.0
        %697 = vmatprep.subr.mxu0 0.0
        %698 = vmatpush1.msra.mxu0 0.0
        %699 = vmatprep.subr.mxu0 0.0
        %700 = vmatpush1.msra.mxu0 0.0
        %701 = vmatprep.subr.mxu0 0.0
        %702 = vmatpush1.msra.mxu0 0.0
        %703 = vmatprep.subr.mxu0 0.0
        %704 = vmatpush1.msra.mxu0 0.0
        %705 = vmatprep.subr.mxu0 0.0
        %706 = vmatpush1.msra.mxu0 0.0
        %707 = vmatprep.subr.mxu0 0.0
        %708 = vmatpush1.msra.mxu0 0.0
        %709 = vmatprep.subr.mxu0 0.0
        %710 = vmatpush1.msra.mxu0 0.0
        %711 = vmatprep.subr.mxu0 0.0
        %712 = vmatpush1.msra.mxu0 0.0
        %713 = vmatprep.subr.mxu0 0.0
        %714 = vmatpush1.msra.mxu0 0.0
        %715 = vmatprep.subr.mxu0 0.0
        %716 = vmatpush1.msra.mxu0 0.0
        %717 = vmatprep.subr.mxu0 0.0
        %718 = vmatpush1.msra.mxu0 0.0
        %719 = vmatprep.subr.mxu0 0.0
        %720 = vmatpush1.msra.mxu0 0.0
        %721 = vmatprep.subr.mxu0 0.0
        %722 = vmatpush1.msra.mxu0 0.0
        %723 = vmatprep.subr.mxu0 0.0
        %724 = vmatpush1.msra.mxu0 0.0
        %725 = vmatprep.subr.mxu0 0.0
        %726 = vmatpush1.msra.mxu0 0.0
        %727 = vmatprep.subr.mxu0 0.0
        %728 = vmatpush1.msra.mxu0 0.0
        %729 = vmatprep.subr.mxu0 0.0
        %730 = vmatpush1.msra.mxu0 0.0
        %731 = vmatprep.subr.mxu0 0.0
        %732 = vmatpush1.msra.mxu0 0.0
        %733 = vmatprep.subr.mxu0 0.0
        %734 = vmatpush1.msra.mxu0 0.0
        %735 = vmatprep.subr.mxu0 0.0
        %736 = vmatpush1.msra.mxu0 0.0
        %737 = vmatprep.subr.mxu0 0.0
        %738 = vmatpush1.msra.mxu0 0.0
        %739 = vmatprep.subr.mxu0 0.0
        %740 = vmatpush1.msra.mxu0 0.0
        %741 = vmatprep.mubr.f32.mxu0 0.0
        %742 = vmatmul.mubr.f32.gmra.mrb[0].mxu0 %v675
        %v743 = vpop.f32.mrb[0].mxu0
        %v744 = vadd.f32 0.0, %v743
        %v745 = vpop.f32.mrb[0].mxu0
        %746 = vdwg.mxu0
        %v747 = vmul.f32 %v600, %v600
        %v748 = vsub.f32 %v744, %v747
        %v749 = vmax.f32 %v748, 0.0
        %v750 = vld [vmem:[%s3] sm:$0x1]
        %v751 = vadd.f32 %v749, 1e-05
        %v752 = vrsqrt.pop %v751
        %v753 = vmul.f32 %v750, %v752
        %v754 = vld [vmem:[%s4] sm:$0x1]
        %v755 = vmul.f32 %v600, %v753
        %v756 = vsub.f32 %v754, %v755
        %757 = vst [vmem:[%s281] sm:$0x1] %v753
        %758 = vst [vmem:[%s284] sm:$0x1] %v756
      $region48: #{self_attention_block.3} parent=39 // pred_fallthru
        _
      %p759 = scmp.lt.s32.totalorder %s22, 1
      %s760 = scalar_select %p759, %s22, 1
      %s761 = scalar_lea.vmem %s5, %s760
      %p762 = scmp.lt.s32.totalorder %s22, 1
      %s763 = scalar_select %p762, %s22, 1
      %s764 = scalar_lea.vmem %s6, %s763
      // Predicated region
      $region49: #{self_attention_block.3} parent=39 // pred_check
        %p765 = pneg %p160
      $region50: #{self_attention_block.3} parent=39 // pred_check_branch
        %767 = sbr.rel (%p765) target = $region52
      $region51: #{self_attention_block.3} parent=39 // pred_region
        _
      $region52: #{self_attention_block.3} parent=39 // pred_fallthru
        _
      // Predicated region
      $region53: #{self_attention_block.3} parent=39 // pred_check
        %p768 = pneg %p186
      $region54: #{self_attention_block.3} parent=39 // pred_check_branch
        %770 = sbr.rel (%p768) target = $region56
      $region55: #{self_attention_block.3} parent=39 // pred_region
        _
      $region56: #{self_attention_block.3} parent=39 // pred_fallthru
        _
    $region40: #{self_attention_block.3} parent=5 // pred_fallthru
      _
    %p771 = scmp.le.s32.totalorder 2, %s13
    // Predicated region
    $region57: #{self_attention_block.3} parent=5 // pred_check
      %p772 = pneg %p771
    $region58: #{self_attention_block.3} parent=5 // pred_check_branch
      %774 = sbr.rel (%p772) target = $region60
    $region59: #{self_attention_block.3} parent=5 // pred_region
      %s775 = ssub.s32 %s13, 2
      // Predicated region
      $region61: #{self_attention_block.3} parent=59 // pred_check
        %p776 = pneg %p166
      $region62: #{self_attention_block.3} parent=59 // pred_check_branch
        %778 = sbr.rel (%p776) target = $region64
      $region63: #{self_attention_block.3} parent=59 // pred_region
        %p779 = scmp.lt.s32.totalorder %s24, 1
        %s780 = scalar_select %p779, %s24, 1
        %s781 = scalar_lea.vmem %s5, %s780
      $region64: #{self_attention_block.3} parent=59 // pred_fallthru
        _
      // Predicated region
      $region65: #{self_attention_block.3} parent=59 // pred_check
        %p782 = pneg %p192
      $region66: #{self_attention_block.3} parent=59 // pred_check_branch
        %784 = sbr.rel (%p782) target = $region68
      $region67: #{self_attention_block.3} parent=59 // pred_region
        %p785 = scmp.lt.s32.totalorder %s24, 1
        %s786 = scalar_select %p785, %s24, 1
        %s787 = scalar_lea.vmem %s6, %s786
      $region68: #{self_attention_block.3} parent=59 // pred_fallthru
        _
    $region60: #{self_attention_block.3} parent=5 // pred_fallthru
      _
  $region6: #{self_attention_block.3} parent=0 // loop_footer
    %s17 = sadd.s32 1, %s13
  $region7: #{self_attention_block.3} parent=0 // loop_footer_branch
    %12 = sbr.rel target = $region3
  $region8: #{self_attention_block.3} parent=0 // loop_exit
    _

// kernel: self_attention_block.4
$region0: #{self_attention_block.4}
  #allocation0 [shape = 'u32[]', space=smem, size = 0x4, offset = 0x4, fixed_abs, tag = 'smem constant byte address 0x4 - core index']
  #allocation1 [shape = 'u32[144,128]{1,0:T(1,128)}', space=vmem, size = 0x12000, scoped, tag = 'internal scratch']
  %s0 = inlined_call_operand.vmem [shape: f32[2,256,128], index: 0, kind: input, shape index: {}]
  %s1 = inlined_call_operand.vmem [shape: f32[2,1,128], index: 1, kind: input, shape index: {}]
  %s2 = inlined_call_operand.vmem [shape: f32[2,1,128], index: 2, kind: input, shape index: {}]
  %s3 = inlined_call_operand.vmem [shape: bf16[128,384], index: 3, kind: input, shape index: {}]
  %s4 = inlined_call_operand.vmem [shape: f32[1,384], index: 4, kind: input, shape index: {}]
  %s5 = inlined_call_operand.vmem [shape: bf16[2,256,384], index: 5, kind: output, shape index: {}]
  %s6 = sld [smem:[#allocation0]]
  $region53: #{self_attention_block.4} parent=0
    _
  %s8 = ssub.s32 1, %s6
  %s9 = scalar_select 0, %s8, %s6
  loop: start=0, step=1, limit=4
  $region2: #{self_attention_block.4} parent=0 // loop_pre_header
    _
  $region3: #{self_attention_block.4} parent=0 // loop_header
    %s11 = sphi 0, %s15
    %p12 = scmp.ge.s32.totalorder %s11, 4
    %s18 = sphi 0, %s30
    %s19 = sphi 0, %s26
    %s20 = sphi 0, %s18
    %s21 = sphi 0, %s19
    %s22 = sphi 0, %s20
    %s23 = sphi 0, %s21
    %s35 = sphi 0, %s37
    %s38 = sphi 0, %s35
    %s39 = sphi 0, %s38
    %s55 = sphi 0, %s39
    %s61 = sphi 0, %s63
    %s64 = sphi 0, %s61
    %s65 = sphi 0, %s64
    %s81 = sphi 0, %s65
    %s87 = sphi 0, %s89
    %s90 = sphi 0, %s87
    %s91 = sphi 0, %s90
    %s107 = sphi 0, %s91
    %s111 = sphi 0, %s111
    %s113 = sphi 0, %s111
    %s114 = sphi 0, %s113
    %s128 = sphi 0, %s114
    %s132 = sphi 0, %s132
    %s134 = sphi 0, %s132
    %s135 = sphi 0, %s134
    %s149 = sphi 0, %s135
    %s157 = sphi 0, %s159
    %s160 = sphi 0, %s157
    %s161 = sphi 0, %s160
    %s177 = sphi 0, %s161
  $region4: #{self_attention_block.4} parent=0 // loop_header_branch
    %14 = sbr.rel (%p12) target = $region8
  $region5: #{self_attention_block.4} parent=0 // loop_body
    %s16 = ssub.s32 %s11, 1
    %s17 = ssub.s32 %s11, 2
    %s24 = sadd.s32 1, %s19
    %p25 = scmp.ge.s32.totalorder %s24, 1
    %s26 = scalar_select %p25, 0, %s24
    %s27 = sadd.s32 1, %s18
    %s28 = scalar_select %p25, %s27, %s18
    %p29 = scmp.ge.s32.totalorder %s28, 2
    %s30 = scalar_select %p29, 0, %s28
    %s31 = ssub.s32 %s18, %s30
    %s32 = ssub.s32 %s19, %s26
    %s33 = sor.u32 %s31, %s32
    %p34 = scmp.eq.s32.totalorder %s33, 0
    %s36 = sadd.s32 %s35, 1
    %s37 = scalar_select %p34, %s35, %s36
    %p40 = pneg %p34
    %p41 = scmp.eq.s32.totalorder %s11, 1
    %p42 = por %p40, %p41
    %p43 = scmp.ne.s32.totalorder %s35, %s38
    %p44 = scmp.eq.s32.totalorder %s11, 0
    %p45 = por %p43, %p44
    %p46 = scmp.ne.s32.totalorder %s35, %s38
    %p47 = scmp.eq.s32.totalorder %s16, 1
    %p48 = por %p46, %p47
    %p49 = scmp.ne.s32.totalorder %s38, %s39
    %p50 = scmp.eq.s32.totalorder %s16, 0
    %p51 = por %p49, %p50
    %p52 = scmp.ne.s32.totalorder %s38, %s39
    %p53 = scmp.eq.s32.totalorder %s17, 1
    %p54 = por %p52, %p53
    %p56 = scmp.ne.s32.totalorder %s39, %s55
    %p57 = scmp.eq.s32.totalorder %s17, 0
    %p58 = por %p56, %p57
    %s59 = ssub.s32 %s18, %s30
    %p60 = scmp.eq.s32.totalorder %s59, 0
    %s62 = sadd.s32 %s61, 1
    %s63 = scalar_select %p60, %s61, %s62
    %p66 = pneg %p60
    %p67 = scmp.eq.s32.totalorder %s11, 1
    %p68 = por %p66, %p67
    %p69 = scmp.ne.s32.totalorder %s61, %s64
    %p70 = scmp.eq.s32.totalorder %s11, 0
    %p71 = por %p69, %p70
    %p72 = scmp.ne.s32.totalorder %s61, %s64
    %p73 = scmp.eq.s32.totalorder %s16, 1
    %p74 = por %p72, %p73
    %p75 = scmp.ne.s32.totalorder %s64, %s65
    %p76 = scmp.eq.s32.totalorder %s16, 0
    %p77 = por %p75, %p76
    %p78 = scmp.ne.s32.totalorder %s64, %s65
    %p79 = scmp.eq.s32.totalorder %s17, 1
    %p80 = por %p78, %p79
    %p82 = scmp.ne.s32.totalorder %s65, %s81
    %p83 = scmp.eq.s32.totalorder %s17, 0
    %p84 = por %p82, %p83
    %s85 = ssub.s32 %s18, %s30
    %p86 = scmp.eq.s32.totalorder %s85, 0
    %s88 = sadd.s32 %s87, 1
    %s89 = scalar_select %p86, %s87, %s88
    %p92 = pneg %p86
    %p93 = scmp.eq.s32.totalorder %s11, 1
    %p94 = por %p92, %p93
    %p95 = scmp.ne.s32.totalorder %s87, %s90
    %p96 = scmp.eq.s32.totalorder %s11, 0
    %p97 = por %p95, %p96
    %p98 = scmp.ne.s32.totalorder %s87, %s90
    %p99 = scmp.eq.s32.totalorder %s16, 1
    %p100 = por %p98, %p99
    %p101 = scmp.ne.s32.totalorder %s90, %s91
    %p102 = scmp.eq.s32.totalorder %s16, 0
    %p103 = por %p101, %p102
    %p104 = scmp.ne.s32.totalorder %s90, %s91
    %p105 = scmp.eq.s32.totalorder %s17, 1
    %p106 = por %p104, %p105
    %p108 = scmp.ne.s32.totalorder %s91, %s107
    %p109 = scmp.eq.s32.totalorder %s17, 0
    %p110 = por %p108, %p109
    %s112 = sadd.s32 %s111, 1
    %p115 = scmp.eq.s32.totalorder %s11, 1
    %p116 = scmp.ne.s32.totalorder %s111, %s113
    %p117 = scmp.eq.s32.totalorder %s11, 0
    %p118 = por %p116, %p117
    %p119 = scmp.ne.s32.totalorder %s111, %s113
    %p120 = scmp.eq.s32.totalorder %s16, 1
    %p121 = por %p119, %p120
    %p122 = scmp.ne.s32.totalorder %s113, %s114
    %p123 = scmp.eq.s32.totalorder %s16, 0
    %p124 = por %p122, %p123
    %p125 = scmp.ne.s32.totalorder %s113, %s114
    %p126 = scmp.eq.s32.totalorder %s17, 1
    %p127 = por %p125, %p126
    %p129 = scmp.ne.s32.totalorder %s114, %s128
    %p130 = scmp.eq.s32.totalorder %s17, 0
    %p131 = por %p129, %p130
    %s133 = sadd.s32 %s132, 1
    %p136 = scmp.eq.s32.totalorder %s11, 1
    %p137 = scmp.ne.s32.totalorder %s132, %s134
    %p138 = scmp.eq.s32.totalorder %s11, 0
    %p139 = por %p137, %p138
    %p140 = scmp.ne.s32.totalorder %s132, %s134
    %p141 = scmp.eq.s32.totalorder %s16, 1
    %p142 = por %p140, %p141
    %p143 = scmp.ne.s32.totalorder %s134, %s135
    %p144 = scmp.eq.s32.totalorder %s16, 0
    %p145 = por %p143, %p144
    %p146 = scmp.ne.s32.totalorder %s134, %s135
    %p147 = scmp.eq.s32.totalorder %s17, 1
    %p148 = por %p146, %p147
    %p150 = scmp.ne.s32.totalorder %s135, %s149
    %p151 = scmp.eq.s32.totalorder %s17, 0
    %p152 = por %p150, %p151
    %s153 = ssub.s32 %s18, %s30
    %s154 = ssub.s32 %s19, %s26
    %s155 = sor.u32 %s153, %s154
    %p156 = scmp.eq.s32.totalorder %s155, 0
    %s158 = sadd.s32 %s157, 1
    %s159 = scalar_select %p156, %s157, %s158
    %p162 = pneg %p156
    %p163 = scmp.eq.s32.totalorder %s11, 1
    %p164 = por %p162, %p163
    %p165 = scmp.ne.s32.totalorder %s157, %s160
    %p166 = scmp.eq.s32.totalorder %s11, 0
    %p167 = por %p165, %p166
    %p168 = scmp.ne.s32.totalorder %s157, %s160
    %p169 = scmp.eq.s32.totalorder %s16, 1
    %p170 = por %p168, %p169
    %p171 = scmp.ne.s32.totalorder %s160, %s161
    %p172 = scmp.eq.s32.totalorder %s16, 0
    %p173 = por %p171, %p172
    %p174 = scmp.ne.s32.totalorder %s160, %s161
    %p175 = scmp.eq.s32.totalorder %s17, 1
    %p176 = por %p174, %p175
    %p178 = scmp.ne.s32.totalorder %s161, %s177
    %p179 = scmp.eq.s32.totalorder %s17, 0
    %p180 = por %p178, %p179
    %p181 = scmp.le.s32.totalorder 1, %s11
    %p182 = scmp.lt.s32.totalorder %s11, 3
    %p183 = pnand %p181, %p182
    %p184 = pneg %p183
    // Predicated region
    $region9: #{self_attention_block.4} parent=5 // pred_check
      _
    $region10: #{self_attention_block.4} parent=5 // pred_check_branch
      %186 = sbr.rel (%p183) target = $region12
    $region11: #{self_attention_block.4} parent=5 // pred_region
      %s187 = ssub.s32 %s11, 1
      // Predicated region
      $region13: #{self_attention_block.4} parent=11 // pred_check
        %p188 = pneg %p124
      $region14: #{self_attention_block.4} parent=11 // pred_check_branch
        %190 = sbr.rel (%p188) target = $region16
      $region15: #{self_attention_block.4} parent=11 // pred_region
        _
      $region16: #{self_attention_block.4} parent=11 // pred_fallthru
        _
      // Predicated region
      $region17: #{self_attention_block.4} parent=11 // pred_check
        %p191 = pneg %p145
      $region18: #{self_attention_block.4} parent=11 // pred_check_branch
        %193 = sbr.rel (%p191) target = $region20
      $region19: #{self_attention_block.4} parent=11 // pred_region
        _
      $region20: #{self_attention_block.4} parent=11 // pred_fallthru
        _
    $region12: #{self_attention_block.4} parent=5 // pred_fallthru
      _
    %p194 = scmp.lt.s32.totalorder %s11, 2
    // Predicated region
    $region21: #{self_attention_block.4} parent=5 // pred_check
      %p195 = pneg %p194
    $region22: #{self_attention_block.4} parent=5 // pred_check_branch
      %197 = sbr.rel (%p195) target = $region24
    $region23: #{self_attention_block.4} parent=5 // pred_region
      // Predicated region
      $region25: #{self_attention_block.4} parent=23 // pred_check
        %p198 = pneg %p45
      $region26: #{self_attention_block.4} parent=23 // pred_check_branch
        %200 = sbr.rel (%p198) target = $region28
      $region27: #{self_attention_block.4} parent=23 // pred_region
        %s201 = smul.u32 32, %s19
        %p202 = scmp.lt.s32.totalorder %s18, 1
        %s203 = scalar_select %p202, %s18, 1
        %p204 = scmp.lt.s32.totalorder %s201, 31
        %s205 = scalar_select %p204, %s201, 31
        %s206 = smul.addr %s203, 32
        %s207 = sadd.s32 %s205, %s206
        %s208 = smul.addr %s207, 8
        %s209 = scalar_lea.vmem %s0, %s208
        %s210 = smul.u32 32, %s19
      $region28: #{self_attention_block.4} parent=23 // pred_fallthru
        _
      // Predicated region
      $region29: #{self_attention_block.4} parent=23 // pred_check
        %p211 = pneg %p71
      $region30: #{self_attention_block.4} parent=23 // pred_check_branch
        %213 = sbr.rel (%p211) target = $region32
      $region31: #{self_attention_block.4} parent=23 // pred_region
        %p214 = scmp.lt.s32.totalorder %s18, 1
        %s215 = scalar_select %p214, %s18, 1
        %s216 = scalar_lea.vmem %s1, %s215
      $region32: #{self_attention_block.4} parent=23 // pred_fallthru
        _
      // Predicated region
      $region33: #{self_attention_block.4} parent=23 // pred_check
        %p217 = pneg %p97
      $region34: #{self_attention_block.4} parent=23 // pred_check_branch
        %219 = sbr.rel (%p217) target = $region36
      $region35: #{self_attention_block.4} parent=23 // pred_region
        %p220 = scmp.lt.s32.totalorder %s18, 1
        %s221 = scalar_select %p220, %s18, 1
        %s222 = scalar_lea.vmem %s2, %s221
      $region36: #{self_attention_block.4} parent=23 // pred_fallthru
        _
    $region24: #{self_attention_block.4} parent=5 // pred_fallthru
      _
    %p223 = scmp.le.s32.totalorder 1, %s11
    %p224 = scmp.lt.s32.totalorder %s11, 3
    %p225 = pnand %p223, %p224
    %p226 = pneg %p225
    // Predicated region
    $region37: #{self_attention_block.4} parent=5 // pred_check
      _
    $region38: #{self_attention_block.4} parent=5 // pred_check_branch
      %228 = sbr.rel (%p225) target = $region40
    $region39: #{self_attention_block.4} parent=5 // pred_region
      %s229 = ssub.s32 %s11, 1
      %s230 = smul.u32 32, %s21
      %p231 = scmp.lt.s32.totalorder %s20, 1
      %s232 = scalar_select %p231, %s20, 1
      %p233 = scmp.lt.s32.totalorder %s230, 31
      %s234 = scalar_select %p233, %s230, 31
      %s235 = smul.addr %s232, 32
      %s236 = sadd.s32 %s234, %s235
      %s237 = smul.addr %s236, 8
      %s238 = scalar_lea.vmem %s0, %s237
      %p239 = pneg %p51
      %p240 = pneg %p48
      %p241 = scmp.lt.s32.totalorder %s20, 1
      %s242 = scalar_select %p241, %s20, 1
      %s243 = scalar_lea.vmem %s1, %s242
      %p244 = pneg %p77
      %p245 = pneg %p74
      %p246 = scmp.lt.s32.totalorder %s20, 1
      %s247 = scalar_select %p246, %s20, 1
      %s248 = scalar_lea.vmem %s2, %s247
      %p249 = pneg %p103
      %p250 = pneg %p100
      %p251 = pneg %p124
      %p252 = pneg %p121
      %p253 = pneg %p145
      %p254 = pneg %p142
      %p255 = pneg %p173
      %p256 = pneg %p170
      %s257 = smul.u32 32, %s21
      %p258 = scmp.lt.s32.totalorder %s20, 1
      %s259 = scalar_select %p258, %s20, 1
      %p260 = scmp.lt.s32.totalorder %s257, 31
      %s261 = scalar_select %p260, %s257, 31
      %s262 = smul.addr %s261, 3
      %s263 = smul.addr %s259, 96
      %s264 = sadd.s32 %s262, %s263
      %s265 = smul.addr %s264, 4
      %s266 = scalar_lea.vmem %s5, %s265
      %s267 = smul.u32 32, %s21
      %p268 = scmp.lt.s32.totalorder %s20, 1
      %s269 = scalar_select %p268, %s20, 1
      %p270 = scmp.lt.s32.totalorder %s267, 31
      %s271 = scalar_select %p270, %s267, 31
      %s272 = smul.addr %s269, 32
      %s273 = sadd.s32 %s271, %s272
      %s274 = smul.addr %s273, 8
      %s275 = scalar_lea.vmem %s0, %s274
      %s276 = smul.u32 32, %s21
      %p277 = scmp.lt.s32.totalorder %s20, 1
      %s278 = scalar_select %p277, %s20, 1
      %s279 = scalar_lea.vmem %s1, %s278
      %p280 = scmp.lt.s32.totalorder %s20, 1
      %s281 = scalar_select %p280, %s20, 1
      %s282 = scalar_lea.vmem %s2, %s281
      %s283 = smul.u32 32, %s21
      %p284 = scmp.lt.s32.totalorder %s20, 1
      %s285 = scalar_select %p284, %s20, 1
      %p286 = scmp.lt.s32.totalorder %s283, 31
      %s287 = scalar_select %p286, %s283, 31
      %s288 = smul.addr %s287, 3
      %s289 = smul.addr %s285, 96
      %s290 = sadd.s32 %s288, %s289
      %s291 = smul.addr %s290, 4
      %s292 = scalar_lea.vmem %s5, %s291
      %s293 = smul.u32 32, %s21
      %v295 = vld [vmem:[%s275] sm:$0xff]
      %v296 = vld [vmem:[%s275 + $0x8] sm:$0xff]
      %v297 = vld [vmem:[%s275 + $0x10] sm:$0xff]
      %v298 = vld [vmem:[%s275 + $0x18] sm:$0xff]
      %v299 = vld [vmem:[%s275 + $0x20] sm:$0xff]
      %v300 = vld [vmem:[%s275 + $0x28] sm:$0xff]
      %v301 = vld [vmem:[%s275 + $0x30] sm:$0xff]
      %v302 = vld [vmem:[%s275 + $0x38] sm:$0xff]
      %v303 = vld [vmem:[%s275 + $0x40] sm:$0xff]
      %v304 = vld [vmem:[%s275 + $0x48] sm:$0xff]
      %v305 = vld [vmem:[%s275 + $0x50] sm:$0xff]
      %v306 = vld [vmem:[%s275 + $0x58] sm:$0xff]
      %v307 = vld [vmem:[%s275 + $0x60] sm:$0xff]
      %v308 = vld [vmem:[%s275 + $0x68] sm:$0xff]
      %v309 = vld [vmem:[%s275 + $0x70] sm:$0xff]
      %v310 = vld [vmem:[%s275 + $0x78] sm:$0xff]
      %v311 = vld [vmem:[%s275 + $0x80] sm:$0xff]
      %v312 = vld [vmem:[%s275 + $0x88] sm:$0xff]
      %v313 = vld [vmem:[%s275 + $0x90] sm:$0xff]
      %v314 = vld [vmem:[%s275 + $0x98] sm:$0xff]
      %v315 = vld [vmem:[%s275 + $0xa0] sm:$0xff]
      %v316 = vld [vmem:[%s275 + $0xa8] sm:$0xff]
      %v317 = vld [vmem:[%s275 + $0xb0] sm:$0xff]
      %v318 = vld [vmem:[%s275 + $0xb8] sm:$0xff]
      %v319 = vld [vmem:[%s275 + $0xc0] sm:$0xff]
      %v320 = vld [vmem:[%s275 + $0xc8] sm:$0xff]
      %v321 = vld [vmem:[%s275 + $0xd0] sm:$0xff]
      %v322 = vld [vmem:[%s275 + $0xd8] sm:$0xff]
      %v323 = vld [vmem:[%s275 + $0xe0] sm:$0xff]
      %v324 = vld [vmem:[%s275 + $0xe8] sm:$0xff]
      %v325 = vld [vmem:[%s275 + $0xf0] sm:$0xff]
      %v326 = vld [vmem:[%s275 + $0xf8] sm:$0xff]
      %v327 = vld [vmem:[%s279] sm:$0x1]
      %v329 = vlaneseq
      %v330 = vshrl.u32 %v329, 7
      %v331 = vsub.s32 0, %v330
      %v332 = vrot.slane %v327, %v331
      %v334 = vmul.f32 %v295, %v332
      %v335 = vmul.f32 %v296, %v332
      %v336 = vmul.f32 %v297, %v332
      %v337 = vmul.f32 %v298, %v332
      %v338 = vmul.f32 %v299, %v332
      %v339 = vmul.f32 %v300, %v332
      %v340 = vmul.f32 %v301, %v332
      %v341 = vmul.f32 %v302, %v332
      %v342 = vmul.f32 %v303, %v332
      %v343 = vmul.f32 %v304, %v332
      %v344 = vmul.f32 %v305, %v332
      %v345 = vmul.f32 %v306, %v332
      %v346 = vmul.f32 %v307, %v332
      %v347 = vmul.f32 %v308, %v332
      %v348 = vmul.f32 %v309, %v332
      %v349 = vmul.f32 %v310, %v332
      %v350 = vmul.f32 %v311, %v332
      %v351 = vmul.f32 %v312, %v332
      %v352 = vmul.f32 %v313, %v332
      %v353 = vmul.f32 %v314, %v332
      %v354 = vmul.f32 %v315, %v332
      %v355 = vmul.f32 %v316, %v332
      %v356 = vmul.f32 %v317, %v332
      %v357 = vmul.f32 %v318, %v332
      %v358 = vmul.f32 %v319, %v332
      %v359 = vmul.f32 %v320, %v332
      %v360 = vmul.f32 %v321, %v332
      %v361 = vmul.f32 %v322, %v332
      %v362 = vmul.f32 %v323, %v332
      %v363 = vmul.f32 %v324, %v332
      %v364 = vmul.f32 %v325, %v332
      %v365 = vmul.f32 %v326, %v332
      %v366 = vld [vmem:[%s282] sm:$0x1]
      %v368 = vlaneseq
      %v369 = vshrl.u32 %v368, 7
      %v370 = vsub.s32 0, %v369
      %v371 = vrot.slane %v366, %v370
      %v373 = vadd.f32 %v334, %v371
      %v374 = vadd.f32 %v335, %v371
      %v375 = vadd.f32 %v336, %v371
      %v376 = vadd.f32 %v337, %v371
      %v377 = vadd.f32 %v338, %v371
      %v378 = vadd.f32 %v339, %v371
      %v379 = vadd.f32 %v340, %v371
      %v380 = vadd.f32 %v341, %v371
      %v381 = vadd.f32 %v342, %v371
      %v382 = vadd.f32 %v343, %v371
      %v383 = vadd.f32 %v344, %v371
      %v384 = vadd.f32 %v345, %v371
      %v385 = vadd.f32 %v346, %v371
      %v386 = vadd.f32 %v347, %v371
      %v387 = vadd.f32 %v348, %v371
      %v388 = vadd.f32 %v349, %v371
      %v389 = vadd.f32 %v350, %v371
      %v390 = vadd.f32 %v351, %v371
      %v391 = vadd.f32 %v352, %v371
      %v392 = vadd.f32 %v353, %v371
      %v393 = vadd.f32 %v354, %v371
      %v394 = vadd.f32 %v355, %v371
      %v395 = vadd.f32 %v356, %v371
      %v396 = vadd.f32 %v357, %v371
      %v397 = vadd.f32 %v358, %v371
      %v398 = vadd.f32 %v359, %v371
      %v399 = vadd.f32 %v360, %v371
      %v400 = vadd.f32 %v361, %v371
      %v401 = vadd.f32 %v362, %v371
      %v402 = vadd.f32 %v363, %v371
      %v403 = vadd.f32 %v364, %v371
      %v404 = vadd.f32 %v365, %v371
      %v405 = vpack.c.bf16 %v374, %v373
      %v406 = vpack.c.bf16 %v376, %v375
      %v407 = vpack.c.bf16 %v378, %v377
      %v408 = vpack.c.bf16 %v380, %v379
      %v409 = vpack.c.bf16 %v382, %v381
      %v410 = vpack.c.bf16 %v384, %v383
      %v411 = vpack.c.bf16 %v386, %v385
      %v412 = vpack.c.bf16 %v388, %v387
      %v413 = vpack.c.bf16 %v390, %v389
      %v414 = vpack.c.bf16 %v392, %v391
      %v415 = vpack.c.bf16 %v394, %v393
      %v416 = vpack.c.bf16 %v396, %v395
      %v417 = vpack.c.bf16 %v398, %v397
      %v418 = vpack.c.bf16 %v400, %v399
      %v419 = vpack.c.bf16 %v402, %v401
      %v420 = vpack.c.bf16 %v404, %v403
      %v421 = vld [vmem:[%s3] sm:$0xff]
      %v422 = vld [vmem:[%s3 + $0x8] sm:$0xf]
      %v423 = vld [vmem:[%s3 + $0xc] sm:$0xff]
      %v424 = vld [vmem:[%s3 + $0x14] sm:$0xf]
      %v425 = vld [vmem:[%s3 + $0x18] sm:$0xff]
      %v426 = vld [vmem:[%s3 + $0x20] sm:$0xf]
      %v427 = vld [vmem:[%s3 + $0x24] sm:$0xff]
      %v428 = vld [vmem:[%s3 + $0x2c] sm:$0xf]
      %v429 = vld [vmem:[%s3 + $0x30] sm:$0xff]
      %v430 = vld [vmem:[%s3 + $0x38] sm:$0xf]
      %v431 = vld [vmem:[%s3 + $0x3c] sm:$0xff]
      %v432 = vld [vmem:[%s3 + $0x44] sm:$0xf]
      %v433 = vld [vmem:[%s3 + $0x48] sm:$0xff]
      %v434 = vld [vmem:[%s3 + $0x50] sm:$0xf]
      %v435 = vld [vmem:[%s3 + $0x54] sm:$0xff]
      %v436 = vld [vmem:[%s3 + $0x5c] sm:$0xf]
      %v437 = vld [vmem:[%s3 + $0x60] sm:$0xff]
      %v438 = vld [vmem:[%s3 + $0x68] sm:$0xf]
      %v439 = vld [vmem:[%s3 + $0x6c] sm:$0xff]
      %v440 = vld [vmem:[%s3 + $0x74] sm:$0xf]
      %v441 = vld [vmem:[%s3 + $0x78] sm:$0xff]
      %v442 = vld [vmem:[%s3 + $0x80] sm:$0xf]
      %v443 = vld [vmem:[%s3 + $0x84] sm:$0xff]
      %v444 = vld [vmem:[%s3 + $0x8c] sm:$0xf]
      %v445 = vld [vmem:[%s3 + $0x90] sm:$0xff]
      %v446 = vld [vmem:[%s3 + $0x98] sm:$0xf]
      %v447 = vld [vmem:[%s3 + $0x9c] sm:$0xff]
      %v448 = vld [vmem:[%s3 + $0xa4] sm:$0xf]
      %v449 = vld [vmem:[%s3 + $0xa8] sm:$0xff]
      %v450 = vld [vmem:[%s3 + $0xb0] sm:$0xf]
      %v451 = vld [vmem:[%s3 + $0xb4] sm:$0xff]
      %v452 = vld [vmem:[%s3 + $0xbc] sm:$0xf]
      %v453 = vld [vmem:[%s4] sm:$0x7]
      %v455 = vlaneseq
      %v456 = vshrl.u32 %v455, 7
      %v457 = vsub.s32 0, %v456
      %v458 = vrot.slane %v453, %v457
      %v459 = vlaneseq
      %v460 = vshrl.u32 %v459, 7
      %v461 = vsub.s32 1, %v460
      %v462 = vrot.slane %v453, %v461
      %v463 = vlaneseq
      %v464 = vshrl.u32 %v463, 7
      %v465 = vsub.s32 2, %v464
      %v466 = vrot.slane %v453, %v465
      %v502 = vunpack.c.l.b16 %v421
      %v503 = vunpack.c.h.b16 %v421
      %v504 = vunpack.c.l.b16 %v422
      %v505 = vunpack.c.l.b16 %v423
      %v506 = vunpack.c.h.b16 %v423
      %v507 = vunpack.c.l.b16 %v424
      %v508 = vunpack.c.l.b16 %v425
      %v509 = vunpack.c.h.b16 %v425
      %v510 = vunpack.c.l.b16 %v426
      %v511 = vunpack.c.l.b16 %v427
      %v512 = vunpack.c.h.b16 %v427
      %v513 = vunpack.c.l.b16 %v428
      %v514 = vunpack.c.l.b16 %v429
      %v515 = vunpack.c.h.b16 %v429
      %v516 = vunpack.c.l.b16 %v430
      %v517 = vunpack.c.l.b16 %v431
      %v518 = vunpack.c.h.b16 %v431
      %v519 = vunpack.c.l.b16 %v432
      %v520 = vunpack.c.l.b16 %v433
      %v521 = vunpack.c.h.b16 %v433
      %v522 = vunpack.c.l.b16 %v434
      %v523 = vunpack.c.l.b16 %v435
      %v524 = vunpack.c.h.b16 %v435
      %v525 = vunpack.c.l.b16 %v436
      %v526 = vunpack.c.l.b16 %v437
      %v527 = vunpack.c.h.b16 %v437
      %v528 = vunpack.c.l.b16 %v438
      %v529 = vunpack.c.l.b16 %v439
      %v530 = vunpack.c.h.b16 %v439
      %v531 = vunpack.c.l.b16 %v440
      %v532 = vunpack.c.l.b16 %v441
      %v533 = vunpack.c.h.b16 %v441
      %v534 = vunpack.c.l.b16 %v442
      %v535 = vunpack.c.l.b16 %v443
      %v536 = vunpack.c.h.b16 %v443
      %v537 = vunpack.c.l.b16 %v444
      %v538 = vunpack.c.l.b16 %v445
      %v539 = vunpack.c.h.b16 %v445
      %v540 = vunpack.c.l.b16 %v446
      %v541 = vunpack.c.l.b16 %v447
      %v542 = vunpack.c.h.b16 %v447
      %v543 = vunpack.c.l.b16 %v448
      %v544 = vunpack.c.l.b16 %v449
      %v545 = vunpack.c.h.b16 %v449
      %v546 = vunpack.c.l.b16 %v450
      %v547 = vunpack.c.l.b16 %v451
      %v548 = vunpack.c.h.b16 %v451
      %v549 = vunpack.c.l.b16 %v452
      %v550 = vpack.c.b16 %v505, %v502
      %v551 = vpack.c.b16 %v506, %v503
      %v552 = vpack.c.b16 %v507, %v504
      %v553 = vpack.c.b16 %v511, %v508
      %v554 = vpack.c.b16 %v512, %v509
      %v555 = vpack.c.b16 %v513, %v510
      %v556 = vpack.c.b16 %v517, %v514
      %v557 = vpack.c.b16 %v518, %v515
      %v558 = vpack.c.b16 %v519, %v516
      %v559 = vpack.c.b16 %v523, %v520
      %v560 = vpack.c.b16 %v524, %v521
      %v561 = vpack.c.b16 %v525, %v522
      %v562 = vpack.c.b16 %v529, %v526
      %v563 = vpack.c.b16 %v530, %v527
      %v564 = vpack.c.b16 %v531, %v528
      %v565 = vpack.c.b16 %v535, %v532
      %v566 = vpack.c.b16 %v536, %v533
      %v567 = vpack.c.b16 %v537, %v534
      %v568 = vpack.c.b16 %v541, %v538
      %v569 = vpack.c.b16 %v542, %v539
      %v570 = vpack.c.b16 %v543, %v540
      %v571 = vpack.c.b16 %v547, %v544
      %v572 = vpack.c.b16 %v548, %v545
      %v573 = vpack.c.b16 %v549, %v546
      %598 = vmatprep.subr.bf16.mxu0 %v551
      %599 = vmatpush1.bf16.msra.mxu0 %v550
      %600 = vmatprep.subr.bf16.mxu0 %v554
      %601 = vmatpush1.bf16.msra.mxu0 %v553
      %602 = vmatprep.subr.bf16.mxu0 %v557
      %603 = vmatpush1.bf16.msra.mxu0 %v556
      %604 = vmatprep.subr.bf16.mxu0 %v560
      %605 = vmatpush1.bf16.msra.mxu0 %v559
      %606 = vmatprep.subr.bf16.mxu0 %v563
      %607 = vmatpush1.bf16.msra.mxu0 %v562
      %608 = vmatprep.subr.bf16.mxu0 %v566
      %609 = vmatpush1.bf16.msra.mxu0 %v565
      %610 = vmatprep.subr.bf16.mxu0 %v569
      %611 = vmatpush1.bf16.msra.mxu0 %v568
      %612 = vmatprep.subr.bf16.mxu0 %v572
      %613 = vmatpush1.bf16.msra.mxu0 %v571
      %614 = vmatprep.subr.bf16.mxu0 0
      %615 = vmatpush1.bf16.msra.mxu0 0
      %616 = vmatprep.subr.bf16.mxu0 0
      %617 = vmatpush1.bf16.msra.mxu0 0
      %618 = vmatprep.subr.bf16.mxu0 0
      %619 = vmatpush1.bf16.msra.mxu0 0
      %620 = vmatprep.subr.bf16.mxu0 0
      %621 = vmatpush1.bf16.msra.mxu0 0
      %622 = vmatprep.subr.bf16.mxu0 0
      %623 = vmatpush1.bf16.msra.mxu0 0
      %624 = vmatprep.subr.bf16.mxu0 0
      %625 = vmatpush1.bf16.msra.mxu0 0
      %626 = vmatprep.subr.bf16.mxu0 0
      %627 = vmatpush1.bf16.msra.mxu0 0
      %628 = vmatprep.subr.bf16.mxu0 0
      %629 = vmatpush1.bf16.msra.mxu0 0
      %630 = vmatprep.mubr.bf16.mxu0 0
      %631 = vmatmul.mubr.bf16.gmra.mrb[0].mxu0 %v405
      %v632 = vpop.f32.mrb[0].mxu0
      %v633 = vadd.f32 %v458, %v632
      %v634 = vpop.f32.mrb[0].mxu0
      %v635 = vadd.f32 %v462, %v634
      %v636 = vpop.f32.mrb[0].mxu0
      %v637 = vadd.f32 %v458, %v636
      %v638 = vpop.f32.mrb[0].mxu0
      %v639 = vadd.f32 %v462, %v638
      %640 = vmatprep.mubr.bf16.mxu0 0
      %641 = vmatmul.mubr.bf16.gmra.mrb[0].mxu0 %v406
      %v642 = vpop.f32.mrb[0].mxu0
      %v643 = vadd.f32 %v458, %v642
      %v644 = vpop.f32.mrb[0].mxu0
      %v645 = vadd.f32 %v462, %v644
      %v646 = vpop.f32.mrb[0].mxu0
      %v647 = vadd.f32 %v458, %v646
      %v648 = vpop.f32.mrb[0].mxu0
      %v649 = vadd.f32 %v462, %v648
      %650 = vmatprep.mubr.bf16.mxu0 0
      %651 = vmatmul.mubr.bf16.gmra.mrb[0].mxu0 %v407
      %v652 = vpop.f32.mrb[0].mxu0
      %v653 = vadd.f32 %v458, %v652
      %v654 = vpop.f32.mrb[0].mxu0
      %v655 = vadd.f32 %v462, %v654
      %v656 = vpop.f32.mrb[0].mxu0
      %v657 = vadd.f32 %v458, %v656
      %v658 = vpop.f32.mrb[0].mxu0
      %v659 = vadd.f32 %v462, %v658
      %660 = vmatprep.mubr.bf16.mxu0 0
      %661 = vmatmul.mubr.bf16.gmra.mrb[0].mxu0 %v408
      %v662 = vpop.f32.mrb[0].mxu0
      %v663 = vadd.f32 %v458, %v662
      %v664 = vpop.f32.mrb[0].mxu0
      %v665 = vadd.f32 %v462, %v664
      %v666 = vpop.f32.mrb[0].mxu0
      %v667 = vadd.f32 %v458, %v666
      %v668 = vpop.f32.mrb[0].mxu0
      %v669 = vadd.f32 %v462, %v668
      %670 = vmatprep.mubr.bf16.mxu0 0
      %671 = vmatmul.mubr.bf16.gmra.mrb[0].mxu0 %v409
      %v672 = vpop.f32.mrb[0].mxu0
      %v673 = vadd.f32 %v458, %v672
      %v674 = vpop.f32.mrb[0].mxu0
      %v675 = vadd.f32 %v462, %v674
      %v676 = vpop.f32.mrb[0].mxu0
      %v677 = vadd.f32 %v458, %v676
      %v678 = vpop.f32.mrb[0].mxu0
      %v679 = vadd.f32 %v462, %v678
      %680 = vmatprep.mubr.bf16.mxu0 0
      %681 = vmatmul.mubr.bf16.gmra.mrb[0].mxu0 %v410
      %v682 = vpop.f32.mrb[0].mxu0
      %v683 = vadd.f32 %v458, %v682
      %v684 = vpop.f32.mrb[0].mxu0
      %v685 = vadd.f32 %v462, %v684
      %v686 = vpop.f32.mrb[0].mxu0
      %v687 = vadd.f32 %v458, %v686
      %v688 = vpop.f32.mrb[0].mxu0
      %v689 = vadd.f32 %v462, %v688
      %690 = vmatprep.mubr.bf16.mxu0 0
      %691 = vmatmul.mubr.bf16.gmra.mrb[0].mxu0 %v411
      %v692 = vpop.f32.mrb[0].mxu0
      %v693 = vadd.f32 %v458, %v692
      %v694 = vpop.f32.mrb[0].mxu0
      %v695 = vadd.f32 %v462, %v694
      %v696 = vpop.f32.mrb[0].mxu0
      %v697 = vadd.f32 %v458, %v696
      %v698 = vpop.f32.mrb[0].mxu0
      %v699 = vadd.f32 %v462, %v698
      %700 = vmatprep.mubr.bf16.mxu0 0
      %701 = vmatmul.mubr.bf16.gmra.mrb[0].mxu0 %v412
      %v702 = vpop.f32.mrb[0].mxu0
      %v703 = vadd.f32 %v458, %v702
      %v704 = vpop.f32.mrb[0].mxu0
      %v705 = vadd.f32 %v462, %v704
      %v706 = vpop.f32.mrb[0].mxu0
      %v707 = vadd.f32 %v458, %v706
      %v708 = vpop.f32.mrb[0].mxu0
      %v709 = vadd.f32 %v462, %v708
      %710 = vmatprep.mubr.bf16.mxu0 0
      %711 = vmatmul.mubr.bf16.gmra.mrb[0].mxu0 %v413
      %v712 = vpop.f32.mrb[0].mxu0
      %v713 = vadd.f32 %v458, %v712
      %v714 = vpop.f32.mrb[0].mxu0
      %v715 = vadd.f32 %v462, %v714
      %v716 = vpop.f32.mrb[0].mxu0
      %v717 = vadd.f32 %v458, %v716
      %v718 = vpop.f32.mrb[0].mxu0
      %v719 = vadd.f32 %v462, %v718
      %720 = vmatprep.mubr.bf16.mxu0 0
      %721 = vmatmul.mubr.bf16.gmra.mrb[0].mxu0 %v414
      %v722 = vpop.f32.mrb[0].mxu0
      %v723 = vadd.f32 %v458, %v722
      %v724 = vpop.f32.mrb[0].mxu0
      %v725 = vadd.f32 %v462, %v724
      %v726 = vpop.f32.mrb[0].mxu0
      %v727 = vadd.f32 %v458, %v726
      %v728 = vpop.f32.mrb[0].mxu0
      %v729 = vadd.f32 %v462, %v728
      %730 = vmatprep.mubr.bf16.mxu0 0
      %731 = vmatmul.mubr.bf16.gmra.mrb[0].mxu0 %v415
      %v732 = vpop.f32.mrb[0].mxu0
      %v733 = vadd.f32 %v458, %v732
      %v734 = vpop.f32.mrb[0].mxu0
      %v735 = vadd.f32 %v462, %v734
      %v736 = vpop.f32.mrb[0].mxu0
      %v737 = vadd.f32 %v458, %v736
      %v738 = vpop.f32.mrb[0].mxu0
      %v739 = vadd.f32 %v462, %v738
      %740 = vmatprep.mubr.bf16.mxu0 0
      %741 = vmatmul.mubr.bf16.gmra.mrb[0].mxu0 %v416
      %v742 = vpop.f32.mrb[0].mxu0
      %v743 = vadd.f32 %v458, %v742
      %v744 = vpop.f32.mrb[0].mxu0
      %v745 = vadd.f32 %v462, %v744
      %v746 = vpop.f32.mrb[0].mxu0
      %v747 = vadd.f32 %v458, %v746
      %v748 = vpop.f32.mrb[0].mxu0
      %v749 = vadd.f32 %v462, %v748
      %750 = vmatprep.mubr.bf16.mxu0 0
      %751 = vmatmul.mubr.bf16.gmra.mrb[0].mxu0 %v417
      %v752 = vpop.f32.mrb[0].mxu0
      %v753 = vadd.f32 %v458, %v752
      %v754 = vpop.f32.mrb[0].mxu0
      %v755 = vadd.f32 %v462, %v754
      %v756 = vpop.f32.mrb[0].mxu0
      %v757 = vadd.f32 %v458, %v756
      %v758 = vpop.f32.mrb[0].mxu0
      %v759 = vadd.f32 %v462, %v758
      %760 = vmatprep.mubr.bf16.mxu0 0
      %761 = vmatmul.mubr.bf16.gmra.mrb[0].mxu0 %v418
      %v762 = vpop.f32.mrb[0].mxu0
      %v763 = vadd.f32 %v458, %v762
      %v764 = vpop.f32.mrb[0].mxu0
      %v765 = vadd.f32 %v462, %v764
      %v766 = vpop.f32.mrb[0].mxu0
      %v767 = vadd.f32 %v458, %v766
      %v768 = vpop.f32.mrb[0].mxu0
      %v769 = vadd.f32 %v462, %v768
      %770 = vmatprep.mubr.bf16.mxu0 0
      %771 = vmatmul.mubr.bf16.gmra.mrb[0].mxu0 %v419
      %v772 = vpop.f32.mrb[0].mxu0
      %v773 = vadd.f32 %v458, %v772
      %v774 = vpop.f32.mrb[0].mxu0
      %v775 = vadd.f32 %v462, %v774
      %v776 = vpop.f32.mrb[0].mxu0
      %v777 = vadd.f32 %v458, %v776
      %v778 = vpop.f32.mrb[0].mxu0
      %v779 = vadd.f32 %v462, %v778
      %780 = vmatprep.mubr.bf16.mxu0 0
      %781 = vmatmul.mubr.bf16.gmra.mrb[0].mxu0 %v420
      %v782 = vpop.f32.mrb[0].mxu0
      %v783 = vadd.f32 %v458, %v782
      %v784 = vpop.f32.mrb[0].mxu0
      %v785 = vadd.f32 %v462, %v784
      %v786 = vpop.f32.mrb[0].mxu0
      %v787 = vadd.f32 %v458, %v786
      %v788 = vpop.f32.mrb[0].mxu0
      %v789 = vadd.f32 %v462, %v788
      %790 = vdwg.mxu0
      %791 = vmatprep.subr.bf16.mxu0 0
      %792 = vmatpush1.bf16.msra.mxu0 %v552
      %793 = vmatprep.subr.bf16.mxu0 0
      %794 = vmatpush1.bf16.msra.mxu0 %v555
      %795 = vmatprep.subr.bf16.mxu0 0
      %796 = vmatpush1.bf16.msra.mxu0 %v558
      %797 = vmatprep.subr.bf16.mxu0 0
      %798 = vmatpush1.bf16.msra.mxu0 %v561
      %799 = vmatprep.subr.bf16.mxu0 0
      %800 = vmatpush1.bf16.msra.mxu0 %v564
      %801 = vmatprep.subr.bf16.mxu0 0
      %802 = vmatpush1.bf16.msra.mxu0 %v567
      %803 = vmatprep.subr.bf16.mxu0 0
      %804 = vmatpush1.bf16.msra.mxu0 %v570
      %805 = vmatprep.subr.bf16.mxu0 0
      %806 = vmatpush1.bf16.msra.mxu0 %v573
      %807 = vmatprep.subr.bf16.mxu0 0
      %808 = vmatpush1.bf16.msra.mxu0 0
      %809 = vmatprep.subr.bf16.mxu0 0
      %810 = vmatpush1.bf16.msra.mxu0 0
      %811 = vmatprep.subr.bf16.mxu0 0
      %812 = vmatpush1.bf16.msra.mxu0 0
      %813 = vmatprep.subr.bf16.mxu0 0
      %814 = vmatpush1.bf16.msra.mxu0 0
      %815 = vmatprep.subr.bf16.mxu0 0
      %816 = vmatpush1.bf16.msra.mxu0 0
      %817 = vmatprep.subr.bf16.mxu0 0
      %818 = vmatpush1.bf16.msra.mxu0 0
      %819 = vmatprep.subr.bf16.mxu0 0
      %820 = vmatpush1.bf16.msra.mxu0 0
      %821 = vmatprep.subr.bf16.mxu0 0
      %822 = vmatpush1.bf16.msra.mxu0 0
      %823 = vmatprep.mubr.bf16.mxu0 0
      %824 = vmatmul.mubr.bf16.gmra.mrb[0].mxu0 %v405
      %v825 = vpop.f32.mrb[0].mxu0
      %v826 = vadd.f32 %v466, %v825
      %v827 = vpop.f32.mrb[0].mxu0
      %v828 = vpop.f32.mrb[0].mxu0
      %v829 = vadd.f32 %v466, %v828
      %v830 = vpop.f32.mrb[0].mxu0
      %831 = vmatprep.mubr.bf16.mxu0 0
      %832 = vmatmul.mubr.bf16.gmra.mrb[0].mxu0 %v406
      %v833 = vpop.f32.mrb[0].mxu0
      %v834 = vadd.f32 %v466, %v833
      %v835 = vpop.f32.mrb[0].mxu0
      %v836 = vpop.f32.mrb[0].mxu0
      %v837 = vadd.f32 %v466, %v836
      %v838 = vpop.f32.mrb[0].mxu0
      %839 = vmatprep.mubr.bf16.mxu0 0
      %840 = vmatmul.mubr.bf16.gmra.mrb[0].mxu0 %v407
      %v841 = vpop.f32.mrb[0].mxu0
      %v842 = vadd.f32 %v466, %v841
      %v843 = vpop.f32.mrb[0].mxu0
      %v844 = vpop.f32.mrb[0].mxu0
      %v845 = vadd.f32 %v466, %v844
      %v846 = vpop.f32.mrb[0].mxu0
      %847 = vmatprep.mubr.bf16.mxu0 0
      %848 = vmatmul.mubr.bf16.gmra.mrb[0].mxu0 %v408
      %v849 = vpop.f32.mrb[0].mxu0
      %v850 = vadd.f32 %v466, %v849
      %v851 = vpop.f32.mrb[0].mxu0
      %v852 = vpop.f32.mrb[0].mxu0
      %v853 = vadd.f32 %v466, %v852
      %v854 = vpop.f32.mrb[0].mxu0
      %855 = vmatprep.mubr.bf16.mxu0 0
      %856 = vmatmul.mubr.bf16.gmra.mrb[0].mxu0 %v409
      %v857 = vpop.f32.mrb[0].mxu0
      %v858 = vadd.f32 %v466, %v857
      %v859 = vpop.f32.mrb[0].mxu0
      %v860 = vpop.f32.mrb[0].mxu0
      %v861 = vadd.f32 %v466, %v860
      %v862 = vpop.f32.mrb[0].mxu0
      %863 = vmatprep.mubr.bf16.mxu0 0
      %864 = vmatmul.mubr.bf16.gmra.mrb[0].mxu0 %v410
      %v865 = vpop.f32.mrb[0].mxu0
      %v866 = vadd.f32 %v466, %v865
      %v867 = vpop.f32.mrb[0].mxu0
      %v868 = vpop.f32.mrb[0].mxu0
      %v869 = vadd.f32 %v466, %v868
      %v870 = vpop.f32.mrb[0].mxu0
      %871 = vmatprep.mubr.bf16.mxu0 0
      %872 = vmatmul.mubr.bf16.gmra.mrb[0].mxu0 %v411
      %v873 = vpop.f32.mrb[0].mxu0
      %v874 = vadd.f32 %v466, %v873
      %v875 = vpop.f32.mrb[0].mxu0
      %v876 = vpop.f32.mrb[0].mxu0
      %v877 = vadd.f32 %v466, %v876
      %v878 = vpop.f32.mrb[0].mxu0
      %879 = vmatprep.mubr.bf16.mxu0 0
      %880 = vmatmul.mubr.bf16.gmra.mrb[0].mxu0 %v412
      %v881 = vpop.f32.mrb[0].mxu0
      %v882 = vadd.f32 %v466, %v881
      %v883 = vpop.f32.mrb[0].mxu0
      %v884 = vpop.f32.mrb[0].mxu0
      %v885 = vadd.f32 %v466, %v884
      %v886 = vpop.f32.mrb[0].mxu0
      %887 = vmatprep.mubr.bf16.mxu0 0
      %888 = vmatmul.mubr.bf16.gmra.mrb[0].mxu0 %v413
      %v889 = vpop.f32.mrb[0].mxu0
      %v890 = vadd.f32 %v466, %v889
      %v891 = vpop.f32.mrb[0].mxu0
      %v892 = vpop.f32.mrb[0].mxu0
      %v893 = vadd.f32 %v466, %v892
      %v894 = vpop.f32.mrb[0].mxu0
      %895 = vmatprep.mubr.bf16.mxu0 0
      %896 = vmatmul.mubr.bf16.gmra.mrb[0].mxu0 %v414
      %v897 = vpop.f32.mrb[0].mxu0
      %v898 = vadd.f32 %v466, %v897
      %v899 = vpop.f32.mrb[0].mxu0
      %v900 = vpop.f32.mrb[0].mxu0
      %v901 = vadd.f32 %v466, %v900
      %v902 = vpop.f32.mrb[0].mxu0
      %903 = vmatprep.mubr.bf16.mxu0 0
      %904 = vmatmul.mubr.bf16.gmra.mrb[0].mxu0 %v415
      %v905 = vpop.f32.mrb[0].mxu0
      %v906 = vadd.f32 %v466, %v905
      %v907 = vpop.f32.mrb[0].mxu0
      %v908 = vpop.f32.mrb[0].mxu0
      %v909 = vadd.f32 %v466, %v908
      %v910 = vpop.f32.mrb[0].mxu0
      %911 = vmatprep.mubr.bf16.mxu0 0
      %912 = vmatmul.mubr.bf16.gmra.mrb[0].mxu0 %v416
      %v913 = vpop.f32.mrb[0].mxu0
      %v914 = vadd.f32 %v466, %v913
      %v915 = vpop.f32.mrb[0].mxu0
      %v916 = vpop.f32.mrb[0].mxu0
      %v917 = vadd.f32 %v466, %v916
      %v918 = vpop.f32.mrb[0].mxu0
      %919 = vmatprep.mubr.bf16.mxu0 0
      %920 = vmatmul.mubr.bf16.gmra.mrb[0].mxu0 %v417
      %v921 = vpop.f32.mrb[0].mxu0
      %v922 = vadd.f32 %v466, %v921
      %v923 = vpop.f32.mrb[0].mxu0
      %v924 = vpop.f32.mrb[0].mxu0
      %v925 = vadd.f32 %v466, %v924
      %v926 = vpop.f32.mrb[0].mxu0
      %927 = vmatprep.mubr.bf16.mxu0 0
      %928 = vmatmul.mubr.bf16.gmra.mrb[0].mxu0 %v418
      %v929 = vpop.f32.mrb[0].mxu0
      %v930 = vadd.f32 %v466, %v929
      %v931 = vpop.f32.mrb[0].mxu0
      %v932 = vpop.f32.mrb[0].mxu0
      %v933 = vadd.f32 %v466, %v932
      %v934 = vpop.f32.mrb[0].mxu0
      %935 = vmatprep.mubr.bf16.mxu0 0
      %936 = vmatmul.mubr.bf16.gmra.mrb[0].mxu0 %v419
      %v937 = vpop.f32.mrb[0].mxu0
      %v938 = vadd.f32 %v466, %v937
      %v939 = vpop.f32.mrb[0].mxu0
      %v940 = vpop.f32.mrb[0].mxu0
      %v941 = vadd.f32 %v466, %v940
      %v942 = vpop.f32.mrb[0].mxu0
      %943 = vmatprep.mubr.bf16.mxu0 0
      %944 = vmatmul.mubr.bf16.gmra.mrb[0].mxu0 %v420
      %v945 = vpop.f32.mrb[0].mxu0
      %v946 = vadd.f32 %v466, %v945
      %v947 = vpop.f32.mrb[0].mxu0
      %v948 = vpop.f32.mrb[0].mxu0
      %v949 = vadd.f32 %v466, %v948
      %v950 = vpop.f32.mrb[0].mxu0
      %951 = vdwg.mxu0
      %v952 = vpack.c.bf16 %v637, %v633
      %v953 = vpack.c.bf16 %v639, %v635
      %v954 = vpack.c.bf16 %v829, %v826
      %v955 = vpack.c.bf16 %v647, %v643
      %v956 = vpack.c.bf16 %v649, %v645
      %v957 = vpack.c.bf16 %v837, %v834
      %v958 = vpack.c.bf16 %v657, %v653
      %v959 = vpack.c.bf16 %v659, %v655
      %v960 = vpack.c.bf16 %v845, %v842
      %v961 = vpack.c.bf16 %v667, %v663
      %v962 = vpack.c.bf16 %v669, %v665
      %v963 = vpack.c.bf16 %v853, %v850
      %v964 = vpack.c.bf16 %v677, %v673
      %v965 = vpack.c.bf16 %v679, %v675
      %v966 = vpack.c.bf16 %v861, %v858
      %v967 = vpack.c.bf16 %v687, %v683
      %v968 = vpack.c.bf16 %v689, %v685
      %v969 = vpack.c.bf16 %v869, %v866
      %v970 = vpack.c.bf16 %v697, %v693
      %v971 = vpack.c.bf16 %v699, %v695
      %v972 = vpack.c.bf16 %v877, %v874
      %v973 = vpack.c.bf16 %v707, %v703
      %v974 = vpack.c.bf16 %v709, %v705
      %v975 = vpack.c.bf16 %v885, %v882
      %v976 = vpack.c.bf16 %v717, %v713
      %v977 = vpack.c.bf16 %v719, %v715
      %v978 = vpack.c.bf16 %v893, %v890
      %v979 = vpack.c.bf16 %v727, %v723
      %v980 = vpack.c.bf16 %v729, %v725
      %v981 = vpack.c.bf16 %v901, %v898
      %v982 = vpack.c.bf16 %v737, %v733
      %v983 = vpack.c.bf16 %v739, %v735
      %v984 = vpack.c.bf16 %v909, %v906
      %v985 = vpack.c.bf16 %v747, %v743
      %v986 = vpack.c.bf16 %v749, %v745
      %v987 = vpack.c.bf16 %v917, %v914
      %v988 = vpack.c.bf16 %v757, %v753
      %v989 = vpack.c.bf16 %v759, %v755
      %v990 = vpack.c.bf16 %v925, %v922
      %v991 = vpack.c.bf16 %v767, %v763
      %v992 = vpack.c.bf16 %v769, %v765
      %v993 = vpack.c.bf16 %v933, %v930
      %v994 = vpack.c.bf16 %v777, %v773
      %v995 = vpack.c.bf16 %v779, %v775
      %v996 = vpack.c.bf16 %v941, %v938
      %v997 = vpack.c.bf16 %v787, %v783
      %v998 = vpack.c.bf16 %v789, %v785
      %v999 = vpack.c.bf16 %v949, %v946
      %v1048 = vunpack.c.l.b16 %v952
      %v1049 = vunpack.c.l.b16 %v953
      %v1050 = vunpack.c.l.b16 %v954
      %v1051 = vunpack.c.h.b16 %v952
      %v1052 = vunpack.c.h.b16 %v953
      %v1053 = vunpack.c.h.b16 %v954
      %v1054 = vunpack.c.l.b16 %v955
      %v1055 = vunpack.c.l.b16 %v956
      %v1056 = vunpack.c.l.b16 %v957
      %v1057 = vunpack.c.h.b16 %v955
      %v1058 = vunpack.c.h.b16 %v956
      %v1059 = vunpack.c.h.b16 %v957
      %v1060 = vunpack.c.l.b16 %v958
      %v1061 = vunpack.c.l.b16 %v959
      %v1062 = vunpack.c.l.b16 %v960
      %v1063 = vunpack.c.h.b16 %v958
      %v1064 = vunpack.c.h.b16 %v959
      %v1065 = vunpack.c.h.b16 %v960
      %v1066 = vunpack.c.l.b16 %v961
      %v1067 = vunpack.c.l.b16 %v962
      %v1068 = vunpack.c.l.b16 %v963
      %v1069 = vunpack.c.h.b16 %v961
      %v1070 = vunpack.c.h.b16 %v962
      %v1071 = vunpack.c.h.b16 %v963
      %v1072 = vunpack.c.l.b16 %v964
      %v1073 = vunpack.c.l.b16 %v965
      %v1074 = vunpack.c.l.b16 %v966
      %v1075 = vunpack.c.h.b16 %v964
      %v1076 = vunpack.c.h.b16 %v965
      %v1077 = vunpack.c.h.b16 %v966
      %v1078 = vunpack.c.l.b16 %v967
      %v1079 = vunpack.c.l.b16 %v968
      %v1080 = vunpack.c.l.b16 %v969
      %v1081 = vunpack.c.h.b16 %v967
      %v1082 = vunpack.c.h.b16 %v968
      %v1083 = vunpack.c.h.b16 %v969
      %v1084 = vunpack.c.l.b16 %v970
      %v1085 = vunpack.c.l.b16 %v971
      %v1086 = vunpack.c.l.b16 %v972
      %v1087 = vunpack.c.h.b16 %v970
      %v1088 = vunpack.c.h.b16 %v971
      %v1089 = vunpack.c.h.b16 %v972
      %v1090 = vunpack.c.l.b16 %v973
      %v1091 = vunpack.c.l.b16 %v974
      %v1092 = vunpack.c.l.b16 %v975
      %v1093 = vunpack.c.h.b16 %v973
      %v1094 = vunpack.c.h.b16 %v974
      %v1095 = vunpack.c.h.b16 %v975
      %v1096 = vunpack.c.l.b16 %v976
      %v1097 = vunpack.c.l.b16 %v977
      %v1098 = vunpack.c.l.b16 %v978
      %v1099 = vunpack.c.h.b16 %v976
      %v1100 = vunpack.c.h.b16 %v977
      %v1101 = vunpack.c.h.b16 %v978
      %v1102 = vunpack.c.l.b16 %v979
      %v1103 = vunpack.c.l.b16 %v980
      %v1104 = vunpack.c.l.b16 %v981
      %v1105 = vunpack.c.h.b16 %v979
      %v1106 = vunpack.c.h.b16 %v980
      %v1107 = vunpack.c.h.b16 %v981
      %v1108 = vunpack.c.l.b16 %v982
      %v1109 = vunpack.c.l.b16 %v983
      %v1110 = vunpack.c.l.b16 %v984
      %v1111 = vunpack.c.h.b16 %v982
      %v1112 = vunpack.c.h.b16 %v983
      %v1113 = vunpack.c.h.b16 %v984
      %v1114 = vunpack.c.l.b16 %v985
      %v1115 = vunpack.c.l.b16 %v986
      %v1116 = vunpack.c.l.b16 %v987
      %v1117 = vunpack.c.h.b16 %v985
      %v1118 = vunpack.c.h.b16 %v986
      %v1119 = vunpack.c.h.b16 %v987
      %v1120 = vunpack.c.l.b16 %v988
      %v1121 = vunpack.c.l.b16 %v989
      %v1122 = vunpack.c.l.b16 %v990
      %v1123 = vunpack.c.h.b16 %v988
      %v1124 = vunpack.c.h.b16 %v989
      %v1125 = vunpack.c.h.b16 %v990
      %v1126 = vunpack.c.l.b16 %v991
      %v1127 = vunpack.c.l.b16 %v992
      %v1128 = vunpack.c.l.b16 %v993
      %v1129 = vunpack.c.h.b16 %v991
      %v1130 = vunpack.c.h.b16 %v992
      %v1131 = vunpack.c.h.b16 %v993
      %v1132 = vunpack.c.l.b16 %v994
      %v1133 = vunpack.c.l.b16 %v995
      %v1134 = vunpack.c.l.b16 %v996
      %v1135 = vunpack.c.h.b16 %v994
      %v1136 = vunpack.c.h.b16 %v995
      %v1137 = vunpack.c.h.b16 %v996
      %v1138 = vunpack.c.l.b16 %v997
      %v1139 = vunpack.c.l.b16 %v998
      %v1140 = vunpack.c.l.b16 %v999
      %v1141 = vunpack.c.h.b16 %v997
      %v1142 = vunpack.c.h.b16 %v998
      %v1143 = vunpack.c.h.b16 %v999
      %v1144 = vpack.c.b16 %v1049, %v1048
      %v1145 = vpack.c.b16 %v1050, %v1050
      %v1146 = vpack.c.b16 %v1052, %v1051
      %v1147 = vpack.c.b16 %v1053, %v1053
      %v1148 = vpack.c.b16 %v1055, %v1054
      %v1149 = vpack.c.b16 %v1056, %v1056
      %v1150 = vpack.c.b16 %v1058, %v1057
      %v1151 = vpack.c.b16 %v1059, %v1059
      %v1152 = vpack.c.b16 %v1061, %v1060
      %v1153 = vpack.c.b16 %v1062, %v1062
      %v1154 = vpack.c.b16 %v1064, %v1063
      %v1155 = vpack.c.b16 %v1065, %v1065
      %v1156 = vpack.c.b16 %v1067, %v1066
      %v1157 = vpack.c.b16 %v1068, %v1068
      %v1158 = vpack.c.b16 %v1070, %v1069
      %v1159 = vpack.c.b16 %v1071, %v1071
      %v1160 = vpack.c.b16 %v1073, %v1072
      %v1161 = vpack.c.b16 %v1074, %v1074
      %v1162 = vpack.c.b16 %v1076, %v1075
      %v1163 = vpack.c.b16 %v1077, %v1077
      %v1164 = vpack.c.b16 %v1079, %v1078
      %v1165 = vpack.c.b16 %v1080, %v1080
      %v1166 = vpack.c.b16 %v1082, %v1081
      %v1167 = vpack.c.b16 %v1083, %v1083
      %v1168 = vpack.c.b16 %v1085, %v1084
      %v1169 = vpack.c.b16 %v1086, %v1086
      %v1170 = vpack.c.b16 %v1088, %v1087
      %v1171 = vpack.c.b16 %v1089, %v1089
      %v1172 = vpack.c.b16 %v1091, %v1090
      %v1173 = vpack.c.b16 %v1092, %v1092
      %v1174 = vpack.c.b16 %v1094, %v1093
      %v1175 = vpack.c.b16 %v1095, %v1095
      %v1176 = vpack.c.b16 %v1097, %v1096
      %v1177 = vpack.c.b16 %v1098, %v1098
      %v1178 = vpack.c.b16 %v1100, %v1099
      %v1179 = vpack.c.b16 %v1101, %v1101
      %v1180 = vpack.c.b16 %v1103, %v1102
      %v1181 = vpack.c.b16 %v1104, %v1104
      %v1182 = vpack.c.b16 %v1106, %v1105
      %v1183 = vpack.c.b16 %v1107, %v1107
      %v1184 = vpack.c.b16 %v1109, %v1108
      %v1185 = vpack.c.b16 %v1110, %v1110
      %v1186 = vpack.c.b16 %v1112, %v1111
      %v1187 = vpack.c.b16 %v1113, %v1113
      %v1188 = vpack.c.b16 %v1115, %v1114
      %v1189 = vpack.c.b16 %v1116, %v1116
      %v1190 = vpack.c.b16 %v1118, %v1117
      %v1191 = vpack.c.b16 %v1119, %v1119
      %v1192 = vpack.c.b16 %v1121, %v1120
      %v1193 = vpack.c.b16 %v1122, %v1122
      %v1194 = vpack.c.b16 %v1124, %v1123
      %v1195 = vpack.c.b16 %v1125, %v1125
      %v1196 = vpack.c.b16 %v1127, %v1126
      %v1197 = vpack.c.b16 %v1128, %v1128
      %v1198 = vpack.c.b16 %v1130, %v1129
      %v1199 = vpack.c.b16 %v1131, %v1131
      %v1200 = vpack.c.b16 %v1133, %v1132
      %v1201 = vpack.c.b16 %v1134, %v1134
      %v1202 = vpack.c.b16 %v1136, %v1135
      %v1203 = vpack.c.b16 %v1137, %v1137
      %v1204 = vpack.c.b16 %v1139, %v1138
      %v1205 = vpack.c.b16 %v1140, %v1140
      %v1206 = vpack.c.b16 %v1142, %v1141
      %v1207 = vpack.c.b16 %v1143, %v1143
      %1272 = vst [vmem:[%s292] sm:$0xff] %v1144
      %1273 = vst [vmem:[%s292 + $0x8] sm:$0xf] %v1145
      %1274 = vst [vmem:[%s292 + $0xc] sm:$0xff] %v1146
      %1275 = vst [vmem:[%s292 + $0x14] sm:$0xf] %v1147
      %1276 = vst [vmem:[%s292 + $0x18] sm:$0xff] %v1148
      %1277 = vst [vmem:[%s292 + $0x20] sm:$0xf] %v1149
      %1278 = vst [vmem:[%s292 + $0x24] sm:$0xff] %v1150
      %1279 = vst [vmem:[%s292 + $0x2c] sm:$0xf] %v1151
      %1280 = vst [vmem:[%s292 + $0x30] sm:$0xff] %v1152
      %1281 = vst [vmem:[%s292 + $0x38] sm:$0xf] %v1153
      %1282 = vst [vmem:[%s292 + $0x3c] sm:$0xff] %v1154
      %1283 = vst [vmem:[%s292 + $0x44] sm:$0xf] %v1155
      %1284 = vst [vmem:[%s292 + $0x48] sm:$0xff] %v1156
      %1285 = vst [vmem:[%s292 + $0x50] sm:$0xf] %v1157
      %1286 = vst [vmem:[%s292 + $0x54] sm:$0xff] %v1158
      %1287 = vst [vmem:[%s292 + $0x5c] sm:$0xf] %v1159
      %1288 = vst [vmem:[%s292 + $0x60] sm:$0xff] %v1160
      %1289 = vst [vmem:[%s292 + $0x68] sm:$0xf] %v1161
      %1290 = vst [vmem:[%s292 + $0x6c] sm:$0xff] %v1162
      %1291 = vst [vmem:[%s292 + $0x74] sm:$0xf] %v1163
      %1292 = vst [vmem:[%s292 + $0x78] sm:$0xff] %v1164
      %1293 = vst [vmem:[%s292 + $0x80] sm:$0xf] %v1165
      %1294 = vst [vmem:[%s292 + $0x84] sm:$0xff] %v1166
      %1295 = vst [vmem:[%s292 + $0x8c] sm:$0xf] %v1167
      %1296 = vst [vmem:[%s292 + $0x90] sm:$0xff] %v1168
      %1297 = vst [vmem:[%s292 + $0x98] sm:$0xf] %v1169
      %1298 = vst [vmem:[%s292 + $0x9c] sm:$0xff] %v1170
      %1299 = vst [vmem:[%s292 + $0xa4] sm:$0xf] %v1171
      %1300 = vst [vmem:[%s292 + $0xa8] sm:$0xff] %v1172
      %1301 = vst [vmem:[%s292 + $0xb0] sm:$0xf] %v1173
      %1302 = vst [vmem:[%s292 + $0xb4] sm:$0xff] %v1174
      %1303 = vst [vmem:[%s292 + $0xbc] sm:$0xf] %v1175
      %1304 = vst [vmem:[%s292 + $0xc0] sm:$0xff] %v1176
      %1305 = vst [vmem:[%s292 + $0xc8] sm:$0xf] %v1177
      %1306 = vst [vmem:[%s292 + $0xcc] sm:$0xff] %v1178
      %1307 = vst [vmem:[%s292 + $0xd4] sm:$0xf] %v1179
      %1308 = vst [vmem:[%s292 + $0xd8] sm:$0xff] %v1180
      %1309 = vst [vmem:[%s292 + $0xe0] sm:$0xf] %v1181
      %1310 = vst [vmem:[%s292 + $0xe4] sm:$0xff] %v1182
      %1311 = vst [vmem:[%s292 + $0xec] sm:$0xf] %v1183
      %1312 = vst [vmem:[%s292 + $0xf0] sm:$0xff] %v1184
      %1313 = vst [vmem:[%s292 + $0xf8] sm:$0xf] %v1185
      %1314 = vst [vmem:[%s292 + $0xfc] sm:$0xff] %v1186
      %1315 = vst [vmem:[%s292 + $0x104] sm:$0xf] %v1187
      %1316 = vst [vmem:[%s292 + $0x108] sm:$0xff] %v1188
      %1317 = vst [vmem:[%s292 + $0x110] sm:$0xf] %v1189
      %1318 = vst [vmem:[%s292 + $0x114] sm:$0xff] %v1190
      %1319 = vst [vmem:[%s292 + $0x11c] sm:$0xf] %v1191
      %1320 = vst [vmem:[%s292 + $0x120] sm:$0xff] %v1192
      %1321 = vst [vmem:[%s292 + $0x128] sm:$0xf] %v1193
      %1322 = vst [vmem:[%s292 + $0x12c] sm:$0xff] %v1194
      %1323 = vst [vmem:[%s292 + $0x134] sm:$0xf] %v1195
      %1324 = vst [vmem:[%s292 + $0x138] sm:$0xff] %v1196
      %1325 = vst [vmem:[%s292 + $0x140] sm:$0xf] %v1197
      %1326 = vst [vmem:[%s292 + $0x144] sm:$0xff] %v1198
      %1327 = vst [vmem:[%s292 + $0x14c] sm:$0xf] %v1199
      %1328 = vst [vmem:[%s292 + $0x150] sm:$0xff] %v1200
      %1329 = vst [vmem:[%s292 + $0x158] sm:$0xf] %v1201
      %1330 = vst [vmem:[%s292 + $0x15c] sm:$0xff] %v1202
      %1331 = vst [vmem:[%s292 + $0x164] sm:$0xf] %v1203
      %1332 = vst [vmem:[%s292 + $0x168] sm:$0xff] %v1204
      %1333 = vst [vmem:[%s292 + $0x170] sm:$0xf] %v1205
      %1334 = vst [vmem:[%s292 + $0x174] sm:$0xff] %v1206
      %1335 = vst [vmem:[%s292 + $0x17c] sm:$0xf] %v1207
      %s1336 = smul.u32 32, %s21
      %p1337 = scmp.lt.s32.totalorder %s20, 1
      %s1338 = scalar_select %p1337, %s20, 1
      %p1339 = scmp.lt.s32.totalorder %s1336, 31
      %s1340 = scalar_select %p1339, %s1336, 31
      %s1341 = smul.addr %s1340, 3
      %s1342 = smul.addr %s1338, 96
      %s1343 = sadd.s32 %s1341, %s1342
      %s1344 = smul.addr %s1343, 4
      %s1345 = scalar_lea.vmem %s5, %s1344
      // Predicated region
      $region41: #{self_attention_block.4} parent=39 // pred_check
        %p1346 = pneg %p170
      $region42: #{self_attention_block.4} parent=39 // pred_check_branch
        %1348 = sbr.rel (%p1346) target = $region44
      $region43: #{self_attention_block.4} parent=39 // pred_region
        %s1349 = smul.u32 32, %s21
      $region44: #{self_attention_block.4} parent=39 // pred_fallthru
        _
    $region40: #{self_attention_block.4} parent=5 // pred_fallthru
      _
    %p1350 = scmp.le.s32.totalorder 2, %s11
    // Predicated region
    $region45: #{self_attention_block.4} parent=5 // pred_check
      %p1351 = pneg %p1350
    $region46: #{self_attention_block.4} parent=5 // pred_check_branch
      %1353 = sbr.rel (%p1351) target = $region48
    $region47: #{self_attention_block.4} parent=5 // pred_region
      %s1354 = ssub.s32 %s11, 2
      // Predicated region
      $region49: #{self_attention_block.4} parent=47 // pred_check
        %p1355 = pneg %p176
      $region50: #{self_attention_block.4} parent=47 // pred_check_branch
        %1357 = sbr.rel (%p1355) target = $region52
      $region51: #{self_attention_block.4} parent=47 // pred_region
        %s1358 = smul.u32 32, %s23
        %p1359 = scmp.lt.s32.totalorder %s22, 1
        %s1360 = scalar_select %p1359, %s22, 1
        %p1361 = scmp.lt.s32.totalorder %s1358, 31
        %s1362 = scalar_select %p1361, %s1358, 31
        %s1363 = smul.addr %s1362, 3
        %s1364 = smul.addr %s1360, 96
        %s1365 = sadd.s32 %s1363, %s1364
        %s1366 = smul.addr %s1365, 4
        %s1367 = scalar_lea.vmem %s5, %s1366
      $region52: #{self_attention_block.4} parent=47 // pred_fallthru
        _
    $region48: #{self_attention_block.4} parent=5 // pred_fallthru
      _
  $region6: #{self_attention_block.4} parent=0 // loop_footer
    %s15 = sadd.s32 1, %s11
  $region7: #{self_attention_block.4} parent=0 // loop_footer_branch
    %10 = sbr.rel target = $region3
  $region8: #{self_attention_block.4} parent=0 // loop_exit
    _

// kernel: self_attention_block.5
$region0: #{self_attention_block.5}
  #allocation0 [shape = 'u32[]', space=smem, size = 0x4, offset = 0x4, fixed_abs, tag = 'smem constant byte address 0x4 - core index']
  #allocation1 [shape = 'u32[144,128]{1,0:T(1,128)}', space=vmem, size = 0x12000, scoped, tag = 'internal scratch']
  #allocation2 [shape = 'f32[256,1]{1,0:T(8,128)}', space=vmem, size = 0x20000, scoped, tag = 'scratch operand']
  #allocation3 [shape = 'f32[256,1]{1,0:T(8,128)}', space=vmem, size = 0x20000, scoped, tag = 'scratch operand']
  %s0 = inlined_call_operand.vmem [shape: bf16[2,256,384], index: 0, kind: input, shape index: {}, may-alias: {0,1,2}]
  %s1 = inlined_call_operand.vmem [shape: bf16[2,256,384], index: 1, kind: input, shape index: {}, may-alias: {0,1,2}]
  %s2 = inlined_call_operand.vmem [shape: bf16[2,256,384], index: 2, kind: input, shape index: {}, may-alias: {0,1,2}]
  %s3 = inlined_call_operand.vmem [shape: f32[1,256], index: 3, kind: input, shape index: {}]
  %s4 = inlined_call_operand.vmem [shape: f32[2,256,128], index: 4, kind: input, shape index: {}]
  %s5 = inlined_call_operand.vmem [shape: bf16[128,128], index: 5, kind: input, shape index: {}]
  %s6 = inlined_call_operand.vmem [shape: f32[1,128], index: 6, kind: input, shape index: {}]
  %s7 = inlined_call_operand.hbm [shape: f32[2,256,128], index: 7, kind: output, shape index: {}]
  %s8 = sld [smem:[#allocation0]]
  $region192: #{self_attention_block.5} parent=0
    _
  %s10 = ssub.s32 1, %s8
  %s11 = scalar_select 0, %s10, %s8
  $region1: #{self_attention_block.5} parent=0
    #allocation4 [shape = 'u8[131072]{0}', space=vmem, size = 0x20000, scoped, tag = 'input window, operand 0']
    #allocation5 [shape = 'u8[131072]{0}', space=vmem, size = 0x20000, scoped, tag = 'input window, operand 1']
    #allocation6 [shape = 'u8[131072]{0}', space=vmem, size = 0x20000, scoped, tag = 'input window, operand 2']
    #allocation7 [shape = 'u8[262144]{0}', space=vmem, size = 0x40000, scoped, tag = 'output window, operand 0']
    #allocation8 [shape = 's32[2]{0}', space=sflag, size = 0x8, scoped, tag = 'scoped memory for self_attention_block.5']
    %12 = vsyncpa [#allocation8], 0
    %s13 = scalar_lea.sflag [#allocation8], 1
    %14 = vsyncpa %s13, 0
    loop: start=0, step=1, limit=4
    $region2: #{self_attention_block.5} parent=1 // loop_pre_header
      _
    $region3: #{self_attention_block.5} parent=1 // loop_header
      %s16 = sphi 0, %s20
      %p17 = scmp.ge.s32.totalorder %s16, 4
      %s23 = sphi 0, %s42
      %s24 = sphi 0, %s38
      %s25 = sphi 0, %s34
      %s26 = sphi 0, %s23
      %s27 = sphi 0, %s24
      %s28 = sphi 0, %s25
      %s29 = sphi 0, %s26
      %s30 = sphi 0, %s27
      %s31 = sphi 0, %s28
      %s47 = sphi 0, %s49
      %s50 = sphi 0, %s47
      %s51 = sphi 0, %s50
      %s67 = sphi 0, %s51
      %s75 = sphi 0, %s77
      %s78 = sphi 0, %s75
      %s79 = sphi 0, %s78
      %s95 = sphi 0, %s79
      %s103 = sphi 0, %s105
      %s106 = sphi 0, %s103
      %s107 = sphi 0, %s106
      %s123 = sphi 0, %s107
      %s129 = sphi 0, %s131
      %s132 = sphi 0, %s129
      %s133 = sphi 0, %s132
      %s149 = sphi 0, %s133
      %s157 = sphi 0, %s159
      %s160 = sphi 0, %s157
      %s161 = sphi 0, %s160
      %s177 = sphi 0, %s161
      %s181 = sphi 0, %s181
      %s183 = sphi 0, %s181
      %s184 = sphi 0, %s183
      %s198 = sphi 0, %s184
      %s202 = sphi 0, %s202
      %s204 = sphi 0, %s202
      %s205 = sphi 0, %s204
      %s219 = sphi 0, %s205
      %s227 = sphi 0, %s229
      %s230 = sphi 0, %s227
      %s231 = sphi 0, %s230
      %s247 = sphi 0, %s231
    $region4: #{self_attention_block.5} parent=1 // loop_header_branch
      %19 = sbr.rel (%p17) target = $region8
    $region5: #{self_attention_block.5} parent=1 // loop_body
      %s21 = ssub.s32 %s16, 1
      %s22 = ssub.s32 %s16, 2
      %s32 = sadd.s32 1, %s25
      %p33 = scmp.ge.s32.totalorder %s32, 1
      %s34 = scalar_select %p33, 0, %s32
      %s35 = sadd.s32 1, %s24
      %s36 = scalar_select %p33, %s35, %s24
      %p37 = scmp.ge.s32.totalorder %s36, 1
      %s38 = scalar_select %p37, 0, %s36
      %s39 = sadd.s32 1, %s23
      %s40 = scalar_select %p37, %s39, %s23
      %p41 = scmp.ge.s32.totalorder %s40, 2
      %s42 = scalar_select %p41, 0, %s40
      %s43 = ssub.s32 %s23, %s42
      %s44 = ssub.s32 %s24, %s38
      %s45 = sor.u32 %s43, %s44
      %p46 = scmp.eq.s32.totalorder %s45, 0
      %s48 = sadd.s32 %s47, 1
      %s49 = scalar_select %p46, %s47, %s48
      %p52 = pneg %p46
      %p53 = scmp.eq.s32.totalorder %s16, 1
      %p54 = por %p52, %p53
      %p55 = scmp.ne.s32.totalorder %s47, %s50
      %p56 = scmp.eq.s32.totalorder %s16, 0
      %p57 = por %p55, %p56
      %p58 = scmp.ne.s32.totalorder %s47, %s50
      %p59 = scmp.eq.s32.totalorder %s21, 1
      %p60 = por %p58, %p59
      %p61 = scmp.ne.s32.totalorder %s50, %s51
      %p62 = scmp.eq.s32.totalorder %s21, 0
      %p63 = por %p61, %p62
      %p64 = scmp.ne.s32.totalorder %s50, %s51
      %p65 = scmp.eq.s32.totalorder %s22, 1
      %p66 = por %p64, %p65
      %p68 = scmp.ne.s32.totalorder %s51, %s67
      %p69 = scmp.eq.s32.totalorder %s22, 0
      %p70 = por %p68, %p69
      %s71 = ssub.s32 %s23, %s42
      %s72 = ssub.s32 %s25, %s34
      %s73 = sor.u32 %s71, %s72
      %p74 = scmp.eq.s32.totalorder %s73, 0
      %s76 = sadd.s32 %s75, 1
      %s77 = scalar_select %p74, %s75, %s76
      %p80 = pneg %p74
      %p81 = scmp.eq.s32.totalorder %s16, 1
      %p82 = por %p80, %p81
      %p83 = scmp.ne.s32.totalorder %s75, %s78
      %p84 = scmp.eq.s32.totalorder %s16, 0
      %p85 = por %p83, %p84
      %p86 = scmp.ne.s32.totalorder %s75, %s78
      %p87 = scmp.eq.s32.totalorder %s21, 1
      %p88 = por %p86, %p87
      %p89 = scmp.ne.s32.totalorder %s78, %s79
      %p90 = scmp.eq.s32.totalorder %s21, 0
      %p91 = por %p89, %p90
      %p92 = scmp.ne.s32.totalorder %s78, %s79
      %p93 = scmp.eq.s32.totalorder %s22, 1
      %p94 = por %p92, %p93
      %p96 = scmp.ne.s32.totalorder %s79, %s95
      %p97 = scmp.eq.s32.totalorder %s22, 0
      %p98 = por %p96, %p97
      %s99 = ssub.s32 %s23, %s42
      %s100 = ssub.s32 %s25, %s34
      %s101 = sor.u32 %s99, %s100
      %p102 = scmp.eq.s32.totalorder %s101, 0
      %s104 = sadd.s32 %s103, 1
      %s105 = scalar_select %p102, %s103, %s104
      %p108 = pneg %p102
      %p109 = scmp.eq.s32.totalorder %s16, 1
      %p110 = por %p108, %p109
      %p111 = scmp.ne.s32.totalorder %s103, %s106
      %p112 = scmp.eq.s32.totalorder %s16, 0
      %p113 = por %p111, %p112
      %p114 = scmp.ne.s32.totalorder %s103, %s106
      %p115 = scmp.eq.s32.totalorder %s21, 1
      %p116 = por %p114, %p115
      %p117 = scmp.ne.s32.totalorder %s106, %s107
      %p118 = scmp.eq.s32.totalorder %s21, 0
      %p119 = por %p117, %p118
      %p120 = scmp.ne.s32.totalorder %s106, %s107
      %p121 = scmp.eq.s32.totalorder %s22, 1
      %p122 = por %p120, %p121
      %p124 = scmp.ne.s32.totalorder %s107, %s123
      %p125 = scmp.eq.s32.totalorder %s22, 0
      %p126 = por %p124, %p125
      %s127 = ssub.s32 %s25, %s34
      %p128 = scmp.eq.s32.totalorder %s127, 0
      %s130 = sadd.s32 %s129, 1
      %s131 = scalar_select %p128, %s129, %s130
      %p134 = pneg %p128
      %p135 = scmp.eq.s32.totalorder %s16, 1
      %p136 = por %p134, %p135
      %p137 = scmp.ne.s32.totalorder %s129, %s132
      %p138 = scmp.eq.s32.totalorder %s16, 0
      %p139 = por %p137, %p138
      %p140 = scmp.ne.s32.totalorder %s129, %s132
      %p141 = scmp.eq.s32.totalorder %s21, 1
      %p142 = por %p140, %p141
      %p143 = scmp.ne.s32.totalorder %s132, %s133
      %p144 = scmp.eq.s32.totalorder %s21, 0
      %p145 = por %p143, %p144
      %p146 = scmp.ne.s32.totalorder %s132, %s133
      %p147 = scmp.eq.s32.totalorder %s22, 1
      %p148 = por %p146, %p147
      %p150 = scmp.ne.s32.totalorder %s133, %s149
      %p151 = scmp.eq.s32.totalorder %s22, 0
      %p152 = por %p150, %p151
      %s153 = ssub.s32 %s23, %s42
      %s154 = ssub.s32 %s24, %s38
      %s155 = sor.u32 %s153, %s154
      %p156 = scmp.eq.s32.totalorder %s155, 0
      %s158 = sadd.s32 %s157, 1
      %s159 = scalar_select %p156, %s157, %s158
      %p162 = pneg %p156
      %p163 = scmp.eq.s32.totalorder %s16, 1
      %p164 = por %p162, %p163
      %p165 = scmp.ne.s32.totalorder %s157, %s160
      %p166 = scmp.eq.s32.totalorder %s16, 0
      %p167 = por %p165, %p166
      %p168 = scmp.ne.s32.totalorder %s157, %s160
      %p169 = scmp.eq.s32.totalorder %s21, 1
      %p170 = por %p168, %p169
      %p171 = scmp.ne.s32.totalorder %s160, %s161
      %p172 = scmp.eq.s32.totalorder %s21, 0
      %p173 = por %p171, %p172
      %p174 = scmp.ne.s32.totalorder %s160, %s161
      %p175 = scmp.eq.s32.totalorder %s22, 1
      %p176 = por %p174, %p175
      %p178 = scmp.ne.s32.totalorder %s161, %s177
      %p179 = scmp.eq.s32.totalorder %s22, 0
      %p180 = por %p178, %p179
      %s182 = sadd.s32 %s181, 1
      %p185 = scmp.eq.s32.totalorder %s16, 1
      %p186 = scmp.ne.s32.totalorder %s181, %s183
      %p187 = scmp.eq.s32.totalorder %s16, 0
      %p188 = por %p186, %p187
      %p189 = scmp.ne.s32.totalorder %s181, %s183
      %p190 = scmp.eq.s32.totalorder %s21, 1
      %p191 = por %p189, %p190
      %p192 = scmp.ne.s32.totalorder %s183, %s184
      %p193 = scmp.eq.s32.totalorder %s21, 0
      %p194 = por %p192, %p193
      %p195 = scmp.ne.s32.totalorder %s183, %s184
      %p196 = scmp.eq.s32.totalorder %s22, 1
      %p197 = por %p195, %p196
      %p199 = scmp.ne.s32.totalorder %s184, %s198
      %p200 = scmp.eq.s32.totalorder %s22, 0
      %p201 = por %p199, %p200
      %s203 = sadd.s32 %s202, 1
      %p206 = scmp.eq.s32.totalorder %s16, 1
      %p207 = scmp.ne.s32.totalorder %s202, %s204
      %p208 = scmp.eq.s32.totalorder %s16, 0
      %p209 = por %p207, %p208
      %p210 = scmp.ne.s32.totalorder %s202, %s204
      %p211 = scmp.eq.s32.totalorder %s21, 1
      %p212 = por %p210, %p211
      %p213 = scmp.ne.s32.totalorder %s204, %s205
      %p214 = scmp.eq.s32.totalorder %s21, 0
      %p215 = por %p213, %p214
      %p216 = scmp.ne.s32.totalorder %s204, %s205
      %p217 = scmp.eq.s32.totalorder %s22, 1
      %p218 = por %p216, %p217
      %p220 = scmp.ne.s32.totalorder %s205, %s219
      %p221 = scmp.eq.s32.totalorder %s22, 0
      %p222 = por %p220, %p221
      %s223 = ssub.s32 %s23, %s42
      %s224 = ssub.s32 %s24, %s38
      %s225 = sor.u32 %s223, %s224
      %p226 = scmp.eq.s32.totalorder %s225, 0
      %s228 = sadd.s32 %s227, 1
      %s229 = scalar_select %p226, %s227, %s228
      %p232 = pneg %p226
      %p233 = scmp.eq.s32.totalorder %s16, 1
      %p234 = por %p232, %p233
      %p235 = scmp.ne.s32.totalorder %s227, %s230
      %p236 = scmp.eq.s32.totalorder %s16, 0
      %p237 = por %p235, %p236
      %p238 = scmp.ne.s32.totalorder %s227, %s230
      %p239 = scmp.eq.s32.totalorder %s21, 1
      %p240 = por %p238, %p239
      %p241 = scmp.ne.s32.totalorder %s230, %s231
      %p242 = scmp.eq.s32.totalorder %s21, 0
      %p243 = por %p241, %p242
      %p244 = scmp.ne.s32.totalorder %s230, %s231
      %p245 = scmp.eq.s32.totalorder %s22, 1
      %p246 = por %p244, %p245
      %p248 = scmp.ne.s32.totalorder %s231, %s247
      %p249 = scmp.eq.s32.totalorder %s22, 0
      %p250 = por %p248, %p249
      %p251 = scmp.le.s32.totalorder 1, %s16
      %p252 = scmp.lt.s32.totalorder %s16, 3
      %p253 = pnand %p251, %p252
      %p254 = pneg %p253
      // Predicated region
      $region9: #{self_attention_block.5} parent=5 // pred_check
        _
      $region10: #{self_attention_block.5} parent=5 // pred_check_branch
        %256 = sbr.rel (%p253) target = $region12
      $region11: #{self_attention_block.5} parent=5 // pred_region
        %s257 = ssub.s32 %s16, 1
        // Predicated region
        $region13: #{self_attention_block.5} parent=11 // pred_check
          %p258 = pneg %p145
        $region14: #{self_attention_block.5} parent=11 // pred_check_branch
          %260 = sbr.rel (%p258) target = $region16
        $region15: #{self_attention_block.5} parent=11 // pred_region
          %s261 = smul.u32 2, %s28
          %p262 = scmp.lt.s32.totalorder %s261, 1
          %s263 = scalar_select %p262, %s261, 1
          %s264 = scalar_lea.vmem %s3, %s263
          %s265 = smul.u32 2, %s28
        $region16: #{self_attention_block.5} parent=11 // pred_fallthru
          _
        // Predicated region
        $region17: #{self_attention_block.5} parent=11 // pred_check
          %p266 = pneg %p194
        $region18: #{self_attention_block.5} parent=11 // pred_check_branch
          %268 = sbr.rel (%p266) target = $region20
        $region19: #{self_attention_block.5} parent=11 // pred_region
          _
        $region20: #{self_attention_block.5} parent=11 // pred_fallthru
          _
        // Predicated region
        $region21: #{self_attention_block.5} parent=11 // pred_check
          %p269 = pneg %p215
        $region22: #{self_attention_block.5} parent=11 // pred_check_branch
          %271 = sbr.rel (%p269) target = $region24
        $region23: #{self_attention_block.5} parent=11 // pred_region
          _
        $region24: #{self_attention_block.5} parent=11 // pred_fallthru
          _
      $region12: #{self_attention_block.5} parent=5 // pred_fallthru
        _
      %p272 = scmp.lt.s32.totalorder %s16, 2
      // Predicated region
      $region25: #{self_attention_block.5} parent=5 // pred_check
        %p273 = pneg %p272
      $region26: #{self_attention_block.5} parent=5 // pred_check_branch
        %275 = sbr.rel (%p273) target = $region28
      $region27: #{self_attention_block.5} parent=5 // pred_region
        // Predicated region
        $region29: #{self_attention_block.5} parent=27 // pred_check
          %p276 = pneg %p57
        $region30: #{self_attention_block.5} parent=27 // pred_check_branch
          %278 = sbr.rel (%p276) target = $region32
        $region31: #{self_attention_block.5} parent=27 // pred_region
          %s279 = sand.u32 %s47, 1
          %s280 = sand.u32 %s47, 1
          %s281 = smul.addr %s280, 128
          %s282 = scalar_lea.vmem [#allocation4], %s281
          %s283 = smul.u32 32, %s24
          %s284 = smul.addr %s283, 3
          %s285 = smul.addr %s23, 96
          %s286 = sadd.s32 %s284, %s285
          %s287 = smul.addr %s286, 4
          %s288 = scalar_lea.vmem %s0, %s287
          // Predicated region
          $region33: #{self_attention_block.5} parent=31 // pred_check
            _
          $region34: #{self_attention_block.5} parent=31 // pred_check_branch
            %290 = sbr.rel (0) target = $region36
          $region35: #{self_attention_block.5} parent=31 // pred_region
            // Predicated region
            $region37: #{self_attention_block.5} parent=35 // pred_check
              _
            $region38: #{self_attention_block.5} parent=35 // pred_check_branch
              %292 = sbr.rel target = $region40
            $region39: #{self_attention_block.5} parent=35 // pred_region
              // Predicated region
              $region52: #{self_attention_block.5} parent=39 // pred_check
                _
              $region53: #{self_attention_block.5} parent=39 // pred_check_branch
                %369 = sbr.rel (0) target = $region55
              $region54: #{self_attention_block.5} parent=39 // pred_region
                loop: start=0, step=1, limit=1
                $region56: #{self_attention_block.5} parent=54 // loop_pre_header
                  _
                $region57: #{self_attention_block.5} parent=54 // loop_header
                  %s371 = sphi 0, %s375
                  %p372 = scmp.ge.s32.totalorder %s371, 1
                  %s376 = sphi %s288, %s288
                  %s377 = sphi %s282, %s282
                $region58: #{self_attention_block.5} parent=54 // loop_header_branch
                  %374 = sbr.rel (%p372) target = $region62
                $region59: #{self_attention_block.5} parent=54 // loop_body
                  _
                $region60: #{self_attention_block.5} parent=54 // loop_footer
                  %s375 = sadd.s32 1, %s371
                $region61: #{self_attention_block.5} parent=54 // loop_footer_branch
                  %370 = sbr.rel target = $region57
                $region62: #{self_attention_block.5} parent=54 // loop_exit
                  _
                loop: start=0, step=1, limit=1
                $region63: #{self_attention_block.5} parent=54 // loop_pre_header
                  _
                $region64: #{self_attention_block.5} parent=54 // loop_header
                  %s380 = sphi 0, %s384
                  %p381 = scmp.ge.s32.totalorder %s380, 1
                  %s385 = sphi %s288, %s288
                  %s386 = sphi %s282, %s282
                $region65: #{self_attention_block.5} parent=54 // loop_header_branch
                  %383 = sbr.rel (%p381) target = $region69
                $region66: #{self_attention_block.5} parent=54 // loop_body
                  %v387 = vld [vmem:[%s385] sm:$0xf]
                  %388 = vst [vmem:[%s386] sm:$0xf] %v387
                  %v389 = vld [vmem:[%s385 + $0xc] sm:$0xf]
                  %390 = vst [vmem:[%s386 + $0x4] sm:$0xf] %v389
                  %v391 = vld [vmem:[%s385 + $0x18] sm:$0xf]
                  %392 = vst [vmem:[%s386 + $0x8] sm:$0xf] %v391
                  %v393 = vld [vmem:[%s385 + $0x24] sm:$0xf]
                  %394 = vst [vmem:[%s386 + $0xc] sm:$0xf] %v393
                  %v395 = vld [vmem:[%s385 + $0x30] sm:$0xf]
                  %396 = vst [vmem:[%s386 + $0x10] sm:$0xf] %v395
                  %v397 = vld [vmem:[%s385 + $0x3c] sm:$0xf]
                  %398 = vst [vmem:[%s386 + $0x14] sm:$0xf] %v397
                  %v399 = vld [vmem:[%s385 + $0x48] sm:$0xf]
                  %400 = vst [vmem:[%s386 + $0x18] sm:$0xf] %v399
                  %v401 = vld [vmem:[%s385 + $0x54] sm:$0xf]
                  %402 = vst [vmem:[%s386 + $0x1c] sm:$0xf] %v401
                  %v403 = vld [vmem:[%s385 + $0x60] sm:$0xf]
                  %404 = vst [vmem:[%s386 + $0x20] sm:$0xf] %v403
                  %v405 = vld [vmem:[%s385 + $0x6c] sm:$0xf]
                  %406 = vst [vmem:[%s386 + $0x24] sm:$0xf] %v405
                  %v407 = vld [vmem:[%s385 + $0x78] sm:$0xf]
                  %408 = vst [vmem:[%s386 + $0x28] sm:$0xf] %v407
                  %v409 = vld [vmem:[%s385 + $0x84] sm:$0xf]
                  %410 = vst [vmem:[%s386 + $0x2c] sm:$0xf] %v409
                  %v411 = vld [vmem:[%s385 + $0x90] sm:$0xf]
                  %412 = vst [vmem:[%s386 + $0x30] sm:$0xf] %v411
                  %v413 = vld [vmem:[%s385 + $0x9c] sm:$0xf]
                  %414 = vst [vmem:[%s386 + $0x34] sm:$0xf] %v413
                  %v415 = vld [vmem:[%s385 + $0xa8] sm:$0xf]
                  %416 = vst [vmem:[%s386 + $0x38] sm:$0xf] %v415
                  %v417 = vld [vmem:[%s385 + $0xb4] sm:$0xf]
                  %418 = vst [vmem:[%s386 + $0x3c] sm:$0xf] %v417
                  %v419 = vld [vmem:[%s385 + $0xc0] sm:$0xf]
                  %420 = vst [vmem:[%s386 + $0x40] sm:$0xf] %v419
                  %v421 = vld [vmem:[%s385 + $0xcc] sm:$0xf]
                  %422 = vst [vmem:[%s386 + $0x44] sm:$0xf] %v421
                  %v423 = vld [vmem:[%s385 + $0xd8] sm:$0xf]
                  %424 = vst [vmem:[%s386 + $0x48] sm:$0xf] %v423
                  %v425 = vld [vmem:[%s385 + $0xe4] sm:$0xf]
                  %426 = vst [vmem:[%s386 + $0x4c] sm:$0xf] %v425
                  %v427 = vld [vmem:[%s385 + $0xf0] sm:$0xf]
                  %428 = vst [vmem:[%s386 + $0x50] sm:$0xf] %v427
                  %v429 = vld [vmem:[%s385 + $0xfc] sm:$0xf]
                  %430 = vst [vmem:[%s386 + $0x54] sm:$0xf] %v429
                  %v431 = vld [vmem:[%s385 + $0x108] sm:$0xf]
                  %432 = vst [vmem:[%s386 + $0x58] sm:$0xf] %v431
                  %v433 = vld [vmem:[%s385 + $0x114] sm:$0xf]
                  %434 = vst [vmem:[%s386 + $0x5c] sm:$0xf] %v433
                  %v435 = vld [vmem:[%s385 + $0x120] sm:$0xf]
                  %436 = vst [vmem:[%s386 + $0x60] sm:$0xf] %v435
                  %v437 = vld [vmem:[%s385 + $0x12c] sm:$0xf]
                  %438 = vst [vmem:[%s386 + $0x64] sm:$0xf] %v437
                  %v439 = vld [vmem:[%s385 + $0x138] sm:$0xf]
                  %440 = vst [vmem:[%s386 + $0x68] sm:$0xf] %v439
                  %v441 = vld [vmem:[%s385 + $0x144] sm:$0xf]
                  %442 = vst [vmem:[%s386 + $0x6c] sm:$0xf] %v441
                  %v443 = vld [vmem:[%s385 + $0x150] sm:$0xf]
                  %444 = vst [vmem:[%s386 + $0x70] sm:$0xf] %v443
                  %v445 = vld [vmem:[%s385 + $0x15c] sm:$0xf]
                  %446 = vst [vmem:[%s386 + $0x74] sm:$0xf] %v445
                  %v447 = vld [vmem:[%s385 + $0x168] sm:$0xf]
                  %448 = vst [vmem:[%s386 + $0x78] sm:$0xf] %v447
                  %v449 = vld [vmem:[%s385 + $0x174] sm:$0xf]
                  %450 = vst [vmem:[%s386 + $0x7c] sm:$0xf] %v449
                $region67: #{self_attention_block.5} parent=54 // loop_footer
                  %s384 = sadd.s32 1, %s380
                $region68: #{self_attention_block.5} parent=54 // loop_footer_branch
                  %379 = sbr.rel target = $region64
                $region69: #{self_attention_block.5} parent=54 // loop_exit
                  _
              $region55: #{self_attention_block.5} parent=39 // pred_fallthru
                _
            $region40: #{self_attention_block.5} parent=35 // pred_fallthru
              _
            // Predicated region
            $region41: #{self_attention_block.5} parent=35 // pred_check
              _
            $region42: #{self_attention_block.5} parent=35 // pred_check_branch
              %294 = sbr.rel (0) target = $region44
            $region43: #{self_attention_block.5} parent=35 // pred_region
              loop: start=0, step=1, limit=1
              $region45: #{self_attention_block.5} parent=43 // loop_pre_header
                _
              $region46: #{self_attention_block.5} parent=43 // loop_header
                %s297 = sphi 0, %s301
                %p298 = scmp.ge.s32.totalorder %s297, 1
                %s302 = sphi %s288, %s288
                %s303 = sphi %s282, %s282
              $region47: #{self_attention_block.5} parent=43 // loop_header_branch
                %300 = sbr.rel (%p298) target = $region51
              $region48: #{self_attention_block.5} parent=43 // loop_body
                %v304 = vld [vmem:[%s302] sm:$0xf]
                %305 = vst [vmem:[%s303] sm:$0xf] %v304
                %v306 = vld [vmem:[%s302 + $0xc] sm:$0xf]
                %307 = vst [vmem:[%s303 + $0x4] sm:$0xf] %v306
                %v308 = vld [vmem:[%s302 + $0x18] sm:$0xf]
                %309 = vst [vmem:[%s303 + $0x8] sm:$0xf] %v308
                %v310 = vld [vmem:[%s302 + $0x24] sm:$0xf]
                %311 = vst [vmem:[%s303 + $0xc] sm:$0xf] %v310
                %v312 = vld [vmem:[%s302 + $0x30] sm:$0xf]
                %313 = vst [vmem:[%s303 + $0x10] sm:$0xf] %v312
                %v314 = vld [vmem:[%s302 + $0x3c] sm:$0xf]
                %315 = vst [vmem:[%s303 + $0x14] sm:$0xf] %v314
                %v316 = vld [vmem:[%s302 + $0x48] sm:$0xf]
                %317 = vst [vmem:[%s303 + $0x18] sm:$0xf] %v316
                %v318 = vld [vmem:[%s302 + $0x54] sm:$0xf]
                %319 = vst [vmem:[%s303 + $0x1c] sm:$0xf] %v318
                %v320 = vld [vmem:[%s302 + $0x60] sm:$0xf]
                %321 = vst [vmem:[%s303 + $0x20] sm:$0xf] %v320
                %v322 = vld [vmem:[%s302 + $0x6c] sm:$0xf]
                %323 = vst [vmem:[%s303 + $0x24] sm:$0xf] %v322
                %v324 = vld [vmem:[%s302 + $0x78] sm:$0xf]
                %325 = vst [vmem:[%s303 + $0x28] sm:$0xf] %v324
                %v326 = vld [vmem:[%s302 + $0x84] sm:$0xf]
                %327 = vst [vmem:[%s303 + $0x2c] sm:$0xf] %v326
                %v328 = vld [vmem:[%s302 + $0x90] sm:$0xf]
                %329 = vst [vmem:[%s303 + $0x30] sm:$0xf] %v328
                %v330 = vld [vmem:[%s302 + $0x9c] sm:$0xf]
                %331 = vst [vmem:[%s303 + $0x34] sm:$0xf] %v330
                %v332 = vld [vmem:[%s302 + $0xa8] sm:$0xf]
                %333 = vst [vmem:[%s303 + $0x38] sm:$0xf] %v332
                %v334 = vld [vmem:[%s302 + $0xb4] sm:$0xf]
                %335 = vst [vmem:[%s303 + $0x3c] sm:$0xf] %v334
                %v336 = vld [vmem:[%s302 + $0xc0] sm:$0xf]
                %337 = vst [vmem:[%s303 + $0x40] sm:$0xf] %v336
                %v338 = vld [vmem:[%s302 + $0xcc] sm:$0xf]
                %339 = vst [vmem:[%s303 + $0x44] sm:$0xf] %v338
                %v340 = vld [vmem:[%s302 + $0xd8] sm:$0xf]
                %341 = vst [vmem:[%s303 + $0x48] sm:$0xf] %v340
                %v342 = vld [vmem:[%s302 + $0xe4] sm:$0xf]
                %343 = vst [vmem:[%s303 + $0x4c] sm:$0xf] %v342
                %v344 = vld [vmem:[%s302 + $0xf0] sm:$0xf]
                %345 = vst [vmem:[%s303 + $0x50] sm:$0xf] %v344
                %v346 = vld [vmem:[%s302 + $0xfc] sm:$0xf]
                %347 = vst [vmem:[%s303 + $0x54] sm:$0xf] %v346
                %v348 = vld [vmem:[%s302 + $0x108] sm:$0xf]
                %349 = vst [vmem:[%s303 + $0x58] sm:$0xf] %v348
                %v350 = vld [vmem:[%s302 + $0x114] sm:$0xf]
                %351 = vst [vmem:[%s303 + $0x5c] sm:$0xf] %v350
                %v352 = vld [vmem:[%s302 + $0x120] sm:$0xf]
                %353 = vst [vmem:[%s303 + $0x60] sm:$0xf] %v352
                %v354 = vld [vmem:[%s302 + $0x12c] sm:$0xf]
                %355 = vst [vmem:[%s303 + $0x64] sm:$0xf] %v354
                %v356 = vld [vmem:[%s302 + $0x138] sm:$0xf]
                %357 = vst [vmem:[%s303 + $0x68] sm:$0xf] %v356
                %v358 = vld [vmem:[%s302 + $0x144] sm:$0xf]
                %359 = vst [vmem:[%s303 + $0x6c] sm:$0xf] %v358
                %v360 = vld [vmem:[%s302 + $0x150] sm:$0xf]
                %361 = vst [vmem:[%s303 + $0x70] sm:$0xf] %v360
                %v362 = vld [vmem:[%s302 + $0x15c] sm:$0xf]
                %363 = vst [vmem:[%s303 + $0x74] sm:$0xf] %v362
                %v364 = vld [vmem:[%s302 + $0x168] sm:$0xf]
                %365 = vst [vmem:[%s303 + $0x78] sm:$0xf] %v364
                %v366 = vld [vmem:[%s302 + $0x174] sm:$0xf]
                %367 = vst [vmem:[%s303 + $0x7c] sm:$0xf] %v366
              $region49: #{self_attention_block.5} parent=43 // loop_footer
                %s301 = sadd.s32 1, %s297
              $region50: #{self_attention_block.5} parent=43 // loop_footer_branch
                %296 = sbr.rel target = $region46
              $region51: #{self_attention_block.5} parent=43 // loop_exit
                _
            $region44: #{self_attention_block.5} parent=35 // pred_fallthru
              _
          $region36: #{self_attention_block.5} parent=31 // pred_fallthru
            _
          %451 = vnop
        $region32: #{self_attention_block.5} parent=27 // pred_fallthru
          _
        // Predicated region
        $region70: #{self_attention_block.5} parent=27 // pred_check
          %p452 = pneg %p85
        $region71: #{self_attention_block.5} parent=27 // pred_check_branch
          %454 = sbr.rel (%p452) target = $region73
        $region72: #{self_attention_block.5} parent=27 // pred_region
          %s455 = sand.u32 %s75, 1
          %s456 = sand.u32 %s75, 1
          %s457 = smul.addr %s456, 128
          %s458 = scalar_lea.vmem [#allocation5], %s457
          %s459 = smul.u32 32, %s25
          %s460 = smul.addr %s459, 3
          %s461 = sadd.s32 1, %s460
          %s462 = smul.addr %s23, 96
          %s463 = sadd.s32 %s461, %s462
          %s464 = smul.addr %s463, 4
          %s465 = scalar_lea.vmem %s1, %s464
          // Predicated region
          $region74: #{self_attention_block.5} parent=72 // pred_check
            _
          $region75: #{self_attention_block.5} parent=72 // pred_check_branch
            %467 = sbr.rel (0) target = $region77
          $region76: #{self_attention_block.5} parent=72 // pred_region
            // Predicated region
            $region78: #{self_attention_block.5} parent=76 // pred_check
              _
            $region79: #{self_attention_block.5} parent=76 // pred_check_branch
              %469 = sbr.rel target = $region81
            $region80: #{self_attention_block.5} parent=76 // pred_region
              // Predicated region
              $region93: #{self_attention_block.5} parent=80 // pred_check
                _
              $region94: #{self_attention_block.5} parent=80 // pred_check_branch
                %546 = sbr.rel (0) target = $region96
              $region95: #{self_attention_block.5} parent=80 // pred_region
                loop: start=0, step=1, limit=1
                $region97: #{self_attention_block.5} parent=95 // loop_pre_header
                  _
                $region98: #{self_attention_block.5} parent=95 // loop_header
                  %s548 = sphi 0, %s552
                  %p549 = scmp.ge.s32.totalorder %s548, 1
                  %s553 = sphi %s465, %s465
                  %s554 = sphi %s458, %s458
                $region99: #{self_attention_block.5} parent=95 // loop_header_branch
                  %551 = sbr.rel (%p549) target = $region103
                $region100: #{self_attention_block.5} parent=95 // loop_body
                  _
                $region101: #{self_attention_block.5} parent=95 // loop_footer
                  %s552 = sadd.s32 1, %s548
                $region102: #{self_attention_block.5} parent=95 // loop_footer_branch
                  %547 = sbr.rel target = $region98
                $region103: #{self_attention_block.5} parent=95 // loop_exit
                  _
                loop: start=0, step=1, limit=1
                $region104: #{self_attention_block.5} parent=95 // loop_pre_header
                  _
                $region105: #{self_attention_block.5} parent=95 // loop_header
                  %s557 = sphi 0, %s561
                  %p558 = scmp.ge.s32.totalorder %s557, 1
                  %s562 = sphi %s465, %s465
                  %s563 = sphi %s458, %s458
                $region106: #{self_attention_block.5} parent=95 // loop_header_branch
                  %560 = sbr.rel (%p558) target = $region110
                $region107: #{self_attention_block.5} parent=95 // loop_body
                  %v564 = vld [vmem:[%s562] sm:$0xf]
                  %565 = vst [vmem:[%s563] sm:$0xf] %v564
                  %v566 = vld [vmem:[%s562 + $0xc] sm:$0xf]
                  %567 = vst [vmem:[%s563 + $0x4] sm:$0xf] %v566
                  %v568 = vld [vmem:[%s562 + $0x18] sm:$0xf]
                  %569 = vst [vmem:[%s563 + $0x8] sm:$0xf] %v568
                  %v570 = vld [vmem:[%s562 + $0x24] sm:$0xf]
                  %571 = vst [vmem:[%s563 + $0xc] sm:$0xf] %v570
                  %v572 = vld [vmem:[%s562 + $0x30] sm:$0xf]
                  %573 = vst [vmem:[%s563 + $0x10] sm:$0xf] %v572
                  %v574 = vld [vmem:[%s562 + $0x3c] sm:$0xf]
                  %575 = vst [vmem:[%s563 + $0x14] sm:$0xf] %v574
                  %v576 = vld [vmem:[%s562 + $0x48] sm:$0xf]
                  %577 = vst [vmem:[%s563 + $0x18] sm:$0xf] %v576
                  %v578 = vld [vmem:[%s562 + $0x54] sm:$0xf]
                  %579 = vst [vmem:[%s563 + $0x1c] sm:$0xf] %v578
                  %v580 = vld [vmem:[%s562 + $0x60] sm:$0xf]
                  %581 = vst [vmem:[%s563 + $0x20] sm:$0xf] %v580
                  %v582 = vld [vmem:[%s562 + $0x6c] sm:$0xf]
                  %583 = vst [vmem:[%s563 + $0x24] sm:$0xf] %v582
                  %v584 = vld [vmem:[%s562 + $0x78] sm:$0xf]
                  %585 = vst [vmem:[%s563 + $0x28] sm:$0xf] %v584
                  %v586 = vld [vmem:[%s562 + $0x84] sm:$0xf]
                  %587 = vst [vmem:[%s563 + $0x2c] sm:$0xf] %v586
                  %v588 = vld [vmem:[%s562 + $0x90] sm:$0xf]
                  %589 = vst [vmem:[%s563 + $0x30] sm:$0xf] %v588
                  %v590 = vld [vmem:[%s562 + $0x9c] sm:$0xf]
                  %591 = vst [vmem:[%s563 + $0x34] sm:$0xf] %v590
                  %v592 = vld [vmem:[%s562 + $0xa8] sm:$0xf]
                  %593 = vst [vmem:[%s563 + $0x38] sm:$0xf] %v592
                  %v594 = vld [vmem:[%s562 + $0xb4] sm:$0xf]
                  %595 = vst [vmem:[%s563 + $0x3c] sm:$0xf] %v594
                  %v596 = vld [vmem:[%s562 + $0xc0] sm:$0xf]
                  %597 = vst [vmem:[%s563 + $0x40] sm:$0xf] %v596
                  %v598 = vld [vmem:[%s562 + $0xcc] sm:$0xf]
                  %599 = vst [vmem:[%s563 + $0x44] sm:$0xf] %v598
                  %v600 = vld [vmem:[%s562 + $0xd8] sm:$0xf]
                  %601 = vst [vmem:[%s563 + $0x48] sm:$0xf] %v600
                  %v602 = vld [vmem:[%s562 + $0xe4] sm:$0xf]
                  %603 = vst [vmem:[%s563 + $0x4c] sm:$0xf] %v602
                  %v604 = vld [vmem:[%s562 + $0xf0] sm:$0xf]
                  %605 = vst [vmem:[%s563 + $0x50] sm:$0xf] %v604
                  %v606 = vld [vmem:[%s562 + $0xfc] sm:$0xf]
                  %607 = vst [vmem:[%s563 + $0x54] sm:$0xf] %v606
                  %v608 = vld [vmem:[%s562 + $0x108] sm:$0xf]
                  %609 = vst [vmem:[%s563 + $0x58] sm:$0xf] %v608
                  %v610 = vld [vmem:[%s562 + $0x114] sm:$0xf]
                  %611 = vst [vmem:[%s563 + $0x5c] sm:$0xf] %v610
                  %v612 = vld [vmem:[%s562 + $0x120] sm:$0xf]
                  %613 = vst [vmem:[%s563 + $0x60] sm:$0xf] %v612
                  %v614 = vld [vmem:[%s562 + $0x12c] sm:$0xf]
                  %615 = vst [vmem:[%s563 + $0x64] sm:$0xf] %v614
                  %v616 = vld [vmem:[%s562 + $0x138] sm:$0xf]
                  %617 = vst [vmem:[%s563 + $0x68] sm:$0xf] %v616
                  %v618 = vld [vmem:[%s562 + $0x144] sm:$0xf]
                  %619 = vst [vmem:[%s563 + $0x6c] sm:$0xf] %v618
                  %v620 = vld [vmem:[%s562 + $0x150] sm:$0xf]
                  %621 = vst [vmem:[%s563 + $0x70] sm:$0xf] %v620
                  %v622 = vld [vmem:[%s562 + $0x15c] sm:$0xf]
                  %623 = vst [vmem:[%s563 + $0x74] sm:$0xf] %v622
                  %v624 = vld [vmem:[%s562 + $0x168] sm:$0xf]
                  %625 = vst [vmem:[%s563 + $0x78] sm:$0xf] %v624
                  %v626 = vld [vmem:[%s562 + $0x174] sm:$0xf]
                  %627 = vst [vmem:[%s563 + $0x7c] sm:$0xf] %v626
                $region108: #{self_attention_block.5} parent=95 // loop_footer
                  %s561 = sadd.s32 1, %s557
                $region109: #{self_attention_block.5} parent=95 // loop_footer_branch
                  %556 = sbr.rel target = $region105
                $region110: #{self_attention_block.5} parent=95 // loop_exit
                  _
              $region96: #{self_attention_block.5} parent=80 // pred_fallthru
                _
            $region81: #{self_attention_block.5} parent=76 // pred_fallthru
              _
            // Predicated region
            $region82: #{self_attention_block.5} parent=76 // pred_check
              _
            $region83: #{self_attention_block.5} parent=76 // pred_check_branch
              %471 = sbr.rel (0) target = $region85
            $region84: #{self_attention_block.5} parent=76 // pred_region
              loop: start=0, step=1, limit=1
              $region86: #{self_attention_block.5} parent=84 // loop_pre_header
                _
              $region87: #{self_attention_block.5} parent=84 // loop_header
                %s474 = sphi 0, %s478
                %p475 = scmp.ge.s32.totalorder %s474, 1
                %s479 = sphi %s465, %s465
                %s480 = sphi %s458, %s458
              $region88: #{self_attention_block.5} parent=84 // loop_header_branch
                %477 = sbr.rel (%p475) target = $region92
              $region89: #{self_attention_block.5} parent=84 // loop_body
                %v481 = vld [vmem:[%s479] sm:$0xf]
                %482 = vst [vmem:[%s480] sm:$0xf] %v481
                %v483 = vld [vmem:[%s479 + $0xc] sm:$0xf]
                %484 = vst [vmem:[%s480 + $0x4] sm:$0xf] %v483
                %v485 = vld [vmem:[%s479 + $0x18] sm:$0xf]
                %486 = vst [vmem:[%s480 + $0x8] sm:$0xf] %v485
                %v487 = vld [vmem:[%s479 + $0x24] sm:$0xf]
                %488 = vst [vmem:[%s480 + $0xc] sm:$0xf] %v487
                %v489 = vld [vmem:[%s479 + $0x30] sm:$0xf]
                %490 = vst [vmem:[%s480 + $0x10] sm:$0xf] %v489
                %v491 = vld [vmem:[%s479 + $0x3c] sm:$0xf]
                %492 = vst [vmem:[%s480 + $0x14] sm:$0xf] %v491
                %v493 = vld [vmem:[%s479 + $0x48] sm:$0xf]
                %494 = vst [vmem:[%s480 + $0x18] sm:$0xf] %v493
                %v495 = vld [vmem:[%s479 + $0x54] sm:$0xf]
                %496 = vst [vmem:[%s480 + $0x1c] sm:$0xf] %v495
                %v497 = vld [vmem:[%s479 + $0x60] sm:$0xf]
                %498 = vst [vmem:[%s480 + $0x20] sm:$0xf] %v497
                %v499 = vld [vmem:[%s479 + $0x6c] sm:$0xf]
                %500 = vst [vmem:[%s480 + $0x24] sm:$0xf] %v499
                %v501 = vld [vmem:[%s479 + $0x78] sm:$0xf]
                %502 = vst [vmem:[%s480 + $0x28] sm:$0xf] %v501
                %v503 = vld [vmem:[%s479 + $0x84] sm:$0xf]
                %504 = vst [vmem:[%s480 + $0x2c] sm:$0xf] %v503
                %v505 = vld [vmem:[%s479 + $0x90] sm:$0xf]
                %506 = vst [vmem:[%s480 + $0x30] sm:$0xf] %v505
                %v507 = vld [vmem:[%s479 + $0x9c] sm:$0xf]
                %508 = vst [vmem:[%s480 + $0x34] sm:$0xf] %v507
                %v509 = vld [vmem:[%s479 + $0xa8] sm:$0xf]
                %510 = vst [vmem:[%s480 + $0x38] sm:$0xf] %v509
                %v511 = vld [vmem:[%s479 + $0xb4] sm:$0xf]
                %512 = vst [vmem:[%s480 + $0x3c] sm:$0xf] %v511
                %v513 = vld [vmem:[%s479 + $0xc0] sm:$0xf]
                %514 = vst [vmem:[%s480 + $0x40] sm:$0xf] %v513
                %v515 = vld [vmem:[%s479 + $0xcc] sm:$0xf]
                %516 = vst [vmem:[%s480 + $0x44] sm:$0xf] %v515
                %v517 = vld [vmem:[%s479 + $0xd8] sm:$0xf]
                %518 = vst [vmem:[%s480 + $0x48] sm:$0xf] %v517
                %v519 = vld [vmem:[%s479 + $0xe4] sm:$0xf]
                %520 = vst [vmem:[%s480 + $0x4c] sm:$0xf] %v519
                %v521 = vld [vmem:[%s479 + $0xf0] sm:$0xf]
                %522 = vst [vmem:[%s480 + $0x50] sm:$0xf] %v521
                %v523 = vld [vmem:[%s479 + $0xfc] sm:$0xf]
                %524 = vst [vmem:[%s480 + $0x54] sm:$0xf] %v523
                %v525 = vld [vmem:[%s479 + $0x108] sm:$0xf]
                %526 = vst [vmem:[%s480 + $0x58] sm:$0xf] %v525
                %v527 = vld [vmem:[%s479 + $0x114] sm:$0xf]
                %528 = vst [vmem:[%s480 + $0x5c] sm:$0xf] %v527
                %v529 = vld [vmem:[%s479 + $0x120] sm:$0xf]
                %530 = vst [vmem:[%s480 + $0x60] sm:$0xf] %v529
                %v531 = vld [vmem:[%s479 + $0x12c] sm:$0xf]
                %532 = vst [vmem:[%s480 + $0x64] sm:$0xf] %v531
                %v533 = vld [vmem:[%s479 + $0x138] sm:$0xf]
                %534 = vst [vmem:[%s480 + $0x68] sm:$0xf] %v533
                %v535 = vld [vmem:[%s479 + $0x144] sm:$0xf]
                %536 = vst [vmem:[%s480 + $0x6c] sm:$0xf] %v535
                %v537 = vld [vmem:[%s479 + $0x150] sm:$0xf]
                %538 = vst [vmem:[%s480 + $0x70] sm:$0xf] %v537
                %v539 = vld [vmem:[%s479 + $0x15c] sm:$0xf]
                %540 = vst [vmem:[%s480 + $0x74] sm:$0xf] %v539
                %v541 = vld [vmem:[%s479 + $0x168] sm:$0xf]
                %542 = vst [vmem:[%s480 + $0x78] sm:$0xf] %v541
                %v543 = vld [vmem:[%s479 + $0x174] sm:$0xf]
                %544 = vst [vmem:[%s480 + $0x7c] sm:$0xf] %v543
              $region90: #{self_attention_block.5} parent=84 // loop_footer
                %s478 = sadd.s32 1, %s474
              $region91: #{self_attention_block.5} parent=84 // loop_footer_branch
                %473 = sbr.rel target = $region87
              $region92: #{self_attention_block.5} parent=84 // loop_exit
                _
            $region85: #{self_attention_block.5} parent=76 // pred_fallthru
              _
          $region77: #{self_attention_block.5} parent=72 // pred_fallthru
            _
          %628 = vnop
        $region73: #{self_attention_block.5} parent=27 // pred_fallthru
          _
        // Predicated region
        $region111: #{self_attention_block.5} parent=27 // pred_check
          %p629 = pneg %p113
        $region112: #{self_attention_block.5} parent=27 // pred_check_branch
          %631 = sbr.rel (%p629) target = $region114
        $region113: #{self_attention_block.5} parent=27 // pred_region
          %s632 = sand.u32 %s103, 1
          %s633 = sand.u32 %s103, 1
          %s634 = smul.addr %s633, 128
          %s635 = scalar_lea.vmem [#allocation6], %s634
          %s636 = smul.u32 32, %s25
          %s637 = smul.addr %s636, 3
          %s638 = sadd.s32 2, %s637
          %s639 = smul.addr %s23, 96
          %s640 = sadd.s32 %s638, %s639
          %s641 = smul.addr %s640, 4
          %s642 = scalar_lea.vmem %s2, %s641
          // Predicated region
          $region115: #{self_attention_block.5} parent=113 // pred_check
            _
          $region116: #{self_attention_block.5} parent=113 // pred_check_branch
            %644 = sbr.rel (0) target = $region118
          $region117: #{self_attention_block.5} parent=113 // pred_region
            // Predicated region
            $region119: #{self_attention_block.5} parent=117 // pred_check
              _
            $region120: #{self_attention_block.5} parent=117 // pred_check_branch
              %646 = sbr.rel target = $region122
            $region121: #{self_attention_block.5} parent=117 // pred_region
              // Predicated region
              $region134: #{self_attention_block.5} parent=121 // pred_check
                _
              $region135: #{self_attention_block.5} parent=121 // pred_check_branch
                %723 = sbr.rel (0) target = $region137
              $region136: #{self_attention_block.5} parent=121 // pred_region
                loop: start=0, step=1, limit=1
                $region138: #{self_attention_block.5} parent=136 // loop_pre_header
                  _
                $region139: #{self_attention_block.5} parent=136 // loop_header
                  %s725 = sphi 0, %s729
                  %p726 = scmp.ge.s32.totalorder %s725, 1
                  %s730 = sphi %s642, %s642
                  %s731 = sphi %s635, %s635
                $region140: #{self_attention_block.5} parent=136 // loop_header_branch
                  %728 = sbr.rel (%p726) target = $region144
                $region141: #{self_attention_block.5} parent=136 // loop_body
                  _
                $region142: #{self_attention_block.5} parent=136 // loop_footer
                  %s729 = sadd.s32 1, %s725
                $region143: #{self_attention_block.5} parent=136 // loop_footer_branch
                  %724 = sbr.rel target = $region139
                $region144: #{self_attention_block.5} parent=136 // loop_exit
                  _
                loop: start=0, step=1, limit=1
                $region145: #{self_attention_block.5} parent=136 // loop_pre_header
                  _
                $region146: #{self_attention_block.5} parent=136 // loop_header
                  %s734 = sphi 0, %s738
                  %p735 = scmp.ge.s32.totalorder %s734, 1
                  %s739 = sphi %s642, %s642
                  %s740 = sphi %s635, %s635
                $region147: #{self_attention_block.5} parent=136 // loop_header_branch
                  %737 = sbr.rel (%p735) target = $region151
                $region148: #{self_attention_block.5} parent=136 // loop_body
                  %v741 = vld [vmem:[%s739] sm:$0xf]
                  %742 = vst [vmem:[%s740] sm:$0xf] %v741
                  %v743 = vld [vmem:[%s739 + $0xc] sm:$0xf]
                  %744 = vst [vmem:[%s740 + $0x4] sm:$0xf] %v743
                  %v745 = vld [vmem:[%s739 + $0x18] sm:$0xf]
                  %746 = vst [vmem:[%s740 + $0x8] sm:$0xf] %v745
                  %v747 = vld [vmem:[%s739 + $0x24] sm:$0xf]
                  %748 = vst [vmem:[%s740 + $0xc] sm:$0xf] %v747
                  %v749 = vld [vmem:[%s739 + $0x30] sm:$0xf]
                  %750 = vst [vmem:[%s740 + $0x10] sm:$0xf] %v749
                  %v751 = vld [vmem:[%s739 + $0x3c] sm:$0xf]
                  %752 = vst [vmem:[%s740 + $0x14] sm:$0xf] %v751
                  %v753 = vld [vmem:[%s739 + $0x48] sm:$0xf]
                  %754 = vst [vmem:[%s740 + $0x18] sm:$0xf] %v753
                  %v755 = vld [vmem:[%s739 + $0x54] sm:$0xf]
                  %756 = vst [vmem:[%s740 + $0x1c] sm:$0xf] %v755
                  %v757 = vld [vmem:[%s739 + $0x60] sm:$0xf]
                  %758 = vst [vmem:[%s740 + $0x20] sm:$0xf] %v757
                  %v759 = vld [vmem:[%s739 + $0x6c] sm:$0xf]
                  %760 = vst [vmem:[%s740 + $0x24] sm:$0xf] %v759
                  %v761 = vld [vmem:[%s739 + $0x78] sm:$0xf]
                  %762 = vst [vmem:[%s740 + $0x28] sm:$0xf] %v761
                  %v763 = vld [vmem:[%s739 + $0x84] sm:$0xf]
                  %764 = vst [vmem:[%s740 + $0x2c] sm:$0xf] %v763
                  %v765 = vld [vmem:[%s739 + $0x90] sm:$0xf]
                  %766 = vst [vmem:[%s740 + $0x30] sm:$0xf] %v765
                  %v767 = vld [vmem:[%s739 + $0x9c] sm:$0xf]
                  %768 = vst [vmem:[%s740 + $0x34] sm:$0xf] %v767
                  %v769 = vld [vmem:[%s739 + $0xa8] sm:$0xf]
                  %770 = vst [vmem:[%s740 + $0x38] sm:$0xf] %v769
                  %v771 = vld [vmem:[%s739 + $0xb4] sm:$0xf]
                  %772 = vst [vmem:[%s740 + $0x3c] sm:$0xf] %v771
                  %v773 = vld [vmem:[%s739 + $0xc0] sm:$0xf]
                  %774 = vst [vmem:[%s740 + $0x40] sm:$0xf] %v773
                  %v775 = vld [vmem:[%s739 + $0xcc] sm:$0xf]
                  %776 = vst [vmem:[%s740 + $0x44] sm:$0xf] %v775
                  %v777 = vld [vmem:[%s739 + $0xd8] sm:$0xf]
                  %778 = vst [vmem:[%s740 + $0x48] sm:$0xf] %v777
                  %v779 = vld [vmem:[%s739 + $0xe4] sm:$0xf]
                  %780 = vst [vmem:[%s740 + $0x4c] sm:$0xf] %v779
                  %v781 = vld [vmem:[%s739 + $0xf0] sm:$0xf]
                  %782 = vst [vmem:[%s740 + $0x50] sm:$0xf] %v781
                  %v783 = vld [vmem:[%s739 + $0xfc] sm:$0xf]
                  %784 = vst [vmem:[%s740 + $0x54] sm:$0xf] %v783
                  %v785 = vld [vmem:[%s739 + $0x108] sm:$0xf]
                  %786 = vst [vmem:[%s740 + $0x58] sm:$0xf] %v785
                  %v787 = vld [vmem:[%s739 + $0x114] sm:$0xf]
                  %788 = vst [vmem:[%s740 + $0x5c] sm:$0xf] %v787
                  %v789 = vld [vmem:[%s739 + $0x120] sm:$0xf]
                  %790 = vst [vmem:[%s740 + $0x60] sm:$0xf] %v789
                  %v791 = vld [vmem:[%s739 + $0x12c] sm:$0xf]
                  %792 = vst [vmem:[%s740 + $0x64] sm:$0xf] %v791
                  %v793 = vld [vmem:[%s739 + $0x138] sm:$0xf]
                  %794 = vst [vmem:[%s740 + $0x68] sm:$0xf] %v793
                  %v795 = vld [vmem:[%s739 + $0x144] sm:$0xf]
                  %796 = vst [vmem:[%s740 + $0x6c] sm:$0xf] %v795
                  %v797 = vld [vmem:[%s739 + $0x150] sm:$0xf]
                  %798 = vst [vmem:[%s740 + $0x70] sm:$0xf] %v797
                  %v799 = vld [vmem:[%s739 + $0x15c] sm:$0xf]
                  %800 = vst [vmem:[%s740 + $0x74] sm:$0xf] %v799
                  %v801 = vld [vmem:[%s739 + $0x168] sm:$0xf]
                  %802 = vst [vmem:[%s740 + $0x78] sm:$0xf] %v801
                  %v803 = vld [vmem:[%s739 + $0x174] sm:$0xf]
                  %804 = vst [vmem:[%s740 + $0x7c] sm:$0xf] %v803
                $region149: #{self_attention_block.5} parent=136 // loop_footer
                  %s738 = sadd.s32 1, %s734
                $region150: #{self_attention_block.5} parent=136 // loop_footer_branch
                  %733 = sbr.rel target = $region146
                $region151: #{self_attention_block.5} parent=136 // loop_exit
                  _
              $region137: #{self_attention_block.5} parent=121 // pred_fallthru
                _
            $region122: #{self_attention_block.5} parent=117 // pred_fallthru
              _
            // Predicated region
            $region123: #{self_attention_block.5} parent=117 // pred_check
              _
            $region124: #{self_attention_block.5} parent=117 // pred_check_branch
              %648 = sbr.rel (0) target = $region126
            $region125: #{self_attention_block.5} parent=117 // pred_region
              loop: start=0, step=1, limit=1
              $region127: #{self_attention_block.5} parent=125 // loop_pre_header
                _
              $region128: #{self_attention_block.5} parent=125 // loop_header
                %s651 = sphi 0, %s655
                %p652 = scmp.ge.s32.totalorder %s651, 1
                %s656 = sphi %s642, %s642
                %s657 = sphi %s635, %s635
              $region129: #{self_attention_block.5} parent=125 // loop_header_branch
                %654 = sbr.rel (%p652) target = $region133
              $region130: #{self_attention_block.5} parent=125 // loop_body
                %v658 = vld [vmem:[%s656] sm:$0xf]
                %659 = vst [vmem:[%s657] sm:$0xf] %v658
                %v660 = vld [vmem:[%s656 + $0xc] sm:$0xf]
                %661 = vst [vmem:[%s657 + $0x4] sm:$0xf] %v660
                %v662 = vld [vmem:[%s656 + $0x18] sm:$0xf]
                %663 = vst [vmem:[%s657 + $0x8] sm:$0xf] %v662
                %v664 = vld [vmem:[%s656 + $0x24] sm:$0xf]
                %665 = vst [vmem:[%s657 + $0xc] sm:$0xf] %v664
                %v666 = vld [vmem:[%s656 + $0x30] sm:$0xf]
                %667 = vst [vmem:[%s657 + $0x10] sm:$0xf] %v666
                %v668 = vld [vmem:[%s656 + $0x3c] sm:$0xf]
                %669 = vst [vmem:[%s657 + $0x14] sm:$0xf] %v668
                %v670 = vld [vmem:[%s656 + $0x48] sm:$0xf]
                %671 = vst [vmem:[%s657 + $0x18] sm:$0xf] %v670
                %v672 = vld [vmem:[%s656 + $0x54] sm:$0xf]
                %673 = vst [vmem:[%s657 + $0x1c] sm:$0xf] %v672
                %v674 = vld [vmem:[%s656 + $0x60] sm:$0xf]
                %675 = vst [vmem:[%s657 + $0x20] sm:$0xf] %v674
                %v676 = vld [vmem:[%s656 + $0x6c] sm:$0xf]
                %677 = vst [vmem:[%s657 + $0x24] sm:$0xf] %v676
                %v678 = vld [vmem:[%s656 + $0x78] sm:$0xf]
                %679 = vst [vmem:[%s657 + $0x28] sm:$0xf] %v678
                %v680 = vld [vmem:[%s656 + $0x84] sm:$0xf]
                %681 = vst [vmem:[%s657 + $0x2c] sm:$0xf] %v680
                %v682 = vld [vmem:[%s656 + $0x90] sm:$0xf]
                %683 = vst [vmem:[%s657 + $0x30] sm:$0xf] %v682
                %v684 = vld [vmem:[%s656 + $0x9c] sm:$0xf]
                %685 = vst [vmem:[%s657 + $0x34] sm:$0xf] %v684
                %v686 = vld [vmem:[%s656 + $0xa8] sm:$0xf]
                %687 = vst [vmem:[%s657 + $0x38] sm:$0xf] %v686
                %v688 = vld [vmem:[%s656 + $0xb4] sm:$0xf]
                %689 = vst [vmem:[%s657 + $0x3c] sm:$0xf] %v688
                %v690 = vld [vmem:[%s656 + $0xc0] sm:$0xf]
                %691 = vst [vmem:[%s657 + $0x40] sm:$0xf] %v690
                %v692 = vld [vmem:[%s656 + $0xcc] sm:$0xf]
                %693 = vst [vmem:[%s657 + $0x44] sm:$0xf] %v692
                %v694 = vld [vmem:[%s656 + $0xd8] sm:$0xf]
                %695 = vst [vmem:[%s657 + $0x48] sm:$0xf] %v694
                %v696 = vld [vmem:[%s656 + $0xe4] sm:$0xf]
                %697 = vst [vmem:[%s657 + $0x4c] sm:$0xf] %v696
                %v698 = vld [vmem:[%s656 + $0xf0] sm:$0xf]
                %699 = vst [vmem:[%s657 + $0x50] sm:$0xf] %v698
                %v700 = vld [vmem:[%s656 + $0xfc] sm:$0xf]
                %701 = vst [vmem:[%s657 + $0x54] sm:$0xf] %v700
                %v702 = vld [vmem:[%s656 + $0x108] sm:$0xf]
                %703 = vst [vmem:[%s657 + $0x58] sm:$0xf] %v702
                %v704 = vld [vmem:[%s656 + $0x114] sm:$0xf]
                %705 = vst [vmem:[%s657 + $0x5c] sm:$0xf] %v704
                %v706 = vld [vmem:[%s656 + $0x120] sm:$0xf]
                %707 = vst [vmem:[%s657 + $0x60] sm:$0xf] %v706
                %v708 = vld [vmem:[%s656 + $0x12c] sm:$0xf]
                %709 = vst [vmem:[%s657 + $0x64] sm:$0xf] %v708
                %v710 = vld [vmem:[%s656 + $0x138] sm:$0xf]
                %711 = vst [vmem:[%s657 + $0x68] sm:$0xf] %v710
                %v712 = vld [vmem:[%s656 + $0x144] sm:$0xf]
                %713 = vst [vmem:[%s657 + $0x6c] sm:$0xf] %v712
                %v714 = vld [vmem:[%s656 + $0x150] sm:$0xf]
                %715 = vst [vmem:[%s657 + $0x70] sm:$0xf] %v714
                %v716 = vld [vmem:[%s656 + $0x15c] sm:$0xf]
                %717 = vst [vmem:[%s657 + $0x74] sm:$0xf] %v716
                %v718 = vld [vmem:[%s656 + $0x168] sm:$0xf]
                %719 = vst [vmem:[%s657 + $0x78] sm:$0xf] %v718
                %v720 = vld [vmem:[%s656 + $0x174] sm:$0xf]
                %721 = vst [vmem:[%s657 + $0x7c] sm:$0xf] %v720
              $region131: #{self_attention_block.5} parent=125 // loop_footer
                %s655 = sadd.s32 1, %s651
              $region132: #{self_attention_block.5} parent=125 // loop_footer_branch
                %650 = sbr.rel target = $region128
              $region133: #{self_attention_block.5} parent=125 // loop_exit
                _
            $region126: #{self_attention_block.5} parent=117 // pred_fallthru
              _
          $region118: #{self_attention_block.5} parent=113 // pred_fallthru
            _
          %805 = vnop
        $region114: #{self_attention_block.5} parent=27 // pred_fallthru
          _
        // Predicated region
        $region152: #{self_attention_block.5} parent=27 // pred_check
          %p806 = pneg %p167
        $region153: #{self_attention_block.5} parent=27 // pred_check_branch
          %808 = sbr.rel (%p806) target = $region155
        $region154: #{self_attention_block.5} parent=27 // pred_region
          %s809 = smul.u32 32, %s24
          %p810 = scmp.lt.s32.totalorder %s23, 1
          %s811 = scalar_select %p810, %s23, 1
          %p812 = scmp.lt.s32.totalorder %s809, 31
          %s813 = scalar_select %p812, %s809, 31
          %s814 = smul.addr %s811, 32
          %s815 = sadd.s32 %s813, %s814
          %s816 = smul.addr %s815, 8
          %s817 = scalar_lea.vmem %s4, %s816
          %s818 = smul.u32 32, %s24
        $region155: #{self_attention_block.5} parent=27 // pred_fallthru
          _
      $region28: #{self_attention_block.5} parent=5 // pred_fallthru
        _
      %p819 = scmp.le.s32.totalorder 1, %s16
      %p820 = scmp.lt.s32.totalorder %s16, 3
      %p821 = pnand %p819, %p820
      %p822 = pneg %p821
      // Predicated region
      $region156: #{self_attention_block.5} parent=5 // pred_check
        _
      $region157: #{self_attention_block.5} parent=5 // pred_check_branch
        %824 = sbr.rel (%p821) target = $region159
      $region158: #{self_attention_block.5} parent=5 // pred_region
        %s825 = ssub.s32 %s16, 1
        %s826 = sand.u32 %s50, 1
        %s827 = sand.u32 %s50, 1
        %s828 = smul.addr %s827, 128
        %s829 = scalar_lea.vmem [#allocation4], %s828
        // Predicated region
        $region160: #{self_attention_block.5} parent=158 // pred_check
          %p830 = pneg %p63
        $region161: #{self_attention_block.5} parent=158 // pred_check_branch
          %832 = sbr.rel (%p830) target = $region163
        $region162: #{self_attention_block.5} parent=158 // pred_region
          _
        $region163: #{self_attention_block.5} parent=158 // pred_fallthru
          _
        %s833 = sand.u32 %s78, 1
        %s834 = sand.u32 %s78, 1
        %s835 = smul.addr %s834, 128
        %s836 = scalar_lea.vmem [#allocation5], %s835
        // Predicated region
        $region164: #{self_attention_block.5} parent=158 // pred_check
          %p837 = pneg %p91
        $region165: #{self_attention_block.5} parent=158 // pred_check_branch
          %839 = sbr.rel (%p837) target = $region167
        $region166: #{self_attention_block.5} parent=158 // pred_region
          _
        $region167: #{self_attention_block.5} parent=158 // pred_fallthru
          _
        %s840 = sand.u32 %s106, 1
        %s841 = sand.u32 %s106, 1
        %s842 = smul.addr %s841, 128
        %s843 = scalar_lea.vmem [#allocation6], %s842
        // Predicated region
        $region168: #{self_attention_block.5} parent=158 // pred_check
          %p844 = pneg %p119
        $region169: #{self_attention_block.5} parent=158 // pred_check_branch
          %846 = sbr.rel (%p844) target = $region171
        $region170: #{self_attention_block.5} parent=158 // pred_region
          _
        $region171: #{self_attention_block.5} parent=158 // pred_fallthru
          _
        %s847 = sand.u32 %s50, 1
        %s848 = sand.u32 %s50, 1
        %s849 = smul.addr %s848, 128
        %s850 = scalar_lea.vmem [#allocation4], %s849
        %p851 = pneg %p63
        %p852 = pneg %p60
        %s853 = sand.u32 %s78, 1
        %s854 = sand.u32 %s78, 1
        %s855 = smul.addr %s854, 128
        %s856 = scalar_lea.vmem [#allocation5], %s855
        %p857 = pneg %p91
        %p858 = pneg %p88
        %s859 = sand.u32 %s106, 1
        %s860 = sand.u32 %s106, 1
        %s861 = smul.addr %s860, 128
        %s862 = scalar_lea.vmem [#allocation6], %s861
        %p863 = pneg %p119
        %p864 = pneg %p116
        %s865 = smul.u32 2, %s28
        %p866 = scmp.lt.s32.totalorder %s865, 1
        %s867 = scalar_select %p866, %s865, 1
        %s868 = scalar_lea.vmem %s3, %s867
        %p869 = pneg %p145
        %p870 = pneg %p142
        %s871 = smul.u32 32, %s27
        %p872 = scmp.lt.s32.totalorder %s26, 1
        %s873 = scalar_select %p872, %s26, 1
        %p874 = scmp.lt.s32.totalorder %s871, 31
        %s875 = scalar_select %p874, %s871, 31
        %s876 = smul.addr %s873, 32
        %s877 = sadd.s32 %s875, %s876
        %s878 = smul.addr %s877, 8
        %s879 = scalar_lea.vmem %s4, %s878
        %p880 = pneg %p173
        %p881 = pneg %p170
        %p882 = pneg %p194
        %p883 = pneg %p191
        %p884 = pneg %p215
        %p885 = pneg %p212
        %p886 = pneg %p243
        %p887 = pneg %p240
        %s888 = sand.u32 %s230, 1
        %s889 = scalar_lea.sflag [#allocation8], %s888
        %s890 = sand.u32 %s230, 1
        %s891 = smul.addr %s890, 256
        %s892 = scalar_lea.vmem [#allocation7], %s891
        %s893 = smul.u32 32, %s27
        %s894 = smul.u32 32, %s28
        %s895 = smul.u32 32, %s28
        %s896 = smul.u32 2, %s28
        %p897 = scmp.lt.s32.totalorder %s896, 1
        %s898 = scalar_select %p897, %s896, 1
        %s899 = scalar_lea.vmem %s3, %s898
        %s900 = smul.u32 2, %s28
        %s901 = smul.u32 32, %s27
        %p902 = scmp.lt.s32.totalorder %s26, 1
        %s903 = scalar_select %p902, %s26, 1
        %p904 = scmp.lt.s32.totalorder %s901, 31
        %s905 = scalar_select %p904, %s901, 31
        %s906 = smul.addr %s903, 32
        %s907 = sadd.s32 %s905, %s906
        %s908 = smul.addr %s907, 8
        %s909 = scalar_lea.vmem %s4, %s908
        %s910 = smul.u32 32, %s27
        %s911 = smul.u32 32, %s27
        %p913 = scmp.eq.s32.totalorder %s28, 0
        // Predicated region
        $region172: #{self_attention_block.5} parent=158 // pred_check
          %p914 = pneg %p913
        $region173: #{self_attention_block.5} parent=158 // pred_check_branch
          %916 = sbr.rel (%p914) target = $region175
        $region174: #{self_attention_block.5} parent=158 // pred_region
          %vm917 = vcmask 7168
          %918 = vst.msk [vmem:[#allocation2] sm:$0xff] %vm917, -inf
          %919 = vst.msk [vmem:[#allocation2 + $0x8] sm:$0xff] %vm917, -inf
          %920 = vst.msk [vmem:[#allocation2 + $0x10] sm:$0xff] %vm917, -inf
          %921 = vst.msk [vmem:[#allocation2 + $0x18] sm:$0xff] %vm917, -inf
          %922 = vst.msk [vmem:[#allocation2 + $0x20] sm:$0xff] %vm917, -inf
          %923 = vst.msk [vmem:[#allocation2 + $0x28] sm:$0xff] %vm917, -inf
          %924 = vst.msk [vmem:[#allocation2 + $0x30] sm:$0xff] %vm917, -inf
          %925 = vst.msk [vmem:[#allocation2 + $0x38] sm:$0xff] %vm917, -inf
          %926 = vst.msk [vmem:[#allocation2 + $0x40] sm:$0xff] %vm917, -inf
          %927 = vst.msk [vmem:[#allocation2 + $0x48] sm:$0xff] %vm917, -inf
          %928 = vst.msk [vmem:[#allocation2 + $0x50] sm:$0xff] %vm917, -inf
          %929 = vst.msk [vmem:[#allocation2 + $0x58] sm:$0xff] %vm917, -inf
          %930 = vst.msk [vmem:[#allocation2 + $0x60] sm:$0xff] %vm917, -inf
          %931 = vst.msk [vmem:[#allocation2 + $0x68] sm:$0xff] %vm917, -inf
          %932 = vst.msk [vmem:[#allocation2 + $0x70] sm:$0xff] %vm917, -inf
          %933 = vst.msk [vmem:[#allocation2 + $0x78] sm:$0xff] %vm917, -inf
          %934 = vst.msk [vmem:[#allocation2 + $0x80] sm:$0xff] %vm917, -inf
          %935 = vst.msk [vmem:[#allocation2 + $0x88] sm:$0xff] %vm917, -inf
          %936 = vst.msk [vmem:[#allocation2 + $0x90] sm:$0xff] %vm917, -inf
          %937 = vst.msk [vmem:[#allocation2 + $0x98] sm:$0xff] %vm917, -inf
          %938 = vst.msk [vmem:[#allocation2 + $0xa0] sm:$0xff] %vm917, -inf
          %939 = vst.msk [vmem:[#allocation2 + $0xa8] sm:$0xff] %vm917, -inf
          %940 = vst.msk [vmem:[#allocation2 + $0xb0] sm:$0xff] %vm917, -inf
          %941 = vst.msk [vmem:[#allocation2 + $0xb8] sm:$0xff] %vm917, -inf
          %942 = vst.msk [vmem:[#allocation2 + $0xc0] sm:$0xff] %vm917, -inf
          %943 = vst.msk [vmem:[#allocation2 + $0xc8] sm:$0xff] %vm917, -inf
          %944 = vst.msk [vmem:[#allocation2 + $0xd0] sm:$0xff] %vm917, -inf
          %945 = vst.msk [vmem:[#allocation2 + $0xd8] sm:$0xff] %vm917, -inf
          %946 = vst.msk [vmem:[#allocation2 + $0xe0] sm:$0xff] %vm917, -inf
          %947 = vst.msk [vmem:[#allocation2 + $0xe8] sm:$0xff] %vm917, -inf
          %948 = vst.msk [vmem:[#allocation2 + $0xf0] sm:$0xff] %vm917, -inf
          %949 = vst.msk [vmem:[#allocation2 + $0xf8] sm:$0xff] %vm917, -inf
          %950 = vst.msk [vmem:[#allocation3] sm:$0xff] %vm917, 0.0
          %951 = vst.msk [vmem:[#allocation3 + $0x8] sm:$0xff] %vm917, 0.0
          %952 = vst.msk [vmem:[#allocation3 + $0x10] sm:$0xff] %vm917, 0.0
          %953 = vst.msk [vmem:[#allocation3 + $0x18] sm:$0xff] %vm917, 0.0
          %954 = vst.msk [vmem:[#allocation3 + $0x20] sm:$0xff] %vm917, 0.0
          %955 = vst.msk [vmem:[#allocation3 + $0x28] sm:$0xff] %vm917, 0.0
          %956 = vst.msk [vmem:[#allocation3 + $0x30] sm:$0xff] %vm917, 0.0
          %957 = vst.msk [vmem:[#allocation3 + $0x38] sm:$0xff] %vm917, 0.0
          %958 = vst.msk [vmem:[#allocation3 + $0x40] sm:$0xff] %vm917, 0.0
          %959 = vst.msk [vmem:[#allocation3 + $0x48] sm:$0xff] %vm917, 0.0
          %960 = vst.msk [vmem:[#allocation3 + $0x50] sm:$0xff] %vm917, 0.0
          %961 = vst.msk [vmem:[#allocation3 + $0x58] sm:$0xff] %vm917, 0.0
          %962 = vst.msk [vmem:[#allocation3 + $0x60] sm:$0xff] %vm917, 0.0
          %963 = vst.msk [vmem:[#allocation3 + $0x68] sm:$0xff] %vm917, 0.0
          %964 = vst.msk [vmem:[#allocation3 + $0x70] sm:$0xff] %vm917, 0.0
          %965 = vst.msk [vmem:[#allocation3 + $0x78] sm:$0xff] %vm917, 0.0
          %966 = vst.msk [vmem:[#allocation3 + $0x80] sm:$0xff] %vm917, 0.0
          %967 = vst.msk [vmem:[#allocation3 + $0x88] sm:$0xff] %vm917, 0.0
          %968 = vst.msk [vmem:[#allocation3 + $0x90] sm:$0xff] %vm917, 0.0
          %969 = vst.msk [vmem:[#allocation3 + $0x98] sm:$0xff] %vm917, 0.0
          %970 = vst.msk [vmem:[#allocation3 + $0xa0] sm:$0xff] %vm917, 0.0
          %971 = vst.msk [vmem:[#allocation3 + $0xa8] sm:$0xff] %vm917, 0.0
          %972 = vst.msk [vmem:[#allocation3 + $0xb0] sm:$0xff] %vm917, 0.0
          %973 = vst.msk [vmem:[#allocation3 + $0xb8] sm:$0xff] %vm917, 0.0
          %974 = vst.msk [vmem:[#allocation3 + $0xc0] sm:$0xff] %vm917, 0.0
          %975 = vst.msk [vmem:[#allocation3 + $0xc8] sm:$0xff] %vm917, 0.0
          %976 = vst.msk [vmem:[#allocation3 + $0xd0] sm:$0xff] %vm917, 0.0
          %977 = vst.msk [vmem:[#allocation3 + $0xd8] sm:$0xff] %vm917, 0.0
          %978 = vst.msk [vmem:[#allocation3 + $0xe0] sm:$0xff] %vm917, 0.0
          %979 = vst.msk [vmem:[#allocation3 + $0xe8] sm:$0xff] %vm917, 0.0
          %980 = vst.msk [vmem:[#allocation3 + $0xf0] sm:$0xff] %vm917, 0.0
          %981 = vst.msk [vmem:[#allocation3 + $0xf8] sm:$0xff] %vm917, 0.0
          %982 = vst [vmem:[%s892] sm:$0xff] 0.0
          %983 = vst [vmem:[%s892 + $0x8] sm:$0xff] 0.0
          %984 = vst [vmem:[%s892 + $0x10] sm:$0xff] 0.0
          %985 = vst [vmem:[%s892 + $0x18] sm:$0xff] 0.0
          %986 = vst [vmem:[%s892 + $0x20] sm:$0xff] 0.0
          %987 = vst [vmem:[%s892 + $0x28] sm:$0xff] 0.0
          %988 = vst [vmem:[%s892 + $0x30] sm:$0xff] 0.0
          %989 = vst [vmem:[%s892 + $0x38] sm:$0xff] 0.0
          %990 = vst [vmem:[%s892 + $0x40] sm:$0xff] 0.0
          %991 = vst [vmem:[%s892 + $0x48] sm:$0xff] 0.0
          %992 = vst [vmem:[%s892 + $0x50] sm:$0xff] 0.0
          %993 = vst [vmem:[%s892 + $0x58] sm:$0xff] 0.0
          %994 = vst [vmem:[%s892 + $0x60] sm:$0xff] 0.0
          %995 = vst [vmem:[%s892 + $0x68] sm:$0xff] 0.0
          %996 = vst [vmem:[%s892 + $0x70] sm:$0xff] 0.0
          %997 = vst [vmem:[%s892 + $0x78] sm:$0xff] 0.0
          %998 = vst [vmem:[%s892 + $0x80] sm:$0xff] 0.0
          %999 = vst [vmem:[%s892 + $0x88] sm:$0xff] 0.0
          %1000 = vst [vmem:[%s892 + $0x90] sm:$0xff] 0.0
          %1001 = vst [vmem:[%s892 + $0x98] sm:$0xff] 0.0
          %1002 = vst [vmem:[%s892 + $0xa0] sm:$0xff] 0.0
          %1003 = vst [vmem:[%s892 + $0xa8] sm:$0xff] 0.0
          %1004 = vst [vmem:[%s892 + $0xb0] sm:$0xff] 0.0
          %1005 = vst [vmem:[%s892 + $0xb8] sm:$0xff] 0.0
          %1006 = vst [vmem:[%s892 + $0xc0] sm:$0xff] 0.0
          %1007 = vst [vmem:[%s892 + $0xc8] sm:$0xff] 0.0
          %1008 = vst [vmem:[%s892 + $0xd0] sm:$0xff] 0.0
          %1009 = vst [vmem:[%s892 + $0xd8] sm:$0xff] 0.0
          %1010 = vst [vmem:[%s892 + $0xe0] sm:$0xff] 0.0
          %1011 = vst [vmem:[%s892 + $0xe8] sm:$0xff] 0.0
          %1012 = vst [vmem:[%s892 + $0xf0] sm:$0xff] 0.0
          %1013 = vst [vmem:[%s892 + $0xf8] sm:$0xff] 0.0
        $region175: #{self_attention_block.5} parent=158 // pred_fallthru
          _
        %v1014 = vld [vmem:[%s829] sm:$0xf]
        %v1015 = vld [vmem:[%s829 + $0x4] sm:$0xf]
        %v1016 = vld [vmem:[%s829 + $0x8] sm:$0xf]
        %v1017 = vld [vmem:[%s829 + $0xc] sm:$0xf]
        %v1018 = vld [vmem:[%s829 + $0x10] sm:$0xf]
        %v1019 = vld [vmem:[%s829 + $0x14] sm:$0xf]
        %v1020 = vld [vmem:[%s829 + $0x18] sm:$0xf]
        %v1021 = vld [vmem:[%s829 + $0x1c] sm:$0xf]
        %v1022 = vld [vmem:[%s829 + $0x20] sm:$0xf]
        %v1023 = vld [vmem:[%s829 + $0x24] sm:$0xf]
        %v1024 = vld [vmem:[%s829 + $0x28] sm:$0xf]
        %v1025 = vld [vmem:[%s829 + $0x2c] sm:$0xf]
        %v1026 = vld [vmem:[%s829 + $0x30] sm:$0xf]
        %v1027 = vld [vmem:[%s829 + $0x34] sm:$0xf]
        %v1028 = vld [vmem:[%s829 + $0x38] sm:$0xf]
        %v1029 = vld [vmem:[%s829 + $0x3c] sm:$0xf]
        %v1030 = vld [vmem:[%s829 + $0x40] sm:$0xf]
        %v1031 = vld [vmem:[%s829 + $0x44] sm:$0xf]
        %v1032 = vld [vmem:[%s829 + $0x48] sm:$0xf]
        %v1033 = vld [vmem:[%s829 + $0x4c] sm:$0xf]
        %v1034 = vld [vmem:[%s829 + $0x50] sm:$0xf]
        %v1035 = vld [vmem:[%s829 + $0x54] sm:$0xf]
        %v1036 = vld [vmem:[%s829 + $0x58] sm:$0xf]
        %v1037 = vld [vmem:[%s829 + $0x5c] sm:$0xf]
        %v1038 = vld [vmem:[%s829 + $0x60] sm:$0xf]
        %v1039 = vld [vmem:[%s829 + $0x64] sm:$0xf]
        %v1040 = vld [vmem:[%s829 + $0x68] sm:$0xf]
        %v1041 = vld [vmem:[%s829 + $0x6c] sm:$0xf]
        %v1042 = vld [vmem:[%s829 + $0x70] sm:$0xf]
        %v1043 = vld [vmem:[%s829 + $0x74] sm:$0xf]
        %v1044 = vld [vmem:[%s829 + $0x78] sm:$0xf]
        %v1045 = vld [vmem:[%s829 + $0x7c] sm:$0xf]
        %v1046 = vld [vmem:[%s836] sm:$0xf]
        %v1047 = vld [vmem:[%s836 + $0x4] sm:$0xf]
        %v1048 = vld [vmem:[%s836 + $0x8] sm:$0xf]
        %v1049 = vld [vmem:[%s836 + $0xc] sm:$0xf]
        %v1050 = vld [vmem:[%s836 + $0x10] sm:$0xf]
        %v1051 = vld [vmem:[%s836 + $0x14] sm:$0xf]
        %v1052 = vld [vmem:[%s836 + $0x18] sm:$0xf]
        %v1053 = vld [vmem:[%s836 + $0x1c] sm:$0xf]
        %v1054 = vld [vmem:[%s836 + $0x20] sm:$0xf]
        %v1055 = vld [vmem:[%s836 + $0x24] sm:$0xf]
        %v1056 = vld [vmem:[%s836 + $0x28] sm:$0xf]
        %v1057 = vld [vmem:[%s836 + $0x2c] sm:$0xf]
        %v1058 = vld [vmem:[%s836 + $0x30] sm:$0xf]
        %v1059 = vld [vmem:[%s836 + $0x34] sm:$0xf]
        %v1060 = vld [vmem:[%s836 + $0x38] sm:$0xf]
        %v1061 = vld [vmem:[%s836 + $0x3c] sm:$0xf]
        %v1062 = vld [vmem:[%s836 + $0x40] sm:$0xf]
        %v1063 = vld [vmem:[%s836 + $0x44] sm:$0xf]
        %v1064 = vld [vmem:[%s836 + $0x48] sm:$0xf]
        %v1065 = vld [vmem:[%s836 + $0x4c] sm:$0xf]
        %v1066 = vld [vmem:[%s836 + $0x50] sm:$0xf]
        %v1067 = vld [vmem:[%s836 + $0x54] sm:$0xf]
        %v1068 = vld [vmem:[%s836 + $0x58] sm:$0xf]
        %v1069 = vld [vmem:[%s836 + $0x5c] sm:$0xf]
        %v1070 = vld [vmem:[%s836 + $0x60] sm:$0xf]
        %v1071 = vld [vmem:[%s836 + $0x64] sm:$0xf]
        %v1072 = vld [vmem:[%s836 + $0x68] sm:$0xf]
        %v1073 = vld [vmem:[%s836 + $0x6c] sm:$0xf]
        %v1074 = vld [vmem:[%s836 + $0x70] sm:$0xf]
        %v1075 = vld [vmem:[%s836 + $0x74] sm:$0xf]
        %v1076 = vld [vmem:[%s836 + $0x78] sm:$0xf]
        %v1077 = vld [vmem:[%s836 + $0x7c] sm:$0xf]
        %v1078 = vld [vmem:[%s899] sm:$0x3]
        %v1080 = vlaneseq
        %v1081 = vshrl.u32 %v1080, 7
        %v1082 = vsub.s32 0, %v1081
        %v1083 = vrot.slane %v1078, %v1082
        %v1084 = vlaneseq
        %v1085 = vshrl.u32 %v1084, 7
        %v1086 = vsub.s32 1, %v1085
        %v1087 = vrot.slane %v1078, %v1086
        %v1122 = vunpack.c.l.b16 %v1014
        %v1123 = vunpack.c.l.b16 %v1015
        %v1124 = vunpack.c.l.b16 %v1016
        %v1125 = vunpack.c.l.b16 %v1017
        %v1126 = vunpack.c.l.b16 %v1018
        %v1127 = vunpack.c.l.b16 %v1019
        %v1128 = vunpack.c.l.b16 %v1020
        %v1129 = vunpack.c.l.b16 %v1021
        %v1130 = vunpack.c.l.b16 %v1022
        %v1131 = vunpack.c.l.b16 %v1023
        %v1132 = vunpack.c.l.b16 %v1024
        %v1133 = vunpack.c.l.b16 %v1025
        %v1134 = vunpack.c.l.b16 %v1026
        %v1135 = vunpack.c.l.b16 %v1027
        %v1136 = vunpack.c.l.b16 %v1028
        %v1137 = vunpack.c.l.b16 %v1029
        %v1138 = vunpack.c.l.b16 %v1030
        %v1139 = vunpack.c.l.b16 %v1031
        %v1140 = vunpack.c.l.b16 %v1032
        %v1141 = vunpack.c.l.b16 %v1033
        %v1142 = vunpack.c.l.b16 %v1034
        %v1143 = vunpack.c.l.b16 %v1035
        %v1144 = vunpack.c.l.b16 %v1036
        %v1145 = vunpack.c.l.b16 %v1037
        %v1146 = vunpack.c.l.b16 %v1038
        %v1147 = vunpack.c.l.b16 %v1039
        %v1148 = vunpack.c.l.b16 %v1040
        %v1149 = vunpack.c.l.b16 %v1041
        %v1150 = vunpack.c.l.b16 %v1042
        %v1151 = vunpack.c.l.b16 %v1043
        %v1152 = vunpack.c.l.b16 %v1044
        %v1153 = vunpack.c.l.b16 %v1045
        %v1154 = vpack.c.b16 %v1123, %v1122
        %v1155 = vpack.c.b16 %v1125, %v1124
        %v1156 = vpack.c.b16 %v1127, %v1126
        %v1157 = vpack.c.b16 %v1129, %v1128
        %v1158 = vpack.c.b16 %v1131, %v1130
        %v1159 = vpack.c.b16 %v1133, %v1132
        %v1160 = vpack.c.b16 %v1135, %v1134
        %v1161 = vpack.c.b16 %v1137, %v1136
        %v1162 = vpack.c.b16 %v1139, %v1138
        %v1163 = vpack.c.b16 %v1141, %v1140
        %v1164 = vpack.c.b16 %v1143, %v1142
        %v1165 = vpack.c.b16 %v1145, %v1144
        %v1166 = vpack.c.b16 %v1147, %v1146
        %v1167 = vpack.c.b16 %v1149, %v1148
        %v1168 = vpack.c.b16 %v1151, %v1150
        %v1169 = vpack.c.b16 %v1153, %v1152
        %v1218 = vunpack.c.l.b16 %v1046
        %v1219 = vunpack.c.l.b16 %v1047
        %v1220 = vunpack.c.l.b16 %v1048
        %v1221 = vunpack.c.l.b16 %v1049
        %v1222 = vunpack.c.l.b16 %v1050
        %v1223 = vunpack.c.l.b16 %v1051
        %v1224 = vunpack.c.l.b16 %v1052
        %v1225 = vunpack.c.l.b16 %v1053
        %v1226 = vunpack.c.l.b16 %v1054
        %v1227 = vunpack.c.l.b16 %v1055
        %v1228 = vunpack.c.l.b16 %v1056
        %v1229 = vunpack.c.l.b16 %v1057
        %v1230 = vunpack.c.l.b16 %v1058
        %v1231 = vunpack.c.l.b16 %v1059
        %v1232 = vunpack.c.l.b16 %v1060
        %v1233 = vunpack.c.l.b16 %v1061
        %v1234 = vunpack.c.l.b16 %v1062
        %v1235 = vunpack.c.l.b16 %v1063
        %v1236 = vunpack.c.l.b16 %v1064
        %v1237 = vunpack.c.l.b16 %v1065
        %v1238 = vunpack.c.l.b16 %v1066
        %v1239 = vunpack.c.l.b16 %v1067
        %v1240 = vunpack.c.l.b16 %v1068
        %v1241 = vunpack.c.l.b16 %v1069
        %v1242 = vunpack.c.l.b16 %v1070
        %v1243 = vunpack.c.l.b16 %v1071
        %v1244 = vunpack.c.l.b16 %v1072
        %v1245 = vunpack.c.l.b16 %v1073
        %v1246 = vunpack.c.l.b16 %v1074
        %v1247 = vunpack.c.l.b16 %v1075
        %v1248 = vunpack.c.l.b16 %v1076
        %v1249 = vunpack.c.l.b16 %v1077
        %v1250 = vpack.c.b16 %v1219, %v1218
        %v1251 = vpack.c.b16 %v1221, %v1220
        %v1252 = vpack.c.b16 %v1223, %v1222
        %v1253 = vpack.c.b16 %v1225, %v1224
        %v1254 = vpack.c.b16 %v1227, %v1226
        %v1255 = vpack.c.b16 %v1229, %v1228
        %v1256 = vpack.c.b16 %v1231, %v1230
        %v1257 = vpack.c.b16 %v1233, %v1232
        %v1258 = vpack.c.b16 %v1235, %v1234
        %v1259 = vpack.c.b16 %v1237, %v1236
        %v1260 = vpack.c.b16 %v1239, %v1238
        %v1261 = vpack.c.b16 %v1241, %v1240
        %v1262 = vpack.c.b16 %v1243, %v1242
        %v1263 = vpack.c.b16 %v1245, %v1244
        %v1264 = vpack.c.b16 %v1247, %v1246
        %v1265 = vpack.c.b16 %v1249, %v1248
        %1282 = vmatprep.subr.bf16.mxu0 0
        %1283 = vmatpush1.bf16.xpose.msra.mxu0 %v1250
        %1284 = vmatprep.subr.bf16.mxu0 0
        %1285 = vmatpush1.bf16.xpose.msra.mxu0 %v1251
        %1286 = vmatprep.subr.bf16.mxu0 0
        %1287 = vmatpush1.bf16.xpose.msra.mxu0 %v1252
        %1288 = vmatprep.subr.bf16.mxu0 0
        %1289 = vmatpush1.bf16.xpose.msra.mxu0 %v1253
        %1290 = vmatprep.subr.bf16.mxu0 0
        %1291 = vmatpush1.bf16.xpose.msra.mxu0 %v1254
        %1292 = vmatprep.subr.bf16.mxu0 0
        %1293 = vmatpush1.bf16.xpose.msra.mxu0 %v1255
        %1294 = vmatprep.subr.bf16.mxu0 0
        %1295 = vmatpush1.bf16.xpose.msra.mxu0 %v1256
        %1296 = vmatprep.subr.bf16.mxu0 0
        %1297 = vmatpush1.bf16.xpose.msra.mxu0 %v1257
        %1298 = vmatprep.subr.bf16.mxu0 0
        %1299 = vmatpush1.bf16.xpose.msra.mxu0 %v1258
        %1300 = vmatprep.subr.bf16.mxu0 0
        %1301 = vmatpush1.bf16.xpose.msra.mxu0 %v1259
        %1302 = vmatprep.subr.bf16.mxu0 0
        %1303 = vmatpush1.bf16.xpose.msra.mxu0 %v1260
        %1304 = vmatprep.subr.bf16.mxu0 0
        %1305 = vmatpush1.bf16.xpose.msra.mxu0 %v1261
        %1306 = vmatprep.subr.bf16.mxu0 0
        %1307 = vmatpush1.bf16.xpose.msra.mxu0 %v1262
        %1308 = vmatprep.subr.bf16.mxu0 0
        %1309 = vmatpush1.bf16.xpose.msra.mxu0 %v1263
        %1310 = vmatprep.subr.bf16.mxu0 0
        %1311 = vmatpush1.bf16.xpose.msra.mxu0 %v1264
        %1312 = vmatprep.subr.bf16.mxu0 0
        %1313 = vmatpush1.bf16.xpose.msra.mxu0 %v1265
        %1314 = vmatprep.mubr.bf16.mxu0 0
        %1315 = vmatmul.mubr.bf16.gmra.mrb[0].mxu0 %v1154
        %v1316 = vpop.f32.mrb[0].mxu0
        %v1317 = vadd.f32 %v1083, %v1316
        %v1318 = vpop.f32.mrb[0].mxu0
        %v1319 = vadd.f32 %v1087, %v1318
        %v1320 = vpop.f32.mrb[0].mxu0
        %v1321 = vadd.f32 %v1083, %v1320
        %v1322 = vpop.f32.mrb[0].mxu0
        %v1323 = vadd.f32 %v1087, %v1322
        %1324 = vmatprep.mubr.bf16.mxu0 0
        %1325 = vmatmul.mubr.bf16.gmra.mrb[0].mxu0 %v1155
        %v1326 = vpop.f32.mrb[0].mxu0
        %v1327 = vadd.f32 %v1083, %v1326
        %v1328 = vpop.f32.mrb[0].mxu0
        %v1329 = vadd.f32 %v1087, %v1328
        %v1330 = vpop.f32.mrb[0].mxu0
        %v1331 = vadd.f32 %v1083, %v1330
        %v1332 = vpop.f32.mrb[0].mxu0
        %v1333 = vadd.f32 %v1087, %v1332
        %1334 = vmatprep.mubr.bf16.mxu0 0
        %1335 = vmatmul.mubr.bf16.gmra.mrb[0].mxu0 %v1156
        %v1336 = vpop.f32.mrb[0].mxu0
        %v1337 = vadd.f32 %v1083, %v1336
        %v1338 = vpop.f32.mrb[0].mxu0
        %v1339 = vadd.f32 %v1087, %v1338
        %v1340 = vpop.f32.mrb[0].mxu0
        %v1341 = vadd.f32 %v1083, %v1340
        %v1342 = vpop.f32.mrb[0].mxu0
        %v1343 = vadd.f32 %v1087, %v1342
        %1344 = vmatprep.mubr.bf16.mxu0 0
        %1345 = vmatmul.mubr.bf16.gmra.mrb[0].mxu0 %v1157
        %v1346 = vpop.f32.mrb[0].mxu0
        %v1347 = vadd.f32 %v1083, %v1346
        %v1348 = vpop.f32.mrb[0].mxu0
        %v1349 = vadd.f32 %v1087, %v1348
        %v1350 = vpop.f32.mrb[0].mxu0
        %v1351 = vadd.f32 %v1083, %v1350
        %v1352 = vpop.f32.mrb[0].mxu0
        %v1353 = vadd.f32 %v1087, %v1352
        %1354 = vmatprep.mubr.bf16.mxu0 0
        %1355 = vmatmul.mubr.bf16.gmra.mrb[0].mxu0 %v1158
        %v1356 = vpop.f32.mrb[0].mxu0
        %v1357 = vadd.f32 %v1083, %v1356
        %v1358 = vpop.f32.mrb[0].mxu0
        %v1359 = vadd.f32 %v1087, %v1358
        %v1360 = vpop.f32.mrb[0].mxu0
        %v1361 = vadd.f32 %v1083, %v1360
        %v1362 = vpop.f32.mrb[0].mxu0
        %v1363 = vadd.f32 %v1087, %v1362
        %1364 = vmatprep.mubr.bf16.mxu0 0
        %1365 = vmatmul.mubr.bf16.gmra.mrb[0].mxu0 %v1159
        %v1366 = vpop.f32.mrb[0].mxu0
        %v1367 = vadd.f32 %v1083, %v1366
        %v1368 = vpop.f32.mrb[0].mxu0
        %v1369 = vadd.f32 %v1087, %v1368
        %v1370 = vpop.f32.mrb[0].mxu0
        %v1371 = vadd.f32 %v1083, %v1370
        %v1372 = vpop.f32.mrb[0].mxu0
        %v1373 = vadd.f32 %v1087, %v1372
        %1374 = vmatprep.mubr.bf16.mxu0 0
        %1375 = vmatmul.mubr.bf16.gmra.mrb[0].mxu0 %v1160
        %v1376 = vpop.f32.mrb[0].mxu0
        %v1377 = vadd.f32 %v1083, %v1376
        %v1378 = vpop.f32.mrb[0].mxu0
        %v1379 = vadd.f32 %v1087, %v1378
        %v1380 = vpop.f32.mrb[0].mxu0
        %v1381 = vadd.f32 %v1083, %v1380
        %v1382 = vpop.f32.mrb[0].mxu0
        %v1383 = vadd.f32 %v1087, %v1382
        %1384 = vmatprep.mubr.bf16.mxu0 0
        %1385 = vmatmul.mubr.bf16.gmra.mrb[0].mxu0 %v1161
        %v1386 = vpop.f32.mrb[0].mxu0
        %v1387 = vadd.f32 %v1083, %v1386
        %v1388 = vpop.f32.mrb[0].mxu0
        %v1389 = vadd.f32 %v1087, %v1388
        %v1390 = vpop.f32.mrb[0].mxu0
        %v1391 = vadd.f32 %v1083, %v1390
        %v1392 = vpop.f32.mrb[0].mxu0
        %v1393 = vadd.f32 %v1087, %v1392
        %1394 = vmatprep.mubr.bf16.mxu0 0
        %1395 = vmatmul.mubr.bf16.gmra.mrb[0].mxu0 %v1162
        %v1396 = vpop.f32.mrb[0].mxu0
        %v1397 = vadd.f32 %v1083, %v1396
        %v1398 = vpop.f32.mrb[0].mxu0
        %v1399 = vadd.f32 %v1087, %v1398
        %v1400 = vpop.f32.mrb[0].mxu0
        %v1401 = vadd.f32 %v1083, %v1400
        %v1402 = vpop.f32.mrb[0].mxu0
        %v1403 = vadd.f32 %v1087, %v1402
        %1404 = vmatprep.mubr.bf16.mxu0 0
        %1405 = vmatmul.mubr.bf16.gmra.mrb[0].mxu0 %v1163
        %v1406 = vpop.f32.mrb[0].mxu0
        %v1407 = vadd.f32 %v1083, %v1406
        %v1408 = vpop.f32.mrb[0].mxu0
        %v1409 = vadd.f32 %v1087, %v1408
        %v1410 = vpop.f32.mrb[0].mxu0
        %v1411 = vadd.f32 %v1083, %v1410
        %v1412 = vpop.f32.mrb[0].mxu0
        %v1413 = vadd.f32 %v1087, %v1412
        %1414 = vmatprep.mubr.bf16.mxu0 0
        %1415 = vmatmul.mubr.bf16.gmra.mrb[0].mxu0 %v1164
        %v1416 = vpop.f32.mrb[0].mxu0
        %v1417 = vadd.f32 %v1083, %v1416
        %v1418 = vpop.f32.mrb[0].mxu0
        %v1419 = vadd.f32 %v1087, %v1418
        %v1420 = vpop.f32.mrb[0].mxu0
        %v1421 = vadd.f32 %v1083, %v1420
        %v1422 = vpop.f32.mrb[0].mxu0
        %v1423 = vadd.f32 %v1087, %v1422
        %1424 = vmatprep.mubr.bf16.mxu0 0
        %1425 = vmatmul.mubr.bf16.gmra.mrb[0].mxu0 %v1165
        %v1426 = vpop.f32.mrb[0].mxu0
        %v1427 = vadd.f32 %v1083, %v1426
        %v1428 = vpop.f32.mrb[0].mxu0
        %v1429 = vadd.f32 %v1087, %v1428
        %v1430 = vpop.f32.mrb[0].mxu0
        %v1431 = vadd.f32 %v1083, %v1430
        %v1432 = vpop.f32.mrb[0].mxu0
        %v1433 = vadd.f32 %v1087, %v1432
        %1434 = vmatprep.mubr.bf16.mxu0 0
        %1435 = vmatmul.mubr.bf16.gmra.mrb[0].mxu0 %v1166
        %v1436 = vpop.f32.mrb[0].mxu0
        %v1437 = vadd.f32 %v1083, %v1436
        %v1438 = vpop.f32.mrb[0].mxu0
        %v1439 = vadd.f32 %v1087, %v1438
        %v1440 = vpop.f32.mrb[0].mxu0
        %v1441 = vadd.f32 %v1083, %v1440
        %v1442 = vpop.f32.mrb[0].mxu0
        %v1443 = vadd.f32 %v1087, %v1442
        %1444 = vmatprep.mubr.bf16.mxu0 0
        %1445 = vmatmul.mubr.bf16.gmra.mrb[0].mxu0 %v1167
        %v1446 = vpop.f32.mrb[0].mxu0
        %v1447 = vadd.f32 %v1083, %v1446
        %v1448 = vpop.f32.mrb[0].mxu0
        %v1449 = vadd.f32 %v1087, %v1448
        %v1450 = vpop.f32.mrb[0].mxu0
        %v1451 = vadd.f32 %v1083, %v1450
        %v1452 = vpop.f32.mrb[0].mxu0
        %v1453 = vadd.f32 %v1087, %v1452
        %1454 = vmatprep.mubr.bf16.mxu0 0
        %1455 = vmatmul.mubr.bf16.gmra.mrb[0].mxu0 %v1168
        %v1456 = vpop.f32.mrb[0].mxu0
        %v1457 = vadd.f32 %v1083, %v1456
        %v1458 = vpop.f32.mrb[0].mxu0
        %v1459 = vadd.f32 %v1087, %v1458
        %v1460 = vpop.f32.mrb[0].mxu0
        %v1461 = vadd.f32 %v1083, %v1460
        %v1462 = vpop.f32.mrb[0].mxu0
        %v1463 = vadd.f32 %v1087, %v1462
        %1464 = vmatprep.mubr.bf16.mxu0 0
        %1465 = vmatmul.mubr.bf16.gmra.mrb[0].mxu0 %v1169
        %v1466 = vpop.f32.mrb[0].mxu0
        %v1467 = vadd.f32 %v1083, %v1466
        %v1468 = vpop.f32.mrb[0].mxu0
        %v1469 = vadd.f32 %v1087, %v1468
        %v1470 = vpop.f32.mrb[0].mxu0
        %v1471 = vadd.f32 %v1083, %v1470
        %v1472 = vpop.f32.mrb[0].mxu0
        %v1473 = vadd.f32 %v1087, %v1472
        %1474 = vdwg.mxu0
        %v1475 = vld [vmem:[#allocation2] sm:$0xff]
        %v1476 = vld [vmem:[#allocation2 + $0x8] sm:$0xff]
        %v1477 = vld [vmem:[#allocation2 + $0x10] sm:$0xff]
        %v1478 = vld [vmem:[#allocation2 + $0x18] sm:$0xff]
        %v1479 = vld [vmem:[#allocation2 + $0x20] sm:$0xff]
        %v1480 = vld [vmem:[#allocation2 + $0x28] sm:$0xff]
        %v1481 = vld [vmem:[#allocation2 + $0x30] sm:$0xff]
        %v1482 = vld [vmem:[#allocation2 + $0x38] sm:$0xff]
        %v1483 = vld [vmem:[#allocation2 + $0x40] sm:$0xff]
        %v1484 = vld [vmem:[#allocation2 + $0x48] sm:$0xff]
        %v1485 = vld [vmem:[#allocation2 + $0x50] sm:$0xff]
        %v1486 = vld [vmem:[#allocation2 + $0x58] sm:$0xff]
        %v1487 = vld [vmem:[#allocation2 + $0x60] sm:$0xff]
        %v1488 = vld [vmem:[#allocation2 + $0x68] sm:$0xff]
        %v1489 = vld [vmem:[#allocation2 + $0x70] sm:$0xff]
        %v1490 = vld [vmem:[#allocation2 + $0x78] sm:$0xff]
        %v1491 = vld [vmem:[#allocation2 + $0x80] sm:$0xff]
        %v1492 = vld [vmem:[#allocation2 + $0x88] sm:$0xff]
        %v1493 = vld [vmem:[#allocation2 + $0x90] sm:$0xff]
        %v1494 = vld [vmem:[#allocation2 + $0x98] sm:$0xff]
        %v1495 = vld [vmem:[#allocation2 + $0xa0] sm:$0xff]
        %v1496 = vld [vmem:[#allocation2 + $0xa8] sm:$0xff]
        %v1497 = vld [vmem:[#allocation2 + $0xb0] sm:$0xff]
        %v1498 = vld [vmem:[#allocation2 + $0xb8] sm:$0xff]
        %v1499 = vld [vmem:[#allocation2 + $0xc0] sm:$0xff]
        %v1500 = vld [vmem:[#allocation2 + $0xc8] sm:$0xff]
        %v1501 = vld [vmem:[#allocation2 + $0xd0] sm:$0xff]
        %v1502 = vld [vmem:[#allocation2 + $0xd8] sm:$0xff]
        %v1503 = vld [vmem:[#allocation2 + $0xe0] sm:$0xff]
        %v1504 = vld [vmem:[#allocation2 + $0xe8] sm:$0xff]
        %v1505 = vld [vmem:[#allocation2 + $0xf0] sm:$0xff]
        %v1506 = vld [vmem:[#allocation2 + $0xf8] sm:$0xff]
        %v1507 = vmax.f32 %v1317, %v1319
        %1508 = vmax.xlane.f32.xlu0 %v1507
        %v1509 = vpop.xlane.xlu0 %1508
        %v1510 = vmax.f32 %v1321, %v1323
        %1511 = vmax.xlane.f32.xlu0 %v1510
        %v1512 = vpop.xlane.xlu0 %1511
        %v1513 = vmax.f32 %v1327, %v1329
        %1514 = vmax.xlane.f32.xlu0 %v1513
        %v1515 = vpop.xlane.xlu0 %1514
        %v1516 = vmax.f32 %v1331, %v1333
        %1517 = vmax.xlane.f32.xlu0 %v1516
        %v1518 = vpop.xlane.xlu0 %1517
        %v1519 = vmax.f32 %v1337, %v1339
        %1520 = vmax.xlane.f32.xlu0 %v1519
        %v1521 = vpop.xlane.xlu0 %1520
        %v1522 = vmax.f32 %v1341, %v1343
        %1523 = vmax.xlane.f32.xlu0 %v1522
        %v1524 = vpop.xlane.xlu0 %1523
        %v1525 = vmax.f32 %v1347, %v1349
        %1526 = vmax.xlane.f32.xlu0 %v1525
        %v1527 = vpop.xlane.xlu0 %1526
        %v1528 = vmax.f32 %v1351, %v1353
        %1529 = vmax.xlane.f32.xlu0 %v1528
        %v1530 = vpop.xlane.xlu0 %1529
        %v1531 = vmax.f32 %v1357, %v1359
        %1532 = vmax.xlane.f32.xlu0 %v1531
        %v1533 = vpop.xlane.xlu0 %1532
        %v1534 = vmax.f32 %v1361, %v1363
        %1535 = vmax.xlane.f32.xlu0 %v1534
        %v1536 = vpop.xlane.xlu0 %1535
        %v1537 = vmax.f32 %v1367, %v1369
        %1538 = vmax.xlane.f32.xlu0 %v1537
        %v1539 = vpop.xlane.xlu0 %1538
        %v1540 = vmax.f32 %v1371, %v1373
        %1541 = vmax.xlane.f32.xlu0 %v1540
        %v1542 = vpop.xlane.xlu0 %1541
        %v1543 = vmax.f32 %v1377, %v1379
        %1544 = vmax.xlane.f32.xlu0 %v1543
        %v1545 = vpop.xlane.xlu0 %1544
        %v1546 = vmax.f32 %v1381, %v1383
        %1547 = vmax.xlane.f32.xlu0 %v1546
        %v1548 = vpop.xlane.xlu0 %1547
        %v1549 = vmax.f32 %v1387, %v1389
        %1550 = vmax.xlane.f32.xlu0 %v1549
        %v1551 = vpop.xlane.xlu0 %1550
        %v1552 = vmax.f32 %v1391, %v1393
        %1553 = vmax.xlane.f32.xlu0 %v1552
        %v1554 = vpop.xlane.xlu0 %1553
        %v1555 = vmax.f32 %v1397, %v1399
        %1556 = vmax.xlane.f32.xlu0 %v1555
        %v1557 = vpop.xlane.xlu0 %1556
        %v1558 = vmax.f32 %v1401, %v1403
        %1559 = vmax.xlane.f32.xlu0 %v1558
        %v1560 = vpop.xlane.xlu0 %1559
        %v1561 = vmax.f32 %v1407, %v1409
        %1562 = vmax.xlane.f32.xlu0 %v1561
        %v1563 = vpop.xlane.xlu0 %1562
        %v1564 = vmax.f32 %v1411, %v1413
        %1565 = vmax.xlane.f32.xlu0 %v1564
        %v1566 = vpop.xlane.xlu0 %1565
        %v1567 = vmax.f32 %v1417, %v1419
        %1568 = vmax.xlane.f32.xlu0 %v1567
        %v1569 = vpop.xlane.xlu0 %1568
        %v1570 = vmax.f32 %v1421, %v1423
        %1571 = vmax.xlane.f32.xlu0 %v1570
        %v1572 = vpop.xlane.xlu0 %1571
        %v1573 = vmax.f32 %v1427, %v1429
        %1574 = vmax.xlane.f32.xlu0 %v1573
        %v1575 = vpop.xlane.xlu0 %1574
        %v1576 = vmax.f32 %v1431, %v1433
        %1577 = vmax.xlane.f32.xlu0 %v1576
        %v1578 = vpop.xlane.xlu0 %1577
        %v1579 = vmax.f32 %v1437, %v1439
        %1580 = vmax.xlane.f32.xlu0 %v1579
        %v1581 = vpop.xlane.xlu0 %1580
        %v1582 = vmax.f32 %v1441, %v1443
        %1583 = vmax.xlane.f32.xlu0 %v1582
        %v1584 = vpop.xlane.xlu0 %1583
        %v1585 = vmax.f32 %v1447, %v1449
        %1586 = vmax.xlane.f32.xlu0 %v1585
        %v1587 = vpop.xlane.xlu0 %1586
        %v1588 = vmax.f32 %v1451, %v1453
        %1589 = vmax.xlane.f32.xlu0 %v1588
        %v1590 = vpop.xlane.xlu0 %1589
        %v1591 = vmax.f32 %v1457, %v1459
        %1592 = vmax.xlane.f32.xlu0 %v1591
        %v1593 = vpop.xlane.xlu0 %1592
        %v1594 = vmax.f32 %v1461, %v1463
        %1595 = vmax.xlane.f32.xlu0 %v1594
        %v1596 = vpop.xlane.xlu0 %1595
        %v1597 = vmax.f32 %v1467, %v1469
        %1598 = vmax.xlane.f32.xlu0 %v1597
        %v1599 = vpop.xlane.xlu0 %1598
        %v1600 = vmax.f32 %v1471, %v1473
        %1601 = vmax.xlane.f32.xlu0 %v1600
        %v1602 = vpop.xlane.xlu0 %1601
        %v1603 = vmax.f32 %v1475, %v1509
        %v1604 = vmax.f32 %v1476, %v1512
        %v1605 = vmax.f32 %v1477, %v1515
        %v1606 = vmax.f32 %v1478, %v1518
        %v1607 = vmax.f32 %v1479, %v1521
        %v1608 = vmax.f32 %v1480, %v1524
        %v1609 = vmax.f32 %v1481, %v1527
        %v1610 = vmax.f32 %v1482, %v1530
        %v1611 = vmax.f32 %v1483, %v1533
        %v1612 = vmax.f32 %v1484, %v1536
        %v1613 = vmax.f32 %v1485, %v1539
        %v1614 = vmax.f32 %v1486, %v1542
        %v1615 = vmax.f32 %v1487, %v1545
        %v1616 = vmax.f32 %v1488, %v1548
        %v1617 = vmax.f32 %v1489, %v1551
        %v1618 = vmax.f32 %v1490, %v1554
        %v1619 = vmax.f32 %v1491, %v1557
        %v1620 = vmax.f32 %v1492, %v1560
        %v1621 = vmax.f32 %v1493, %v1563
        %v1622 = vmax.f32 %v1494, %v1566
        %v1623 = vmax.f32 %v1495, %v1569
        %v1624 = vmax.f32 %v1496, %v1572
        %v1625 = vmax.f32 %v1497, %v1575
        %v1626 = vmax.f32 %v1498, %v1578
        %v1627 = vmax.f32 %v1499, %v1581
        %v1628 = vmax.f32 %v1500, %v1584
        %v1629 = vmax.f32 %v1501, %v1587
        %v1630 = vmax.f32 %v1502, %v1590
        %v1631 = vmax.f32 %v1503, %v1593
        %v1632 = vmax.f32 %v1504, %v1596
        %v1633 = vmax.f32 %v1505, %v1599
        %v1634 = vmax.f32 %v1506, %v1602
        %v1635 = vsub.f32 %v1475, %v1603
        %v1636 = vsub.f32 %v1476, %v1604
        %v1637 = vsub.f32 %v1477, %v1605
        %v1638 = vsub.f32 %v1478, %v1606
        %v1639 = vsub.f32 %v1479, %v1607
        %v1640 = vsub.f32 %v1480, %v1608
        %v1641 = vsub.f32 %v1481, %v1609
        %v1642 = vsub.f32 %v1482, %v1610
        %v1643 = vsub.f32 %v1483, %v1611
        %v1644 = vsub.f32 %v1484, %v1612
        %v1645 = vsub.f32 %v1485, %v1613
        %v1646 = vsub.f32 %v1486, %v1614
        %v1647 = vsub.f32 %v1487, %v1615
        %v1648 = vsub.f32 %v1488, %v1616
        %v1649 = vsub.f32 %v1489, %v1617
        %v1650 = vsub.f32 %v1490, %v1618
        %v1651 = vsub.f32 %v1491, %v1619
        %v1652 = vsub.f32 %v1492, %v1620
        %v1653 = vsub.f32 %v1493, %v1621
        %v1654 = vsub.f32 %v1494, %v1622
        %v1655 = vsub.f32 %v1495, %v1623
        %v1656 = vsub.f32 %v1496, %v1624
        %v1657 = vsub.f32 %v1497, %v1625
        %v1658 = vsub.f32 %v1498, %v1626
        %v1659 = vsub.f32 %v1499, %v1627
        %v1660 = vsub.f32 %v1500, %v1628
        %v1661 = vsub.f32 %v1501, %v1629
        %v1662 = vsub.f32 %v1502, %v1630
        %v1663 = vsub.f32 %v1503, %v1631
        %v1664 = vsub.f32 %v1504, %v1632
        %v1665 = vsub.f32 %v1505, %v1633
        %v1666 = vsub.f32 %v1506, %v1634
        %v1667 = vmul.f32 %v1635, 1.442695
        %v1668 = vpow.pop %v1667
        %v1669 = vmul.f32 %v1636, 1.442695
        %v1670 = vpow.pop %v1669
        %v1671 = vmul.f32 %v1637, 1.442695
        %v1672 = vpow.pop %v1671
        %v1673 = vmul.f32 %v1638, 1.442695
        %v1674 = vpow.pop %v1673
        %v1675 = vmul.f32 %v1639, 1.442695
        %v1676 = vpow.pop %v1675
        %v1677 = vmul.f32 %v1640, 1.442695
        %v1678 = vpow.pop %v1677
        %v1679 = vmul.f32 %v1641, 1.442695
        %v1680 = vpow.pop %v1679
        %v1681 = vmul.f32 %v1642, 1.442695
        %v1682 = vpow.pop %v1681
        %v1683 = vmul.f32 %v1643, 1.442695
        %v1684 = vpow.pop %v1683
        %v1685 = vmul.f32 %v1644, 1.442695
        %v1686 = vpow.pop %v1685
        %v1687 = vmul.f32 %v1645, 1.442695
        %v1688 = vpow.pop %v1687
        %v1689 = vmul.f32 %v1646, 1.442695
        %v1690 = vpow.pop %v1689
        %v1691 = vmul.f32 %v1647, 1.442695
        %v1692 = vpow.pop %v1691
        %v1693 = vmul.f32 %v1648, 1.442695
        %v1694 = vpow.pop %v1693
        %v1695 = vmul.f32 %v1649, 1.442695
        %v1696 = vpow.pop %v1695
        %v1697 = vmul.f32 %v1650, 1.442695
        %v1698 = vpow.pop %v1697
        %v1699 = vmul.f32 %v1651, 1.442695
        %v1700 = vpow.pop %v1699
        %v1701 = vmul.f32 %v1652, 1.442695
        %v1702 = vpow.pop %v1701
        %v1703 = vmul.f32 %v1653, 1.442695
        %v1704 = vpow.pop %v1703
        %v1705 = vmul.f32 %v1654, 1.442695
        %v1706 = vpow.pop %v1705
        %v1707 = vmul.f32 %v1655, 1.442695
        %v1708 = vpow.pop %v1707
        %v1709 = vmul.f32 %v1656, 1.442695
        %v1710 = vpow.pop %v1709
        %v1711 = vmul.f32 %v1657, 1.442695
        %v1712 = vpow.pop %v1711
        %v1713 = vmul.f32 %v1658, 1.442695
        %v1714 = vpow.pop %v1713
        %v1715 = vmul.f32 %v1659, 1.442695
        %v1716 = vpow.pop %v1715
        %v1717 = vmul.f32 %v1660, 1.442695
        %v1718 = vpow.pop %v1717
        %v1719 = vmul.f32 %v1661, 1.442695
        %v1720 = vpow.pop %v1719
        %v1721 = vmul.f32 %v1662, 1.442695
        %v1722 = vpow.pop %v1721
        %v1723 = vmul.f32 %v1663, 1.442695
        %v1724 = vpow.pop %v1723
        %v1725 = vmul.f32 %v1664, 1.442695
        %v1726 = vpow.pop %v1725
        %v1727 = vmul.f32 %v1665, 1.442695
        %v1728 = vpow.pop %v1727
        %v1729 = vmul.f32 %v1666, 1.442695
        %v1730 = vpow.pop %v1729
        %1732 = vset.pattern.permute.xlu0 0
        %1733 = vperm.xlu0 %1732, %v1603
        %v1734 = vpop.permute.xlu0 %1733
        %1737 = vset.pattern.permute.xlu0 0
        %1738 = vperm.xlu0 %1737, %v1604
        %v1739 = vpop.permute.xlu0 %1738
        %1742 = vset.pattern.permute.xlu0 0
        %1743 = vperm.xlu0 %1742, %v1605
        %v1744 = vpop.permute.xlu0 %1743
        %1747 = vset.pattern.permute.xlu0 0
        %1748 = vperm.xlu0 %1747, %v1606
        %v1749 = vpop.permute.xlu0 %1748
        %1752 = vset.pattern.permute.xlu0 0
        %1753 = vperm.xlu0 %1752, %v1607
        %v1754 = vpop.permute.xlu0 %1753
        %1757 = vset.pattern.permute.xlu0 0
        %1758 = vperm.xlu0 %1757, %v1608
        %v1759 = vpop.permute.xlu0 %1758
        %1762 = vset.pattern.permute.xlu0 0
        %1763 = vperm.xlu0 %1762, %v1609
        %v1764 = vpop.permute.xlu0 %1763
        %1767 = vset.pattern.permute.xlu0 0
        %1768 = vperm.xlu0 %1767, %v1610
        %v1769 = vpop.permute.xlu0 %1768
        %1772 = vset.pattern.permute.xlu0 0
        %1773 = vperm.xlu0 %1772, %v1611
        %v1774 = vpop.permute.xlu0 %1773
        %1777 = vset.pattern.permute.xlu0 0
        %1778 = vperm.xlu0 %1777, %v1612
        %v1779 = vpop.permute.xlu0 %1778
        %1782 = vset.pattern.permute.xlu0 0
        %1783 = vperm.xlu0 %1782, %v1613
        %v1784 = vpop.permute.xlu0 %1783
        %1787 = vset.pattern.permute.xlu0 0
        %1788 = vperm.xlu0 %1787, %v1614
        %v1789 = vpop.permute.xlu0 %1788
        %1792 = vset.pattern.permute.xlu0 0
        %1793 = vperm.xlu0 %1792, %v1615
        %v1794 = vpop.permute.xlu0 %1793
        %1797 = vset.pattern.permute.xlu0 0
        %1798 = vperm.xlu0 %1797, %v1616
        %v1799 = vpop.permute.xlu0 %1798
        %1802 = vset.pattern.permute.xlu0 0
        %1803 = vperm.xlu0 %1802, %v1617
        %v1804 = vpop.permute.xlu0 %1803
        %1807 = vset.pattern.permute.xlu0 0
        %1808 = vperm.xlu0 %1807, %v1618
        %v1809 = vpop.permute.xlu0 %1808
        %1812 = vset.pattern.permute.xlu0 0
        %1813 = vperm.xlu0 %1812, %v1619
        %v1814 = vpop.permute.xlu0 %1813
        %1817 = vset.pattern.permute.xlu0 0
        %1818 = vperm.xlu0 %1817, %v1620
        %v1819 = vpop.permute.xlu0 %1818
        %1822 = vset.pattern.permute.xlu0 0
        %1823 = vperm.xlu0 %1822, %v1621
        %v1824 = vpop.permute.xlu0 %1823
        %1827 = vset.pattern.permute.xlu0 0
        %1828 = vperm.xlu0 %1827, %v1622
        %v1829 = vpop.permute.xlu0 %1828
        %1832 = vset.pattern.permute.xlu0 0
        %1833 = vperm.xlu0 %1832, %v1623
        %v1834 = vpop.permute.xlu0 %1833
        %1837 = vset.pattern.permute.xlu0 0
        %1838 = vperm.xlu0 %1837, %v1624
        %v1839 = vpop.permute.xlu0 %1838
        %1842 = vset.pattern.permute.xlu0 0
        %1843 = vperm.xlu0 %1842, %v1625
        %v1844 = vpop.permute.xlu0 %1843
        %1847 = vset.pattern.permute.xlu0 0
        %1848 = vperm.xlu0 %1847, %v1626
        %v1849 = vpop.permute.xlu0 %1848
        %1852 = vset.pattern.permute.xlu0 0
        %1853 = vperm.xlu0 %1852, %v1627
        %v1854 = vpop.permute.xlu0 %1853
        %1857 = vset.pattern.permute.xlu0 0
        %1858 = vperm.xlu0 %1857, %v1628
        %v1859 = vpop.permute.xlu0 %1858
        %1862 = vset.pattern.permute.xlu0 0
        %1863 = vperm.xlu0 %1862, %v1629
        %v1864 = vpop.permute.xlu0 %1863
        %1867 = vset.pattern.permute.xlu0 0
        %1868 = vperm.xlu0 %1867, %v1630
        %v1869 = vpop.permute.xlu0 %1868
        %1872 = vset.pattern.permute.xlu0 0
        %1873 = vperm.xlu0 %1872, %v1631
        %v1874 = vpop.permute.xlu0 %1873
        %1877 = vset.pattern.permute.xlu0 0
        %1878 = vperm.xlu0 %1877, %v1632
        %v1879 = vpop.permute.xlu0 %1878
        %1882 = vset.pattern.permute.xlu0 0
        %1883 = vperm.xlu0 %1882, %v1633
        %v1884 = vpop.permute.xlu0 %1883
        %1887 = vset.pattern.permute.xlu0 0
        %1888 = vperm.xlu0 %1887, %v1634
        %v1889 = vpop.permute.xlu0 %1888
        %v1891 = vsub.f32 %v1317, %v1734
        %v1892 = vsub.f32 %v1319, %v1734
        %v1893 = vsub.f32 %v1321, %v1739
        %v1894 = vsub.f32 %v1323, %v1739
        %v1895 = vsub.f32 %v1327, %v1744
        %v1896 = vsub.f32 %v1329, %v1744
        %v1897 = vsub.f32 %v1331, %v1749
        %v1898 = vsub.f32 %v1333, %v1749
        %v1899 = vsub.f32 %v1337, %v1754
        %v1900 = vsub.f32 %v1339, %v1754
        %v1901 = vsub.f32 %v1341, %v1759
        %v1902 = vsub.f32 %v1343, %v1759
        %v1903 = vsub.f32 %v1347, %v1764
        %v1904 = vsub.f32 %v1349, %v1764
        %v1905 = vsub.f32 %v1351, %v1769
        %v1906 = vsub.f32 %v1353, %v1769
        %v1907 = vsub.f32 %v1357, %v1774
        %v1908 = vsub.f32 %v1359, %v1774
        %v1909 = vsub.f32 %v1361, %v1779
        %v1910 = vsub.f32 %v1363, %v1779
        %v1911 = vsub.f32 %v1367, %v1784
        %v1912 = vsub.f32 %v1369, %v1784
        %v1913 = vsub.f32 %v1371, %v1789
        %v1914 = vsub.f32 %v1373, %v1789
        %v1915 = vsub.f32 %v1377, %v1794
        %v1916 = vsub.f32 %v1379, %v1794
        %v1917 = vsub.f32 %v1381, %v1799
        %v1918 = vsub.f32 %v1383, %v1799
        %v1919 = vsub.f32 %v1387, %v1804
        %v1920 = vsub.f32 %v1389, %v1804
        %v1921 = vsub.f32 %v1391, %v1809
        %v1922 = vsub.f32 %v1393, %v1809
        %v1923 = vsub.f32 %v1397, %v1814
        %v1924 = vsub.f32 %v1399, %v1814
        %v1925 = vsub.f32 %v1401, %v1819
        %v1926 = vsub.f32 %v1403, %v1819
        %v1927 = vsub.f32 %v1407, %v1824
        %v1928 = vsub.f32 %v1409, %v1824
        %v1929 = vsub.f32 %v1411, %v1829
        %v1930 = vsub.f32 %v1413, %v1829
        %v1931 = vsub.f32 %v1417, %v1834
        %v1932 = vsub.f32 %v1419, %v1834
        %v1933 = vsub.f32 %v1421, %v1839
        %v1934 = vsub.f32 %v1423, %v1839
        %v1935 = vsub.f32 %v1427, %v1844
        %v1936 = vsub.f32 %v1429, %v1844
        %v1937 = vsub.f32 %v1431, %v1849
        %v1938 = vsub.f32 %v1433, %v1849
        %v1939 = vsub.f32 %v1437, %v1854
        %v1940 = vsub.f32 %v1439, %v1854
        %v1941 = vsub.f32 %v1441, %v1859
        %v1942 = vsub.f32 %v1443, %v1859
        %v1943 = vsub.f32 %v1447, %v1864
        %v1944 = vsub.f32 %v1449, %v1864
        %v1945 = vsub.f32 %v1451, %v1869
        %v1946 = vsub.f32 %v1453, %v1869
        %v1947 = vsub.f32 %v1457, %v1874
        %v1948 = vsub.f32 %v1459, %v1874
        %v1949 = vsub.f32 %v1461, %v1879
        %v1950 = vsub.f32 %v1463, %v1879
        %v1951 = vsub.f32 %v1467, %v1884
        %v1952 = vsub.f32 %v1469, %v1884
        %v1953 = vsub.f32 %v1471, %v1889
        %v1954 = vsub.f32 %v1473, %v1889
        %v1955 = vmul.f32 %v1891, 1.442695
        %v1956 = vpow.pop %v1955
        %v1957 = vmul.f32 %v1892, 1.442695
        %v1958 = vpow.pop %v1957
        %v1959 = vmul.f32 %v1893, 1.442695
        %v1960 = vpow.pop %v1959
        %v1961 = vmul.f32 %v1894, 1.442695
        %v1962 = vpow.pop %v1961
        %v1963 = vmul.f32 %v1895, 1.442695
        %v1964 = vpow.pop %v1963
        %v1965 = vmul.f32 %v1896, 1.442695
        %v1966 = vpow.pop %v1965
        %v1967 = vmul.f32 %v1897, 1.442695
        %v1968 = vpow.pop %v1967
        %v1969 = vmul.f32 %v1898, 1.442695
        %v1970 = vpow.pop %v1969
        %v1971 = vmul.f32 %v1899, 1.442695
        %v1972 = vpow.pop %v1971
        %v1973 = vmul.f32 %v1900, 1.442695
        %v1974 = vpow.pop %v1973
        %v1975 = vmul.f32 %v1901, 1.442695
        %v1976 = vpow.pop %v1975
        %v1977 = vmul.f32 %v1902, 1.442695
        %v1978 = vpow.pop %v1977
        %v1979 = vmul.f32 %v1903, 1.442695
        %v1980 = vpow.pop %v1979
        %v1981 = vmul.f32 %v1904, 1.442695
        %v1982 = vpow.pop %v1981
        %v1983 = vmul.f32 %v1905, 1.442695
        %v1984 = vpow.pop %v1983
        %v1985 = vmul.f32 %v1906, 1.442695
        %v1986 = vpow.pop %v1985
        %v1987 = vmul.f32 %v1907, 1.442695
        %v1988 = vpow.pop %v1987
        %v1989 = vmul.f32 %v1908, 1.442695
        %v1990 = vpow.pop %v1989
        %v1991 = vmul.f32 %v1909, 1.442695
        %v1992 = vpow.pop %v1991
        %v1993 = vmul.f32 %v1910, 1.442695
        %v1994 = vpow.pop %v1993
        %v1995 = vmul.f32 %v1911, 1.442695
        %v1996 = vpow.pop %v1995
        %v1997 = vmul.f32 %v1912, 1.442695
        %v1998 = vpow.pop %v1997
        %v1999 = vmul.f32 %v1913, 1.442695
        %v2000 = vpow.pop %v1999
        %v2001 = vmul.f32 %v1914, 1.442695
        %v2002 = vpow.pop %v2001
        %v2003 = vmul.f32 %v1915, 1.442695
        %v2004 = vpow.pop %v2003
        %v2005 = vmul.f32 %v1916, 1.442695
        %v2006 = vpow.pop %v2005
        %v2007 = vmul.f32 %v1917, 1.442695
        %v2008 = vpow.pop %v2007
        %v2009 = vmul.f32 %v1918, 1.442695
        %v2010 = vpow.pop %v2009
        %v2011 = vmul.f32 %v1919, 1.442695
        %v2012 = vpow.pop %v2011
        %v2013 = vmul.f32 %v1920, 1.442695
        %v2014 = vpow.pop %v2013
        %v2015 = vmul.f32 %v1921, 1.442695
        %v2016 = vpow.pop %v2015
        %v2017 = vmul.f32 %v1922, 1.442695
        %v2018 = vpow.pop %v2017
        %v2019 = vmul.f32 %v1923, 1.442695
        %v2020 = vpow.pop %v2019
        %v2021 = vmul.f32 %v1924, 1.442695
        %v2022 = vpow.pop %v2021
        %v2023 = vmul.f32 %v1925, 1.442695
        %v2024 = vpow.pop %v2023
        %v2025 = vmul.f32 %v1926, 1.442695
        %v2026 = vpow.pop %v2025
        %v2027 = vmul.f32 %v1927, 1.442695
        %v2028 = vpow.pop %v2027
        %v2029 = vmul.f32 %v1928, 1.442695
        %v2030 = vpow.pop %v2029
        %v2031 = vmul.f32 %v1929, 1.442695
        %v2032 = vpow.pop %v2031
        %v2033 = vmul.f32 %v1930, 1.442695
        %v2034 = vpow.pop %v2033
        %v2035 = vmul.f32 %v1931, 1.442695
        %v2036 = vpow.pop %v2035
        %v2037 = vmul.f32 %v1932, 1.442695
        %v2038 = vpow.pop %v2037
        %v2039 = vmul.f32 %v1933, 1.442695
        %v2040 = vpow.pop %v2039
        %v2041 = vmul.f32 %v1934, 1.442695
        %v2042 = vpow.pop %v2041
        %v2043 = vmul.f32 %v1935, 1.442695
        %v2044 = vpow.pop %v2043
        %v2045 = vmul.f32 %v1936, 1.442695
        %v2046 = vpow.pop %v2045
        %v2047 = vmul.f32 %v1937, 1.442695
        %v2048 = vpow.pop %v2047
        %v2049 = vmul.f32 %v1938, 1.442695
        %v2050 = vpow.pop %v2049
        %v2051 = vmul.f32 %v1939, 1.442695
        %v2052 = vpow.pop %v2051
        %v2053 = vmul.f32 %v1940, 1.442695
        %v2054 = vpow.pop %v2053
        %v2055 = vmul.f32 %v1941, 1.442695
        %v2056 = vpow.pop %v2055
        %v2057 = vmul.f32 %v1942, 1.442695
        %v2058 = vpow.pop %v2057
        %v2059 = vmul.f32 %v1943, 1.442695
        %v2060 = vpow.pop %v2059
        %v2061 = vmul.f32 %v1944, 1.442695
        %v2062 = vpow.pop %v2061
        %v2063 = vmul.f32 %v1945, 1.442695
        %v2064 = vpow.pop %v2063
        %v2065 = vmul.f32 %v1946, 1.442695
        %v2066 = vpow.pop %v2065
        %v2067 = vmul.f32 %v1947, 1.442695
        %v2068 = vpow.pop %v2067
        %v2069 = vmul.f32 %v1948, 1.442695
        %v2070 = vpow.pop %v2069
        %v2071 = vmul.f32 %v1949, 1.442695
        %v2072 = vpow.pop %v2071
        %v2073 = vmul.f32 %v1950, 1.442695
        %v2074 = vpow.pop %v2073
        %v2075 = vmul.f32 %v1951, 1.442695
        %v2076 = vpow.pop %v2075
        %v2077 = vmul.f32 %v1952, 1.442695
        %v2078 = vpow.pop %v2077
        %v2079 = vmul.f32 %v1953, 1.442695
        %v2080 = vpow.pop %v2079
        %v2081 = vmul.f32 %v1954, 1.442695
        %v2082 = vpow.pop %v2081
        %v2083 = vld [vmem:[#allocation3] sm:$0xff]
        %v2084 = vld [vmem:[#allocation3 + $0x8] sm:$0xff]
        %v2085 = vld [vmem:[#allocation3 + $0x10] sm:$0xff]
        %v2086 = vld [vmem:[#allocation3 + $0x18] sm:$0xff]
        %v2087 = vld [vmem:[#allocation3 + $0x20] sm:$0xff]
        %v2088 = vld [vmem:[#allocation3 + $0x28] sm:$0xff]
        %v2089 = vld [vmem:[#allocation3 + $0x30] sm:$0xff]
        %v2090 = vld [vmem:[#allocation3 + $0x38] sm:$0xff]
        %v2091 = vld [vmem:[#allocation3 + $0x40] sm:$0xff]
        %v2092 = vld [vmem:[#allocation3 + $0x48] sm:$0xff]
        %v2093 = vld [vmem:[#allocation3 + $0x50] sm:$0xff]
        %v2094 = vld [vmem:[#allocation3 + $0x58] sm:$0xff]
        %v2095 = vld [vmem:[#allocation3 + $0x60] sm:$0xff]
        %v2096 = vld [vmem:[#allocation3 + $0x68] sm:$0xff]
        %v2097 = vld [vmem:[#allocation3 + $0x70] sm:$0xff]
        %v2098 = vld [vmem:[#allocation3 + $0x78] sm:$0xff]
        %v2099 = vld [vmem:[#allocation3 + $0x80] sm:$0xff]
        %v2100 = vld [vmem:[#allocation3 + $0x88] sm:$0xff]
        %v2101 = vld [vmem:[#allocation3 + $0x90] sm:$0xff]
        %v2102 = vld [vmem:[#allocation3 + $0x98] sm:$0xff]
        %v2103 = vld [vmem:[#allocation3 + $0xa0] sm:$0xff]
        %v2104 = vld [vmem:[#allocation3 + $0xa8] sm:$0xff]
        %v2105 = vld [vmem:[#allocation3 + $0xb0] sm:$0xff]
        %v2106 = vld [vmem:[#allocation3 + $0xb8] sm:$0xff]
        %v2107 = vld [vmem:[#allocation3 + $0xc0] sm:$0xff]
        %v2108 = vld [vmem:[#allocation3 + $0xc8] sm:$0xff]
        %v2109 = vld [vmem:[#allocation3 + $0xd0] sm:$0xff]
        %v2110 = vld [vmem:[#allocation3 + $0xd8] sm:$0xff]
        %v2111 = vld [vmem:[#allocation3 + $0xe0] sm:$0xff]
        %v2112 = vld [vmem:[#allocation3 + $0xe8] sm:$0xff]
        %v2113 = vld [vmem:[#allocation3 + $0xf0] sm:$0xff]
        %v2114 = vld [vmem:[#allocation3 + $0xf8] sm:$0xff]
        %v2115 = vmul.f32 %v1668, %v2083
        %v2116 = vmul.f32 %v1670, %v2084
        %v2117 = vmul.f32 %v1672, %v2085
        %v2118 = vmul.f32 %v1674, %v2086
        %v2119 = vmul.f32 %v1676, %v2087
        %v2120 = vmul.f32 %v1678, %v2088
        %v2121 = vmul.f32 %v1680, %v2089
        %v2122 = vmul.f32 %v1682, %v2090
        %v2123 = vmul.f32 %v1684, %v2091
        %v2124 = vmul.f32 %v1686, %v2092
        %v2125 = vmul.f32 %v1688, %v2093
        %v2126 = vmul.f32 %v1690, %v2094
        %v2127 = vmul.f32 %v1692, %v2095
        %v2128 = vmul.f32 %v1694, %v2096
        %v2129 = vmul.f32 %v1696, %v2097
        %v2130 = vmul.f32 %v1698, %v2098
        %v2131 = vmul.f32 %v1700, %v2099
        %v2132 = vmul.f32 %v1702, %v2100
        %v2133 = vmul.f32 %v1704, %v2101
        %v2134 = vmul.f32 %v1706, %v2102
        %v2135 = vmul.f32 %v1708, %v2103
        %v2136 = vmul.f32 %v1710, %v2104
        %v2137 = vmul.f32 %v1712, %v2105
        %v2138 = vmul.f32 %v1714, %v2106
        %v2139 = vmul.f32 %v1716, %v2107
        %v2140 = vmul.f32 %v1718, %v2108
        %v2141 = vmul.f32 %v1720, %v2109
        %v2142 = vmul.f32 %v1722, %v2110
        %v2143 = vmul.f32 %v1724, %v2111
        %v2144 = vmul.f32 %v1726, %v2112
        %v2145 = vmul.f32 %v1728, %v2113
        %v2146 = vmul.f32 %v1730, %v2114
        %v2147 = vadd.f32 %v1956, %v1958
        %2148 = vadd.xlane.f32.xlu0 %v2147
        %v2149 = vpop.xlane.xlu0 %2148
        %v2150 = vadd.f32 %v1960, %v1962
        %2151 = vadd.xlane.f32.xlu0 %v2150
        %v2152 = vpop.xlane.xlu0 %2151
        %v2153 = vadd.f32 %v1964, %v1966
        %2154 = vadd.xlane.f32.xlu0 %v2153
        %v2155 = vpop.xlane.xlu0 %2154
        %v2156 = vadd.f32 %v1968, %v1970
        %2157 = vadd.xlane.f32.xlu0 %v2156
        %v2158 = vpop.xlane.xlu0 %2157
        %v2159 = vadd.f32 %v1972, %v1974
        %2160 = vadd.xlane.f32.xlu0 %v2159
        %v2161 = vpop.xlane.xlu0 %2160
        %v2162 = vadd.f32 %v1976, %v1978
        %2163 = vadd.xlane.f32.xlu0 %v2162
        %v2164 = vpop.xlane.xlu0 %2163
        %v2165 = vadd.f32 %v1980, %v1982
        %2166 = vadd.xlane.f32.xlu0 %v2165
        %v2167 = vpop.xlane.xlu0 %2166
        %v2168 = vadd.f32 %v1984, %v1986
        %2169 = vadd.xlane.f32.xlu0 %v2168
        %v2170 = vpop.xlane.xlu0 %2169
        %v2171 = vadd.f32 %v1988, %v1990
        %2172 = vadd.xlane.f32.xlu0 %v2171
        %v2173 = vpop.xlane.xlu0 %2172
        %v2174 = vadd.f32 %v1992, %v1994
        %2175 = vadd.xlane.f32.xlu0 %v2174
        %v2176 = vpop.xlane.xlu0 %2175
        %v2177 = vadd.f32 %v1996, %v1998
        %2178 = vadd.xlane.f32.xlu0 %v2177
        %v2179 = vpop.xlane.xlu0 %2178
        %v2180 = vadd.f32 %v2000, %v2002
        %2181 = vadd.xlane.f32.xlu0 %v2180
        %v2182 = vpop.xlane.xlu0 %2181
        %v2183 = vadd.f32 %v2004, %v2006
        %2184 = vadd.xlane.f32.xlu0 %v2183
        %v2185 = vpop.xlane.xlu0 %2184
        %v2186 = vadd.f32 %v2008, %v2010
        %2187 = vadd.xlane.f32.xlu0 %v2186
        %v2188 = vpop.xlane.xlu0 %2187
        %v2189 = vadd.f32 %v2012, %v2014
        %2190 = vadd.xlane.f32.xlu0 %v2189
        %v2191 = vpop.xlane.xlu0 %2190
        %v2192 = vadd.f32 %v2016, %v2018
        %2193 = vadd.xlane.f32.xlu0 %v2192
        %v2194 = vpop.xlane.xlu0 %2193
        %v2195 = vadd.f32 %v2020, %v2022
        %2196 = vadd.xlane.f32.xlu0 %v2195
        %v2197 = vpop.xlane.xlu0 %2196
        %v2198 = vadd.f32 %v2024, %v2026
        %2199 = vadd.xlane.f32.xlu0 %v2198
        %v2200 = vpop.xlane.xlu0 %2199
        %v2201 = vadd.f32 %v2028, %v2030
        %2202 = vadd.xlane.f32.xlu0 %v2201
        %v2203 = vpop.xlane.xlu0 %2202
        %v2204 = vadd.f32 %v2032, %v2034
        %2205 = vadd.xlane.f32.xlu0 %v2204
        %v2206 = vpop.xlane.xlu0 %2205
        %v2207 = vadd.f32 %v2036, %v2038
        %2208 = vadd.xlane.f32.xlu0 %v2207
        %v2209 = vpop.xlane.xlu0 %2208
        %v2210 = vadd.f32 %v2040, %v2042
        %2211 = vadd.xlane.f32.xlu0 %v2210
        %v2212 = vpop.xlane.xlu0 %2211
        %v2213 = vadd.f32 %v2044, %v2046
        %2214 = vadd.xlane.f32.xlu0 %v2213
        %v2215 = vpop.xlane.xlu0 %2214
        %v2216 = vadd.f32 %v2048, %v2050
        %2217 = vadd.xlane.f32.xlu0 %v2216
        %v2218 = vpop.xlane.xlu0 %2217
        %v2219 = vadd.f32 %v2052, %v2054
        %2220 = vadd.xlane.f32.xlu0 %v2219
        %v2221 = vpop.xlane.xlu0 %2220
        %v2222 = vadd.f32 %v2056, %v2058
        %2223 = vadd.xlane.f32.xlu0 %v2222
        %v2224 = vpop.xlane.xlu0 %2223
        %v2225 = vadd.f32 %v2060, %v2062
        %2226 = vadd.xlane.f32.xlu0 %v2225
        %v2227 = vpop.xlane.xlu0 %2226
        %v2228 = vadd.f32 %v2064, %v2066
        %2229 = vadd.xlane.f32.xlu0 %v2228
        %v2230 = vpop.xlane.xlu0 %2229
        %v2231 = vadd.f32 %v2068, %v2070
        %2232 = vadd.xlane.f32.xlu0 %v2231
        %v2233 = vpop.xlane.xlu0 %2232
        %v2234 = vadd.f32 %v2072, %v2074
        %2235 = vadd.xlane.f32.xlu0 %v2234
        %v2236 = vpop.xlane.xlu0 %2235
        %v2237 = vadd.f32 %v2076, %v2078
        %2238 = vadd.xlane.f32.xlu0 %v2237
        %v2239 = vpop.xlane.xlu0 %2238
        %v2240 = vadd.f32 %v2080, %v2082
        %2241 = vadd.xlane.f32.xlu0 %v2240
        %v2242 = vpop.xlane.xlu0 %2241
        %v2243 = vadd.f32 %v2115, %v2149
        %v2244 = vadd.f32 %v2116, %v2152
        %v2245 = vadd.f32 %v2117, %v2155
        %v2246 = vadd.f32 %v2118, %v2158
        %v2247 = vadd.f32 %v2119, %v2161
        %v2248 = vadd.f32 %v2120, %v2164
        %v2249 = vadd.f32 %v2121, %v2167
        %v2250 = vadd.f32 %v2122, %v2170
        %v2251 = vadd.f32 %v2123, %v2173
        %v2252 = vadd.f32 %v2124, %v2176
        %v2253 = vadd.f32 %v2125, %v2179
        %v2254 = vadd.f32 %v2126, %v2182
        %v2255 = vadd.f32 %v2127, %v2185
        %v2256 = vadd.f32 %v2128, %v2188
        %v2257 = vadd.f32 %v2129, %v2191
        %v2258 = vadd.f32 %v2130, %v2194
        %v2259 = vadd.f32 %v2131, %v2197
        %v2260 = vadd.f32 %v2132, %v2200
        %v2261 = vadd.f32 %v2133, %v2203
        %v2262 = vadd.f32 %v2134, %v2206
        %v2263 = vadd.f32 %v2135, %v2209
        %v2264 = vadd.f32 %v2136, %v2212
        %v2265 = vadd.f32 %v2137, %v2215
        %v2266 = vadd.f32 %v2138, %v2218
        %v2267 = vadd.f32 %v2139, %v2221
        %v2268 = vadd.f32 %v2140, %v2224
        %v2269 = vadd.f32 %v2141, %v2227
        %v2270 = vadd.f32 %v2142, %v2230
        %v2271 = vadd.f32 %v2143, %v2233
        %v2272 = vadd.f32 %v2144, %v2236
        %v2273 = vadd.f32 %v2145, %v2239
        %v2274 = vadd.f32 %v2146, %v2242
        %vm2275 = vcmask 7168
        %2276 = vst.msk [vmem:[#allocation3] sm:$0xff] %vm2275, %v2243
        %2277 = vst.msk [vmem:[#allocation3 + $0x8] sm:$0xff] %vm2275, %v2244
        %2278 = vst.msk [vmem:[#allocation3 + $0x10] sm:$0xff] %vm2275, %v2245
        %2279 = vst.msk [vmem:[#allocation3 + $0x18] sm:$0xff] %vm2275, %v2246
        %2280 = vst.msk [vmem:[#allocation3 + $0x20] sm:$0xff] %vm2275, %v2247
        %2281 = vst.msk [vmem:[#allocation3 + $0x28] sm:$0xff] %vm2275, %v2248
        %2282 = vst.msk [vmem:[#allocation3 + $0x30] sm:$0xff] %vm2275, %v2249
        %2283 = vst.msk [vmem:[#allocation3 + $0x38] sm:$0xff] %vm2275, %v2250
        %2284 = vst.msk [vmem:[#allocation3 + $0x40] sm:$0xff] %vm2275, %v2251
        %2285 = vst.msk [vmem:[#allocation3 + $0x48] sm:$0xff] %vm2275, %v2252
        %2286 = vst.msk [vmem:[#allocation3 + $0x50] sm:$0xff] %vm2275, %v2253
        %2287 = vst.msk [vmem:[#allocation3 + $0x58] sm:$0xff] %vm2275, %v2254
        %2288 = vst.msk [vmem:[#allocation3 + $0x60] sm:$0xff] %vm2275, %v2255
        %2289 = vst.msk [vmem:[#allocation3 + $0x68] sm:$0xff] %vm2275, %v2256
        %2290 = vst.msk [vmem:[#allocation3 + $0x70] sm:$0xff] %vm2275, %v2257
        %2291 = vst.msk [vmem:[#allocation3 + $0x78] sm:$0xff] %vm2275, %v2258
        %2292 = vst.msk [vmem:[#allocation3 + $0x80] sm:$0xff] %vm2275, %v2259
        %2293 = vst.msk [vmem:[#allocation3 + $0x88] sm:$0xff] %vm2275, %v2260
        %2294 = vst.msk [vmem:[#allocation3 + $0x90] sm:$0xff] %vm2275, %v2261
        %2295 = vst.msk [vmem:[#allocation3 + $0x98] sm:$0xff] %vm2275, %v2262
        %2296 = vst.msk [vmem:[#allocation3 + $0xa0] sm:$0xff] %vm2275, %v2263
        %2297 = vst.msk [vmem:[#allocation3 + $0xa8] sm:$0xff] %vm2275, %v2264
        %2298 = vst.msk [vmem:[#allocation3 + $0xb0] sm:$0xff] %vm2275, %v2265
        %2299 = vst.msk [vmem:[#allocation3 + $0xb8] sm:$0xff] %vm2275, %v2266
        %2300 = vst.msk [vmem:[#allocation3 + $0xc0] sm:$0xff] %vm2275, %v2267
        %2301 = vst.msk [vmem:[#allocation3 + $0xc8] sm:$0xff] %vm2275, %v2268
        %2302 = vst.msk [vmem:[#allocation3 + $0xd0] sm:$0xff] %vm2275, %v2269
        %2303 = vst.msk [vmem:[#allocation3 + $0xd8] sm:$0xff] %vm2275, %v2270
        %2304 = vst.msk [vmem:[#allocation3 + $0xe0] sm:$0xff] %vm2275, %v2271
        %2305 = vst.msk [vmem:[#allocation3 + $0xe8] sm:$0xff] %vm2275, %v2272
        %2306 = vst.msk [vmem:[#allocation3 + $0xf0] sm:$0xff] %vm2275, %v2273
        %2307 = vst.msk [vmem:[#allocation3 + $0xf8] sm:$0xff] %vm2275, %v2274
        %v2308 = vld [vmem:[%s892] sm:$0xff]
        %v2309 = vld [vmem:[%s892 + $0x8] sm:$0xff]
        %v2310 = vld [vmem:[%s892 + $0x10] sm:$0xff]
        %v2311 = vld [vmem:[%s892 + $0x18] sm:$0xff]
        %v2312 = vld [vmem:[%s892 + $0x20] sm:$0xff]
        %v2313 = vld [vmem:[%s892 + $0x28] sm:$0xff]
        %v2314 = vld [vmem:[%s892 + $0x30] sm:$0xff]
        %v2315 = vld [vmem:[%s892 + $0x38] sm:$0xff]
        %v2316 = vld [vmem:[%s892 + $0x40] sm:$0xff]
        %v2317 = vld [vmem:[%s892 + $0x48] sm:$0xff]
        %v2318 = vld [vmem:[%s892 + $0x50] sm:$0xff]
        %v2319 = vld [vmem:[%s892 + $0x58] sm:$0xff]
        %v2320 = vld [vmem:[%s892 + $0x60] sm:$0xff]
        %v2321 = vld [vmem:[%s892 + $0x68] sm:$0xff]
        %v2322 = vld [vmem:[%s892 + $0x70] sm:$0xff]
        %v2323 = vld [vmem:[%s892 + $0x78] sm:$0xff]
        %v2324 = vld [vmem:[%s892 + $0x80] sm:$0xff]
        %v2325 = vld [vmem:[%s892 + $0x88] sm:$0xff]
        %v2326 = vld [vmem:[%s892 + $0x90] sm:$0xff]
        %v2327 = vld [vmem:[%s892 + $0x98] sm:$0xff]
        %v2328 = vld [vmem:[%s892 + $0xa0] sm:$0xff]
        %v2329 = vld [vmem:[%s892 + $0xa8] sm:$0xff]
        %v2330 = vld [vmem:[%s892 + $0xb0] sm:$0xff]
        %v2331 = vld [vmem:[%s892 + $0xb8] sm:$0xff]
        %v2332 = vld [vmem:[%s892 + $0xc0] sm:$0xff]
        %v2333 = vld [vmem:[%s892 + $0xc8] sm:$0xff]
        %v2334 = vld [vmem:[%s892 + $0xd0] sm:$0xff]
        %v2335 = vld [vmem:[%s892 + $0xd8] sm:$0xff]
        %v2336 = vld [vmem:[%s892 + $0xe0] sm:$0xff]
        %v2337 = vld [vmem:[%s892 + $0xe8] sm:$0xff]
        %v2338 = vld [vmem:[%s892 + $0xf0] sm:$0xff]
        %v2339 = vld [vmem:[%s892 + $0xf8] sm:$0xff]
        %2341 = vset.pattern.permute.xlu0 0
        %2342 = vperm.xlu0 %2341, %v1668
        %v2343 = vpop.permute.xlu0 %2342
        %2346 = vset.pattern.permute.xlu0 0
        %2347 = vperm.xlu0 %2346, %v1670
        %v2348 = vpop.permute.xlu0 %2347
        %2351 = vset.pattern.permute.xlu0 0
        %2352 = vperm.xlu0 %2351, %v1672
        %v2353 = vpop.permute.xlu0 %2352
        %2356 = vset.pattern.permute.xlu0 0
        %2357 = vperm.xlu0 %2356, %v1674
        %v2358 = vpop.permute.xlu0 %2357
        %2361 = vset.pattern.permute.xlu0 0
        %2362 = vperm.xlu0 %2361, %v1676
        %v2363 = vpop.permute.xlu0 %2362
        %2366 = vset.pattern.permute.xlu0 0
        %2367 = vperm.xlu0 %2366, %v1678
        %v2368 = vpop.permute.xlu0 %2367
        %2371 = vset.pattern.permute.xlu0 0
        %2372 = vperm.xlu0 %2371, %v1680
        %v2373 = vpop.permute.xlu0 %2372
        %2376 = vset.pattern.permute.xlu0 0
        %2377 = vperm.xlu0 %2376, %v1682
        %v2378 = vpop.permute.xlu0 %2377
        %2381 = vset.pattern.permute.xlu0 0
        %2382 = vperm.xlu0 %2381, %v1684
        %v2383 = vpop.permute.xlu0 %2382
        %2386 = vset.pattern.permute.xlu0 0
        %2387 = vperm.xlu0 %2386, %v1686
        %v2388 = vpop.permute.xlu0 %2387
        %2391 = vset.pattern.permute.xlu0 0
        %2392 = vperm.xlu0 %2391, %v1688
        %v2393 = vpop.permute.xlu0 %2392
        %2396 = vset.pattern.permute.xlu0 0
        %2397 = vperm.xlu0 %2396, %v1690
        %v2398 = vpop.permute.xlu0 %2397
        %2401 = vset.pattern.permute.xlu0 0
        %2402 = vperm.xlu0 %2401, %v1692
        %v2403 = vpop.permute.xlu0 %2402
        %2406 = vset.pattern.permute.xlu0 0
        %2407 = vperm.xlu0 %2406, %v1694
        %v2408 = vpop.permute.xlu0 %2407
        %2411 = vset.pattern.permute.xlu0 0
        %2412 = vperm.xlu0 %2411, %v1696
        %v2413 = vpop.permute.xlu0 %2412
        %2416 = vset.pattern.permute.xlu0 0
        %2417 = vperm.xlu0 %2416, %v1698
        %v2418 = vpop.permute.xlu0 %2417
        %2421 = vset.pattern.permute.xlu0 0
        %2422 = vperm.xlu0 %2421, %v1700
        %v2423 = vpop.permute.xlu0 %2422
        %2426 = vset.pattern.permute.xlu0 0
        %2427 = vperm.xlu0 %2426, %v1702
        %v2428 = vpop.permute.xlu0 %2427
        %2431 = vset.pattern.permute.xlu0 0
        %2432 = vperm.xlu0 %2431, %v1704
        %v2433 = vpop.permute.xlu0 %2432
        %2436 = vset.pattern.permute.xlu0 0
        %2437 = vperm.xlu0 %2436, %v1706
        %v2438 = vpop.permute.xlu0 %2437
        %2441 = vset.pattern.permute.xlu0 0
        %2442 = vperm.xlu0 %2441, %v1708
        %v2443 = vpop.permute.xlu0 %2442
        %2446 = vset.pattern.permute.xlu0 0
        %2447 = vperm.xlu0 %2446, %v1710
        %v2448 = vpop.permute.xlu0 %2447
        %2451 = vset.pattern.permute.xlu0 0
        %2452 = vperm.xlu0 %2451, %v1712
        %v2453 = vpop.permute.xlu0 %2452
        %2456 = vset.pattern.permute.xlu0 0
        %2457 = vperm.xlu0 %2456, %v1714
        %v2458 = vpop.permute.xlu0 %2457
        %2461 = vset.pattern.permute.xlu0 0
        %2462 = vperm.xlu0 %2461, %v1716
        %v2463 = vpop.permute.xlu0 %2462
        %2466 = vset.pattern.permute.xlu0 0
        %2467 = vperm.xlu0 %2466, %v1718
        %v2468 = vpop.permute.xlu0 %2467
        %2471 = vset.pattern.permute.xlu0 0
        %2472 = vperm.xlu0 %2471, %v1720
        %v2473 = vpop.permute.xlu0 %2472
        %2476 = vset.pattern.permute.xlu0 0
        %2477 = vperm.xlu0 %2476, %v1722
        %v2478 = vpop.permute.xlu0 %2477
        %2481 = vset.pattern.permute.xlu0 0
        %2482 = vperm.xlu0 %2481, %v1724
        %v2483 = vpop.permute.xlu0 %2482
        %2486 = vset.pattern.permute.xlu0 0
        %2487 = vperm.xlu0 %2486, %v1726
        %v2488 = vpop.permute.xlu0 %2487
        %2491 = vset.pattern.permute.xlu0 0
        %2492 = vperm.xlu0 %2491, %v1728
        %v2493 = vpop.permute.xlu0 %2492
        %2496 = vset.pattern.permute.xlu0 0
        %2497 = vperm.xlu0 %2496, %v1730
        %v2498 = vpop.permute.xlu0 %2497
        %v2500 = vmul.f32 %v2343, %v2308
        %v2501 = vmul.f32 %v2348, %v2309
        %v2502 = vmul.f32 %v2353, %v2310
        %v2503 = vmul.f32 %v2358, %v2311
        %v2504 = vmul.f32 %v2363, %v2312
        %v2505 = vmul.f32 %v2368, %v2313
        %v2506 = vmul.f32 %v2373, %v2314
        %v2507 = vmul.f32 %v2378, %v2315
        %v2508 = vmul.f32 %v2383, %v2316
        %v2509 = vmul.f32 %v2388, %v2317
        %v2510 = vmul.f32 %v2393, %v2318
        %v2511 = vmul.f32 %v2398, %v2319
        %v2512 = vmul.f32 %v2403, %v2320
        %v2513 = vmul.f32 %v2408, %v2321
        %v2514 = vmul.f32 %v2413, %v2322
        %v2515 = vmul.f32 %v2418, %v2323
        %v2516 = vmul.f32 %v2423, %v2324
        %v2517 = vmul.f32 %v2428, %v2325
        %v2518 = vmul.f32 %v2433, %v2326
        %v2519 = vmul.f32 %v2438, %v2327
        %v2520 = vmul.f32 %v2443, %v2328
        %v2521 = vmul.f32 %v2448, %v2329
        %v2522 = vmul.f32 %v2453, %v2330
        %v2523 = vmul.f32 %v2458, %v2331
        %v2524 = vmul.f32 %v2463, %v2332
        %v2525 = vmul.f32 %v2468, %v2333
        %v2526 = vmul.f32 %v2473, %v2334
        %v2527 = vmul.f32 %v2478, %v2335
        %v2528 = vmul.f32 %v2483, %v2336
        %v2529 = vmul.f32 %v2488, %v2337
        %v2530 = vmul.f32 %v2493, %v2338
        %v2531 = vmul.f32 %v2498, %v2339
        %v2532 = vpack.c.bf16 %v1960, %v1956
        %v2533 = vpack.c.bf16 %v1962, %v1958
        %v2534 = vpack.c.bf16 %v1968, %v1964
        %v2535 = vpack.c.bf16 %v1970, %v1966
        %v2536 = vpack.c.bf16 %v1976, %v1972
        %v2537 = vpack.c.bf16 %v1978, %v1974
        %v2538 = vpack.c.bf16 %v1984, %v1980
        %v2539 = vpack.c.bf16 %v1986, %v1982
        %v2540 = vpack.c.bf16 %v1992, %v1988
        %v2541 = vpack.c.bf16 %v1994, %v1990
        %v2542 = vpack.c.bf16 %v2000, %v1996
        %v2543 = vpack.c.bf16 %v2002, %v1998
        %v2544 = vpack.c.bf16 %v2008, %v2004
        %v2545 = vpack.c.bf16 %v2010, %v2006
        %v2546 = vpack.c.bf16 %v2016, %v2012
        %v2547 = vpack.c.bf16 %v2018, %v2014
        %v2548 = vpack.c.bf16 %v2024, %v2020
        %v2549 = vpack.c.bf16 %v2026, %v2022
        %v2550 = vpack.c.bf16 %v2032, %v2028
        %v2551 = vpack.c.bf16 %v2034, %v2030
        %v2552 = vpack.c.bf16 %v2040, %v2036
        %v2553 = vpack.c.bf16 %v2042, %v2038
        %v2554 = vpack.c.bf16 %v2048, %v2044
        %v2555 = vpack.c.bf16 %v2050, %v2046
        %v2556 = vpack.c.bf16 %v2056, %v2052
        %v2557 = vpack.c.bf16 %v2058, %v2054
        %v2558 = vpack.c.bf16 %v2064, %v2060
        %v2559 = vpack.c.bf16 %v2066, %v2062
        %v2560 = vpack.c.bf16 %v2072, %v2068
        %v2561 = vpack.c.bf16 %v2074, %v2070
        %v2562 = vpack.c.bf16 %v2080, %v2076
        %v2563 = vpack.c.bf16 %v2082, %v2078
        %v2564 = vld [vmem:[%s843] sm:$0xf]
        %v2565 = vld [vmem:[%s843 + $0x4] sm:$0xf]
        %v2566 = vld [vmem:[%s843 + $0x8] sm:$0xf]
        %v2567 = vld [vmem:[%s843 + $0xc] sm:$0xf]
        %v2568 = vld [vmem:[%s843 + $0x10] sm:$0xf]
        %v2569 = vld [vmem:[%s843 + $0x14] sm:$0xf]
        %v2570 = vld [vmem:[%s843 + $0x18] sm:$0xf]
        %v2571 = vld [vmem:[%s843 + $0x1c] sm:$0xf]
        %v2572 = vld [vmem:[%s843 + $0x20] sm:$0xf]
        %v2573 = vld [vmem:[%s843 + $0x24] sm:$0xf]
        %v2574 = vld [vmem:[%s843 + $0x28] sm:$0xf]
        %v2575 = vld [vmem:[%s843 + $0x2c] sm:$0xf]
        %v2576 = vld [vmem:[%s843 + $0x30] sm:$0xf]
        %v2577 = vld [vmem:[%s843 + $0x34] sm:$0xf]
        %v2578 = vld [vmem:[%s843 + $0x38] sm:$0xf]
        %v2579 = vld [vmem:[%s843 + $0x3c] sm:$0xf]
        %v2580 = vld [vmem:[%s843 + $0x40] sm:$0xf]
        %v2581 = vld [vmem:[%s843 + $0x44] sm:$0xf]
        %v2582 = vld [vmem:[%s843 + $0x48] sm:$0xf]
        %v2583 = vld [vmem:[%s843 + $0x4c] sm:$0xf]
        %v2584 = vld [vmem:[%s843 + $0x50] sm:$0xf]
        %v2585 = vld [vmem:[%s843 + $0x54] sm:$0xf]
        %v2586 = vld [vmem:[%s843 + $0x58] sm:$0xf]
        %v2587 = vld [vmem:[%s843 + $0x5c] sm:$0xf]
        %v2588 = vld [vmem:[%s843 + $0x60] sm:$0xf]
        %v2589 = vld [vmem:[%s843 + $0x64] sm:$0xf]
        %v2590 = vld [vmem:[%s843 + $0x68] sm:$0xf]
        %v2591 = vld [vmem:[%s843 + $0x6c] sm:$0xf]
        %v2592 = vld [vmem:[%s843 + $0x70] sm:$0xf]
        %v2593 = vld [vmem:[%s843 + $0x74] sm:$0xf]
        %v2594 = vld [vmem:[%s843 + $0x78] sm:$0xf]
        %v2595 = vld [vmem:[%s843 + $0x7c] sm:$0xf]
        %v2628 = vunpack.c.l.b16 %v2564
        %v2629 = vunpack.c.l.b16 %v2565
        %v2630 = vunpack.c.l.b16 %v2566
        %v2631 = vunpack.c.l.b16 %v2567
        %v2632 = vunpack.c.l.b16 %v2568
        %v2633 = vunpack.c.l.b16 %v2569
        %v2634 = vunpack.c.l.b16 %v2570
        %v2635 = vunpack.c.l.b16 %v2571
        %v2636 = vunpack.c.l.b16 %v2572
        %v2637 = vunpack.c.l.b16 %v2573
        %v2638 = vunpack.c.l.b16 %v2574
        %v2639 = vunpack.c.l.b16 %v2575
        %v2640 = vunpack.c.l.b16 %v2576
        %v2641 = vunpack.c.l.b16 %v2577
        %v2642 = vunpack.c.l.b16 %v2578
        %v2643 = vunpack.c.l.b16 %v2579
        %v2644 = vunpack.c.l.b16 %v2580
        %v2645 = vunpack.c.l.b16 %v2581
        %v2646 = vunpack.c.l.b16 %v2582
        %v2647 = vunpack.c.l.b16 %v2583
        %v2648 = vunpack.c.l.b16 %v2584
        %v2649 = vunpack.c.l.b16 %v2585
        %v2650 = vunpack.c.l.b16 %v2586
        %v2651 = vunpack.c.l.b16 %v2587
        %v2652 = vunpack.c.l.b16 %v2588
        %v2653 = vunpack.c.l.b16 %v2589
        %v2654 = vunpack.c.l.b16 %v2590
        %v2655 = vunpack.c.l.b16 %v2591
        %v2656 = vunpack.c.l.b16 %v2592
        %v2657 = vunpack.c.l.b16 %v2593
        %v2658 = vunpack.c.l.b16 %v2594
        %v2659 = vunpack.c.l.b16 %v2595
        %v2660 = vpack.c.b16 %v2629, %v2628
        %v2661 = vpack.c.b16 %v2631, %v2630
        %v2662 = vpack.c.b16 %v2633, %v2632
        %v2663 = vpack.c.b16 %v2635, %v2634
        %v2664 = vpack.c.b16 %v2637, %v2636
        %v2665 = vpack.c.b16 %v2639, %v2638
        %v2666 = vpack.c.b16 %v2641, %v2640
        %v2667 = vpack.c.b16 %v2643, %v2642
        %v2668 = vpack.c.b16 %v2645, %v2644
        %v2669 = vpack.c.b16 %v2647, %v2646
        %v2670 = vpack.c.b16 %v2649, %v2648
        %v2671 = vpack.c.b16 %v2651, %v2650
        %v2672 = vpack.c.b16 %v2653, %v2652
        %v2673 = vpack.c.b16 %v2655, %v2654
        %v2674 = vpack.c.b16 %v2657, %v2656
        %v2675 = vpack.c.b16 %v2659, %v2658
        %2692 = vmatprep.subr.bf16.mxu0 0
        %2693 = vmatpush1.bf16.msra.mxu0 %v2660
        %2694 = vmatprep.subr.bf16.mxu0 0
        %2695 = vmatpush1.bf16.msra.mxu0 %v2661
        %2696 = vmatprep.subr.bf16.mxu0 0
        %2697 = vmatpush1.bf16.msra.mxu0 %v2662
        %2698 = vmatprep.subr.bf16.mxu0 0
        %2699 = vmatpush1.bf16.msra.mxu0 %v2663
        %2700 = vmatprep.subr.bf16.mxu0 0
        %2701 = vmatpush1.bf16.msra.mxu0 %v2664
        %2702 = vmatprep.subr.bf16.mxu0 0
        %2703 = vmatpush1.bf16.msra.mxu0 %v2665
        %2704 = vmatprep.subr.bf16.mxu0 0
        %2705 = vmatpush1.bf16.msra.mxu0 %v2666
        %2706 = vmatprep.subr.bf16.mxu0 0
        %2707 = vmatpush1.bf16.msra.mxu0 %v2667
        %2708 = vmatprep.subr.bf16.mxu0 0
        %2709 = vmatpush1.bf16.msra.mxu0 %v2668
        %2710 = vmatprep.subr.bf16.mxu0 0
        %2711 = vmatpush1.bf16.msra.mxu0 %v2669
        %2712 = vmatprep.subr.bf16.mxu0 0
        %2713 = vmatpush1.bf16.msra.mxu0 %v2670
        %2714 = vmatprep.subr.bf16.mxu0 0
        %2715 = vmatpush1.bf16.msra.mxu0 %v2671
        %2716 = vmatprep.subr.bf16.mxu0 0
        %2717 = vmatpush1.bf16.msra.mxu0 %v2672
        %2718 = vmatprep.subr.bf16.mxu0 0
        %2719 = vmatpush1.bf16.msra.mxu0 %v2673
        %2720 = vmatprep.subr.bf16.mxu0 0
        %2721 = vmatpush1.bf16.msra.mxu0 %v2674
        %2722 = vmatprep.subr.bf16.mxu0 0
        %2723 = vmatpush1.bf16.msra.mxu0 %v2675
        %2724 = vmatprep.mubr.bf16.mxu0 %v2533
        %2725 = vmatmul.mubr.bf16.gmra.mrb[0].mxu0 %v2532
        %v2726 = vpop.f32.mrb[0].mxu0
        %v2727 = vadd.f32 0.0, %v2726
        %v2728 = vpop.f32.mrb[0].mxu0
        %v2729 = vpop.f32.mrb[0].mxu0
        %v2730 = vadd.f32 0.0, %v2729
        %v2731 = vpop.f32.mrb[0].mxu0
        %2732 = vmatprep.mubr.bf16.mxu0 %v2535
        %2733 = vmatmul.mubr.bf16.gmra.mrb[0].mxu0 %v2534
        %v2734 = vpop.f32.mrb[0].mxu0
        %v2735 = vadd.f32 0.0, %v2734
        %v2736 = vpop.f32.mrb[0].mxu0
        %v2737 = vpop.f32.mrb[0].mxu0
        %v2738 = vadd.f32 0.0, %v2737
        %v2739 = vpop.f32.mrb[0].mxu0
        %2740 = vmatprep.mubr.bf16.mxu0 %v2537
        %2741 = vmatmul.mubr.bf16.gmra.mrb[0].mxu0 %v2536
        %v2742 = vpop.f32.mrb[0].mxu0
        %v2743 = vadd.f32 0.0, %v2742
        %v2744 = vpop.f32.mrb[0].mxu0
        %v2745 = vpop.f32.mrb[0].mxu0
        %v2746 = vadd.f32 0.0, %v2745
        %v2747 = vpop.f32.mrb[0].mxu0
        %2748 = vmatprep.mubr.bf16.mxu0 %v2539
        %2749 = vmatmul.mubr.bf16.gmra.mrb[0].mxu0 %v2538
        %v2750 = vpop.f32.mrb[0].mxu0
        %v2751 = vadd.f32 0.0, %v2750
        %v2752 = vpop.f32.mrb[0].mxu0
        %v2753 = vpop.f32.mrb[0].mxu0
        %v2754 = vadd.f32 0.0, %v2753
        %v2755 = vpop.f32.mrb[0].mxu0
        %2756 = vmatprep.mubr.bf16.mxu0 %v2541
        %2757 = vmatmul.mubr.bf16.gmra.mrb[0].mxu0 %v2540
        %v2758 = vpop.f32.mrb[0].mxu0
        %v2759 = vadd.f32 0.0, %v2758
        %v2760 = vpop.f32.mrb[0].mxu0
        %v2761 = vpop.f32.mrb[0].mxu0
        %v2762 = vadd.f32 0.0, %v2761
        %v2763 = vpop.f32.mrb[0].mxu0
        %2764 = vmatprep.mubr.bf16.mxu0 %v2543
        %2765 = vmatmul.mubr.bf16.gmra.mrb[0].mxu0 %v2542
        %v2766 = vpop.f32.mrb[0].mxu0
        %v2767 = vadd.f32 0.0, %v2766
        %v2768 = vpop.f32.mrb[0].mxu0
        %v2769 = vpop.f32.mrb[0].mxu0
        %v2770 = vadd.f32 0.0, %v2769
        %v2771 = vpop.f32.mrb[0].mxu0
        %2772 = vmatprep.mubr.bf16.mxu0 %v2545
        %2773 = vmatmul.mubr.bf16.gmra.mrb[0].mxu0 %v2544
        %v2774 = vpop.f32.mrb[0].mxu0
        %v2775 = vadd.f32 0.0, %v2774
        %v2776 = vpop.f32.mrb[0].mxu0
        %v2777 = vpop.f32.mrb[0].mxu0
        %v2778 = vadd.f32 0.0, %v2777
        %v2779 = vpop.f32.mrb[0].mxu0
        %2780 = vmatprep.mubr.bf16.mxu0 %v2547
        %2781 = vmatmul.mubr.bf16.gmra.mrb[0].mxu0 %v2546
        %v2782 = vpop.f32.mrb[0].mxu0
        %v2783 = vadd.f32 0.0, %v2782
        %v2784 = vpop.f32.mrb[0].mxu0
        %v2785 = vpop.f32.mrb[0].mxu0
        %v2786 = vadd.f32 0.0, %v2785
        %v2787 = vpop.f32.mrb[0].mxu0
        %2788 = vmatprep.mubr.bf16.mxu0 %v2549
        %2789 = vmatmul.mubr.bf16.gmra.mrb[0].mxu0 %v2548
        %v2790 = vpop.f32.mrb[0].mxu0
        %v2791 = vadd.f32 0.0, %v2790
        %v2792 = vpop.f32.mrb[0].mxu0
        %v2793 = vpop.f32.mrb[0].mxu0
        %v2794 = vadd.f32 0.0, %v2793
        %v2795 = vpop.f32.mrb[0].mxu0
        %2796 = vmatprep.mubr.bf16.mxu0 %v2551
        %2797 = vmatmul.mubr.bf16.gmra.mrb[0].mxu0 %v2550
        %v2798 = vpop.f32.mrb[0].mxu0
        %v2799 = vadd.f32 0.0, %v2798
        %v2800 = vpop.f32.mrb[0].mxu0
        %v2801 = vpop.f32.mrb[0].mxu0
        %v2802 = vadd.f32 0.0, %v2801
        %v2803 = vpop.f32.mrb[0].mxu0
        %2804 = vmatprep.mubr.bf16.mxu0 %v2553
        %2805 = vmatmul.mubr.bf16.gmra.mrb[0].mxu0 %v2552
        %v2806 = vpop.f32.mrb[0].mxu0
        %v2807 = vadd.f32 0.0, %v2806
        %v2808 = vpop.f32.mrb[0].mxu0
        %v2809 = vpop.f32.mrb[0].mxu0
        %v2810 = vadd.f32 0.0, %v2809
        %v2811 = vpop.f32.mrb[0].mxu0
        %2812 = vmatprep.mubr.bf16.mxu0 %v2555
        %2813 = vmatmul.mubr.bf16.gmra.mrb[0].mxu0 %v2554
        %v2814 = vpop.f32.mrb[0].mxu0
        %v2815 = vadd.f32 0.0, %v2814
        %v2816 = vpop.f32.mrb[0].mxu0
        %v2817 = vpop.f32.mrb[0].mxu0
        %v2818 = vadd.f32 0.0, %v2817
        %v2819 = vpop.f32.mrb[0].mxu0
        %2820 = vmatprep.mubr.bf16.mxu0 %v2557
        %2821 = vmatmul.mubr.bf16.gmra.mrb[0].mxu0 %v2556
        %v2822 = vpop.f32.mrb[0].mxu0
        %v2823 = vadd.f32 0.0, %v2822
        %v2824 = vpop.f32.mrb[0].mxu0
        %v2825 = vpop.f32.mrb[0].mxu0
        %v2826 = vadd.f32 0.0, %v2825
        %v2827 = vpop.f32.mrb[0].mxu0
        %2828 = vmatprep.mubr.bf16.mxu0 %v2559
        %2829 = vmatmul.mubr.bf16.gmra.mrb[0].mxu0 %v2558
        %v2830 = vpop.f32.mrb[0].mxu0
        %v2831 = vadd.f32 0.0, %v2830
        %v2832 = vpop.f32.mrb[0].mxu0
        %v2833 = vpop.f32.mrb[0].mxu0
        %v2834 = vadd.f32 0.0, %v2833
        %v2835 = vpop.f32.mrb[0].mxu0
        %2836 = vmatprep.mubr.bf16.mxu0 %v2561
        %2837 = vmatmul.mubr.bf16.gmra.mrb[0].mxu0 %v2560
        %v2838 = vpop.f32.mrb[0].mxu0
        %v2839 = vadd.f32 0.0, %v2838
        %v2840 = vpop.f32.mrb[0].mxu0
        %v2841 = vpop.f32.mrb[0].mxu0
        %v2842 = vadd.f32 0.0, %v2841
        %v2843 = vpop.f32.mrb[0].mxu0
        %2844 = vmatprep.mubr.bf16.mxu0 %v2563
        %2845 = vmatmul.mubr.bf16.gmra.mrb[0].mxu0 %v2562
        %v2846 = vpop.f32.mrb[0].mxu0
        %v2847 = vadd.f32 0.0, %v2846
        %v2848 = vpop.f32.mrb[0].mxu0
        %v2849 = vpop.f32.mrb[0].mxu0
        %v2850 = vadd.f32 0.0, %v2849
        %v2851 = vpop.f32.mrb[0].mxu0
        %2852 = vdwg.mxu0
        %v2853 = vadd.f32 %v2500, %v2727
        %v2854 = vadd.f32 %v2501, %v2730
        %v2855 = vadd.f32 %v2502, %v2735
        %v2856 = vadd.f32 %v2503, %v2738
        %v2857 = vadd.f32 %v2504, %v2743
        %v2858 = vadd.f32 %v2505, %v2746
        %v2859 = vadd.f32 %v2506, %v2751
        %v2860 = vadd.f32 %v2507, %v2754
        %v2861 = vadd.f32 %v2508, %v2759
        %v2862 = vadd.f32 %v2509, %v2762
        %v2863 = vadd.f32 %v2510, %v2767
        %v2864 = vadd.f32 %v2511, %v2770
        %v2865 = vadd.f32 %v2512, %v2775
        %v2866 = vadd.f32 %v2513, %v2778
        %v2867 = vadd.f32 %v2514, %v2783
        %v2868 = vadd.f32 %v2515, %v2786
        %v2869 = vadd.f32 %v2516, %v2791
        %v2870 = vadd.f32 %v2517, %v2794
        %v2871 = vadd.f32 %v2518, %v2799
        %v2872 = vadd.f32 %v2519, %v2802
        %v2873 = vadd.f32 %v2520, %v2807
        %v2874 = vadd.f32 %v2521, %v2810
        %v2875 = vadd.f32 %v2522, %v2815
        %v2876 = vadd.f32 %v2523, %v2818
        %v2877 = vadd.f32 %v2524, %v2823
        %v2878 = vadd.f32 %v2525, %v2826
        %v2879 = vadd.f32 %v2526, %v2831
        %v2880 = vadd.f32 %v2527, %v2834
        %v2881 = vadd.f32 %v2528, %v2839
        %v2882 = vadd.f32 %v2529, %v2842
        %v2883 = vadd.f32 %v2530, %v2847
        %v2884 = vadd.f32 %v2531, %v2850
        %2885 = vst [vmem:[%s892] sm:$0xff] %v2853
        %2886 = vst [vmem:[%s892 + $0x8] sm:$0xff] %v2854
        %2887 = vst [vmem:[%s892 + $0x10] sm:$0xff] %v2855
        %2888 = vst [vmem:[%s892 + $0x18] sm:$0xff] %v2856
        %2889 = vst [vmem:[%s892 + $0x20] sm:$0xff] %v2857
        %2890 = vst [vmem:[%s892 + $0x28] sm:$0xff] %v2858
        %2891 = vst [vmem:[%s892 + $0x30] sm:$0xff] %v2859
        %2892 = vst [vmem:[%s892 + $0x38] sm:$0xff] %v2860
        %2893 = vst [vmem:[%s892 + $0x40] sm:$0xff] %v2861
        %2894 = vst [vmem:[%s892 + $0x48] sm:$0xff] %v2862
        %2895 = vst [vmem:[%s892 + $0x50] sm:$0xff] %v2863
        %2896 = vst [vmem:[%s892 + $0x58] sm:$0xff] %v2864
        %2897 = vst [vmem:[%s892 + $0x60] sm:$0xff] %v2865
        %2898 = vst [vmem:[%s892 + $0x68] sm:$0xff] %v2866
        %2899 = vst [vmem:[%s892 + $0x70] sm:$0xff] %v2867
        %2900 = vst [vmem:[%s892 + $0x78] sm:$0xff] %v2868
        %2901 = vst [vmem:[%s892 + $0x80] sm:$0xff] %v2869
        %2902 = vst [vmem:[%s892 + $0x88] sm:$0xff] %v2870
        %2903 = vst [vmem:[%s892 + $0x90] sm:$0xff] %v2871
        %2904 = vst [vmem:[%s892 + $0x98] sm:$0xff] %v2872
        %2905 = vst [vmem:[%s892 + $0xa0] sm:$0xff] %v2873
        %2906 = vst [vmem:[%s892 + $0xa8] sm:$0xff] %v2874
        %2907 = vst [vmem:[%s892 + $0xb0] sm:$0xff] %v2875
        %2908 = vst [vmem:[%s892 + $0xb8] sm:$0xff] %v2876
        %2909 = vst [vmem:[%s892 + $0xc0] sm:$0xff] %v2877
        %2910 = vst [vmem:[%s892 + $0xc8] sm:$0xff] %v2878
        %2911 = vst [vmem:[%s892 + $0xd0] sm:$0xff] %v2879
        %2912 = vst [vmem:[%s892 + $0xd8] sm:$0xff] %v2880
        %2913 = vst [vmem:[%s892 + $0xe0] sm:$0xff] %v2881
        %2914 = vst [vmem:[%s892 + $0xe8] sm:$0xff] %v2882
        %2915 = vst [vmem:[%s892 + $0xf0] sm:$0xff] %v2883
        %2916 = vst [vmem:[%s892 + $0xf8] sm:$0xff] %v2884
        %2917 = vst.msk [vmem:[#allocation2] sm:$0xff] %vm2275, %v1603
        %2918 = vst.msk [vmem:[#allocation2 + $0x8] sm:$0xff] %vm2275, %v1604
        %2919 = vst.msk [vmem:[#allocation2 + $0x10] sm:$0xff] %vm2275, %v1605
        %2920 = vst.msk [vmem:[#allocation2 + $0x18] sm:$0xff] %vm2275, %v1606
        %2921 = vst.msk [vmem:[#allocation2 + $0x20] sm:$0xff] %vm2275, %v1607
        %2922 = vst.msk [vmem:[#allocation2 + $0x28] sm:$0xff] %vm2275, %v1608
        %2923 = vst.msk [vmem:[#allocation2 + $0x30] sm:$0xff] %vm2275, %v1609
        %2924 = vst.msk [vmem:[#allocation2 + $0x38] sm:$0xff] %vm2275, %v1610
        %2925 = vst.msk [vmem:[#allocation2 + $0x40] sm:$0xff] %vm2275, %v1611
        %2926 = vst.msk [vmem:[#allocation2 + $0x48] sm:$0xff] %vm2275, %v1612
        %2927 = vst.msk [vmem:[#allocation2 + $0x50] sm:$0xff] %vm2275, %v1613
        %2928 = vst.msk [vmem:[#allocation2 + $0x58] sm:$0xff] %vm2275, %v1614
        %2929 = vst.msk [vmem:[#allocation2 + $0x60] sm:$0xff] %vm2275, %v1615
        %2930 = vst.msk [vmem:[#allocation2 + $0x68] sm:$0xff] %vm2275, %v1616
        %2931 = vst.msk [vmem:[#allocation2 + $0x70] sm:$0xff] %vm2275, %v1617
        %2932 = vst.msk [vmem:[#allocation2 + $0x78] sm:$0xff] %vm2275, %v1618
        %2933 = vst.msk [vmem:[#allocation2 + $0x80] sm:$0xff] %vm2275, %v1619
        %2934 = vst.msk [vmem:[#allocation2 + $0x88] sm:$0xff] %vm2275, %v1620
        %2935 = vst.msk [vmem:[#allocation2 + $0x90] sm:$0xff] %vm2275, %v1621
        %2936 = vst.msk [vmem:[#allocation2 + $0x98] sm:$0xff] %vm2275, %v1622
        %2937 = vst.msk [vmem:[#allocation2 + $0xa0] sm:$0xff] %vm2275, %v1623
        %2938 = vst.msk [vmem:[#allocation2 + $0xa8] sm:$0xff] %vm2275, %v1624
        %2939 = vst.msk [vmem:[#allocation2 + $0xb0] sm:$0xff] %vm2275, %v1625
        %2940 = vst.msk [vmem:[#allocation2 + $0xb8] sm:$0xff] %vm2275, %v1626
        %2941 = vst.msk [vmem:[#allocation2 + $0xc0] sm:$0xff] %vm2275, %v1627
        %2942 = vst.msk [vmem:[#allocation2 + $0xc8] sm:$0xff] %vm2275, %v1628
        %2943 = vst.msk [vmem:[#allocation2 + $0xd0] sm:$0xff] %vm2275, %v1629
        %2944 = vst.msk [vmem:[#allocation2 + $0xd8] sm:$0xff] %vm2275, %v1630
        %2945 = vst.msk [vmem:[#allocation2 + $0xe0] sm:$0xff] %vm2275, %v1631
        %2946 = vst.msk [vmem:[#allocation2 + $0xe8] sm:$0xff] %vm2275, %v1632
        %2947 = vst.msk [vmem:[#allocation2 + $0xf0] sm:$0xff] %vm2275, %v1633
        %2948 = vst.msk [vmem:[#allocation2 + $0xf8] sm:$0xff] %vm2275, %v1634
        // Predicated region
        $region176: #{self_attention_block.5} parent=158 // pred_check
          %p2949 = pneg %p913
        $region177: #{self_attention_block.5} parent=158 // pred_check_branch
          %2951 = sbr.rel (%p2949) target = $region179
        $region178: #{self_attention_block.5} parent=158 // pred_region
          %v2952 = vld [vmem:[%s892] sm:$0xff]
          %v2953 = vld [vmem:[%s892 + $0x8] sm:$0xff]
          %v2954 = vld [vmem:[%s892 + $0x10] sm:$0xff]
          %v2955 = vld [vmem:[%s892 + $0x18] sm:$0xff]
          %v2956 = vld [vmem:[%s892 + $0x20] sm:$0xff]
          %v2957 = vld [vmem:[%s892 + $0x28] sm:$0xff]
          %v2958 = vld [vmem:[%s892 + $0x30] sm:$0xff]
          %v2959 = vld [vmem:[%s892 + $0x38] sm:$0xff]
          %v2960 = vld [vmem:[%s892 + $0x40] sm:$0xff]
          %v2961 = vld [vmem:[%s892 + $0x48] sm:$0xff]
          %v2962 = vld [vmem:[%s892 + $0x50] sm:$0xff]
          %v2963 = vld [vmem:[%s892 + $0x58] sm:$0xff]
          %v2964 = vld [vmem:[%s892 + $0x60] sm:$0xff]
          %v2965 = vld [vmem:[%s892 + $0x68] sm:$0xff]
          %v2966 = vld [vmem:[%s892 + $0x70] sm:$0xff]
          %v2967 = vld [vmem:[%s892 + $0x78] sm:$0xff]
          %v2968 = vld [vmem:[%s892 + $0x80] sm:$0xff]
          %v2969 = vld [vmem:[%s892 + $0x88] sm:$0xff]
          %v2970 = vld [vmem:[%s892 + $0x90] sm:$0xff]
          %v2971 = vld [vmem:[%s892 + $0x98] sm:$0xff]
          %v2972 = vld [vmem:[%s892 + $0xa0] sm:$0xff]
          %v2973 = vld [vmem:[%s892 + $0xa8] sm:$0xff]
          %v2974 = vld [vmem:[%s892 + $0xb0] sm:$0xff]
          %v2975 = vld [vmem:[%s892 + $0xb8] sm:$0xff]
          %v2976 = vld [vmem:[%s892 + $0xc0] sm:$0xff]
          %v2977 = vld [vmem:[%s892 + $0xc8] sm:$0xff]
          %v2978 = vld [vmem:[%s892 + $0xd0] sm:$0xff]
          %v2979 = vld [vmem:[%s892 + $0xd8] sm:$0xff]
          %v2980 = vld [vmem:[%s892 + $0xe0] sm:$0xff]
          %v2981 = vld [vmem:[%s892 + $0xe8] sm:$0xff]
          %v2982 = vld [vmem:[%s892 + $0xf0] sm:$0xff]
          %v2983 = vld [vmem:[%s892 + $0xf8] sm:$0xff]
          %v2984 = vld [vmem:[#allocation3] sm:$0xff]
          %v2985 = vld [vmem:[#allocation3 + $0x8] sm:$0xff]
          %v2986 = vld [vmem:[#allocation3 + $0x10] sm:$0xff]
          %v2987 = vld [vmem:[#allocation3 + $0x18] sm:$0xff]
          %v2988 = vld [vmem:[#allocation3 + $0x20] sm:$0xff]
          %v2989 = vld [vmem:[#allocation3 + $0x28] sm:$0xff]
          %v2990 = vld [vmem:[#allocation3 + $0x30] sm:$0xff]
          %v2991 = vld [vmem:[#allocation3 + $0x38] sm:$0xff]
          %v2992 = vld [vmem:[#allocation3 + $0x40] sm:$0xff]
          %v2993 = vld [vmem:[#allocation3 + $0x48] sm:$0xff]
          %v2994 = vld [vmem:[#allocation3 + $0x50] sm:$0xff]
          %v2995 = vld [vmem:[#allocation3 + $0x58] sm:$0xff]
          %v2996 = vld [vmem:[#allocation3 + $0x60] sm:$0xff]
          %v2997 = vld [vmem:[#allocation3 + $0x68] sm:$0xff]
          %v2998 = vld [vmem:[#allocation3 + $0x70] sm:$0xff]
          %v2999 = vld [vmem:[#allocation3 + $0x78] sm:$0xff]
          %v3000 = vld [vmem:[#allocation3 + $0x80] sm:$0xff]
          %v3001 = vld [vmem:[#allocation3 + $0x88] sm:$0xff]
          %v3002 = vld [vmem:[#allocation3 + $0x90] sm:$0xff]
          %v3003 = vld [vmem:[#allocation3 + $0x98] sm:$0xff]
          %v3004 = vld [vmem:[#allocation3 + $0xa0] sm:$0xff]
          %v3005 = vld [vmem:[#allocation3 + $0xa8] sm:$0xff]
          %v3006 = vld [vmem:[#allocation3 + $0xb0] sm:$0xff]
          %v3007 = vld [vmem:[#allocation3 + $0xb8] sm:$0xff]
          %v3008 = vld [vmem:[#allocation3 + $0xc0] sm:$0xff]
          %v3009 = vld [vmem:[#allocation3 + $0xc8] sm:$0xff]
          %v3010 = vld [vmem:[#allocation3 + $0xd0] sm:$0xff]
          %v3011 = vld [vmem:[#allocation3 + $0xd8] sm:$0xff]
          %v3012 = vld [vmem:[#allocation3 + $0xe0] sm:$0xff]
          %v3013 = vld [vmem:[#allocation3 + $0xe8] sm:$0xff]
          %v3014 = vld [vmem:[#allocation3 + $0xf0] sm:$0xff]
          %v3015 = vld [vmem:[#allocation3 + $0xf8] sm:$0xff]
          %v3016 = vrcp.pop %v2984
          %v3017 = vrcp.pop %v2985
          %v3018 = vrcp.pop %v2986
          %v3019 = vrcp.pop %v2987
          %v3020 = vrcp.pop %v2988
          %v3021 = vrcp.pop %v2989
          %v3022 = vrcp.pop %v2990
          %v3023 = vrcp.pop %v2991
          %v3024 = vrcp.pop %v2992
          %v3025 = vrcp.pop %v2993
          %v3026 = vrcp.pop %v2994
          %v3027 = vrcp.pop %v2995
          %v3028 = vrcp.pop %v2996
          %v3029 = vrcp.pop %v2997
          %v3030 = vrcp.pop %v2998
          %v3031 = vrcp.pop %v2999
          %v3032 = vrcp.pop %v3000
          %v3033 = vrcp.pop %v3001
          %v3034 = vrcp.pop %v3002
          %v3035 = vrcp.pop %v3003
          %v3036 = vrcp.pop %v3004
          %v3037 = vrcp.pop %v3005
          %v3038 = vrcp.pop %v3006
          %v3039 = vrcp.pop %v3007
          %v3040 = vrcp.pop %v3008
          %v3041 = vrcp.pop %v3009
          %v3042 = vrcp.pop %v3010
          %v3043 = vrcp.pop %v3011
          %v3044 = vrcp.pop %v3012
          %v3045 = vrcp.pop %v3013
          %v3046 = vrcp.pop %v3014
          %v3047 = vrcp.pop %v3015
          %3049 = vset.pattern.permute.xlu0 0
          %3050 = vperm.xlu0 %3049, %v3016
          %v3051 = vpop.permute.xlu0 %3050
          %3054 = vset.pattern.permute.xlu0 0
          %3055 = vperm.xlu0 %3054, %v3017
          %v3056 = vpop.permute.xlu0 %3055
          %3059 = vset.pattern.permute.xlu0 0
          %3060 = vperm.xlu0 %3059, %v3018
          %v3061 = vpop.permute.xlu0 %3060
          %3064 = vset.pattern.permute.xlu0 0
          %3065 = vperm.xlu0 %3064, %v3019
          %v3066 = vpop.permute.xlu0 %3065
          %3069 = vset.pattern.permute.xlu0 0
          %3070 = vperm.xlu0 %3069, %v3020
          %v3071 = vpop.permute.xlu0 %3070
          %3074 = vset.pattern.permute.xlu0 0
          %3075 = vperm.xlu0 %3074, %v3021
          %v3076 = vpop.permute.xlu0 %3075
          %3079 = vset.pattern.permute.xlu0 0
          %3080 = vperm.xlu0 %3079, %v3022
          %v3081 = vpop.permute.xlu0 %3080
          %3084 = vset.pattern.permute.xlu0 0
          %3085 = vperm.xlu0 %3084, %v3023
          %v3086 = vpop.permute.xlu0 %3085
          %3089 = vset.pattern.permute.xlu0 0
          %3090 = vperm.xlu0 %3089, %v3024
          %v3091 = vpop.permute.xlu0 %3090
          %3094 = vset.pattern.permute.xlu0 0
          %3095 = vperm.xlu0 %3094, %v3025
          %v3096 = vpop.permute.xlu0 %3095
          %3099 = vset.pattern.permute.xlu0 0
          %3100 = vperm.xlu0 %3099, %v3026
          %v3101 = vpop.permute.xlu0 %3100
          %3104 = vset.pattern.permute.xlu0 0
          %3105 = vperm.xlu0 %3104, %v3027
          %v3106 = vpop.permute.xlu0 %3105
          %3109 = vset.pattern.permute.xlu0 0
          %3110 = vperm.xlu0 %3109, %v3028
          %v3111 = vpop.permute.xlu0 %3110
          %3114 = vset.pattern.permute.xlu0 0
          %3115 = vperm.xlu0 %3114, %v3029
          %v3116 = vpop.permute.xlu0 %3115
          %3119 = vset.pattern.permute.xlu0 0
          %3120 = vperm.xlu0 %3119, %v3030
          %v3121 = vpop.permute.xlu0 %3120
          %3124 = vset.pattern.permute.xlu0 0
          %3125 = vperm.xlu0 %3124, %v3031
          %v3126 = vpop.permute.xlu0 %3125
          %3129 = vset.pattern.permute.xlu0 0
          %3130 = vperm.xlu0 %3129, %v3032
          %v3131 = vpop.permute.xlu0 %3130
          %3134 = vset.pattern.permute.xlu0 0
          %3135 = vperm.xlu0 %3134, %v3033
          %v3136 = vpop.permute.xlu0 %3135
          %3139 = vset.pattern.permute.xlu0 0
          %3140 = vperm.xlu0 %3139, %v3034
          %v3141 = vpop.permute.xlu0 %3140
          %3144 = vset.pattern.permute.xlu0 0
          %3145 = vperm.xlu0 %3144, %v3035
          %v3146 = vpop.permute.xlu0 %3145
          %3149 = vset.pattern.permute.xlu0 0
          %3150 = vperm.xlu0 %3149, %v3036
          %v3151 = vpop.permute.xlu0 %3150
          %3154 = vset.pattern.permute.xlu0 0
          %3155 = vperm.xlu0 %3154, %v3037
          %v3156 = vpop.permute.xlu0 %3155
          %3159 = vset.pattern.permute.xlu0 0
          %3160 = vperm.xlu0 %3159, %v3038
          %v3161 = vpop.permute.xlu0 %3160
          %3164 = vset.pattern.permute.xlu0 0
          %3165 = vperm.xlu0 %3164, %v3039
          %v3166 = vpop.permute.xlu0 %3165
          %3169 = vset.pattern.permute.xlu0 0
          %3170 = vperm.xlu0 %3169, %v3040
          %v3171 = vpop.permute.xlu0 %3170
          %3174 = vset.pattern.permute.xlu0 0
          %3175 = vperm.xlu0 %3174, %v3041
          %v3176 = vpop.permute.xlu0 %3175
          %3179 = vset.pattern.permute.xlu0 0
          %3180 = vperm.xlu0 %3179, %v3042
          %v3181 = vpop.permute.xlu0 %3180
          %3184 = vset.pattern.permute.xlu0 0
          %3185 = vperm.xlu0 %3184, %v3043
          %v3186 = vpop.permute.xlu0 %3185
          %3189 = vset.pattern.permute.xlu0 0
          %3190 = vperm.xlu0 %3189, %v3044
          %v3191 = vpop.permute.xlu0 %3190
          %3194 = vset.pattern.permute.xlu0 0
          %3195 = vperm.xlu0 %3194, %v3045
          %v3196 = vpop.permute.xlu0 %3195
          %3199 = vset.pattern.permute.xlu0 0
          %3200 = vperm.xlu0 %3199, %v3046
          %v3201 = vpop.permute.xlu0 %3200
          %3204 = vset.pattern.permute.xlu0 0
          %3205 = vperm.xlu0 %3204, %v3047
          %v3206 = vpop.permute.xlu0 %3205
          %v3208 = vmul.f32 %v2952, %v3051
          %v3209 = vmul.f32 %v2953, %v3056
          %v3210 = vmul.f32 %v2954, %v3061
          %v3211 = vmul.f32 %v2955, %v3066
          %v3212 = vmul.f32 %v2956, %v3071
          %v3213 = vmul.f32 %v2957, %v3076
          %v3214 = vmul.f32 %v2958, %v3081
          %v3215 = vmul.f32 %v2959, %v3086
          %v3216 = vmul.f32 %v2960, %v3091
          %v3217 = vmul.f32 %v2961, %v3096
          %v3218 = vmul.f32 %v2962, %v3101
          %v3219 = vmul.f32 %v2963, %v3106
          %v3220 = vmul.f32 %v2964, %v3111
          %v3221 = vmul.f32 %v2965, %v3116
          %v3222 = vmul.f32 %v2966, %v3121
          %v3223 = vmul.f32 %v2967, %v3126
          %v3224 = vmul.f32 %v2968, %v3131
          %v3225 = vmul.f32 %v2969, %v3136
          %v3226 = vmul.f32 %v2970, %v3141
          %v3227 = vmul.f32 %v2971, %v3146
          %v3228 = vmul.f32 %v2972, %v3151
          %v3229 = vmul.f32 %v2973, %v3156
          %v3230 = vmul.f32 %v2974, %v3161
          %v3231 = vmul.f32 %v2975, %v3166
          %v3232 = vmul.f32 %v2976, %v3171
          %v3233 = vmul.f32 %v2977, %v3176
          %v3234 = vmul.f32 %v2978, %v3181
          %v3235 = vmul.f32 %v2979, %v3186
          %v3236 = vmul.f32 %v2980, %v3191
          %v3237 = vmul.f32 %v2981, %v3196
          %v3238 = vmul.f32 %v2982, %v3201
          %v3239 = vmul.f32 %v2983, %v3206
          %v3240 = vpack.c.bf16 %v3209, %v3208
          %v3241 = vpack.c.bf16 %v3211, %v3210
          %v3242 = vpack.c.bf16 %v3213, %v3212
          %v3243 = vpack.c.bf16 %v3215, %v3214
          %v3244 = vpack.c.bf16 %v3217, %v3216
          %v3245 = vpack.c.bf16 %v3219, %v3218
          %v3246 = vpack.c.bf16 %v3221, %v3220
          %v3247 = vpack.c.bf16 %v3223, %v3222
          %v3248 = vpack.c.bf16 %v3225, %v3224
          %v3249 = vpack.c.bf16 %v3227, %v3226
          %v3250 = vpack.c.bf16 %v3229, %v3228
          %v3251 = vpack.c.bf16 %v3231, %v3230
          %v3252 = vpack.c.bf16 %v3233, %v3232
          %v3253 = vpack.c.bf16 %v3235, %v3234
          %v3254 = vpack.c.bf16 %v3237, %v3236
          %v3255 = vpack.c.bf16 %v3239, %v3238
          %v3256 = vld [vmem:[%s5] sm:$0xf]
          %v3257 = vld [vmem:[%s5 + $0x4] sm:$0xf]
          %v3258 = vld [vmem:[%s5 + $0x8] sm:$0xf]
          %v3259 = vld [vmem:[%s5 + $0xc] sm:$0xf]
          %v3260 = vld [vmem:[%s5 + $0x10] sm:$0xf]
          %v3261 = vld [vmem:[%s5 + $0x14] sm:$0xf]
          %v3262 = vld [vmem:[%s5 + $0x18] sm:$0xf]
          %v3263 = vld [vmem:[%s5 + $0x1c] sm:$0xf]
          %v3264 = vld [vmem:[%s5 + $0x20] sm:$0xf]
          %v3265 = vld [vmem:[%s5 + $0x24] sm:$0xf]
          %v3266 = vld [vmem:[%s5 + $0x28] sm:$0xf]
          %v3267 = vld [vmem:[%s5 + $0x2c] sm:$0xf]
          %v3268 = vld [vmem:[%s5 + $0x30] sm:$0xf]
          %v3269 = vld [vmem:[%s5 + $0x34] sm:$0xf]
          %v3270 = vld [vmem:[%s5 + $0x38] sm:$0xf]
          %v3271 = vld [vmem:[%s5 + $0x3c] sm:$0xf]
          %v3272 = vld [vmem:[%s6] sm:$0x1]
          %v3274 = vlaneseq
          %v3275 = vshrl.u32 %v3274, 7
          %v3276 = vsub.s32 0, %v3275
          %v3277 = vrot.slane %v3272, %v3276
          %v3295 = vunpack.c.l.b16 %v3256
          %v3296 = vunpack.c.l.b16 %v3257
          %v3297 = vunpack.c.l.b16 %v3258
          %v3298 = vunpack.c.l.b16 %v3259
          %v3299 = vunpack.c.l.b16 %v3260
          %v3300 = vunpack.c.l.b16 %v3261
          %v3301 = vunpack.c.l.b16 %v3262
          %v3302 = vunpack.c.l.b16 %v3263
          %v3303 = vunpack.c.l.b16 %v3264
          %v3304 = vunpack.c.l.b16 %v3265
          %v3305 = vunpack.c.l.b16 %v3266
          %v3306 = vunpack.c.l.b16 %v3267
          %v3307 = vunpack.c.l.b16 %v3268
          %v3308 = vunpack.c.l.b16 %v3269
          %v3309 = vunpack.c.l.b16 %v3270
          %v3310 = vunpack.c.l.b16 %v3271
          %v3311 = vpack.c.b16 %v3296, %v3295
          %v3312 = vpack.c.b16 %v3298, %v3297
          %v3313 = vpack.c.b16 %v3300, %v3299
          %v3314 = vpack.c.b16 %v3302, %v3301
          %v3315 = vpack.c.b16 %v3304, %v3303
          %v3316 = vpack.c.b16 %v3306, %v3305
          %v3317 = vpack.c.b16 %v3308, %v3307
          %v3318 = vpack.c.b16 %v3310, %v3309
          %3327 = vmatprep.subr.bf16.mxu0 0
          %3328 = vmatpush1.bf16.msra.mxu0 %v3311
          %3329 = vmatprep.subr.bf16.mxu0 0
          %3330 = vmatpush1.bf16.msra.mxu0 %v3312
          %3331 = vmatprep.subr.bf16.mxu0 0
          %3332 = vmatpush1.bf16.msra.mxu0 %v3313
          %3333 = vmatprep.subr.bf16.mxu0 0
          %3334 = vmatpush1.bf16.msra.mxu0 %v3314
          %3335 = vmatprep.subr.bf16.mxu0 0
          %3336 = vmatpush1.bf16.msra.mxu0 %v3315
          %3337 = vmatprep.subr.bf16.mxu0 0
          %3338 = vmatpush1.bf16.msra.mxu0 %v3316
          %3339 = vmatprep.subr.bf16.mxu0 0
          %3340 = vmatpush1.bf16.msra.mxu0 %v3317
          %3341 = vmatprep.subr.bf16.mxu0 0
          %3342 = vmatpush1.bf16.msra.mxu0 %v3318
          %3343 = vmatprep.subr.bf16.mxu0 0
          %3344 = vmatpush1.bf16.msra.mxu0 0
          %3345 = vmatprep.subr.bf16.mxu0 0
          %3346 = vmatpush1.bf16.msra.mxu0 0
          %3347 = vmatprep.subr.bf16.mxu0 0
          %3348 = vmatpush1.bf16.msra.mxu0 0
          %3349 = vmatprep.subr.bf16.mxu0 0
          %3350 = vmatpush1.bf16.msra.mxu0 0
          %3351 = vmatprep.subr.bf16.mxu0 0
          %3352 = vmatpush1.bf16.msra.mxu0 0
          %3353 = vmatprep.subr.bf16.mxu0 0
          %3354 = vmatpush1.bf16.msra.mxu0 0
          %3355 = vmatprep.subr.bf16.mxu0 0
          %3356 = vmatpush1.bf16.msra.mxu0 0
          %3357 = vmatprep.subr.bf16.mxu0 0
          %3358 = vmatpush1.bf16.msra.mxu0 0
          %3359 = vmatprep.mubr.bf16.mxu0 0
          %3360 = vmatmul.mubr.bf16.gmra.mrb[0].mxu0 %v3240
          %v3361 = vpop.f32.mrb[0].mxu0
          %v3362 = vadd.f32 %v3277, %v3361
          %v3363 = vpop.f32.mrb[0].mxu0
          %v3364 = vpop.f32.mrb[0].mxu0
          %v3365 = vadd.f32 %v3277, %v3364
          %v3366 = vpop.f32.mrb[0].mxu0
          %3367 = vmatprep.mubr.bf16.mxu0 0
          %3368 = vmatmul.mubr.bf16.gmra.mrb[0].mxu0 %v3241
          %v3369 = vpop.f32.mrb[0].mxu0
          %v3370 = vadd.f32 %v3277, %v3369
          %v3371 = vpop.f32.mrb[0].mxu0
          %v3372 = vpop.f32.mrb[0].mxu0
          %v3373 = vadd.f32 %v3277, %v3372
          %v3374 = vpop.f32.mrb[0].mxu0
          %3375 = vmatprep.mubr.bf16.mxu0 0
          %3376 = vmatmul.mubr.bf16.gmra.mrb[0].mxu0 %v3242
          %v3377 = vpop.f32.mrb[0].mxu0
          %v3378 = vadd.f32 %v3277, %v3377
          %v3379 = vpop.f32.mrb[0].mxu0
          %v3380 = vpop.f32.mrb[0].mxu0
          %v3381 = vadd.f32 %v3277, %v3380
          %v3382 = vpop.f32.mrb[0].mxu0
          %3383 = vmatprep.mubr.bf16.mxu0 0
          %3384 = vmatmul.mubr.bf16.gmra.mrb[0].mxu0 %v3243
          %v3385 = vpop.f32.mrb[0].mxu0
          %v3386 = vadd.f32 %v3277, %v3385
          %v3387 = vpop.f32.mrb[0].mxu0
          %v3388 = vpop.f32.mrb[0].mxu0
          %v3389 = vadd.f32 %v3277, %v3388
          %v3390 = vpop.f32.mrb[0].mxu0
          %3391 = vmatprep.mubr.bf16.mxu0 0
          %3392 = vmatmul.mubr.bf16.gmra.mrb[0].mxu0 %v3244
          %v3393 = vpop.f32.mrb[0].mxu0
          %v3394 = vadd.f32 %v3277, %v3393
          %v3395 = vpop.f32.mrb[0].mxu0
          %v3396 = vpop.f32.mrb[0].mxu0
          %v3397 = vadd.f32 %v3277, %v3396
          %v3398 = vpop.f32.mrb[0].mxu0
          %3399 = vmatprep.mubr.bf16.mxu0 0
          %3400 = vmatmul.mubr.bf16.gmra.mrb[0].mxu0 %v3245
          %v3401 = vpop.f32.mrb[0].mxu0
          %v3402 = vadd.f32 %v3277, %v3401
          %v3403 = vpop.f32.mrb[0].mxu0
          %v3404 = vpop.f32.mrb[0].mxu0
          %v3405 = vadd.f32 %v3277, %v3404
          %v3406 = vpop.f32.mrb[0].mxu0
          %3407 = vmatprep.mubr.bf16.mxu0 0
          %3408 = vmatmul.mubr.bf16.gmra.mrb[0].mxu0 %v3246
          %v3409 = vpop.f32.mrb[0].mxu0
          %v3410 = vadd.f32 %v3277, %v3409
          %v3411 = vpop.f32.mrb[0].mxu0
          %v3412 = vpop.f32.mrb[0].mxu0
          %v3413 = vadd.f32 %v3277, %v3412
          %v3414 = vpop.f32.mrb[0].mxu0
          %3415 = vmatprep.mubr.bf16.mxu0 0
          %3416 = vmatmul.mubr.bf16.gmra.mrb[0].mxu0 %v3247
          %v3417 = vpop.f32.mrb[0].mxu0
          %v3418 = vadd.f32 %v3277, %v3417
          %v3419 = vpop.f32.mrb[0].mxu0
          %v3420 = vpop.f32.mrb[0].mxu0
          %v3421 = vadd.f32 %v3277, %v3420
          %v3422 = vpop.f32.mrb[0].mxu0
          %3423 = vmatprep.mubr.bf16.mxu0 0
          %3424 = vmatmul.mubr.bf16.gmra.mrb[0].mxu0 %v3248
          %v3425 = vpop.f32.mrb[0].mxu0
          %v3426 = vadd.f32 %v3277, %v3425
          %v3427 = vpop.f32.mrb[0].mxu0
          %v3428 = vpop.f32.mrb[0].mxu0
          %v3429 = vadd.f32 %v3277, %v3428
          %v3430 = vpop.f32.mrb[0].mxu0
          %3431 = vmatprep.mubr.bf16.mxu0 0
          %3432 = vmatmul.mubr.bf16.gmra.mrb[0].mxu0 %v3249
          %v3433 = vpop.f32.mrb[0].mxu0
          %v3434 = vadd.f32 %v3277, %v3433
          %v3435 = vpop.f32.mrb[0].mxu0
          %v3436 = vpop.f32.mrb[0].mxu0
          %v3437 = vadd.f32 %v3277, %v3436
          %v3438 = vpop.f32.mrb[0].mxu0
          %3439 = vmatprep.mubr.bf16.mxu0 0
          %3440 = vmatmul.mubr.bf16.gmra.mrb[0].mxu0 %v3250
          %v3441 = vpop.f32.mrb[0].mxu0
          %v3442 = vadd.f32 %v3277, %v3441
          %v3443 = vpop.f32.mrb[0].mxu0
          %v3444 = vpop.f32.mrb[0].mxu0
          %v3445 = vadd.f32 %v3277, %v3444
          %v3446 = vpop.f32.mrb[0].mxu0
          %3447 = vmatprep.mubr.bf16.mxu0 0
          %3448 = vmatmul.mubr.bf16.gmra.mrb[0].mxu0 %v3251
          %v3449 = vpop.f32.mrb[0].mxu0
          %v3450 = vadd.f32 %v3277, %v3449
          %v3451 = vpop.f32.mrb[0].mxu0
          %v3452 = vpop.f32.mrb[0].mxu0
          %v3453 = vadd.f32 %v3277, %v3452
          %v3454 = vpop.f32.mrb[0].mxu0
          %3455 = vmatprep.mubr.bf16.mxu0 0
          %3456 = vmatmul.mubr.bf16.gmra.mrb[0].mxu0 %v3252
          %v3457 = vpop.f32.mrb[0].mxu0
          %v3458 = vadd.f32 %v3277, %v3457
          %v3459 = vpop.f32.mrb[0].mxu0
          %v3460 = vpop.f32.mrb[0].mxu0
          %v3461 = vadd.f32 %v3277, %v3460
          %v3462 = vpop.f32.mrb[0].mxu0
          %3463 = vmatprep.mubr.bf16.mxu0 0
          %3464 = vmatmul.mubr.bf16.gmra.mrb[0].mxu0 %v3253
          %v3465 = vpop.f32.mrb[0].mxu0
          %v3466 = vadd.f32 %v3277, %v3465
          %v3467 = vpop.f32.mrb[0].mxu0
          %v3468 = vpop.f32.mrb[0].mxu0
          %v3469 = vadd.f32 %v3277, %v3468
          %v3470 = vpop.f32.mrb[0].mxu0
          %3471 = vmatprep.mubr.bf16.mxu0 0
          %3472 = vmatmul.mubr.bf16.gmra.mrb[0].mxu0 %v3254
          %v3473 = vpop.f32.mrb[0].mxu0
          %v3474 = vadd.f32 %v3277, %v3473
          %v3475 = vpop.f32.mrb[0].mxu0
          %v3476 = vpop.f32.mrb[0].mxu0
          %v3477 = vadd.f32 %v3277, %v3476
          %v3478 = vpop.f32.mrb[0].mxu0
          %3479 = vmatprep.mubr.bf16.mxu0 0
          %3480 = vmatmul.mubr.bf16.gmra.mrb[0].mxu0 %v3255
          %v3481 = vpop.f32.mrb[0].mxu0
          %v3482 = vadd.f32 %v3277, %v3481
          %v3483 = vpop.f32.mrb[0].mxu0
          %v3484 = vpop.f32.mrb[0].mxu0
          %v3485 = vadd.f32 %v3277, %v3484
          %v3486 = vpop.f32.mrb[0].mxu0
          %3487 = vdwg.mxu0
          %v3488 = vld [vmem:[%s909] sm:$0xff]
          %v3489 = vld [vmem:[%s909 + $0x8] sm:$0xff]
          %v3490 = vld [vmem:[%s909 + $0x10] sm:$0xff]
          %v3491 = vld [vmem:[%s909 + $0x18] sm:$0xff]
          %v3492 = vld [vmem:[%s909 + $0x20] sm:$0xff]
          %v3493 = vld [vmem:[%s909 + $0x28] sm:$0xff]
          %v3494 = vld [vmem:[%s909 + $0x30] sm:$0xff]
          %v3495 = vld [vmem:[%s909 + $0x38] sm:$0xff]
          %v3496 = vld [vmem:[%s909 + $0x40] sm:$0xff]
          %v3497 = vld [vmem:[%s909 + $0x48] sm:$0xff]
          %v3498 = vld [vmem:[%s909 + $0x50] sm:$0xff]
          %v3499 = vld [vmem:[%s909 + $0x58] sm:$0xff]
          %v3500 = vld [vmem:[%s909 + $0x60] sm:$0xff]
          %v3501 = vld [vmem:[%s909 + $0x68] sm:$0xff]
          %v3502 = vld [vmem:[%s909 + $0x70] sm:$0xff]
          %v3503 = vld [vmem:[%s909 + $0x78] sm:$0xff]
          %v3504 = vld [vmem:[%s909 + $0x80] sm:$0xff]
          %v3505 = vld [vmem:[%s909 + $0x88] sm:$0xff]
          %v3506 = vld [vmem:[%s909 + $0x90] sm:$0xff]
          %v3507 = vld [vmem:[%s909 + $0x98] sm:$0xff]
          %v3508 = vld [vmem:[%s909 + $0xa0] sm:$0xff]
          %v3509 = vld [vmem:[%s909 + $0xa8] sm:$0xff]
          %v3510 = vld [vmem:[%s909 + $0xb0] sm:$0xff]
          %v3511 = vld [vmem:[%s909 + $0xb8] sm:$0xff]
          %v3512 = vld [vmem:[%s909 + $0xc0] sm:$0xff]
          %v3513 = vld [vmem:[%s909 + $0xc8] sm:$0xff]
          %v3514 = vld [vmem:[%s909 + $0xd0] sm:$0xff]
          %v3515 = vld [vmem:[%s909 + $0xd8] sm:$0xff]
          %v3516 = vld [vmem:[%s909 + $0xe0] sm:$0xff]
          %v3517 = vld [vmem:[%s909 + $0xe8] sm:$0xff]
          %v3518 = vld [vmem:[%s909 + $0xf0] sm:$0xff]
          %v3519 = vld [vmem:[%s909 + $0xf8] sm:$0xff]
          %v3520 = vadd.f32 %v3362, %v3488
          %v3521 = vadd.f32 %v3365, %v3489
          %v3522 = vadd.f32 %v3370, %v3490
          %v3523 = vadd.f32 %v3373, %v3491
          %v3524 = vadd.f32 %v3378, %v3492
          %v3525 = vadd.f32 %v3381, %v3493
          %v3526 = vadd.f32 %v3386, %v3494
          %v3527 = vadd.f32 %v3389, %v3495
          %v3528 = vadd.f32 %v3394, %v3496
          %v3529 = vadd.f32 %v3397, %v3497
          %v3530 = vadd.f32 %v3402, %v3498
          %v3531 = vadd.f32 %v3405, %v3499
          %v3532 = vadd.f32 %v3410, %v3500
          %v3533 = vadd.f32 %v3413, %v3501
          %v3534 = vadd.f32 %v3418, %v3502
          %v3535 = vadd.f32 %v3421, %v3503
          %v3536 = vadd.f32 %v3426, %v3504
          %v3537 = vadd.f32 %v3429, %v3505
          %v3538 = vadd.f32 %v3434, %v3506
          %v3539 = vadd.f32 %v3437, %v3507
          %v3540 = vadd.f32 %v3442, %v3508
          %v3541 = vadd.f32 %v3445, %v3509
          %v3542 = vadd.f32 %v3450, %v3510
          %v3543 = vadd.f32 %v3453, %v3511
          %v3544 = vadd.f32 %v3458, %v3512
          %v3545 = vadd.f32 %v3461, %v3513
          %v3546 = vadd.f32 %v3466, %v3514
          %v3547 = vadd.f32 %v3469, %v3515
          %v3548 = vadd.f32 %v3474, %v3516
          %v3549 = vadd.f32 %v3477, %v3517
          %v3550 = vadd.f32 %v3482, %v3518
          %v3551 = vadd.f32 %v3485, %v3519
          %3552 = vst [vmem:[%s892] sm:$0xff] %v3520
          %3553 = vst [vmem:[%s892 + $0x8] sm:$0xff] %v3521
          %3554 = vst [vmem:[%s892 + $0x10] sm:$0xff] %v3522
          %3555 = vst [vmem:[%s892 + $0x18] sm:$0xff] %v3523
          %3556 = vst [vmem:[%s892 + $0x20] sm:$0xff] %v3524
          %3557 = vst [vmem:[%s892 + $0x28] sm:$0xff] %v3525
          %3558 = vst [vmem:[%s892 + $0x30] sm:$0xff] %v3526
          %3559 = vst [vmem:[%s892 + $0x38] sm:$0xff] %v3527
          %3560 = vst [vmem:[%s892 + $0x40] sm:$0xff] %v3528
          %3561 = vst [vmem:[%s892 + $0x48] sm:$0xff] %v3529
          %3562 = vst [vmem:[%s892 + $0x50] sm:$0xff] %v3530
          %3563 = vst [vmem:[%s892 + $0x58] sm:$0xff] %v3531
          %3564 = vst [vmem:[%s892 + $0x60] sm:$0xff] %v3532
          %3565 = vst [vmem:[%s892 + $0x68] sm:$0xff] %v3533
          %3566 = vst [vmem:[%s892 + $0x70] sm:$0xff] %v3534
          %3567 = vst [vmem:[%s892 + $0x78] sm:$0xff] %v3535
          %3568 = vst [vmem:[%s892 + $0x80] sm:$0xff] %v3536
          %3569 = vst [vmem:[%s892 + $0x88] sm:$0xff] %v3537
          %3570 = vst [vmem:[%s892 + $0x90] sm:$0xff] %v3538
          %3571 = vst [vmem:[%s892 + $0x98] sm:$0xff] %v3539
          %3572 = vst [vmem:[%s892 + $0xa0] sm:$0xff] %v3540
          %3573 = vst [vmem:[%s892 + $0xa8] sm:$0xff] %v3541
          %3574 = vst [vmem:[%s892 + $0xb0] sm:$0xff] %v3542
          %3575 = vst [vmem:[%s892 + $0xb8] sm:$0xff] %v3543
          %3576 = vst [vmem:[%s892 + $0xc0] sm:$0xff] %v3544
          %3577 = vst [vmem:[%s892 + $0xc8] sm:$0xff] %v3545
          %3578 = vst [vmem:[%s892 + $0xd0] sm:$0xff] %v3546
          %3579 = vst [vmem:[%s892 + $0xd8] sm:$0xff] %v3547
          %3580 = vst [vmem:[%s892 + $0xe0] sm:$0xff] %v3548
          %3581 = vst [vmem:[%s892 + $0xe8] sm:$0xff] %v3549
          %3582 = vst [vmem:[%s892 + $0xf0] sm:$0xff] %v3550
          %3583 = vst [vmem:[%s892 + $0xf8] sm:$0xff] %v3551
        $region179: #{self_attention_block.5} parent=158 // pred_fallthru
          _
        %s3584 = sand.u32 %s230, 1
        %s3585 = scalar_lea.sflag [#allocation8], %s3584
        %s3586 = sand.u32 %s230, 1
        %s3587 = smul.addr %s3586, 256
        %s3588 = scalar_lea.vmem [#allocation7], %s3587
        // Predicated region
        $region180: #{self_attention_block.5} parent=158 // pred_check
          %p3589 = pneg %p240
        $region181: #{self_attention_block.5} parent=158 // pred_check_branch
          %3591 = sbr.rel (%p3589) target = $region183
        $region182: #{self_attention_block.5} parent=158 // pred_region
          %s3592 = smul.u32 32, %s27
          %s3594 = ssub.s32 4096, 4096
          %3595 = vsyncadd %s3585, %s3594
          %s3596 = smul.addr %s26, 32
          %s3597 = sadd.s32 %s3592, %s3596
          %s3598 = smul.addr %s3597, 128
          %s3599 = scalar_lea.hbm %s7, %s3598
          %s3600 = sshll.u32 %s3588, 4
          %s3601 = int_to_ptr.vmem [resolvable:$true] %s3600
          %3606 = dma.vmem_to_hbm [thread:$0]  %s3601, 4096, %s3599, %s3585, 128, 128, 8
        $region183: #{self_attention_block.5} parent=158 // pred_fallthru
          _
      $region159: #{self_attention_block.5} parent=5 // pred_fallthru
        _
      %p3607 = scmp.le.s32.totalorder 2, %s16
      // Predicated region
      $region184: #{self_attention_block.5} parent=5 // pred_check
        %p3608 = pneg %p3607
      $region185: #{self_attention_block.5} parent=5 // pred_check_branch
        %3610 = sbr.rel (%p3608) target = $region187
      $region186: #{self_attention_block.5} parent=5 // pred_region
        %s3611 = ssub.s32 %s16, 2
        // Predicated region
        $region188: #{self_attention_block.5} parent=186 // pred_check
          %p3612 = pneg %p246
        $region189: #{self_attention_block.5} parent=186 // pred_check_branch
          %3614 = sbr.rel (%p3612) target = $region191
        $region190: #{self_attention_block.5} parent=186 // pred_region
          %s3615 = sand.u32 %s231, 1
          %s3616 = scalar_lea.sflag [#allocation8], %s3615
          %s3617 = sand.u32 %s231, 1
          %s3618 = smul.addr %s3617, 256
          %s3619 = scalar_lea.vmem [#allocation7], %s3618
          %3620 = dma.done %s3616, 4096
        $region191: #{self_attention_block.5} parent=186 // pred_fallthru
          _
      $region187: #{self_attention_block.5} parent=5 // pred_fallthru
        _
    $region6: #{self_attention_block.5} parent=1 // loop_footer
      %s20 = sadd.s32 1, %s16
    $region7: #{self_attention_block.5} parent=1 // loop_footer_branch
      %15 = sbr.rel target = $region3
    $region8: #{self_attention_block.5} parent=1 // loop_exit
      _
    %3621 = vsyncpa [#allocation8], 1
    %s3622 = scalar_lea.sflag [#allocation8], 1
    %3623 = vsyncpa %s3622, 1

</llo_original>
